<compile_context>
chip_gen: v7x
topology: tpu7x:2x2x1
jax: 0.10.0
libtpu: 0.0.40
codegen_flags: <defaults>
</compile_context>

<pallas_src>
import functools

import jax
import jax.numpy as jnp
from jax.experimental import pallas as pl
from jax.experimental.pallas import tpu as pltpu


# ----------------------------------------------------------------------------
# Fused Pallas kernel:
#   bilinear-up(x1) -> pad+concat([x2, x1]) -> conv3x3+BN+ReLU -> conv3x3+BN+ReLU
# One grid step processes one batch element; everything stays in VMEM.
# ----------------------------------------------------------------------------
def _up_doubleconv_kernel(x1_ref, x2_ref, mh_ref, mwT_ref,
                          w1_ref, b1_ref, w2_ref, b2_ref,
                          o_ref, xpad_ref, mid_ref,
                          *, H, W, h, w, C1, C2, C_mid, C_out):
    bf16 = jnp.bfloat16
    C_in = C2 + C1
    HW = H * W

    # --- zero only the 1-pixel conv halo ring (interiors are fully rewritten
    #     every step; no full-buffer zero sweep, megacore-safe) ----------------
    def zero_halo(ref, C):
        zr = jnp.zeros((C, 1, W + 2), bf16)
        zc = jnp.zeros((C, H + 2, 1), bf16)
        ref[:, 0:1, :] = zr
        ref[:, H + 1:H + 2, :] = zr
        ref[:, :, 0:1] = zc
        ref[:, :, W + 1:W + 2] = zc

    zero_halo(xpad_ref, C_in)
    zero_halo(mid_ref, C_mid)

    # --- fused bilinear x2 upsample (align_corners=True) + F.pad fold --------
    # width axis: one plain matmul (C1*h, w) @ (w, W)
    t = jnp.dot(x1_ref[...].reshape(C1 * h, w), mwT_ref[...],
                preferred_element_type=jnp.float32).reshape(C1, h, W)
    # height axis: channel-batched matmul (C1, H, h) @ (C1, h, W) -> (C1, H, W)
    mh_b = jnp.broadcast_to(mh_ref[...][None, :, :], (C1, H, h))
    x1_up = jnp.einsum('chk,ckw->chw', mh_b, t,
                       preferred_element_type=jnp.float32)      # (C1, H, W) f32

    # --- stage zero-padded concat([x2, up(x1)]) in VMEM (bf16, no casts on x2)
    xpad_ref[0:C2, 1:H + 1, 1:W + 1] = x2_ref[...]
    xpad_ref[C2:C_in, 1:H + 1, 1:W + 1] = x1_up.astype(bf16)

    def conv3x3_bn_relu(src_ref, w_ref, b_ref, C, Cn):
        # Per-tap accumulation: 9 matmuls (Cn, C) x (C, H*W) into an f32
        # accumulator seeded with the folded-BN bias (kept in f32).
        xp = src_ref[...]                                        # (C, H+2, W+2) bf16
        wm = w_ref[...]                                          # (Cn, 9*C)     bf16
        acc = jnp.broadcast_to(b_ref[...], (Cn, HW))             # (Cn, H*W)     f32
        for dy in range(3):
            for dx in range(3):
                k = dy * 3 + dx
                tap = xp[:, dy:dy + H, dx:dx + W].reshape(C, HW)   # bf16, lane-dense
                wk = wm[:, k * C:(k + 1) * C]                      # (Cn, C)
                acc = acc + jnp.dot(wk, tap,
                                    preferred_element_type=jnp.float32)
        return jnp.maximum(acc, 0.0)                              # ReLU, (Cn, H*W) f32

    # conv1 + BN + ReLU; mid activation staged zero-padded in VMEM only
    a1 = conv3x3_bn_relu(xpad_ref, w1_ref, b1_ref, C_in, C_mid)   # (C_mid, H*W)
    mid_ref[:, 1:H + 1, 1:W + 1] = a1.reshape(C_mid, H, W).astype(bf16)

    # conv2 + BN + ReLU; lane-dense (C_out, H*W) store, no transpose
    a2 = conv3x3_bn_relu(mid_ref, w2_ref, b2_ref, C_mid, C_out)
    o_ref[...] = a2.astype(o_ref.dtype)


def up_double_conv(x1_nchw, x2_nchw, mh, mwT, w1m, b1, w2m, b2, c_mid, c_out):
    """x1_nchw: (N,C1,h,w) coarse map; x2_nchw: (N,C2,H,W) skip connection.
    mh: (H,h) / mwT: (w,W) bilinear(+pad) interpolation matrices (f32).
    w*m: (Cout, 9*Cin) bf16 tap-major folded conv+BN weights; b*: (Cout,1) f32.
    Returns (N, c_out, H, W) bfloat16 (NCHW)."""
    N, C1, h, w = x1_nchw.shape
    _, C2, H, W = x2_nchw.shape
    C_in = C2 + C1
    kernel = functools.partial(_up_doubleconv_kernel, H=H, W=W, h=h, w=w,
                               C1=C1, C2=C2, C_mid=c_mid, C_out=c_out)
    out_flat = pl.pallas_call(
        kernel,
        out_shape=jax.ShapeDtypeStruct((N, c_out, H * W), jnp.bfloat16),
        grid=(N,),
        in_specs=[
            pl.BlockSpec((None, C1, h, w), lambda n: (n, 0, 0, 0)),   # x1 coarse (f32)
            pl.BlockSpec((None, C2, H, W), lambda n: (n, 0, 0, 0)),   # x2 skip (bf16)
            pl.BlockSpec((H, h), lambda n: (0, 0)),                   # row interp matrix
            pl.BlockSpec((w, W), lambda n: (0, 0)),                   # col interp matrix^T
            pl.BlockSpec((c_mid, 9 * C_in), lambda n: (0, 0)),        # conv1 folded weights
            pl.BlockSpec((c_mid, 1), lambda n: (0, 0)),               # conv1 folded bias f32
            pl.BlockSpec((c_out, 9 * c_mid), lambda n: (0, 0)),       # conv2 folded weights
            pl.BlockSpec((c_out, 1), lambda n: (0, 0)),               # conv2 folded bias f32
        ],
        out_specs=pl.BlockSpec((None, c_out, H * W), lambda n: (n, 0, 0)),
        scratch_shapes=[
            pltpu.VMEM((C_in, H + 2, W + 2), jnp.bfloat16),    # padded concat input
            pltpu.VMEM((c_mid, H + 2, W + 2), jnp.bfloat16),   # padded mid activation
        ],
        compiler_params=pltpu.CompilerParams(
            dimension_semantics=("parallel",)),
    )(x1_nchw.astype(jnp.float32), x2_nchw.astype(jnp.bfloat16),
      mh, mwT, w1m, b1, w2m, b2)
    # TODO(synk): for realistic UNet resolutions, add a row-tiled grid axis with
    # a 2-row halo (and/or block several batch images per step) so the per-step
    # matmul M and the f32 live intermediates stay within vreg/VMEM budgets,
    # and DMA x2 straight into xpad's interior (pl.ANY + make_async_copy) to
    # drop the remaining VMEM->VMEM staging copy.
    return out_flat.reshape(N, c_out, H, W)


# ----------------------------------------------------------------------------
# Small XLA glue: upsample matrices (pad folded in) and BN folding.
# ----------------------------------------------------------------------------
def _interp_matrix(n_in, n_out):
    """Bilinear (align_corners=True) interpolation matrix M: out = M @ in."""
    if n_in == 1:
        return jnp.ones((n_out, 1), jnp.float32)
    src = jnp.arange(n_out, dtype=jnp.float32) * (n_in - 1) / (n_out - 1)
    lo = jnp.clip(jnp.floor(src).astype(jnp.int32), 0, n_in - 1)
    hi = jnp.clip(lo + 1, 0, n_in - 1)
    frac = src - lo.astype(jnp.float32)
    return ((1.0 - frac)[:, None] * jax.nn.one_hot(lo, n_in, dtype=jnp.float32)
            + frac[:, None] * jax.nn.one_hot(hi, n_in, dtype=jnp.float32))


def _upsample_pad_matrix(n_in, n_target):
    """x2 bilinear upsample with F.pad-to-target (PyTorch split) folded in."""
    n_up = 2 * n_in
    m = _interp_matrix(n_in, n_up)
    diff = n_target - n_up
    return jnp.pad(m, ((diff // 2, diff - diff // 2), (0, 0)))


def fold_bn_into_tap_weights(w_oihw, gamma, beta, mean, var, eps=1e-5):
    """Fold eval-mode BN into the bias-free 3x3 conv. Returns the (Cout, 9*Cin)
    bf16 tap-major weight matrix (columns ordered (dy, dx, cin)) and the
    (Cout, 1) float32 folded bias."""
    scale = gamma / jnp.sqrt(var + eps)                       # (Cout,)
    w_scaled = w_oihw * scale[:, None, None, None]            # (Cout,Cin,3,3)
    bias = (beta - mean * scale).reshape(-1, 1).astype(jnp.float32)
    c_out = w_oihw.shape[0]
    w_taps = jnp.transpose(w_scaled, (0, 2, 3, 1)).reshape(c_out, -1)
    return w_taps.astype(jnp.bfloat16), bias


# ----------------------------------------------------------------------------
# Up module (bilinear=True path of the U-Net Up block)
# ----------------------------------------------------------------------------
class UpPallas:
    def __init__(self, in_channels, out_channels, key):
        mid_channels = in_channels // 2
        self.mid_channels = mid_channels
        self.out_channels = out_channels
        k1, k2, k3, k4 = jax.random.split(key, 4)
        # Conv weights (PyTorch OIHW layout), deterministic init.
        self.w1 = 0.1 * jax.random.normal(
            k1, (mid_channels, in_channels, 3, 3), jnp.float32)
        self.w2 = 0.1 * jax.random.normal(
            k2, (out_channels, mid_channels, 3, 3), jnp.float32)
        # BatchNorm params / running stats (eval mode), deterministic non-trivial.
        self.g1 = 1.0 + 0.05 * jax.random.normal(k3, (mid_channels,), jnp.float32)
        self.b1 = 0.01 * jnp.arange(mid_channels, dtype=jnp.float32)
        self.m1 = 0.02 * jnp.arange(mid_channels, dtype=jnp.float32)
        self.v1 = 1.0 + 0.1 * jnp.arange(mid_channels, dtype=jnp.float32)
        self.g2 = 1.0 + 0.05 * jax.random.normal(k4, (out_channels,), jnp.float32)
        self.b2 = 0.01 * jnp.arange(out_channels, dtype=jnp.float32)
        self.m2 = 0.02 * jnp.arange(out_channels, dtype=jnp.float32)
        self.v2 = 1.0 + 0.1 * jnp.arange(out_channels, dtype=jnp.float32)

    def __call__(self, x1, x2):
        # x1: (N, C1, h, w) coarse map; x2: (N, C2, H, W) skip connection (NCHW).
        _, _, h, w = x1.shape
        _, _, H, W = x2.shape
        # Interpolation matrices (F.pad-to-x2-size folded in); applied inside
        # the kernel, so the upsampled map never touches HBM.
        mh = _upsample_pad_matrix(h, H)                        # (H, h)
        mwT = _upsample_pad_matrix(w, W).T                     # (w, W)
        w1m, bias1 = fold_bn_into_tap_weights(self.w1, self.g1, self.b1,
                                              self.m1, self.v1)
        w2m, bias2 = fold_bn_into_tap_weights(self.w2, self.g2, self.b2,
                                              self.m2, self.v2)
        return up_double_conv(x1, x2, mh, mwT, w1m, bias1, w2m, bias2,
                              self.mid_channels, self.out_channels)


if __name__ == "__main__":
    key = jax.random.PRNGKey(0)
    k_x1, k_x2, k_p = jax.random.split(key, 3)

    in_channels, out_channels = 8, 4
    N, h, H = 2, 8, 16            # x1 is half the spatial size of x2
    # x1: coarse feature map (in_channels // 2 channels), x2: skip connection.
    x1 = jax.random.normal(k_x1, (N, in_channels // 2, h, h), jnp.float32)
    x2 = jax.random.normal(k_x2, (N, in_channels // 2, H, H), jnp.float32)

    up = UpPallas(in_channels, out_channels, k_p)
    out = jax.block_until_ready(up(x1, x2))
    assert out.shape == (N, out_channels, H, H), out.shape
    assert bool(jnp.all(jnp.isfinite(out.astype(jnp.float32))))
    print("KERNEL_OK")
</pallas_src>

<mosaic_0001>
module attributes {stable_mosaic.version = 11 : i64} {
  func.func @_up_doubleconv_kernel(%arg0: i32, %arg1: memref<1x4x8x8xf32, #tpu.memory_space<vmem>>, %arg2: memref<1x4x16x16xbf16, #tpu.memory_space<vmem>>, %arg3: memref<16x8xf32, #tpu.memory_space<vmem>>, %arg4: memref<8x16xf32, #tpu.memory_space<vmem>>, %arg5: memref<4x72xbf16, #tpu.memory_space<vmem>>, %arg6: memref<4x1xf32, #tpu.memory_space<vmem>>, %arg7: memref<4x36xbf16, #tpu.memory_space<vmem>>, %arg8: memref<4x1xf32, #tpu.memory_space<vmem>>, %arg9: memref<1x4x256xbf16, #tpu.memory_space<vmem>>, %arg10: memref<8x18x18xbf16, #tpu.memory_space<vmem>>, %arg11: memref<4x18x18xbf16, #tpu.memory_space<vmem>>) attributes {dimension_semantics = [#tpu.dimension_semantics<parallel>], iteration_bounds = array<i64: 2>, scalar_prefetch = 0 : i64, scratch_operands = 2 : i64, tpu.core_type = #tpu.core_type<tc>, window_params = [{transform_indices = @transform_0, window_bounds = array<i64: 1, 4, 8, 8>}, {transform_indices = @transform_1, window_bounds = array<i64: 1, 4, 16, 16>}, {pipeline_mode = #tpu.pipeline_mode<synchronous>, transform_indices = @transform_2, window_bounds = array<i64: 16, 8>}, {pipeline_mode = #tpu.pipeline_mode<synchronous>, transform_indices = @transform_3, window_bounds = array<i64: 8, 16>}, {pipeline_mode = #tpu.pipeline_mode<synchronous>, transform_indices = @transform_4, window_bounds = array<i64: 4, 72>}, {pipeline_mode = #tpu.pipeline_mode<synchronous>, transform_indices = @transform_5, window_bounds = array<i64: 4, 1>}, {pipeline_mode = #tpu.pipeline_mode<synchronous>, transform_indices = @transform_6, window_bounds = array<i64: 4, 36>}, {pipeline_mode = #tpu.pipeline_mode<synchronous>, transform_indices = @transform_7, window_bounds = array<i64: 4, 1>}, {transform_indices = @transform_8, window_bounds = array<i64: 1, 4, 256>}]} {
    %cst = arith.constant 0.000000e+00 : bf16
    %0 = vector.broadcast %cst : bf16 to vector<8x1x18xbf16>
    %cst_0 = arith.constant 0.000000e+00 : bf16
    %1 = vector.broadcast %cst_0 : bf16 to vector<8x18x1xbf16>
    %c0 = arith.constant 0 : index
    %c0_1 = arith.constant 0 : index
    %c0_2 = arith.constant 0 : index
    %2 = vector.load %arg10[%c0, %c0_1, %c0_2] : memref<8x18x18xbf16, #tpu.memory_space<vmem>>, vector<8x1x18xbf16>
    tpu.vector_store %arg10[%c0, %c0_1, %c0_2], %0 {strides = array<i32>} : memref<8x18x18xbf16, #tpu.memory_space<vmem>>, vector<8x1x18xbf16>,
    %c0_3 = arith.constant 0 : index
    %c17 = arith.constant 17 : index
    %c0_4 = arith.constant 0 : index
    %3 = vector.load %arg10[%c0_3, %c17, %c0_4] : memref<8x18x18xbf16, #tpu.memory_space<vmem>>, vector<8x1x18xbf16>
    tpu.vector_store %arg10[%c0_3, %c17, %c0_4], %0 {strides = array<i32>} : memref<8x18x18xbf16, #tpu.memory_space<vmem>>, vector<8x1x18xbf16>,
    %c0_5 = arith.constant 0 : index
    %c0_6 = arith.constant 0 : index
    %c0_7 = arith.constant 0 : index
    %4 = vector.load %arg10[%c0_5, %c0_6, %c0_7] : memref<8x18x18xbf16, #tpu.memory_space<vmem>>, vector<8x18x1xbf16>
    tpu.vector_store %arg10[%c0_5, %c0_6, %c0_7], %1 {strides = array<i32>} : memref<8x18x18xbf16, #tpu.memory_space<vmem>>, vector<8x18x1xbf16>,
    %c0_8 = arith.constant 0 : index
    %c0_9 = arith.constant 0 : index
    %c17_10 = arith.constant 17 : index
    %5 = vector.load %arg10[%c0_8, %c0_9, %c17_10] : memref<8x18x18xbf16, #tpu.memory_space<vmem>>, vector<8x18x1xbf16>
    tpu.vector_store %arg10[%c0_8, %c0_9, %c17_10], %1 {strides = array<i32>} : memref<8x18x18xbf16, #tpu.memory_space<vmem>>, vector<8x18x1xbf16>,
    %cst_11 = arith.constant 0.000000e+00 : bf16
    %6 = vector.broadcast %cst_11 : bf16 to vector<4x1x18xbf16>
    %cst_12 = arith.constant 0.000000e+00 : bf16
    %7 = vector.broadcast %cst_12 : bf16 to vector<4x18x1xbf16>
    %c0_13 = arith.constant 0 : index
    %c0_14 = arith.constant 0 : index
    %c0_15 = arith.constant 0 : index
    %8 = vector.load %arg11[%c0_13, %c0_14, %c0_15] : memref<4x18x18xbf16, #tpu.memory_space<vmem>>, vector<4x1x18xbf16>
    tpu.vector_store %arg11[%c0_13, %c0_14, %c0_15], %6 {strides = array<i32>} : memref<4x18x18xbf16, #tpu.memory_space<vmem>>, vector<4x1x18xbf16>,
    %c0_16 = arith.constant 0 : index
    %c17_17 = arith.constant 17 : index
    %c0_18 = arith.constant 0 : index
    %9 = vector.load %arg11[%c0_16, %c17_17, %c0_18] : memref<4x18x18xbf16, #tpu.memory_space<vmem>>, vector<4x1x18xbf16>
    tpu.vector_store %arg11[%c0_16, %c17_17, %c0_18], %6 {strides = array<i32>} : memref<4x18x18xbf16, #tpu.memory_space<vmem>>, vector<4x1x18xbf16>,
    %c0_19 = arith.constant 0 : index
    %c0_20 = arith.constant 0 : index
    %c0_21 = arith.constant 0 : index
    %10 = vector.load %arg11[%c0_19, %c0_20, %c0_21] : memref<4x18x18xbf16, #tpu.memory_space<vmem>>, vector<4x18x1xbf16>
    tpu.vector_store %arg11[%c0_19, %c0_20, %c0_21], %7 {strides = array<i32>} : memref<4x18x18xbf16, #tpu.memory_space<vmem>>, vector<4x18x1xbf16>,
    %c0_22 = arith.constant 0 : index
    %c0_23 = arith.constant 0 : index
    %c17_24 = arith.constant 17 : index
    %11 = vector.load %arg11[%c0_22, %c0_23, %c17_24] : memref<4x18x18xbf16, #tpu.memory_space<vmem>>, vector<4x18x1xbf16>
    tpu.vector_store %arg11[%c0_22, %c0_23, %c17_24], %7 {strides = array<i32>} : memref<4x18x18xbf16, #tpu.memory_space<vmem>>, vector<4x18x1xbf16>,
    %c0_25 = arith.constant 0 : index
    %c0_26 = arith.constant 0 : index
    %c0_27 = arith.constant 0 : index
    %c0_28 = arith.constant 0 : index
    %12 = vector.load %arg1[%c0_25, %c0_26, %c0_27, %c0_28] : memref<1x4x8x8xf32, #tpu.memory_space<vmem>>, vector<1x4x8x8xf32>
    %13 = vector.shape_cast %12 : vector<1x4x8x8xf32> to vector<4x8x8xf32>
    %14 = vector.shape_cast %13 : vector<4x8x8xf32> to vector<32x8xf32>
    %c0_29 = arith.constant 0 : index
    %c0_30 = arith.constant 0 : index
    %15 = vector.load %arg4[%c0_29, %c0_30] : memref<8x16xf32, #tpu.memory_space<vmem>>, vector<8x16xf32>
    %cst_31 = arith.constant dense<0.000000e+00> : vector<32x16xf32>
    %16 = tpu.matmul %14, %15, %cst_31 {dimension_numbers = #tpu.dot_dimension_numbers<[1], [0], [0], [1], [0, 0, 1, 1], [], []>} : vector<32x8xf32>, vector<8x16xf32>, vector<32x16xf32> -> vector<32x16xf32>
    %17 = vector.shape_cast %16 : vector<32x16xf32> to vector<4x8x16xf32>
    %c0_32 = arith.constant 0 : index
    %c0_33 = arith.constant 0 : index
    %18 = vector.load %arg3[%c0_32, %c0_33] : memref<16x8xf32, #tpu.memory_space<vmem>>, vector<16x8xf32>
    %19 = vector.shape_cast %18 : vector<16x8xf32> to vector<1x16x8xf32>
    %20 = vector.shape_cast %19 : vector<1x16x8xf32> to vector<1x16x8xf32>
    %21 = vector.broadcast %20 : vector<1x16x8xf32> to vector<4x16x8xf32>
    "tpu.trace_start"() <{level = 10 : i32, message = "chk,ckw->chw"}> : () -> ()
    %cst_34 = arith.constant dense<0.000000e+00> : vector<4x16x16xf32>
    %22 = tpu.matmul %21, %17, %cst_34 {dimension_numbers = #tpu.dot_dimension_numbers<[2], [1], [1], [2], [0, 0, 0, 1, 1, 2], [0], [0]>} : vector<4x16x8xf32>, vector<4x8x16xf32>, vector<4x16x16xf32> -> vector<4x16x16xf32>
    "tpu.trace_stop"() : () -> ()
    %c0_35 = arith.constant 0 : index
    %c0_36 = arith.constant 0 : index
    %c0_37 = arith.constant 0 : index
    %c0_38 = arith.constant 0 : index
    %23 = vector.load %arg2[%c0_35, %c0_36, %c0_37, %c0_38] : memref<1x4x16x16xbf16, #tpu.memory_space<vmem>>, vector<1x4x16x16xbf16>
    %24 = vector.shape_cast %23 : vector<1x4x16x16xbf16> to vector<4x16x16xbf16>
    %c0_39 = arith.constant 0 : index
    %c1 = arith.constant 1 : index
    %c1_40 = arith.constant 1 : index
    %25 = vector.load %arg10[%c0_39, %c1, %c1_40] : memref<8x18x18xbf16, #tpu.memory_space<vmem>>, vector<4x16x16xbf16>
    tpu.vector_store %arg10[%c0_39, %c1, %c1_40], %24 {strides = array<i32>} : memref<8x18x18xbf16, #tpu.memory_space<vmem>>, vector<4x16x16xbf16>,
    %26 = arith.truncf %22 : vector<4x16x16xf32> to vector<4x16x16xbf16>
    %c4 = arith.constant 4 : index
    %c1_41 = arith.constant 1 : index
    %c1_42 = arith.constant 1 : index
    %27 = vector.load %arg10[%c4, %c1_41, %c1_42] : memref<8x18x18xbf16, #tpu.memory_space<vmem>>, vector<4x16x16xbf16>
    tpu.vector_store %arg10[%c4, %c1_41, %c1_42], %26 {strides = array<i32>} : memref<8x18x18xbf16, #tpu.memory_space<vmem>>, vector<4x16x16xbf16>,
    %c0_43 = arith.constant 0 : index
    %c0_44 = arith.constant 0 : index
    %c0_45 = arith.constant 0 : index
    %28 = vector.load %arg10[%c0_43, %c0_44, %c0_45] : memref<8x18x18xbf16, #tpu.memory_space<vmem>>, vector<8x18x18xbf16>
    %c0_46 = arith.constant 0 : index
    %c0_47 = arith.constant 0 : index
    %29 = vector.load %arg5[%c0_46, %c0_47] : memref<4x72xbf16, #tpu.memory_space<vmem>>, vector<4x72xbf16>
    %c0_48 = arith.constant 0 : index
    %c0_49 = arith.constant 0 : index
    %30 = vector.load %arg6[%c0_48, %c0_49] : memref<4x1xf32, #tpu.memory_space<vmem>>, vector<4x1xf32>
    %31 = vector.shape_cast %30 : vector<4x1xf32> to vector<4x1xf32>
    %32 = vector.broadcast %31 : vector<4x1xf32> to vector<4x256xf32>
    %33 = vector.extract_strided_slice %28 {offsets = [0, 0, 0], sizes = [8, 16, 16], strides = [1, 1, 1]} : vector<8x18x18xbf16> to vector<8x16x16xbf16>
    %34 = vector.shape_cast %33 : vector<8x16x16xbf16> to vector<8x256xbf16>
    %35 = vector.extract_strided_slice %29 {offsets = [0, 0], sizes = [4, 8], strides = [1, 1]} : vector<4x72xbf16> to vector<4x8xbf16>
    %cst_50 = arith.constant dense<0.000000e+00> : vector<4x256xf32>
    %36 = tpu.matmul %35, %34, %cst_50 {dimension_numbers = #tpu.dot_dimension_numbers<[1], [0], [0], [1], [0, 0, 1, 1], [], []>} : vector<4x8xbf16>, vector<8x256xbf16>, vector<4x256xf32> -> vector<4x256xf32>
    %37 = arith.addf %32, %36 : vector<4x256xf32>
    %38 = vector.extract_strided_slice %28 {offsets = [0, 0, 1], sizes = [8, 16, 16], strides = [1, 1, 1]} : vector<8x18x18xbf16> to vector<8x16x16xbf16>
    %39 = vector.shape_cast %38 : vector<8x16x16xbf16> to vector<8x256xbf16>
    %40 = vector.extract_strided_slice %29 {offsets = [0, 8], sizes = [4, 8], strides = [1, 1]} : vector<4x72xbf16> to vector<4x8xbf16>
    %cst_51 = arith.constant dense<0.000000e+00> : vector<4x256xf32>
    %41 = tpu.matmul %40, %39, %cst_51 {dimension_numbers = #tpu.dot_dimension_numbers<[1], [0], [0], [1], [0, 0, 1, 1], [], []>} : vector<4x8xbf16>, vector<8x256xbf16>, vector<4x256xf32> -> vector<4x256xf32>
    %42 = arith.addf %37, %41 : vector<4x256xf32>
    %43 = vector.extract_strided_slice %28 {offsets = [0, 0, 2], sizes = [8, 16, 16], strides = [1, 1, 1]} : vector<8x18x18xbf16> to vector<8x16x16xbf16>
    %44 = vector.shape_cast %43 : vector<8x16x16xbf16> to vector<8x256xbf16>
    %45 = vector.extract_strided_slice %29 {offsets = [0, 16], sizes = [4, 8], strides = [1, 1]} : vector<4x72xbf16> to vector<4x8xbf16>
    %cst_52 = arith.constant dense<0.000000e+00> : vector<4x256xf32>
    %46 = tpu.matmul %45, %44, %cst_52 {dimension_numbers = #tpu.dot_dimension_numbers<[1], [0], [0], [1], [0, 0, 1, 1], [], []>} : vector<4x8xbf16>, vector<8x256xbf16>, vector<4x256xf32> -> vector<4x256xf32>
    %47 = arith.addf %42, %46 : vector<4x256xf32>
    %48 = vector.extract_strided_slice %28 {offsets = [0, 1, 0], sizes = [8, 16, 16], strides = [1, 1, 1]} : vector<8x18x18xbf16> to vector<8x16x16xbf16>
    %49 = vector.shape_cast %48 : vector<8x16x16xbf16> to vector<8x256xbf16>
    %50 = vector.extract_strided_slice %29 {offsets = [0, 24], sizes = [4, 8], strides = [1, 1]} : vector<4x72xbf16> to vector<4x8xbf16>
    %cst_53 = arith.constant dense<0.000000e+00> : vector<4x256xf32>
    %51 = tpu.matmul %50, %49, %cst_53 {dimension_numbers = #tpu.dot_dimension_numbers<[1], [0], [0], [1], [0, 0, 1, 1], [], []>} : vector<4x8xbf16>, vector<8x256xbf16>, vector<4x256xf32> -> vector<4x256xf32>
    %52 = arith.addf %47, %51 : vector<4x256xf32>
    %53 = vector.extract_strided_slice %28 {offsets = [0, 1, 1], sizes = [8, 16, 16], strides = [1, 1, 1]} : vector<8x18x18xbf16> to vector<8x16x16xbf16>
    %54 = vector.shape_cast %53 : vector<8x16x16xbf16> to vector<8x256xbf16>
    %55 = vector.extract_strided_slice %29 {offsets = [0, 32], sizes = [4, 8], strides = [1, 1]} : vector<4x72xbf16> to vector<4x8xbf16>
    %cst_54 = arith.constant dense<0.000000e+00> : vector<4x256xf32>
    %56 = tpu.matmul %55, %54, %cst_54 {dimension_numbers = #tpu.dot_dimension_numbers<[1], [0], [0], [1], [0, 0, 1, 1], [], []>} : vector<4x8xbf16>, vector<8x256xbf16>, vector<4x256xf32> -> vector<4x256xf32>
    %57 = arith.addf %52, %56 : vector<4x256xf32>
    %58 = vector.extract_strided_slice %28 {offsets = [0, 1, 2], sizes = [8, 16, 16], strides = [1, 1, 1]} : vector<8x18x18xbf16> to vector<8x16x16xbf16>
    %59 = vector.shape_cast %58 : vector<8x16x16xbf16> to vector<8x256xbf16>
    %60 = vector.extract_strided_slice %29 {offsets = [0, 40], sizes = [4, 8], strides = [1, 1]} : vector<4x72xbf16> to vector<4x8xbf16>
    %cst_55 = arith.constant dense<0.000000e+00> : vector<4x256xf32>
    %61 = tpu.matmul %60, %59, %cst_55 {dimension_numbers = #tpu.dot_dimension_numbers<[1], [0], [0], [1], [0, 0, 1, 1], [], []>} : vector<4x8xbf16>, vector<8x256xbf16>, vector<4x256xf32> -> vector<4x256xf32>
    %62 = arith.addf %57, %61 : vector<4x256xf32>
    %63 = vector.extract_strided_slice %28 {offsets = [0, 2, 0], sizes = [8, 16, 16], strides = [1, 1, 1]} : vector<8x18x18xbf16> to vector<8x16x16xbf16>
    %64 = vector.shape_cast %63 : vector<8x16x16xbf16> to vector<8x256xbf16>
    %65 = vector.extract_strided_slice %29 {offsets = [0, 48], sizes = [4, 8], strides = [1, 1]} : vector<4x72xbf16> to vector<4x8xbf16>
    %cst_56 = arith.constant dense<0.000000e+00> : vector<4x256xf32>
    %66 = tpu.matmul %65, %64, %cst_56 {dimension_numbers = #tpu.dot_dimension_numbers<[1], [0], [0], [1], [0, 0, 1, 1], [], []>} : vector<4x8xbf16>, vector<8x256xbf16>, vector<4x256xf32> -> vector<4x256xf32>
    %67 = arith.addf %62, %66 : vector<4x256xf32>
    %68 = vector.extract_strided_slice %28 {offsets = [0, 2, 1], sizes = [8, 16, 16], strides = [1, 1, 1]} : vector<8x18x18xbf16> to vector<8x16x16xbf16>
    %69 = vector.shape_cast %68 : vector<8x16x16xbf16> to vector<8x256xbf16>
    %70 = vector.extract_strided_slice %29 {offsets = [0, 56], sizes = [4, 8], strides = [1, 1]} : vector<4x72xbf16> to vector<4x8xbf16>
    %cst_57 = arith.constant dense<0.000000e+00> : vector<4x256xf32>
    %71 = tpu.matmul %70, %69, %cst_57 {dimension_numbers = #tpu.dot_dimension_numbers<[1], [0], [0], [1], [0, 0, 1, 1], [], []>} : vector<4x8xbf16>, vector<8x256xbf16>, vector<4x256xf32> -> vector<4x256xf32>
    %72 = arith.addf %67, %71 : vector<4x256xf32>
    %73 = vector.extract_strided_slice %28 {offsets = [0, 2, 2], sizes = [8, 16, 16], strides = [1, 1, 1]} : vector<8x18x18xbf16> to vector<8x16x16xbf16>
    %74 = vector.shape_cast %73 : vector<8x16x16xbf16> to vector<8x256xbf16>
    %75 = vector.extract_strided_slice %29 {offsets = [0, 64], sizes = [4, 8], strides = [1, 1]} : vector<4x72xbf16> to vector<4x8xbf16>
    %cst_58 = arith.constant dense<0.000000e+00> : vector<4x256xf32>
    %76 = tpu.matmul %75, %74, %cst_58 {dimension_numbers = #tpu.dot_dimension_numbers<[1], [0], [0], [1], [0, 0, 1, 1], [], []>} : vector<4x8xbf16>, vector<8x256xbf16>, vector<4x256xf32> -> vector<4x256xf32>
    %77 = arith.addf %72, %76 : vector<4x256xf32>
    %cst_59 = arith.constant 0.000000e+00 : f32
    %78 = vector.broadcast %cst_59 : f32 to vector<4x256xf32>
    %79 = arith.maximumf %77, %78 : vector<4x256xf32>
    %80 = vector.shape_cast %79 : vector<4x256xf32> to vector<4x16x16xf32>
    %81 = arith.truncf %80 : vector<4x16x16xf32> to vector<4x16x16xbf16>
    %c0_60 = arith.constant 0 : index
    %c1_61 = arith.constant 1 : index
    %c1_62 = arith.constant 1 : index
    %82 = vector.load %arg11[%c0_60, %c1_61, %c1_62] : memref<4x18x18xbf16, #tpu.memory_space<vmem>>, vector<4x16x16xbf16>
    tpu.vector_store %arg11[%c0_60, %c1_61, %c1_62], %81 {strides = array<i32>} : memref<4x18x18xbf16, #tpu.memory_space<vmem>>, vector<4x16x16xbf16>,
    %c0_63 = arith.constant 0 : index
    %c0_64 = arith.constant 0 : index
    %c0_65 = arith.constant 0 : index
    %83 = vector.load %arg11[%c0_63, %c0_64, %c0_65] : memref<4x18x18xbf16, #tpu.memory_space<vmem>>, vector<4x18x18xbf16>
    %c0_66 = arith.constant 0 : index
    %c0_67 = arith.constant 0 : index
    %84 = vector.load %arg7[%c0_66, %c0_67] : memref<4x36xbf16, #tpu.memory_space<vmem>>, vector<4x36xbf16>
    %c0_68 = arith.constant 0 : index
    %c0_69 = arith.constant 0 : index
    %85 = vector.load %arg8[%c0_68, %c0_69] : memref<4x1xf32, #tpu.memory_space<vmem>>, vector<4x1xf32>
    %86 = vector.shape_cast %85 : vector<4x1xf32> to vector<4x1xf32>
    %87 = vector.broadcast %86 : vector<4x1xf32> to vector<4x256xf32>
    %88 = vector.extract_strided_slice %83 {offsets = [0, 0, 0], sizes = [4, 16, 16], strides = [1, 1, 1]} : vector<4x18x18xbf16> to vector<4x16x16xbf16>
    %89 = vector.shape_cast %88 : vector<4x16x16xbf16> to vector<4x256xbf16>
    %90 = vector.extract_strided_slice %84 {offsets = [0, 0], sizes = [4, 4], strides = [1, 1]} : vector<4x36xbf16> to vector<4x4xbf16>
    %cst_70 = arith.constant dense<0.000000e+00> : vector<4x256xf32>
    %91 = tpu.matmul %90, %89, %cst_70 {dimension_numbers = #tpu.dot_dimension_numbers<[1], [0], [0], [1], [0, 0, 1, 1], [], []>} : vector<4x4xbf16>, vector<4x256xbf16>, vector<4x256xf32> -> vector<4x256xf32>
    %92 = arith.addf %87, %91 : vector<4x256xf32>
    %93 = vector.extract_strided_slice %83 {offsets = [0, 0, 1], sizes = [4, 16, 16], strides = [1, 1, 1]} : vector<4x18x18xbf16> to vector<4x16x16xbf16>
    %94 = vector.shape_cast %93 : vector<4x16x16xbf16> to vector<4x256xbf16>
    %95 = vector.extract_strided_slice %84 {offsets = [0, 4], sizes = [4, 4], strides = [1, 1]} : vector<4x36xbf16> to vector<4x4xbf16>
    %cst_71 = arith.constant dense<0.000000e+00> : vector<4x256xf32>
    %96 = tpu.matmul %95, %94, %cst_71 {dimension_numbers = #tpu.dot_dimension_numbers<[1], [0], [0], [1], [0, 0, 1, 1], [], []>} : vector<4x4xbf16>, vector<4x256xbf16>, vector<4x256xf32> -> vector<4x256xf32>
    %97 = arith.addf %92, %96 : vector<4x256xf32>
    %98 = vector.extract_strided_slice %83 {offsets = [0, 0, 2], sizes = [4, 16, 16], strides = [1, 1, 1]} : vector<4x18x18xbf16> to vector<4x16x16xbf16>
    %99 = vector.shape_cast %98 : vector<4x16x16xbf16> to vector<4x256xbf16>
    %100 = vector.extract_strided_slice %84 {offsets = [0, 8], sizes = [4, 4], strides = [1, 1]} : vector<4x36xbf16> to vector<4x4xbf16>
    %cst_72 = arith.constant dense<0.000000e+00> : vector<4x256xf32>
    %101 = tpu.matmul %100, %99, %cst_72 {dimension_numbers = #tpu.dot_dimension_numbers<[1], [0], [0], [1], [0, 0, 1, 1], [], []>} : vector<4x4xbf16>, vector<4x256xbf16>, vector<4x256xf32> -> vector<4x256xf32>
    %102 = arith.addf %97, %101 : vector<4x256xf32>
    %103 = vector.extract_strided_slice %83 {offsets = [0, 1, 0], sizes = [4, 16, 16], strides = [1, 1, 1]} : vector<4x18x18xbf16> to vector<4x16x16xbf16>
    %104 = vector.shape_cast %103 : vector<4x16x16xbf16> to vector<4x256xbf16>
    %105 = vector.extract_strided_slice %84 {offsets = [0, 12], sizes = [4, 4], strides = [1, 1]} : vector<4x36xbf16> to vector<4x4xbf16>
    %cst_73 = arith.constant dense<0.000000e+00> : vector<4x256xf32>
    %106 = tpu.matmul %105, %104, %cst_73 {dimension_numbers = #tpu.dot_dimension_numbers<[1], [0], [0], [1], [0, 0, 1, 1], [], []>} : vector<4x4xbf16>, vector<4x256xbf16>, vector<4x256xf32> -> vector<4x256xf32>
    %107 = arith.addf %102, %106 : vector<4x256xf32>
    %108 = vector.extract_strided_slice %83 {offsets = [0, 1, 1], sizes = [4, 16, 16], strides = [1, 1, 1]} : vector<4x18x18xbf16> to vector<4x16x16xbf16>
    %109 = vector.shape_cast %108 : vector<4x16x16xbf16> to vector<4x256xbf16>
    %110 = vector.extract_strided_slice %84 {offsets = [0, 16], sizes = [4, 4], strides = [1, 1]} : vector<4x36xbf16> to vector<4x4xbf16>
    %cst_74 = arith.constant dense<0.000000e+00> : vector<4x256xf32>
    %111 = tpu.matmul %110, %109, %cst_74 {dimension_numbers = #tpu.dot_dimension_numbers<[1], [0], [0], [1], [0, 0, 1, 1], [], []>} : vector<4x4xbf16>, vector<4x256xbf16>, vector<4x256xf32> -> vector<4x256xf32>
    %112 = arith.addf %107, %111 : vector<4x256xf32>
    %113 = vector.extract_strided_slice %83 {offsets = [0, 1, 2], sizes = [4, 16, 16], strides = [1, 1, 1]} : vector<4x18x18xbf16> to vector<4x16x16xbf16>
    %114 = vector.shape_cast %113 : vector<4x16x16xbf16> to vector<4x256xbf16>
    %115 = vector.extract_strided_slice %84 {offsets = [0, 20], sizes = [4, 4], strides = [1, 1]} : vector<4x36xbf16> to vector<4x4xbf16>
    %cst_75 = arith.constant dense<0.000000e+00> : vector<4x256xf32>
    %116 = tpu.matmul %115, %114, %cst_75 {dimension_numbers = #tpu.dot_dimension_numbers<[1], [0], [0], [1], [0, 0, 1, 1], [], []>} : vector<4x4xbf16>, vector<4x256xbf16>, vector<4x256xf32> -> vector<4x256xf32>
    %117 = arith.addf %112, %116 : vector<4x256xf32>
    %118 = vector.extract_strided_slice %83 {offsets = [0, 2, 0], sizes = [4, 16, 16], strides = [1, 1, 1]} : vector<4x18x18xbf16> to vector<4x16x16xbf16>
    %119 = vector.shape_cast %118 : vector<4x16x16xbf16> to vector<4x256xbf16>
    %120 = vector.extract_strided_slice %84 {offsets = [0, 24], sizes = [4, 4], strides = [1, 1]} : vector<4x36xbf16> to vector<4x4xbf16>
    %cst_76 = arith.constant dense<0.000000e+00> : vector<4x256xf32>
    %121 = tpu.matmul %120, %119, %cst_76 {dimension_numbers = #tpu.dot_dimension_numbers<[1], [0], [0], [1], [0, 0, 1, 1], [], []>} : vector<4x4xbf16>, vector<4x256xbf16>, vector<4x256xf32> -> vector<4x256xf32>
    %122 = arith.addf %117, %121 : vector<4x256xf32>
    %123 = vector.extract_strided_slice %83 {offsets = [0, 2, 1], sizes = [4, 16, 16], strides = [1, 1, 1]} : vector<4x18x18xbf16> to vector<4x16x16xbf16>
    %124 = vector.shape_cast %123 : vector<4x16x16xbf16> to vector<4x256xbf16>
    %125 = vector.extract_strided_slice %84 {offsets = [0, 28], sizes = [4, 4], strides = [1, 1]} : vector<4x36xbf16> to vector<4x4xbf16>
    %cst_77 = arith.constant dense<0.000000e+00> : vector<4x256xf32>
    %126 = tpu.matmul %125, %124, %cst_77 {dimension_numbers = #tpu.dot_dimension_numbers<[1], [0], [0], [1], [0, 0, 1, 1], [], []>} : vector<4x4xbf16>, vector<4x256xbf16>, vector<4x256xf32> -> vector<4x256xf32>
    %127 = arith.addf %122, %126 : vector<4x256xf32>
    %128 = vector.extract_strided_slice %83 {offsets = [0, 2, 2], sizes = [4, 16, 16], strides = [1, 1, 1]} : vector<4x18x18xbf16> to vector<4x16x16xbf16>
    %129 = vector.shape_cast %128 : vector<4x16x16xbf16> to vector<4x256xbf16>
    %130 = vector.extract_strided_slice %84 {offsets = [0, 32], sizes = [4, 4], strides = [1, 1]} : vector<4x36xbf16> to vector<4x4xbf16>
    %cst_78 = arith.constant dense<0.000000e+00> : vector<4x256xf32>
    %131 = tpu.matmul %130, %129, %cst_78 {dimension_numbers = #tpu.dot_dimension_numbers<[1], [0], [0], [1], [0, 0, 1, 1], [], []>} : vector<4x4xbf16>, vector<4x256xbf16>, vector<4x256xf32> -> vector<4x256xf32>
    %132 = arith.addf %127, %131 : vector<4x256xf32>
    %cst_79 = arith.constant 0.000000e+00 : f32
    %133 = vector.broadcast %cst_79 : f32 to vector<4x256xf32>
    %134 = arith.maximumf %132, %133 : vector<4x256xf32>
    %135 = arith.truncf %134 : vector<4x256xf32> to vector<4x256xbf16>
    %c0_80 = arith.constant 0 : index
    %c0_81 = arith.constant 0 : index
    %c0_82 = arith.constant 0 : index
    %136 = vector.load %arg9[%c0_80, %c0_81, %c0_82] : memref<1x4x256xbf16, #tpu.memory_space<vmem>>, vector<1x4x256xbf16>
    %137 = vector.shape_cast %136 : vector<1x4x256xbf16> to vector<4x256xbf16>
    %138 = vector.shape_cast %135 : vector<4x256xbf16> to vector<1x4x256xbf16>
    tpu.vector_store %arg9[%c0_80, %c0_81, %c0_82], %138 {strides = array<i32>} : memref<1x4x256xbf16, #tpu.memory_space<vmem>>, vector<1x4x256xbf16>,
    return
  }
  func.func @transform_0(%arg0: i32) -> (i32, i32, i32, i32) {
    %c0_i32 = arith.constant 0 : i32
    %c0_i32_0 = arith.constant 0 : i32
    %c0_i32_1 = arith.constant 0 : i32
    %c0_i32_2 = arith.constant 0 : i32
    return %arg0, %c0_i32, %c0_i32_0, %c0_i32_1 : i32, i32, i32, i32
  }
  func.func @transform_1(%arg0: i32) -> (i32, i32, i32, i32) {
    %c0_i32 = arith.constant 0 : i32
    %c0_i32_0 = arith.constant 0 : i32
    %c0_i32_1 = arith.constant 0 : i32
    %c0_i32_2 = arith.constant 0 : i32
    return %arg0, %c0_i32, %c0_i32_0, %c0_i32_1 : i32, i32, i32, i32
  }
  func.func @transform_2(%arg0: i32) -> (i32, i32) {
    %c0_i32 = arith.constant 0 : i32
    %c0_i32_0 = arith.constant 0 : i32
    %c0_i32_1 = arith.constant 0 : i32
    return %c0_i32, %c0_i32_0 : i32, i32
  }
  func.func @transform_3(%arg0: i32) -> (i32, i32) {
    %c0_i32 = arith.constant 0 : i32
    %c0_i32_0 = arith.constant 0 : i32
    %c0_i32_1 = arith.constant 0 : i32
    return %c0_i32, %c0_i32_0 : i32, i32
  }
  func.func @transform_4(%arg0: i32) -> (i32, i32) {
    %c0_i32 = arith.constant 0 : i32
    %c0_i32_0 = arith.constant 0 : i32
    %c0_i32_1 = arith.constant 0 : i32
    return %c0_i32, %c0_i32_0 : i32, i32
  }
  func.func @transform_5(%arg0: i32) -> (i32, i32) {
    %c0_i32 = arith.constant 0 : i32
    %c0_i32_0 = arith.constant 0 : i32
    %c0_i32_1 = arith.constant 0 : i32
    return %c0_i32, %c0_i32_0 : i32, i32
  }
  func.func @transform_6(%arg0: i32) -> (i32, i32) {
    %c0_i32 = arith.constant 0 : i32
    %c0_i32_0 = arith.constant 0 : i32
    %c0_i32_1 = arith.constant 0 : i32
    return %c0_i32, %c0_i32_0 : i32, i32
  }
  func.func @transform_7(%arg0: i32) -> (i32, i32) {
    %c0_i32 = arith.constant 0 : i32
    %c0_i32_0 = arith.constant 0 : i32
    %c0_i32_1 = arith.constant 0 : i32
    return %c0_i32, %c0_i32_0 : i32, i32
  }
  func.func @transform_8(%arg0: i32) -> (i32, i32, i32) {
    %c0_i32 = arith.constant 0 : i32
    %c0_i32_0 = arith.constant 0 : i32
    %c0_i32_1 = arith.constant 0 : i32
    return %arg0, %c0_i32, %c0_i32_0 : i32, i32, i32
  }
}

</mosaic_0001>

<llo_original>
// kernel: tpu_custom_call.1
$region0: #{tpu_custom_call.1}
  #allocation0 [shape = 'u32[]', space=smem, size = 0x4, offset = 0x4, fixed_abs, tag = 'smem constant byte address 0x4 - core index']
  #allocation1 [shape = 'u32[144,128]{1,0:T(1,128)}', space=vmem, size = 0x12000, scoped, tag = 'internal scratch']
  #allocation2 [shape = 'bf16[8,18,18]{2,1,0:T(8,128)(2,1)}', space=vmem, size = 0xc000, scoped, tag = 'scratch operand']
  #allocation3 [shape = 'bf16[4,18,18]{2,1,0:T(8,128)(2,1)}', space=vmem, size = 0x6000, scoped, tag = 'scratch operand']
  %s0 = inlined_call_operand.hbm [shape: f32[2,4,8,8], index: 0, kind: input, shape index: {}]
  %s1 = inlined_call_operand.hbm [shape: bf16[2,4,16,16], index: 1, kind: input, shape index: {}]
  %s2 = inlined_call_operand.vmem [shape: f32[16,8], index: 2, kind: input, shape index: {}]
  %s3 = inlined_call_operand.vmem [shape: f32[8,16], index: 3, kind: input, shape index: {}]
  %s4 = inlined_call_operand.vmem [shape: bf16[4,72], index: 4, kind: input, shape index: {}]
  %s5 = inlined_call_operand.vmem [shape: f32[4,1], index: 5, kind: input, shape index: {}]
  %s6 = inlined_call_operand.vmem [shape: bf16[4,36], index: 6, kind: input, shape index: {}]
  %s7 = inlined_call_operand.vmem [shape: f32[4,1], index: 7, kind: input, shape index: {}]
  %s8 = inlined_call_operand.hbm [shape: bf16[2,4,256], index: 8, kind: output, shape index: {}]
  %s9 = sld [smem:[#allocation0]]
  $region73: #{tpu_custom_call.1} parent=0
    _
  %s11 = ssub.s32 1, %s9
  %s12 = scalar_select 0, %s11, %s9
  $region1: #{tpu_custom_call.1} parent=0
    #allocation4 [shape = 'u8[32768]{0}', space=vmem, size = 0x8000, scoped, tag = 'input window, operand 0']
    #allocation5 [shape = 's32[2]{0}', space=sflag, size = 0x8, scoped, tag = 'scoped memory for tpu_custom_call.1']
    #allocation6 [shape = 's32[2]{0}', space=sflag, size = 0x8, scoped, tag = 'scoped memory for tpu_custom_call.1']
    #allocation7 [shape = 'u8[32768]{0}', space=vmem, size = 0x8000, scoped, tag = 'input window, operand 1']
    #allocation8 [shape = 's32[2]{0}', space=sflag, size = 0x8, scoped, tag = 'scoped memory for tpu_custom_call.1']
    #allocation9 [shape = 'u8[4096]{0}', space=vmem, size = 0x1000, scoped, tag = 'output window, operand 0']
    %13 = vsyncpa [#allocation5], 0
    %s14 = scalar_lea.sflag [#allocation5], 1
    %15 = vsyncpa %s14, 0
    %16 = vsyncpa [#allocation8], 0
    %s17 = scalar_lea.sflag [#allocation8], 1
    %18 = vsyncpa %s17, 0
    %19 = vsyncpa [#allocation6], 0
    %s20 = scalar_lea.sflag [#allocation6], 1
    %21 = vsyncpa %s20, 0
    loop: start=0, step=1, limit=4
    $region2: #{tpu_custom_call.1} parent=1 // loop_pre_header
      _
    $region3: #{tpu_custom_call.1} parent=1 // loop_header
      %s23 = sphi 0, %s27
      %p24 = scmp.ge.s32.totalorder %s23, 4
      %s33 = sphi 0, %s35
      %s36 = sphi 0, %s33
      %s37 = sphi 0, %s36
      %s53 = sphi 0, %s37
      %s59 = sphi 0, %s61
      %s62 = sphi 0, %s59
      %s63 = sphi 0, %s62
      %s79 = sphi 0, %s63
      %s83 = sphi 0, %s83
      %s85 = sphi 0, %s83
      %s86 = sphi 0, %s85
      %s100 = sphi 0, %s86
      %s104 = sphi 0, %s104
      %s106 = sphi 0, %s104
      %s107 = sphi 0, %s106
      %s121 = sphi 0, %s107
      %s125 = sphi 0, %s125
      %s127 = sphi 0, %s125
      %s128 = sphi 0, %s127
      %s142 = sphi 0, %s128
      %s146 = sphi 0, %s146
      %s148 = sphi 0, %s146
      %s149 = sphi 0, %s148
      %s163 = sphi 0, %s149
      %s167 = sphi 0, %s167
      %s169 = sphi 0, %s167
      %s170 = sphi 0, %s169
      %s184 = sphi 0, %s170
      %s188 = sphi 0, %s188
      %s190 = sphi 0, %s188
      %s191 = sphi 0, %s190
      %s205 = sphi 0, %s191
      %s211 = sphi 0, %s213
      %s214 = sphi 0, %s211
      %s215 = sphi 0, %s214
      %s231 = sphi 0, %s215
    $region4: #{tpu_custom_call.1} parent=1 // loop_header_branch
      %26 = sbr.rel (%p24) target = $region8
    $region5: #{tpu_custom_call.1} parent=1 // loop_body
      %s28 = ssub.s32 %s23, 1
      %s29 = ssub.s32 %s23, 2
      %s30 = sadd.s32 %s23, 1
      %s31 = ssub.s32 %s23, %s30
      %p32 = scmp.eq.s32.totalorder %s31, 0
      %s34 = sadd.s32 %s33, 1
      %s35 = scalar_select %p32, %s33, %s34
      %p38 = pneg %p32
      %p39 = scmp.eq.s32.totalorder %s23, 1
      %p40 = por %p38, %p39
      %p41 = scmp.ne.s32.totalorder %s33, %s36
      %p42 = scmp.eq.s32.totalorder %s23, 0
      %p43 = por %p41, %p42
      %p44 = scmp.ne.s32.totalorder %s33, %s36
      %p45 = scmp.eq.s32.totalorder %s28, 1
      %p46 = por %p44, %p45
      %p47 = scmp.ne.s32.totalorder %s36, %s37
      %p48 = scmp.eq.s32.totalorder %s28, 0
      %p49 = por %p47, %p48
      %p50 = scmp.ne.s32.totalorder %s36, %s37
      %p51 = scmp.eq.s32.totalorder %s29, 1
      %p52 = por %p50, %p51
      %p54 = scmp.ne.s32.totalorder %s37, %s53
      %p55 = scmp.eq.s32.totalorder %s29, 0
      %p56 = por %p54, %p55
      %s57 = ssub.s32 %s23, %s30
      %p58 = scmp.eq.s32.totalorder %s57, 0
      %s60 = sadd.s32 %s59, 1
      %s61 = scalar_select %p58, %s59, %s60
      %p64 = pneg %p58
      %p65 = scmp.eq.s32.totalorder %s23, 1
      %p66 = por %p64, %p65
      %p67 = scmp.ne.s32.totalorder %s59, %s62
      %p68 = scmp.eq.s32.totalorder %s23, 0
      %p69 = por %p67, %p68
      %p70 = scmp.ne.s32.totalorder %s59, %s62
      %p71 = scmp.eq.s32.totalorder %s28, 1
      %p72 = por %p70, %p71
      %p73 = scmp.ne.s32.totalorder %s62, %s63
      %p74 = scmp.eq.s32.totalorder %s28, 0
      %p75 = por %p73, %p74
      %p76 = scmp.ne.s32.totalorder %s62, %s63
      %p77 = scmp.eq.s32.totalorder %s29, 1
      %p78 = por %p76, %p77
      %p80 = scmp.ne.s32.totalorder %s63, %s79
      %p81 = scmp.eq.s32.totalorder %s29, 0
      %p82 = por %p80, %p81
      %s84 = sadd.s32 %s83, 1
      %p87 = scmp.eq.s32.totalorder %s23, 1
      %p88 = scmp.ne.s32.totalorder %s83, %s85
      %p89 = scmp.eq.s32.totalorder %s23, 0
      %p90 = por %p88, %p89
      %p91 = scmp.ne.s32.totalorder %s83, %s85
      %p92 = scmp.eq.s32.totalorder %s28, 1
      %p93 = por %p91, %p92
      %p94 = scmp.ne.s32.totalorder %s85, %s86
      %p95 = scmp.eq.s32.totalorder %s28, 0
      %p96 = por %p94, %p95
      %p97 = scmp.ne.s32.totalorder %s85, %s86
      %p98 = scmp.eq.s32.totalorder %s29, 1
      %p99 = por %p97, %p98
      %p101 = scmp.ne.s32.totalorder %s86, %s100
      %p102 = scmp.eq.s32.totalorder %s29, 0
      %p103 = por %p101, %p102
      %s105 = sadd.s32 %s104, 1
      %p108 = scmp.eq.s32.totalorder %s23, 1
      %p109 = scmp.ne.s32.totalorder %s104, %s106
      %p110 = scmp.eq.s32.totalorder %s23, 0
      %p111 = por %p109, %p110
      %p112 = scmp.ne.s32.totalorder %s104, %s106
      %p113 = scmp.eq.s32.totalorder %s28, 1
      %p114 = por %p112, %p113
      %p115 = scmp.ne.s32.totalorder %s106, %s107
      %p116 = scmp.eq.s32.totalorder %s28, 0
      %p117 = por %p115, %p116
      %p118 = scmp.ne.s32.totalorder %s106, %s107
      %p119 = scmp.eq.s32.totalorder %s29, 1
      %p120 = por %p118, %p119
      %p122 = scmp.ne.s32.totalorder %s107, %s121
      %p123 = scmp.eq.s32.totalorder %s29, 0
      %p124 = por %p122, %p123
      %s126 = sadd.s32 %s125, 1
      %p129 = scmp.eq.s32.totalorder %s23, 1
      %p130 = scmp.ne.s32.totalorder %s125, %s127
      %p131 = scmp.eq.s32.totalorder %s23, 0
      %p132 = por %p130, %p131
      %p133 = scmp.ne.s32.totalorder %s125, %s127
      %p134 = scmp.eq.s32.totalorder %s28, 1
      %p135 = por %p133, %p134
      %p136 = scmp.ne.s32.totalorder %s127, %s128
      %p137 = scmp.eq.s32.totalorder %s28, 0
      %p138 = por %p136, %p137
      %p139 = scmp.ne.s32.totalorder %s127, %s128
      %p140 = scmp.eq.s32.totalorder %s29, 1
      %p141 = por %p139, %p140
      %p143 = scmp.ne.s32.totalorder %s128, %s142
      %p144 = scmp.eq.s32.totalorder %s29, 0
      %p145 = por %p143, %p144
      %s147 = sadd.s32 %s146, 1
      %p150 = scmp.eq.s32.totalorder %s23, 1
      %p151 = scmp.ne.s32.totalorder %s146, %s148
      %p152 = scmp.eq.s32.totalorder %s23, 0
      %p153 = por %p151, %p152
      %p154 = scmp.ne.s32.totalorder %s146, %s148
      %p155 = scmp.eq.s32.totalorder %s28, 1
      %p156 = por %p154, %p155
      %p157 = scmp.ne.s32.totalorder %s148, %s149
      %p158 = scmp.eq.s32.totalorder %s28, 0
      %p159 = por %p157, %p158
      %p160 = scmp.ne.s32.totalorder %s148, %s149
      %p161 = scmp.eq.s32.totalorder %s29, 1
      %p162 = por %p160, %p161
      %p164 = scmp.ne.s32.totalorder %s149, %s163
      %p165 = scmp.eq.s32.totalorder %s29, 0
      %p166 = por %p164, %p165
      %s168 = sadd.s32 %s167, 1
      %p171 = scmp.eq.s32.totalorder %s23, 1
      %p172 = scmp.ne.s32.totalorder %s167, %s169
      %p173 = scmp.eq.s32.totalorder %s23, 0
      %p174 = por %p172, %p173
      %p175 = scmp.ne.s32.totalorder %s167, %s169
      %p176 = scmp.eq.s32.totalorder %s28, 1
      %p177 = por %p175, %p176
      %p178 = scmp.ne.s32.totalorder %s169, %s170
      %p179 = scmp.eq.s32.totalorder %s28, 0
      %p180 = por %p178, %p179
      %p181 = scmp.ne.s32.totalorder %s169, %s170
      %p182 = scmp.eq.s32.totalorder %s29, 1
      %p183 = por %p181, %p182
      %p185 = scmp.ne.s32.totalorder %s170, %s184
      %p186 = scmp.eq.s32.totalorder %s29, 0
      %p187 = por %p185, %p186
      %s189 = sadd.s32 %s188, 1
      %p192 = scmp.eq.s32.totalorder %s23, 1
      %p193 = scmp.ne.s32.totalorder %s188, %s190
      %p194 = scmp.eq.s32.totalorder %s23, 0
      %p195 = por %p193, %p194
      %p196 = scmp.ne.s32.totalorder %s188, %s190
      %p197 = scmp.eq.s32.totalorder %s28, 1
      %p198 = por %p196, %p197
      %p199 = scmp.ne.s32.totalorder %s190, %s191
      %p200 = scmp.eq.s32.totalorder %s28, 0
      %p201 = por %p199, %p200
      %p202 = scmp.ne.s32.totalorder %s190, %s191
      %p203 = scmp.eq.s32.totalorder %s29, 1
      %p204 = por %p202, %p203
      %p206 = scmp.ne.s32.totalorder %s191, %s205
      %p207 = scmp.eq.s32.totalorder %s29, 0
      %p208 = por %p206, %p207
      %s209 = ssub.s32 %s23, %s30
      %p210 = scmp.eq.s32.totalorder %s209, 0
      %s212 = sadd.s32 %s211, 1
      %s213 = scalar_select %p210, %s211, %s212
      %p216 = pneg %p210
      %p217 = scmp.eq.s32.totalorder %s23, 1
      %p218 = por %p216, %p217
      %p219 = scmp.ne.s32.totalorder %s211, %s214
      %p220 = scmp.eq.s32.totalorder %s23, 0
      %p221 = por %p219, %p220
      %p222 = scmp.ne.s32.totalorder %s211, %s214
      %p223 = scmp.eq.s32.totalorder %s28, 1
      %p224 = por %p222, %p223
      %p225 = scmp.ne.s32.totalorder %s214, %s215
      %p226 = scmp.eq.s32.totalorder %s28, 0
      %p227 = por %p225, %p226
      %p228 = scmp.ne.s32.totalorder %s214, %s215
      %p229 = scmp.eq.s32.totalorder %s29, 1
      %p230 = por %p228, %p229
      %p232 = scmp.ne.s32.totalorder %s215, %s231
      %p233 = scmp.eq.s32.totalorder %s29, 0
      %p234 = por %p232, %p233
      %p235 = scmp.le.s32.totalorder 1, %s23
      %p236 = scmp.lt.s32.totalorder %s23, 3
      %p237 = pnand %p235, %p236
      %p238 = pneg %p237
      // Predicated region
      $region9: #{tpu_custom_call.1} parent=5 // pred_check
        _
      $region10: #{tpu_custom_call.1} parent=5 // pred_check_branch
        %240 = sbr.rel (%p237) target = $region12
      $region11: #{tpu_custom_call.1} parent=5 // pred_region
        %s241 = ssub.s32 %s23, 1
        // Predicated region
        $region13: #{tpu_custom_call.1} parent=11 // pred_check
          %p242 = pneg %p96
        $region14: #{tpu_custom_call.1} parent=11 // pred_check_branch
          %244 = sbr.rel (%p242) target = $region16
        $region15: #{tpu_custom_call.1} parent=11 // pred_region
          _
        $region16: #{tpu_custom_call.1} parent=11 // pred_fallthru
          _
        // Predicated region
        $region17: #{tpu_custom_call.1} parent=11 // pred_check
          %p245 = pneg %p117
        $region18: #{tpu_custom_call.1} parent=11 // pred_check_branch
          %247 = sbr.rel (%p245) target = $region20
        $region19: #{tpu_custom_call.1} parent=11 // pred_region
          _
        $region20: #{tpu_custom_call.1} parent=11 // pred_fallthru
          _
        // Predicated region
        $region21: #{tpu_custom_call.1} parent=11 // pred_check
          %p248 = pneg %p138
        $region22: #{tpu_custom_call.1} parent=11 // pred_check_branch
          %250 = sbr.rel (%p248) target = $region24
        $region23: #{tpu_custom_call.1} parent=11 // pred_region
          _
        $region24: #{tpu_custom_call.1} parent=11 // pred_fallthru
          _
        // Predicated region
        $region25: #{tpu_custom_call.1} parent=11 // pred_check
          %p251 = pneg %p159
        $region26: #{tpu_custom_call.1} parent=11 // pred_check_branch
          %253 = sbr.rel (%p251) target = $region28
        $region27: #{tpu_custom_call.1} parent=11 // pred_region
          _
        $region28: #{tpu_custom_call.1} parent=11 // pred_fallthru
          _
        // Predicated region
        $region29: #{tpu_custom_call.1} parent=11 // pred_check
          %p254 = pneg %p180
        $region30: #{tpu_custom_call.1} parent=11 // pred_check_branch
          %256 = sbr.rel (%p254) target = $region32
        $region31: #{tpu_custom_call.1} parent=11 // pred_region
          _
        $region32: #{tpu_custom_call.1} parent=11 // pred_fallthru
          _
        // Predicated region
        $region33: #{tpu_custom_call.1} parent=11 // pred_check
          %p257 = pneg %p201
        $region34: #{tpu_custom_call.1} parent=11 // pred_check_branch
          %259 = sbr.rel (%p257) target = $region36
        $region35: #{tpu_custom_call.1} parent=11 // pred_region
          _
        $region36: #{tpu_custom_call.1} parent=11 // pred_fallthru
          _
      $region12: #{tpu_custom_call.1} parent=5 // pred_fallthru
        _
      %p260 = scmp.lt.s32.totalorder %s23, 2
      // Predicated region
      $region37: #{tpu_custom_call.1} parent=5 // pred_check
        %p261 = pneg %p260
      $region38: #{tpu_custom_call.1} parent=5 // pred_check_branch
        %263 = sbr.rel (%p261) target = $region40
      $region39: #{tpu_custom_call.1} parent=5 // pred_region
        // Predicated region
        $region41: #{tpu_custom_call.1} parent=39 // pred_check
          %p264 = pneg %p43
        $region42: #{tpu_custom_call.1} parent=39 // pred_check_branch
          %266 = sbr.rel (%p264) target = $region44
        $region43: #{tpu_custom_call.1} parent=39 // pred_region
          %s267 = sand.u32 %s33, 1
          %s268 = scalar_lea.sflag [#allocation5], %s267
          %s269 = sand.u32 %s33, 1
          %s270 = smul.addr %s269, 32
          %s271 = scalar_lea.vmem [#allocation4], %s270
          %s273 = ssub.s32 512, 512
          %274 = vsyncadd %s268, %s273
          %s275 = smul.addr %s23, 4
          %s276 = smul.addr %s275, 128
          %s277 = scalar_lea.hbm %s0, %s276
          %s278 = sshll.u32 %s271, 4
          %s279 = int_to_ptr.vmem [resolvable:$true] %s278
          %284 = dma.hbm_to_vmem [thread:$0]  %s277, 512, %s279, %s268, 128, 128, 8
        $region44: #{tpu_custom_call.1} parent=39 // pred_fallthru
          _
        // Predicated region
        $region45: #{tpu_custom_call.1} parent=39 // pred_check
          %p285 = pneg %p69
        $region46: #{tpu_custom_call.1} parent=39 // pred_check_branch
          %287 = sbr.rel (%p285) target = $region48
        $region47: #{tpu_custom_call.1} parent=39 // pred_region
          %s288 = sand.u32 %s59, 1
          %s289 = scalar_lea.sflag [#allocation8], %s288
          %s290 = sand.u32 %s59, 1
          %s291 = smul.addr %s290, 32
          %s292 = scalar_lea.vmem [#allocation7], %s291
          %s294 = ssub.s32 512, 512
          %295 = vsyncadd %s289, %s294
          %s296 = smul.addr %s23, 8
          %s297 = smul.addr %s296, 64
          %s298 = scalar_lea.hbm %s1, %s297
          %s299 = sshll.u32 %s292, 4
          %s300 = int_to_ptr.vmem [resolvable:$true] %s299
          %305 = dma.hbm_to_vmem [thread:$0]  %s298, 512, %s300, %s289, 64, 64, 4
        $region48: #{tpu_custom_call.1} parent=39 // pred_fallthru
          _
      $region40: #{tpu_custom_call.1} parent=5 // pred_fallthru
        _
      %p306 = scmp.le.s32.totalorder 1, %s23
      %p307 = scmp.lt.s32.totalorder %s23, 3
      %p308 = pnand %p306, %p307
      %p309 = pneg %p308
      // Predicated region
      $region49: #{tpu_custom_call.1} parent=5 // pred_check
        _
      $region50: #{tpu_custom_call.1} parent=5 // pred_check_branch
        %311 = sbr.rel (%p308) target = $region52
      $region51: #{tpu_custom_call.1} parent=5 // pred_region
        %s312 = ssub.s32 %s23, 1
        %s313 = sand.u32 %s36, 1
        %s314 = scalar_lea.sflag [#allocation5], %s313
        %s315 = sand.u32 %s36, 1
        %s316 = smul.addr %s315, 32
        %s317 = scalar_lea.vmem [#allocation4], %s316
        // Predicated region
        $region53: #{tpu_custom_call.1} parent=51 // pred_check
          %p318 = pneg %p49
        $region54: #{tpu_custom_call.1} parent=51 // pred_check_branch
          %320 = sbr.rel (%p318) target = $region56
        $region55: #{tpu_custom_call.1} parent=51 // pred_region
          %321 = dma.done %s314, 512
        $region56: #{tpu_custom_call.1} parent=51 // pred_fallthru
          _
        %s322 = sand.u32 %s62, 1
        %s323 = scalar_lea.sflag [#allocation8], %s322
        %s324 = sand.u32 %s62, 1
        %s325 = smul.addr %s324, 32
        %s326 = scalar_lea.vmem [#allocation7], %s325
        // Predicated region
        $region57: #{tpu_custom_call.1} parent=51 // pred_check
          %p327 = pneg %p75
        $region58: #{tpu_custom_call.1} parent=51 // pred_check_branch
          %329 = sbr.rel (%p327) target = $region60
        $region59: #{tpu_custom_call.1} parent=51 // pred_region
          %330 = dma.done %s323, 512
        $region60: #{tpu_custom_call.1} parent=51 // pred_fallthru
          _
        %s331 = sand.u32 %s36, 1
        %s332 = scalar_lea.sflag [#allocation5], %s331
        %s333 = sand.u32 %s36, 1
        %s334 = smul.addr %s333, 32
        %s335 = scalar_lea.vmem [#allocation4], %s334
        %p336 = pneg %p49
        %p337 = pneg %p46
        %s338 = sand.u32 %s62, 1
        %s339 = scalar_lea.sflag [#allocation8], %s338
        %s340 = sand.u32 %s62, 1
        %s341 = smul.addr %s340, 32
        %s342 = scalar_lea.vmem [#allocation7], %s341
        %p343 = pneg %p75
        %p344 = pneg %p72
        %p345 = pneg %p96
        %p346 = pneg %p93
        %p347 = pneg %p117
        %p348 = pneg %p114
        %p349 = pneg %p138
        %p350 = pneg %p135
        %p351 = pneg %p159
        %p352 = pneg %p156
        %p353 = pneg %p180
        %p354 = pneg %p177
        %p355 = pneg %p201
        %p356 = pneg %p198
        %p357 = pneg %p227
        %p358 = pneg %p224
        %s359 = sand.u32 %s214, 1
        %s360 = scalar_lea.sflag [#allocation6], %s359
        %s361 = sand.u32 %s214, 1
        %s362 = smul.addr %s361, 4
        %s363 = scalar_lea.vmem [#allocation9], %s362
        %vm365 = vcmask 139264
        %vm366 = vsmask.f32 256
        %vm367 = vmand %vm365, %vm366
        %v368 = vld [vmem:[#allocation2] sm:$0x1]
        %v369 = vsel %vm367, 0, %v368
        %370 = vst [vmem:[#allocation2] sm:$0x1] %v369
        %v371 = vld [vmem:[#allocation2 + $0xc] sm:$0x1]
        %v372 = vsel %vm367, 0, %v371
        %373 = vst [vmem:[#allocation2 + $0xc] sm:$0x1] %v372
        %v374 = vld [vmem:[#allocation2 + $0x18] sm:$0x1]
        %v375 = vsel %vm367, 0, %v374
        %376 = vst [vmem:[#allocation2 + $0x18] sm:$0x1] %v375
        %v377 = vld [vmem:[#allocation2 + $0x24] sm:$0x1]
        %v378 = vsel %vm367, 0, %v377
        %379 = vst [vmem:[#allocation2 + $0x24] sm:$0x1] %v378
        %v380 = vld [vmem:[#allocation2 + $0x30] sm:$0x1]
        %v381 = vsel %vm367, 0, %v380
        %382 = vst [vmem:[#allocation2 + $0x30] sm:$0x1] %v381
        %v383 = vld [vmem:[#allocation2 + $0x3c] sm:$0x1]
        %v384 = vsel %vm367, 0, %v383
        %385 = vst [vmem:[#allocation2 + $0x3c] sm:$0x1] %v384
        %v386 = vld [vmem:[#allocation2 + $0x48] sm:$0x1]
        %v387 = vsel %vm367, 0, %v386
        %388 = vst [vmem:[#allocation2 + $0x48] sm:$0x1] %v387
        %v389 = vld [vmem:[#allocation2 + $0x54] sm:$0x1]
        %v390 = vsel %vm367, 0, %v389
        %391 = vst [vmem:[#allocation2 + $0x54] sm:$0x1] %v390
        %vm392 = vsmask.f32 7938
        %vm393 = vmand %vm365, %vm392
        %v394 = vld [vmem:[#allocation2 + $0x8] sm:$0x1]
        %v395 = vsel %vm393, 0, %v394
        %396 = vst [vmem:[#allocation2 + $0x8] sm:$0x1] %v395
        %v397 = vld [vmem:[#allocation2 + $0x14] sm:$0x1]
        %v398 = vsel %vm393, 0, %v397
        %399 = vst [vmem:[#allocation2 + $0x14] sm:$0x1] %v398
        %v400 = vld [vmem:[#allocation2 + $0x20] sm:$0x1]
        %v401 = vsel %vm393, 0, %v400
        %402 = vst [vmem:[#allocation2 + $0x20] sm:$0x1] %v401
        %v403 = vld [vmem:[#allocation2 + $0x2c] sm:$0x1]
        %v404 = vsel %vm393, 0, %v403
        %405 = vst [vmem:[#allocation2 + $0x2c] sm:$0x1] %v404
        %v406 = vld [vmem:[#allocation2 + $0x38] sm:$0x1]
        %v407 = vsel %vm393, 0, %v406
        %408 = vst [vmem:[#allocation2 + $0x38] sm:$0x1] %v407
        %v409 = vld [vmem:[#allocation2 + $0x44] sm:$0x1]
        %v410 = vsel %vm393, 0, %v409
        %411 = vst [vmem:[#allocation2 + $0x44] sm:$0x1] %v410
        %v412 = vld [vmem:[#allocation2 + $0x50] sm:$0x1]
        %v413 = vsel %vm393, 0, %v412
        %414 = vst [vmem:[#allocation2 + $0x50] sm:$0x1] %v413
        %v415 = vld [vmem:[#allocation2 + $0x5c] sm:$0x1]
        %v416 = vsel %vm393, 0, %v415
        %417 = vst [vmem:[#allocation2 + $0x5c] sm:$0x1] %v416
        %vm418 = vcmask 3072
        %419 = vst.msk [vmem:[#allocation2] sm:$0xf] %vm418, 0
        %420 = vst.msk [vmem:[#allocation2 + $0x4] sm:$0xf] %vm418, 0
        %vm421 = vcmask 0
        %422 = vst.msk [vmem:[#allocation2 + $0x8] sm:$0x1] %vm421, 0
        %423 = vst.msk [vmem:[#allocation2 + $0xc] sm:$0xf] %vm418, 0
        %424 = vst.msk [vmem:[#allocation2 + $0x10] sm:$0xf] %vm418, 0
        %425 = vst.msk [vmem:[#allocation2 + $0x14] sm:$0x1] %vm421, 0
        %426 = vst.msk [vmem:[#allocation2 + $0x18] sm:$0xf] %vm418, 0
        %427 = vst.msk [vmem:[#allocation2 + $0x1c] sm:$0xf] %vm418, 0
        %428 = vst.msk [vmem:[#allocation2 + $0x20] sm:$0x1] %vm421, 0
        %429 = vst.msk [vmem:[#allocation2 + $0x24] sm:$0xf] %vm418, 0
        %430 = vst.msk [vmem:[#allocation2 + $0x28] sm:$0xf] %vm418, 0
        %431 = vst.msk [vmem:[#allocation2 + $0x2c] sm:$0x1] %vm421, 0
        %432 = vst.msk [vmem:[#allocation2 + $0x30] sm:$0xf] %vm418, 0
        %433 = vst.msk [vmem:[#allocation2 + $0x34] sm:$0xf] %vm418, 0
        %434 = vst.msk [vmem:[#allocation2 + $0x38] sm:$0x1] %vm421, 0
        %435 = vst.msk [vmem:[#allocation2 + $0x3c] sm:$0xf] %vm418, 0
        %436 = vst.msk [vmem:[#allocation2 + $0x40] sm:$0xf] %vm418, 0
        %437 = vst.msk [vmem:[#allocation2 + $0x44] sm:$0x1] %vm421, 0
        %438 = vst.msk [vmem:[#allocation2 + $0x48] sm:$0xf] %vm418, 0
        %439 = vst.msk [vmem:[#allocation2 + $0x4c] sm:$0xf] %vm418, 0
        %440 = vst.msk [vmem:[#allocation2 + $0x50] sm:$0x1] %vm421, 0
        %441 = vst.msk [vmem:[#allocation2 + $0x54] sm:$0xf] %vm418, 0
        %442 = vst.msk [vmem:[#allocation2 + $0x58] sm:$0xf] %vm418, 0
        %443 = vst.msk [vmem:[#allocation2 + $0x5c] sm:$0x1] %vm421, 0
        %vm444 = vcmask 142472
        %445 = vst.msk [vmem:[#allocation2] sm:$0xf] %vm444, 0
        %446 = vst.msk [vmem:[#allocation2 + $0x4] sm:$0xf] %vm444, 0
        %vm447 = vcmask 139400
        %448 = vst.msk [vmem:[#allocation2 + $0x8] sm:$0x1] %vm447, 0
        %449 = vst.msk [vmem:[#allocation2 + $0xc] sm:$0xf] %vm444, 0
        %450 = vst.msk [vmem:[#allocation2 + $0x10] sm:$0xf] %vm444, 0
        %451 = vst.msk [vmem:[#allocation2 + $0x14] sm:$0x1] %vm447, 0
        %452 = vst.msk [vmem:[#allocation2 + $0x18] sm:$0xf] %vm444, 0
        %453 = vst.msk [vmem:[#allocation2 + $0x1c] sm:$0xf] %vm444, 0
        %454 = vst.msk [vmem:[#allocation2 + $0x20] sm:$0x1] %vm447, 0
        %455 = vst.msk [vmem:[#allocation2 + $0x24] sm:$0xf] %vm444, 0
        %456 = vst.msk [vmem:[#allocation2 + $0x28] sm:$0xf] %vm444, 0
        %457 = vst.msk [vmem:[#allocation2 + $0x2c] sm:$0x1] %vm447, 0
        %458 = vst.msk [vmem:[#allocation2 + $0x30] sm:$0xf] %vm444, 0
        %459 = vst.msk [vmem:[#allocation2 + $0x34] sm:$0xf] %vm444, 0
        %460 = vst.msk [vmem:[#allocation2 + $0x38] sm:$0x1] %vm447, 0
        %461 = vst.msk [vmem:[#allocation2 + $0x3c] sm:$0xf] %vm444, 0
        %462 = vst.msk [vmem:[#allocation2 + $0x40] sm:$0xf] %vm444, 0
        %463 = vst.msk [vmem:[#allocation2 + $0x44] sm:$0x1] %vm447, 0
        %464 = vst.msk [vmem:[#allocation2 + $0x48] sm:$0xf] %vm444, 0
        %465 = vst.msk [vmem:[#allocation2 + $0x4c] sm:$0xf] %vm444, 0
        %466 = vst.msk [vmem:[#allocation2 + $0x50] sm:$0x1] %vm447, 0
        %467 = vst.msk [vmem:[#allocation2 + $0x54] sm:$0xf] %vm444, 0
        %468 = vst.msk [vmem:[#allocation2 + $0x58] sm:$0xf] %vm444, 0
        %469 = vst.msk [vmem:[#allocation2 + $0x5c] sm:$0x1] %vm447, 0
        %v470 = vld [vmem:[#allocation3] sm:$0x1]
        %v471 = vsel %vm367, 0, %v470
        %472 = vst [vmem:[#allocation3] sm:$0x1] %v471
        %v473 = vld [vmem:[#allocation3 + $0xc] sm:$0x1]
        %v474 = vsel %vm367, 0, %v473
        %475 = vst [vmem:[#allocation3 + $0xc] sm:$0x1] %v474
        %v476 = vld [vmem:[#allocation3 + $0x18] sm:$0x1]
        %v477 = vsel %vm367, 0, %v476
        %478 = vst [vmem:[#allocation3 + $0x18] sm:$0x1] %v477
        %v479 = vld [vmem:[#allocation3 + $0x24] sm:$0x1]
        %v480 = vsel %vm367, 0, %v479
        %481 = vst [vmem:[#allocation3 + $0x24] sm:$0x1] %v480
        %v482 = vld [vmem:[#allocation3 + $0x8] sm:$0x1]
        %v483 = vsel %vm393, 0, %v482
        %484 = vst [vmem:[#allocation3 + $0x8] sm:$0x1] %v483
        %v485 = vld [vmem:[#allocation3 + $0x14] sm:$0x1]
        %v486 = vsel %vm393, 0, %v485
        %487 = vst [vmem:[#allocation3 + $0x14] sm:$0x1] %v486
        %v488 = vld [vmem:[#allocation3 + $0x20] sm:$0x1]
        %v489 = vsel %vm393, 0, %v488
        %490 = vst [vmem:[#allocation3 + $0x20] sm:$0x1] %v489
        %v491 = vld [vmem:[#allocation3 + $0x2c] sm:$0x1]
        %v492 = vsel %vm393, 0, %v491
        %493 = vst [vmem:[#allocation3 + $0x2c] sm:$0x1] %v492
        %494 = vst.msk [vmem:[#allocation3] sm:$0xf] %vm418, 0
        %495 = vst.msk [vmem:[#allocation3 + $0x4] sm:$0xf] %vm418, 0
        %496 = vst.msk [vmem:[#allocation3 + $0x8] sm:$0x1] %vm421, 0
        %497 = vst.msk [vmem:[#allocation3 + $0xc] sm:$0xf] %vm418, 0
        %498 = vst.msk [vmem:[#allocation3 + $0x10] sm:$0xf] %vm418, 0
        %499 = vst.msk [vmem:[#allocation3 + $0x14] sm:$0x1] %vm421, 0
        %500 = vst.msk [vmem:[#allocation3 + $0x18] sm:$0xf] %vm418, 0
        %501 = vst.msk [vmem:[#allocation3 + $0x1c] sm:$0xf] %vm418, 0
        %502 = vst.msk [vmem:[#allocation3 + $0x20] sm:$0x1] %vm421, 0
        %503 = vst.msk [vmem:[#allocation3 + $0x24] sm:$0xf] %vm418, 0
        %504 = vst.msk [vmem:[#allocation3 + $0x28] sm:$0xf] %vm418, 0
        %505 = vst.msk [vmem:[#allocation3 + $0x2c] sm:$0x1] %vm421, 0
        %506 = vst.msk [vmem:[#allocation3] sm:$0xf] %vm444, 0
        %507 = vst.msk [vmem:[#allocation3 + $0x4] sm:$0xf] %vm444, 0
        %508 = vst.msk [vmem:[#allocation3 + $0x8] sm:$0x1] %vm447, 0
        %509 = vst.msk [vmem:[#allocation3 + $0xc] sm:$0xf] %vm444, 0
        %510 = vst.msk [vmem:[#allocation3 + $0x10] sm:$0xf] %vm444, 0
        %511 = vst.msk [vmem:[#allocation3 + $0x14] sm:$0x1] %vm447, 0
        %512 = vst.msk [vmem:[#allocation3 + $0x18] sm:$0xf] %vm444, 0
        %513 = vst.msk [vmem:[#allocation3 + $0x1c] sm:$0xf] %vm444, 0
        %514 = vst.msk [vmem:[#allocation3 + $0x20] sm:$0x1] %vm447, 0
        %515 = vst.msk [vmem:[#allocation3 + $0x24] sm:$0xf] %vm444, 0
        %516 = vst.msk [vmem:[#allocation3 + $0x28] sm:$0xf] %vm444, 0
        %517 = vst.msk [vmem:[#allocation3 + $0x2c] sm:$0x1] %vm447, 0
        %v518 = vld [vmem:[%s317] sm:$0xff]
        %v519 = vld [vmem:[%s317 + $0x8] sm:$0xff]
        %v520 = vld [vmem:[%s317 + $0x10] sm:$0xff]
        %v521 = vld [vmem:[%s317 + $0x18] sm:$0xff]
        %v522 = vld [vmem:[%s3] sm:$0xff]
        %vm523 = vcmask 64512
        %v525 = vsel %vm523, %v518, 0
        %v528 = vsel %vm523, %v519, 0
        %v531 = vsel %vm523, %v520, 0
        %v534 = vsel %vm523, %v521, 0
        %536 = vmatprep.subr.mxu0 0.0
        %537 = vmatpush1.msra.mxu0 %v522
        %538 = vmatprep.subr.mxu0 0.0
        %539 = vmatpush1.msra.mxu0 0.0
        %540 = vmatprep.subr.mxu0 0.0
        %541 = vmatpush1.msra.mxu0 0.0
        %542 = vmatprep.subr.mxu0 0.0
        %543 = vmatpush1.msra.mxu0 0.0
        %544 = vmatprep.subr.mxu0 0.0
        %545 = vmatpush1.msra.mxu0 0.0
        %546 = vmatprep.subr.mxu0 0.0
        %547 = vmatpush1.msra.mxu0 0.0
        %548 = vmatprep.subr.mxu0 0.0
        %549 = vmatpush1.msra.mxu0 0.0
        %550 = vmatprep.subr.mxu0 0.0
        %551 = vmatpush1.msra.mxu0 0.0
        %552 = vmatprep.subr.mxu0 0.0
        %553 = vmatpush1.msra.mxu0 0.0
        %554 = vmatprep.subr.mxu0 0.0
        %555 = vmatpush1.msra.mxu0 0.0
        %556 = vmatprep.subr.mxu0 0.0
        %557 = vmatpush1.msra.mxu0 0.0
        %558 = vmatprep.subr.mxu0 0.0
        %559 = vmatpush1.msra.mxu0 0.0
        %560 = vmatprep.subr.mxu0 0.0
        %561 = vmatpush1.msra.mxu0 0.0
        %562 = vmatprep.subr.mxu0 0.0
        %563 = vmatpush1.msra.mxu0 0.0
        %564 = vmatprep.subr.mxu0 0.0
        %565 = vmatpush1.msra.mxu0 0.0
        %566 = vmatprep.subr.mxu0 0.0
        %567 = vmatpush1.msra.mxu0 0.0
        %568 = vmatprep.subr.mxu0 0.0
        %569 = vmatpush1.msra.mxu0 0.0
        %570 = vmatprep.subr.mxu0 0.0
        %571 = vmatpush1.msra.mxu0 0.0
        %572 = vmatprep.subr.mxu0 0.0
        %573 = vmatpush1.msra.mxu0 0.0
        %574 = vmatprep.subr.mxu0 0.0
        %575 = vmatpush1.msra.mxu0 0.0
        %576 = vmatprep.subr.mxu0 0.0
        %577 = vmatpush1.msra.mxu0 0.0
        %578 = vmatprep.subr.mxu0 0.0
        %579 = vmatpush1.msra.mxu0 0.0
        %580 = vmatprep.subr.mxu0 0.0
        %581 = vmatpush1.msra.mxu0 0.0
        %582 = vmatprep.subr.mxu0 0.0
        %583 = vmatpush1.msra.mxu0 0.0
        %584 = vmatprep.subr.mxu0 0.0
        %585 = vmatpush1.msra.mxu0 0.0
        %586 = vmatprep.subr.mxu0 0.0
        %587 = vmatpush1.msra.mxu0 0.0
        %588 = vmatprep.subr.mxu0 0.0
        %589 = vmatpush1.msra.mxu0 0.0
        %590 = vmatprep.subr.mxu0 0.0
        %591 = vmatpush1.msra.mxu0 0.0
        %592 = vmatprep.subr.mxu0 0.0
        %593 = vmatpush1.msra.mxu0 0.0
        %594 = vmatprep.subr.mxu0 0.0
        %595 = vmatpush1.msra.mxu0 0.0
        %596 = vmatprep.subr.mxu0 0.0
        %597 = vmatpush1.msra.mxu0 0.0
        %598 = vmatprep.subr.mxu0 0.0
        %599 = vmatpush1.msra.mxu0 0.0
        %600 = vmatprep.mubr.f32.mxu0 0.0
        %601 = vmatmul.mubr.f32.gmra.mrb[0].mxu0 %v525
        %v602 = vpop.f32.mrb[0].mxu0
        %v603 = vadd.f32 0.0, %v602
        %v604 = vpop.f32.mrb[0].mxu0
        %605 = vmatprep.mubr.f32.mxu0 0.0
        %606 = vmatmul.mubr.f32.gmra.mrb[0].mxu0 %v528
        %v607 = vpop.f32.mrb[0].mxu0
        %v608 = vadd.f32 0.0, %v607
        %v609 = vpop.f32.mrb[0].mxu0
        %610 = vmatprep.mubr.f32.mxu0 0.0
        %611 = vmatmul.mubr.f32.gmra.mrb[0].mxu0 %v531
        %v612 = vpop.f32.mrb[0].mxu0
        %v613 = vadd.f32 0.0, %v612
        %v614 = vpop.f32.mrb[0].mxu0
        %615 = vmatprep.mubr.f32.mxu0 0.0
        %616 = vmatmul.mubr.f32.gmra.mrb[0].mxu0 %v534
        %v617 = vpop.f32.mrb[0].mxu0
        %v618 = vadd.f32 0.0, %v617
        %v619 = vpop.f32.mrb[0].mxu0
        %620 = vdwg.mxu0
        %v621 = vld [vmem:[%s2] sm:$0xff]
        %v622 = vld [vmem:[%s2 + $0x8] sm:$0xff]
        %v624 = vsel %vm523, %v621, 0
        %v627 = vsel %vm523, %v622, 0
        %629 = vmatprep.subr.mxu0 0.0
        %630 = vmatpush1.msra.mxu0 %v603
        %631 = vmatprep.subr.mxu0 0.0
        %632 = vmatpush1.msra.mxu0 0.0
        %633 = vmatprep.subr.mxu0 0.0
        %634 = vmatpush1.msra.mxu0 0.0
        %635 = vmatprep.subr.mxu0 0.0
        %636 = vmatpush1.msra.mxu0 0.0
        %637 = vmatprep.subr.mxu0 0.0
        %638 = vmatpush1.msra.mxu0 0.0
        %639 = vmatprep.subr.mxu0 0.0
        %640 = vmatpush1.msra.mxu0 0.0
        %641 = vmatprep.subr.mxu0 0.0
        %642 = vmatpush1.msra.mxu0 0.0
        %643 = vmatprep.subr.mxu0 0.0
        %644 = vmatpush1.msra.mxu0 0.0
        %645 = vmatprep.subr.mxu0 0.0
        %646 = vmatpush1.msra.mxu0 0.0
        %647 = vmatprep.subr.mxu0 0.0
        %648 = vmatpush1.msra.mxu0 0.0
        %649 = vmatprep.subr.mxu0 0.0
        %650 = vmatpush1.msra.mxu0 0.0
        %651 = vmatprep.subr.mxu0 0.0
        %652 = vmatpush1.msra.mxu0 0.0
        %653 = vmatprep.subr.mxu0 0.0
        %654 = vmatpush1.msra.mxu0 0.0
        %655 = vmatprep.subr.mxu0 0.0
        %656 = vmatpush1.msra.mxu0 0.0
        %657 = vmatprep.subr.mxu0 0.0
        %658 = vmatpush1.msra.mxu0 0.0
        %659 = vmatprep.subr.mxu0 0.0
        %660 = vmatpush1.msra.mxu0 0.0
        %661 = vmatprep.subr.mxu0 0.0
        %662 = vmatpush1.msra.mxu0 0.0
        %663 = vmatprep.subr.mxu0 0.0
        %664 = vmatpush1.msra.mxu0 0.0
        %665 = vmatprep.subr.mxu0 0.0
        %666 = vmatpush1.msra.mxu0 0.0
        %667 = vmatprep.subr.mxu0 0.0
        %668 = vmatpush1.msra.mxu0 0.0
        %669 = vmatprep.subr.mxu0 0.0
        %670 = vmatpush1.msra.mxu0 0.0
        %671 = vmatprep.subr.mxu0 0.0
        %672 = vmatpush1.msra.mxu0 0.0
        %673 = vmatprep.subr.mxu0 0.0
        %674 = vmatpush1.msra.mxu0 0.0
        %675 = vmatprep.subr.mxu0 0.0
        %676 = vmatpush1.msra.mxu0 0.0
        %677 = vmatprep.subr.mxu0 0.0
        %678 = vmatpush1.msra.mxu0 0.0
        %679 = vmatprep.subr.mxu0 0.0
        %680 = vmatpush1.msra.mxu0 0.0
        %681 = vmatprep.subr.mxu0 0.0
        %682 = vmatpush1.msra.mxu0 0.0
        %683 = vmatprep.subr.mxu0 0.0
        %684 = vmatpush1.msra.mxu0 0.0
        %685 = vmatprep.subr.mxu0 0.0
        %686 = vmatpush1.msra.mxu0 0.0
        %687 = vmatprep.subr.mxu0 0.0
        %688 = vmatpush1.msra.mxu0 0.0
        %689 = vmatprep.subr.mxu0 0.0
        %690 = vmatpush1.msra.mxu0 0.0
        %691 = vmatprep.subr.mxu0 0.0
        %692 = vmatpush1.msra.mxu0 0.0
        %693 = vmatprep.mubr.f32.mxu0 0.0
        %694 = vmatmul.mubr.f32.gmra.mrb[0].mxu0 %v624
        %v695 = vpop.f32.mrb[0].mxu0
        %v696 = vadd.f32 0.0, %v695
        %v697 = vpop.f32.mrb[0].mxu0
        %698 = vmatprep.mubr.f32.mxu0 0.0
        %699 = vmatmul.mubr.f32.gmra.mrb[0].mxu0 %v627
        %v700 = vpop.f32.mrb[0].mxu0
        %v701 = vadd.f32 0.0, %v700
        %v702 = vpop.f32.mrb[0].mxu0
        %703 = vdwg.mxu0
        %704 = vmatprep.subr.mxu0 0.0
        %705 = vmatpush1.msra.mxu0 %v608
        %706 = vmatprep.subr.mxu0 0.0
        %707 = vmatpush1.msra.mxu0 0.0
        %708 = vmatprep.subr.mxu0 0.0
        %709 = vmatpush1.msra.mxu0 0.0
        %710 = vmatprep.subr.mxu0 0.0
        %711 = vmatpush1.msra.mxu0 0.0
        %712 = vmatprep.subr.mxu0 0.0
        %713 = vmatpush1.msra.mxu0 0.0
        %714 = vmatprep.subr.mxu0 0.0
        %715 = vmatpush1.msra.mxu0 0.0
        %716 = vmatprep.subr.mxu0 0.0
        %717 = vmatpush1.msra.mxu0 0.0
        %718 = vmatprep.subr.mxu0 0.0
        %719 = vmatpush1.msra.mxu0 0.0
        %720 = vmatprep.subr.mxu0 0.0
        %721 = vmatpush1.msra.mxu0 0.0
        %722 = vmatprep.subr.mxu0 0.0
        %723 = vmatpush1.msra.mxu0 0.0
        %724 = vmatprep.subr.mxu0 0.0
        %725 = vmatpush1.msra.mxu0 0.0
        %726 = vmatprep.subr.mxu0 0.0
        %727 = vmatpush1.msra.mxu0 0.0
        %728 = vmatprep.subr.mxu0 0.0
        %729 = vmatpush1.msra.mxu0 0.0
        %730 = vmatprep.subr.mxu0 0.0
        %731 = vmatpush1.msra.mxu0 0.0
        %732 = vmatprep.subr.mxu0 0.0
        %733 = vmatpush1.msra.mxu0 0.0
        %734 = vmatprep.subr.mxu0 0.0
        %735 = vmatpush1.msra.mxu0 0.0
        %736 = vmatprep.subr.mxu0 0.0
        %737 = vmatpush1.msra.mxu0 0.0
        %738 = vmatprep.subr.mxu0 0.0
        %739 = vmatpush1.msra.mxu0 0.0
        %740 = vmatprep.subr.mxu0 0.0
        %741 = vmatpush1.msra.mxu0 0.0
        %742 = vmatprep.subr.mxu0 0.0
        %743 = vmatpush1.msra.mxu0 0.0
        %744 = vmatprep.subr.mxu0 0.0
        %745 = vmatpush1.msra.mxu0 0.0
        %746 = vmatprep.subr.mxu0 0.0
        %747 = vmatpush1.msra.mxu0 0.0
        %748 = vmatprep.subr.mxu0 0.0
        %749 = vmatpush1.msra.mxu0 0.0
        %750 = vmatprep.subr.mxu0 0.0
        %751 = vmatpush1.msra.mxu0 0.0
        %752 = vmatprep.subr.mxu0 0.0
        %753 = vmatpush1.msra.mxu0 0.0
        %754 = vmatprep.subr.mxu0 0.0
        %755 = vmatpush1.msra.mxu0 0.0
        %756 = vmatprep.subr.mxu0 0.0
        %757 = vmatpush1.msra.mxu0 0.0
        %758 = vmatprep.subr.mxu0 0.0
        %759 = vmatpush1.msra.mxu0 0.0
        %760 = vmatprep.subr.mxu0 0.0
        %761 = vmatpush1.msra.mxu0 0.0
        %762 = vmatprep.subr.mxu0 0.0
        %763 = vmatpush1.msra.mxu0 0.0
        %764 = vmatprep.subr.mxu0 0.0
        %765 = vmatpush1.msra.mxu0 0.0
        %766 = vmatprep.subr.mxu0 0.0
        %767 = vmatpush1.msra.mxu0 0.0
        %768 = vmatprep.mubr.f32.mxu0 0.0
        %769 = vmatmul.mubr.f32.gmra.mrb[0].mxu0 %v624
        %v770 = vpop.f32.mrb[0].mxu0
        %v771 = vadd.f32 0.0, %v770
        %v772 = vpop.f32.mrb[0].mxu0
        %773 = vmatprep.mubr.f32.mxu0 0.0
        %774 = vmatmul.mubr.f32.gmra.mrb[0].mxu0 %v627
        %v775 = vpop.f32.mrb[0].mxu0
        %v776 = vadd.f32 0.0, %v775
        %v777 = vpop.f32.mrb[0].mxu0
        %778 = vdwg.mxu0
        %779 = vmatprep.subr.mxu0 0.0
        %780 = vmatpush1.msra.mxu0 %v613
        %781 = vmatprep.subr.mxu0 0.0
        %782 = vmatpush1.msra.mxu0 0.0
        %783 = vmatprep.subr.mxu0 0.0
        %784 = vmatpush1.msra.mxu0 0.0
        %785 = vmatprep.subr.mxu0 0.0
        %786 = vmatpush1.msra.mxu0 0.0
        %787 = vmatprep.subr.mxu0 0.0
        %788 = vmatpush1.msra.mxu0 0.0
        %789 = vmatprep.subr.mxu0 0.0
        %790 = vmatpush1.msra.mxu0 0.0
        %791 = vmatprep.subr.mxu0 0.0
        %792 = vmatpush1.msra.mxu0 0.0
        %793 = vmatprep.subr.mxu0 0.0
        %794 = vmatpush1.msra.mxu0 0.0
        %795 = vmatprep.subr.mxu0 0.0
        %796 = vmatpush1.msra.mxu0 0.0
        %797 = vmatprep.subr.mxu0 0.0
        %798 = vmatpush1.msra.mxu0 0.0
        %799 = vmatprep.subr.mxu0 0.0
        %800 = vmatpush1.msra.mxu0 0.0
        %801 = vmatprep.subr.mxu0 0.0
        %802 = vmatpush1.msra.mxu0 0.0
        %803 = vmatprep.subr.mxu0 0.0
        %804 = vmatpush1.msra.mxu0 0.0
        %805 = vmatprep.subr.mxu0 0.0
        %806 = vmatpush1.msra.mxu0 0.0
        %807 = vmatprep.subr.mxu0 0.0
        %808 = vmatpush1.msra.mxu0 0.0
        %809 = vmatprep.subr.mxu0 0.0
        %810 = vmatpush1.msra.mxu0 0.0
        %811 = vmatprep.subr.mxu0 0.0
        %812 = vmatpush1.msra.mxu0 0.0
        %813 = vmatprep.subr.mxu0 0.0
        %814 = vmatpush1.msra.mxu0 0.0
        %815 = vmatprep.subr.mxu0 0.0
        %816 = vmatpush1.msra.mxu0 0.0
        %817 = vmatprep.subr.mxu0 0.0
        %818 = vmatpush1.msra.mxu0 0.0
        %819 = vmatprep.subr.mxu0 0.0
        %820 = vmatpush1.msra.mxu0 0.0
        %821 = vmatprep.subr.mxu0 0.0
        %822 = vmatpush1.msra.mxu0 0.0
        %823 = vmatprep.subr.mxu0 0.0
        %824 = vmatpush1.msra.mxu0 0.0
        %825 = vmatprep.subr.mxu0 0.0
        %826 = vmatpush1.msra.mxu0 0.0
        %827 = vmatprep.subr.mxu0 0.0
        %828 = vmatpush1.msra.mxu0 0.0
        %829 = vmatprep.subr.mxu0 0.0
        %830 = vmatpush1.msra.mxu0 0.0
        %831 = vmatprep.subr.mxu0 0.0
        %832 = vmatpush1.msra.mxu0 0.0
        %833 = vmatprep.subr.mxu0 0.0
        %834 = vmatpush1.msra.mxu0 0.0
        %835 = vmatprep.subr.mxu0 0.0
        %836 = vmatpush1.msra.mxu0 0.0
        %837 = vmatprep.subr.mxu0 0.0
        %838 = vmatpush1.msra.mxu0 0.0
        %839 = vmatprep.subr.mxu0 0.0
        %840 = vmatpush1.msra.mxu0 0.0
        %841 = vmatprep.subr.mxu0 0.0
        %842 = vmatpush1.msra.mxu0 0.0
        %843 = vmatprep.mubr.f32.mxu0 0.0
        %844 = vmatmul.mubr.f32.gmra.mrb[0].mxu0 %v624
        %v845 = vpop.f32.mrb[0].mxu0
        %v846 = vadd.f32 0.0, %v845
        %v847 = vpop.f32.mrb[0].mxu0
        %848 = vmatprep.mubr.f32.mxu0 0.0
        %849 = vmatmul.mubr.f32.gmra.mrb[0].mxu0 %v627
        %v850 = vpop.f32.mrb[0].mxu0
        %v851 = vadd.f32 0.0, %v850
        %v852 = vpop.f32.mrb[0].mxu0
        %853 = vdwg.mxu0
        %854 = vmatprep.subr.mxu0 0.0
        %855 = vmatpush1.msra.mxu0 %v618
        %856 = vmatprep.subr.mxu0 0.0
        %857 = vmatpush1.msra.mxu0 0.0
        %858 = vmatprep.subr.mxu0 0.0
        %859 = vmatpush1.msra.mxu0 0.0
        %860 = vmatprep.subr.mxu0 0.0
        %861 = vmatpush1.msra.mxu0 0.0
        %862 = vmatprep.subr.mxu0 0.0
        %863 = vmatpush1.msra.mxu0 0.0
        %864 = vmatprep.subr.mxu0 0.0
        %865 = vmatpush1.msra.mxu0 0.0
        %866 = vmatprep.subr.mxu0 0.0
        %867 = vmatpush1.msra.mxu0 0.0
        %868 = vmatprep.subr.mxu0 0.0
        %869 = vmatpush1.msra.mxu0 0.0
        %870 = vmatprep.subr.mxu0 0.0
        %871 = vmatpush1.msra.mxu0 0.0
        %872 = vmatprep.subr.mxu0 0.0
        %873 = vmatpush1.msra.mxu0 0.0
        %874 = vmatprep.subr.mxu0 0.0
        %875 = vmatpush1.msra.mxu0 0.0
        %876 = vmatprep.subr.mxu0 0.0
        %877 = vmatpush1.msra.mxu0 0.0
        %878 = vmatprep.subr.mxu0 0.0
        %879 = vmatpush1.msra.mxu0 0.0
        %880 = vmatprep.subr.mxu0 0.0
        %881 = vmatpush1.msra.mxu0 0.0
        %882 = vmatprep.subr.mxu0 0.0
        %883 = vmatpush1.msra.mxu0 0.0
        %884 = vmatprep.subr.mxu0 0.0
        %885 = vmatpush1.msra.mxu0 0.0
        %886 = vmatprep.subr.mxu0 0.0
        %887 = vmatpush1.msra.mxu0 0.0
        %888 = vmatprep.subr.mxu0 0.0
        %889 = vmatpush1.msra.mxu0 0.0
        %890 = vmatprep.subr.mxu0 0.0
        %891 = vmatpush1.msra.mxu0 0.0
        %892 = vmatprep.subr.mxu0 0.0
        %893 = vmatpush1.msra.mxu0 0.0
        %894 = vmatprep.subr.mxu0 0.0
        %895 = vmatpush1.msra.mxu0 0.0
        %896 = vmatprep.subr.mxu0 0.0
        %897 = vmatpush1.msra.mxu0 0.0
        %898 = vmatprep.subr.mxu0 0.0
        %899 = vmatpush1.msra.mxu0 0.0
        %900 = vmatprep.subr.mxu0 0.0
        %901 = vmatpush1.msra.mxu0 0.0
        %902 = vmatprep.subr.mxu0 0.0
        %903 = vmatpush1.msra.mxu0 0.0
        %904 = vmatprep.subr.mxu0 0.0
        %905 = vmatpush1.msra.mxu0 0.0
        %906 = vmatprep.subr.mxu0 0.0
        %907 = vmatpush1.msra.mxu0 0.0
        %908 = vmatprep.subr.mxu0 0.0
        %909 = vmatpush1.msra.mxu0 0.0
        %910 = vmatprep.subr.mxu0 0.0
        %911 = vmatpush1.msra.mxu0 0.0
        %912 = vmatprep.subr.mxu0 0.0
        %913 = vmatpush1.msra.mxu0 0.0
        %914 = vmatprep.subr.mxu0 0.0
        %915 = vmatpush1.msra.mxu0 0.0
        %916 = vmatprep.subr.mxu0 0.0
        %917 = vmatpush1.msra.mxu0 0.0
        %918 = vmatprep.mubr.f32.mxu0 0.0
        %919 = vmatmul.mubr.f32.gmra.mrb[0].mxu0 %v624
        %v920 = vpop.f32.mrb[0].mxu0
        %v921 = vadd.f32 0.0, %v920
        %v922 = vpop.f32.mrb[0].mxu0
        %923 = vmatprep.mubr.f32.mxu0 0.0
        %924 = vmatmul.mubr.f32.gmra.mrb[0].mxu0 %v627
        %v925 = vpop.f32.mrb[0].mxu0
        %v926 = vadd.f32 0.0, %v925
        %v927 = vpop.f32.mrb[0].mxu0
        %928 = vdwg.mxu0
        %v929 = vld [vmem:[%s326] sm:$0xf]
        %v930 = vld [vmem:[%s326 + $0x4] sm:$0xf]
        %v931 = vld [vmem:[%s326 + $0x8] sm:$0xf]
        %v932 = vld [vmem:[%s326 + $0xc] sm:$0xf]
        %v933 = vld [vmem:[%s326 + $0x10] sm:$0xf]
        %v934 = vld [vmem:[%s326 + $0x14] sm:$0xf]
        %v935 = vld [vmem:[%s326 + $0x18] sm:$0xf]
        %v936 = vld [vmem:[%s326 + $0x1c] sm:$0xf]
        %vm937 = vsmask.f32 4368
        %vm938 = vmor %vm366, %vm937
        %v940 = vshrl.u32 %v929, 16
        %v942 = vrot.slane %v940, 7
        %v943 = vshll.u32 %v929, 16
        %v945 = vor.u32 %v942, %v943
        %v946 = vrot.slane %v942, 4
        %v948 = vshrl.u32 %v930, 16
        %v950 = vrot.slane %v948, 7
        %v951 = vshll.u32 %v930, 16
        %v953 = vor.u32 %v950, %v951
        %v954 = vsel %vm938, %v946, %v953
        %v955 = vrot.slane %v950, 4
        %v957 = vshrl.u32 %v931, 16
        %v959 = vrot.slane %v957, 7
        %v960 = vshll.u32 %v931, 16
        %v962 = vor.u32 %v959, %v960
        %v963 = vrot.slane %v959, 4
        %v965 = vshrl.u32 %v932, 16
        %v967 = vrot.slane %v965, 7
        %v968 = vshll.u32 %v932, 16
        %v970 = vor.u32 %v967, %v968
        %v971 = vsel %vm938, %v963, %v970
        %v972 = vrot.slane %v967, 4
        %v974 = vshrl.u32 %v933, 16
        %v976 = vrot.slane %v974, 7
        %v977 = vshll.u32 %v933, 16
        %v979 = vor.u32 %v976, %v977
        %v980 = vrot.slane %v976, 4
        %v982 = vshrl.u32 %v934, 16
        %v984 = vrot.slane %v982, 7
        %v985 = vshll.u32 %v934, 16
        %v987 = vor.u32 %v984, %v985
        %v988 = vsel %vm938, %v980, %v987
        %v989 = vrot.slane %v984, 4
        %v991 = vshrl.u32 %v935, 16
        %v993 = vrot.slane %v991, 7
        %v994 = vshll.u32 %v935, 16
        %v996 = vor.u32 %v993, %v994
        %v997 = vrot.slane %v993, 4
        %v999 = vshrl.u32 %v936, 16
        %v1001 = vrot.slane %v999, 7
        %v1002 = vshll.u32 %v936, 16
        %v1004 = vor.u32 %v1001, %v1002
        %v1005 = vsel %vm938, %v997, %v1004
        %v1006 = vrot.slane %v1001, 4
        %1007 = vrot.lane.b32.xlu0 %v945, 1
        %v1008 = vpop.permute.xlu0 %1007
        %1009 = vrot.lane.b32.xlu0 %v954, 1
        %v1010 = vpop.permute.xlu0 %1009
        %1011 = vrot.lane.b32.xlu0 %v955, 1
        %v1012 = vpop.permute.xlu0 %1011
        %1013 = vrot.lane.b32.xlu0 %v962, 1
        %v1014 = vpop.permute.xlu0 %1013
        %1015 = vrot.lane.b32.xlu0 %v971, 1
        %v1016 = vpop.permute.xlu0 %1015
        %1017 = vrot.lane.b32.xlu0 %v972, 1
        %v1018 = vpop.permute.xlu0 %1017
        %1019 = vrot.lane.b32.xlu0 %v979, 1
        %v1020 = vpop.permute.xlu0 %1019
        %1021 = vrot.lane.b32.xlu0 %v988, 1
        %v1022 = vpop.permute.xlu0 %1021
        %1023 = vrot.lane.b32.xlu0 %v989, 1
        %v1024 = vpop.permute.xlu0 %1023
        %1025 = vrot.lane.b32.xlu0 %v996, 1
        %v1026 = vpop.permute.xlu0 %1025
        %1027 = vrot.lane.b32.xlu0 %v1005, 1
        %v1028 = vpop.permute.xlu0 %1027
        %1029 = vrot.lane.b32.xlu0 %v1006, 1
        %v1030 = vpop.permute.xlu0 %1029
        %vm1043 = vcmask 134152
        %vm1044 = vmand %vm1043, %vm392
        %v1045 = vld [vmem:[#allocation2] sm:$0xf]
        %v1046 = vsel %vm1044, %v1008, %v1045
        %1047 = vst [vmem:[#allocation2] sm:$0xf] %v1046
        %vm1048 = vcmask 134152
        %1049 = vst.msk [vmem:[#allocation2 + $0x4] sm:$0xf] %vm1048, %v1010
        %vm1050 = vcmask 131080
        %vm1051 = vmand %vm1050, %vm366
        %v1052 = vld [vmem:[#allocation2 + $0x8] sm:$0x1]
        %v1053 = vsel %vm1051, %v1012, %v1052
        %1054 = vst [vmem:[#allocation2 + $0x8] sm:$0x1] %v1053
        %v1055 = vld [vmem:[#allocation2 + $0xc] sm:$0xf]
        %v1056 = vsel %vm1044, %v1014, %v1055
        %1057 = vst [vmem:[#allocation2 + $0xc] sm:$0xf] %v1056
        %1058 = vst.msk [vmem:[#allocation2 + $0x10] sm:$0xf] %vm1048, %v1016
        %v1059 = vld [vmem:[#allocation2 + $0x14] sm:$0x1]
        %v1060 = vsel %vm1051, %v1018, %v1059
        %1061 = vst [vmem:[#allocation2 + $0x14] sm:$0x1] %v1060
        %v1062 = vld [vmem:[#allocation2 + $0x18] sm:$0xf]
        %v1063 = vsel %vm1044, %v1020, %v1062
        %1064 = vst [vmem:[#allocation2 + $0x18] sm:$0xf] %v1063
        %1065 = vst.msk [vmem:[#allocation2 + $0x1c] sm:$0xf] %vm1048, %v1022
        %v1066 = vld [vmem:[#allocation2 + $0x20] sm:$0x1]
        %v1067 = vsel %vm1051, %v1024, %v1066
        %1068 = vst [vmem:[#allocation2 + $0x20] sm:$0x1] %v1067
        %v1069 = vld [vmem:[#allocation2 + $0x24] sm:$0xf]
        %v1070 = vsel %vm1044, %v1026, %v1069
        %1071 = vst [vmem:[#allocation2 + $0x24] sm:$0xf] %v1070
        %1072 = vst.msk [vmem:[#allocation2 + $0x28] sm:$0xf] %vm1048, %v1028
        %v1073 = vld [vmem:[#allocation2 + $0x2c] sm:$0x1]
        %v1074 = vsel %vm1051, %v1030, %v1073
        %1075 = vst [vmem:[#allocation2 + $0x2c] sm:$0x1] %v1074
        %v1076 = vpack.c.bf16 %v701, %v696
        %v1077 = vpack.c.bf16 %v776, %v771
        %v1078 = vpack.c.bf16 %v851, %v846
        %v1079 = vpack.c.bf16 %v926, %v921
        %v1084 = vunpack.c.l.b16 %v1076
        %v1085 = vunpack.c.h.b16 %v1076
        %v1086 = vunpack.c.l.b16 %v1077
        %v1087 = vunpack.c.h.b16 %v1077
        %v1088 = vunpack.c.l.b16 %v1078
        %v1089 = vunpack.c.h.b16 %v1078
        %v1090 = vunpack.c.l.b16 %v1079
        %v1091 = vunpack.c.h.b16 %v1079
        %v1092 = vpack.c.b16 %v1084, %v1084
        %v1093 = vpack.c.b16 %v1085, %v1085
        %v1094 = vpack.c.b16 %v1086, %v1086
        %v1095 = vpack.c.b16 %v1087, %v1087
        %v1096 = vpack.c.b16 %v1088, %v1088
        %v1097 = vpack.c.b16 %v1089, %v1089
        %v1098 = vpack.c.b16 %v1090, %v1090
        %v1099 = vpack.c.b16 %v1091, %v1091
        %v1101 = vshrl.u32 %v1092, 16
        %v1103 = vrot.slane %v1101, 7
        %v1104 = vshll.u32 %v1092, 16
        %v1106 = vor.u32 %v1103, %v1104
        %v1107 = vrot.slane %v1103, 4
        %v1109 = vshrl.u32 %v1093, 16
        %v1111 = vrot.slane %v1109, 7
        %v1112 = vshll.u32 %v1093, 16
        %v1114 = vor.u32 %v1111, %v1112
        %v1115 = vsel %vm938, %v1107, %v1114
        %v1116 = vrot.slane %v1111, 4
        %v1118 = vshrl.u32 %v1094, 16
        %v1120 = vrot.slane %v1118, 7
        %v1121 = vshll.u32 %v1094, 16
        %v1123 = vor.u32 %v1120, %v1121
        %v1124 = vrot.slane %v1120, 4
        %v1126 = vshrl.u32 %v1095, 16
        %v1128 = vrot.slane %v1126, 7
        %v1129 = vshll.u32 %v1095, 16
        %v1131 = vor.u32 %v1128, %v1129
        %v1132 = vsel %vm938, %v1124, %v1131
        %v1133 = vrot.slane %v1128, 4
        %v1135 = vshrl.u32 %v1096, 16
        %v1137 = vrot.slane %v1135, 7
        %v1138 = vshll.u32 %v1096, 16
        %v1140 = vor.u32 %v1137, %v1138
        %v1141 = vrot.slane %v1137, 4
        %v1143 = vshrl.u32 %v1097, 16
        %v1145 = vrot.slane %v1143, 7
        %v1146 = vshll.u32 %v1097, 16
        %v1148 = vor.u32 %v1145, %v1146
        %v1149 = vsel %vm938, %v1141, %v1148
        %v1150 = vrot.slane %v1145, 4
        %v1152 = vshrl.u32 %v1098, 16
        %v1154 = vrot.slane %v1152, 7
        %v1155 = vshll.u32 %v1098, 16
        %v1157 = vor.u32 %v1154, %v1155
        %v1158 = vrot.slane %v1154, 4
        %v1160 = vshrl.u32 %v1099, 16
        %v1162 = vrot.slane %v1160, 7
        %v1163 = vshll.u32 %v1099, 16
        %v1165 = vor.u32 %v1162, %v1163
        %v1166 = vsel %vm938, %v1158, %v1165
        %v1167 = vrot.slane %v1162, 4
        %1168 = vrot.lane.b32.xlu0 %v1106, 1
        %v1169 = vpop.permute.xlu0 %1168
        %1170 = vrot.lane.b32.xlu0 %v1115, 1
        %v1171 = vpop.permute.xlu0 %1170
        %1172 = vrot.lane.b32.xlu0 %v1116, 1
        %v1173 = vpop.permute.xlu0 %1172
        %1174 = vrot.lane.b32.xlu0 %v1123, 1
        %v1175 = vpop.permute.xlu0 %1174
        %1176 = vrot.lane.b32.xlu0 %v1132, 1
        %v1177 = vpop.permute.xlu0 %1176
        %1178 = vrot.lane.b32.xlu0 %v1133, 1
        %v1179 = vpop.permute.xlu0 %1178
        %1180 = vrot.lane.b32.xlu0 %v1140, 1
        %v1181 = vpop.permute.xlu0 %1180
        %1182 = vrot.lane.b32.xlu0 %v1149, 1
        %v1183 = vpop.permute.xlu0 %1182
        %1184 = vrot.lane.b32.xlu0 %v1150, 1
        %v1185 = vpop.permute.xlu0 %1184
        %1186 = vrot.lane.b32.xlu0 %v1157, 1
        %v1187 = vpop.permute.xlu0 %1186
        %1188 = vrot.lane.b32.xlu0 %v1166, 1
        %v1189 = vpop.permute.xlu0 %1188
        %1190 = vrot.lane.b32.xlu0 %v1167, 1
        %v1191 = vpop.permute.xlu0 %1190
        %s1204 = scalar_lea.vmem [#allocation2], 48
        %v1205 = vld [vmem:[%s1204] sm:$0xf]
        %v1206 = vsel %vm1044, %v1169, %v1205
        %1207 = vst [vmem:[%s1204] sm:$0xf] %v1206
        %1208 = vst.msk [vmem:[%s1204 + $0x4] sm:$0xf] %vm1048, %v1171
        %v1209 = vld [vmem:[%s1204 + $0x8] sm:$0x1]
        %v1210 = vsel %vm1051, %v1173, %v1209
        %1211 = vst [vmem:[%s1204 + $0x8] sm:$0x1] %v1210
        %v1212 = vld [vmem:[%s1204 + $0xc] sm:$0xf]
        %v1213 = vsel %vm1044, %v1175, %v1212
        %1214 = vst [vmem:[%s1204 + $0xc] sm:$0xf] %v1213
        %1215 = vst.msk [vmem:[%s1204 + $0x10] sm:$0xf] %vm1048, %v1177
        %v1216 = vld [vmem:[%s1204 + $0x14] sm:$0x1]
        %v1217 = vsel %vm1051, %v1179, %v1216
        %1218 = vst [vmem:[%s1204 + $0x14] sm:$0x1] %v1217
        %v1219 = vld [vmem:[%s1204 + $0x18] sm:$0xf]
        %v1220 = vsel %vm1044, %v1181, %v1219
        %1221 = vst [vmem:[%s1204 + $0x18] sm:$0xf] %v1220
        %1222 = vst.msk [vmem:[%s1204 + $0x1c] sm:$0xf] %vm1048, %v1183
        %v1223 = vld [vmem:[%s1204 + $0x20] sm:$0x1]
        %v1224 = vsel %vm1051, %v1185, %v1223
        %1225 = vst [vmem:[%s1204 + $0x20] sm:$0x1] %v1224
        %v1226 = vld [vmem:[%s1204 + $0x24] sm:$0xf]
        %v1227 = vsel %vm1044, %v1187, %v1226
        %1228 = vst [vmem:[%s1204 + $0x24] sm:$0xf] %v1227
        %1229 = vst.msk [vmem:[%s1204 + $0x28] sm:$0xf] %vm1048, %v1189
        %v1230 = vld [vmem:[%s1204 + $0x2c] sm:$0x1]
        %v1231 = vsel %vm1051, %v1191, %v1230
        %1232 = vst [vmem:[%s1204 + $0x2c] sm:$0x1] %v1231
        %v1233 = vld [vmem:[#allocation2] sm:$0xf]
        %v1234 = vld [vmem:[#allocation2 + $0x4] sm:$0xf]
        %v1235 = vld [vmem:[#allocation2 + $0x8] sm:$0x1]
        %v1236 = vld [vmem:[#allocation2 + $0xc] sm:$0xf]
        %v1237 = vld [vmem:[#allocation2 + $0x10] sm:$0xf]
        %v1238 = vld [vmem:[#allocation2 + $0x14] sm:$0x1]
        %v1239 = vld [vmem:[#allocation2 + $0x18] sm:$0xf]
        %v1240 = vld [vmem:[#allocation2 + $0x1c] sm:$0xf]
        %v1241 = vld [vmem:[#allocation2 + $0x20] sm:$0x1]
        %v1242 = vld [vmem:[#allocation2 + $0x24] sm:$0xf]
        %v1243 = vld [vmem:[#allocation2 + $0x28] sm:$0xf]
        %v1244 = vld [vmem:[#allocation2 + $0x2c] sm:$0x1]
        %v1245 = vld [vmem:[#allocation2 + $0x30] sm:$0xf]
        %v1246 = vld [vmem:[#allocation2 + $0x34] sm:$0xf]
        %v1247 = vld [vmem:[#allocation2 + $0x38] sm:$0x1]
        %v1248 = vld [vmem:[#allocation2 + $0x3c] sm:$0xf]
        %v1249 = vld [vmem:[#allocation2 + $0x40] sm:$0xf]
        %v1250 = vld [vmem:[#allocation2 + $0x44] sm:$0x1]
        %v1251 = vld [vmem:[#allocation2 + $0x48] sm:$0xf]
        %v1252 = vld [vmem:[#allocation2 + $0x4c] sm:$0xf]
        %v1253 = vld [vmem:[#allocation2 + $0x50] sm:$0x1]
        %v1254 = vld [vmem:[#allocation2 + $0x54] sm:$0xf]
        %v1255 = vld [vmem:[#allocation2 + $0x58] sm:$0xf]
        %v1256 = vld [vmem:[#allocation2 + $0x5c] sm:$0x1]
        %v1257 = vld [vmem:[%s4] sm:$0x3]
        %v1258 = vld [vmem:[%s5] sm:$0xf]
        %1260 = vset.pattern.permute.xlu0 0
        %1261 = vperm.xlu0 %1260, %v1258
        %v1262 = vpop.permute.xlu0 %1261
        %v1264 = vcombine.low %v1233, %v1245
        %v1266 = vunpack.c.l.s4 1983009808
        %v1267 = vunpack.c.0.s8 %v1266
        %v1268 = vlaneseq
        %v1269 = vshrl.u32 %v1268, 7
        %v1270 = vsub.s32 %v1267, %v1269
        %v1271 = vrot.slane %v1264, %v1270
        %v1272 = vcombine.low %v1239, %v1251
        %v1274 = vunpack.c.l.s4 1983009808
        %v1275 = vunpack.c.0.s8 %v1274
        %v1276 = vlaneseq
        %v1277 = vshrl.u32 %v1276, 7
        %v1278 = vsub.s32 %v1275, %v1277
        %v1279 = vrot.slane %v1272, %v1278
        %v1280 = vcombine.low %v1271, %v1279
        %v1281 = vcombine.high %v1271, %v1279
        %v1283 = vunpack.c.l.s4 1934713408
        %v1284 = vunpack.c.0.s8 %v1283
        %v1285 = vlaneseq
        %v1286 = vshrl.u32 %v1285, 7
        %v1287 = vsub.s32 %v1284, %v1286
        %v1288 = vrot.slane %v1280, %v1287
        %v1290 = vunpack.c.l.s4 1934713408
        %v1291 = vunpack.c.0.s8 %v1290
        %v1292 = vlaneseq
        %v1293 = vshrl.u32 %v1292, 7
        %v1294 = vsub.s32 %v1291, %v1293
        %v1295 = vrot.slane %v1281, %v1294
        %v1296 = vcombine.high %v1288, 0
        %v1297 = vcombine.high %v1295, 0
        %v1298 = vcombine.low %v1236, %v1248
        %v1300 = vunpack.c.l.s4 1983009808
        %v1301 = vunpack.c.0.s8 %v1300
        %v1302 = vlaneseq
        %v1303 = vshrl.u32 %v1302, 7
        %v1304 = vsub.s32 %v1301, %v1303
        %v1305 = vrot.slane %v1298, %v1304
        %v1306 = vcombine.low %v1242, %v1254
        %v1308 = vunpack.c.l.s4 1983009808
        %v1309 = vunpack.c.0.s8 %v1308
        %v1310 = vlaneseq
        %v1311 = vshrl.u32 %v1310, 7
        %v1312 = vsub.s32 %v1309, %v1311
        %v1313 = vrot.slane %v1306, %v1312
        %v1314 = vcombine.low %v1305, %v1313
        %v1315 = vcombine.high %v1305, %v1313
        %v1317 = vunpack.c.l.s4 1934713408
        %v1318 = vunpack.c.0.s8 %v1317
        %v1319 = vlaneseq
        %v1320 = vshrl.u32 %v1319, 7
        %v1321 = vsub.s32 %v1318, %v1320
        %v1322 = vrot.slane %v1314, %v1321
        %v1324 = vunpack.c.l.s4 1934713408
        %v1325 = vunpack.c.0.s8 %v1324
        %v1326 = vlaneseq
        %v1327 = vshrl.u32 %v1326, 7
        %v1328 = vsub.s32 %v1325, %v1327
        %v1329 = vrot.slane %v1315, %v1328
        %v1330 = vcombine.high %v1322, 0
        %v1331 = vcombine.high %v1329, 0
        %v1332 = vcombine.low %v1234, %v1246
        %v1334 = vunpack.c.l.s4 1983009808
        %v1335 = vunpack.c.0.s8 %v1334
        %v1336 = vlaneseq
        %v1337 = vshrl.u32 %v1336, 7
        %v1338 = vsub.s32 %v1335, %v1337
        %v1339 = vrot.slane %v1332, %v1338
        %v1340 = vcombine.low %v1240, %v1252
        %v1342 = vunpack.c.l.s4 1983009808
        %v1343 = vunpack.c.0.s8 %v1342
        %v1344 = vlaneseq
        %v1345 = vshrl.u32 %v1344, 7
        %v1346 = vsub.s32 %v1343, %v1345
        %v1347 = vrot.slane %v1340, %v1346
        %v1348 = vcombine.low %v1339, %v1347
        %v1349 = vcombine.high %v1339, %v1347
        %v1351 = vunpack.c.l.s4 1934713408
        %v1352 = vunpack.c.0.s8 %v1351
        %v1353 = vlaneseq
        %v1354 = vshrl.u32 %v1353, 7
        %v1355 = vsub.s32 %v1352, %v1354
        %v1356 = vrot.slane %v1348, %v1355
        %v1358 = vunpack.c.l.s4 1934713408
        %v1359 = vunpack.c.0.s8 %v1358
        %v1360 = vlaneseq
        %v1361 = vshrl.u32 %v1360, 7
        %v1362 = vsub.s32 %v1359, %v1361
        %v1363 = vrot.slane %v1349, %v1362
        %v1364 = vcombine.high %v1356, 0
        %v1365 = vcombine.high %v1363, 0
        %v1366 = vcombine.low %v1237, %v1249
        %v1368 = vunpack.c.l.s4 1983009808
        %v1369 = vunpack.c.0.s8 %v1368
        %v1370 = vlaneseq
        %v1371 = vshrl.u32 %v1370, 7
        %v1372 = vsub.s32 %v1369, %v1371
        %v1373 = vrot.slane %v1366, %v1372
        %v1374 = vcombine.low %v1243, %v1255
        %v1376 = vunpack.c.l.s4 1983009808
        %v1377 = vunpack.c.0.s8 %v1376
        %v1378 = vlaneseq
        %v1379 = vshrl.u32 %v1378, 7
        %v1380 = vsub.s32 %v1377, %v1379
        %v1381 = vrot.slane %v1374, %v1380
        %v1382 = vcombine.low %v1373, %v1381
        %v1383 = vcombine.high %v1373, %v1381
        %v1385 = vunpack.c.l.s4 1934713408
        %v1386 = vunpack.c.0.s8 %v1385
        %v1387 = vlaneseq
        %v1388 = vshrl.u32 %v1387, 7
        %v1389 = vsub.s32 %v1386, %v1388
        %v1390 = vrot.slane %v1382, %v1389
        %v1392 = vunpack.c.l.s4 1934713408
        %v1393 = vunpack.c.0.s8 %v1392
        %v1394 = vlaneseq
        %v1395 = vshrl.u32 %v1394, 7
        %v1396 = vsub.s32 %v1393, %v1395
        %v1397 = vrot.slane %v1383, %v1396
        %v1398 = vcombine.high %v1390, 0
        %v1399 = vcombine.high %v1397, 0
        %v1402 = vpack.i.b16 %v1322, %v1288
        %v1403 = vshrl.u32 %v1288, 16
        %v1404 = vshrl.u32 %v1322, 16
        %v1405 = vpack.i.b16 %v1404, %v1403
        %v1408 = vpack.i.b16 %v1330, %v1296
        %v1409 = vshrl.u32 %v1296, 16
        %v1410 = vshrl.u32 %v1330, 16
        %v1411 = vpack.i.b16 %v1410, %v1409
        %v1414 = vpack.i.b16 %v1329, %v1295
        %v1415 = vshrl.u32 %v1295, 16
        %v1416 = vshrl.u32 %v1329, 16
        %v1417 = vpack.i.b16 %v1416, %v1415
        %v1420 = vpack.i.b16 %v1331, %v1297
        %v1421 = vshrl.u32 %v1297, 16
        %v1422 = vshrl.u32 %v1331, 16
        %v1423 = vpack.i.b16 %v1422, %v1421
        %v1426 = vpack.i.b16 %v1390, %v1356
        %v1427 = vshrl.u32 %v1356, 16
        %v1428 = vshrl.u32 %v1390, 16
        %v1429 = vpack.i.b16 %v1428, %v1427
        %v1432 = vpack.i.b16 %v1398, %v1364
        %v1433 = vshrl.u32 %v1364, 16
        %v1434 = vshrl.u32 %v1398, 16
        %v1435 = vpack.i.b16 %v1434, %v1433
        %v1438 = vpack.i.b16 %v1397, %v1363
        %v1439 = vshrl.u32 %v1363, 16
        %v1440 = vshrl.u32 %v1397, 16
        %v1441 = vpack.i.b16 %v1440, %v1439
        %v1444 = vpack.i.b16 %v1399, %v1365
        %v1445 = vshrl.u32 %v1365, 16
        %v1446 = vshrl.u32 %v1399, 16
        %v1447 = vpack.i.b16 %v1446, %v1445
        %v1448 = vunpack.c.l.b16 %v1405
        %v1449 = vpack.c.b16 %v1448, %v1448
        %1450 = vrot.lane.b32.xlu0 %v1449, 16
        %v1451 = vpop.permute.xlu0 %1450
        %v1452 = vunpack.c.l.b16 %v1408
        %v1453 = vpack.c.b16 %v1452, %v1452
        %1454 = vrot.lane.b32.xlu0 %v1453, 32
        %v1455 = vpop.permute.xlu0 %1454
        %v1456 = vunpack.c.l.b16 %v1411
        %v1457 = vpack.c.b16 %v1456, %v1456
        %1458 = vrot.lane.b32.xlu0 %v1457, 48
        %v1459 = vpop.permute.xlu0 %1458
        %v1460 = vunpack.c.l.b16 %v1414
        %v1461 = vpack.c.b16 %v1460, %v1460
        %1462 = vrot.lane.b32.xlu0 %v1461, 64
        %v1463 = vpop.permute.xlu0 %1462
        %v1464 = vunpack.c.l.b16 %v1417
        %v1465 = vpack.c.b16 %v1464, %v1464
        %1466 = vrot.lane.b32.xlu0 %v1465, 80
        %v1467 = vpop.permute.xlu0 %1466
        %v1468 = vunpack.c.l.b16 %v1420
        %v1469 = vpack.c.b16 %v1468, %v1468
        %1470 = vrot.lane.b32.xlu0 %v1469, 96
        %v1471 = vpop.permute.xlu0 %1470
        %v1472 = vunpack.c.l.b16 %v1423
        %v1473 = vpack.c.b16 %v1472, %v1472
        %1474 = vrot.lane.b32.xlu0 %v1473, 112
        %v1475 = vpop.permute.xlu0 %1474
        %v1476 = vunpack.c.l.b16 %v1429
        %v1477 = vpack.c.b16 %v1476, %v1476
        %1478 = vrot.lane.b32.xlu0 %v1477, 16
        %v1479 = vpop.permute.xlu0 %1478
        %v1480 = vunpack.c.l.b16 %v1432
        %v1481 = vpack.c.b16 %v1480, %v1480
        %1482 = vrot.lane.b32.xlu0 %v1481, 32
        %v1483 = vpop.permute.xlu0 %1482
        %v1484 = vunpack.c.l.b16 %v1435
        %v1485 = vpack.c.b16 %v1484, %v1484
        %1486 = vrot.lane.b32.xlu0 %v1485, 48
        %v1487 = vpop.permute.xlu0 %1486
        %v1488 = vunpack.c.l.b16 %v1438
        %v1489 = vpack.c.b16 %v1488, %v1488
        %1490 = vrot.lane.b32.xlu0 %v1489, 64
        %v1491 = vpop.permute.xlu0 %1490
        %v1492 = vunpack.c.l.b16 %v1441
        %v1493 = vpack.c.b16 %v1492, %v1492
        %1494 = vrot.lane.b32.xlu0 %v1493, 80
        %v1495 = vpop.permute.xlu0 %1494
        %v1496 = vunpack.c.l.b16 %v1444
        %v1497 = vpack.c.b16 %v1496, %v1496
        %1498 = vrot.lane.b32.xlu0 %v1497, 96
        %v1499 = vpop.permute.xlu0 %1498
        %v1500 = vunpack.c.l.b16 %v1447
        %v1501 = vpack.c.b16 %v1500, %v1500
        %1502 = vrot.lane.b32.xlu0 %v1501, 112
        %v1503 = vpop.permute.xlu0 %1502
        %vm1504 = vcmask 130048
        %v1507 = vsel %vm1504, %v1402, %v1451
        %vm1508 = vcmask 261120
        %v1510 = vsel %vm1508, %v1507, %v1455
        %vm1511 = vcmask 392192
        %v1513 = vsel %vm1511, %v1510, %v1459
        %vm1514 = vcmask 523264
        %v1516 = vsel %vm1514, %v1513, %v1463
        %vm1517 = vcmask 654336
        %v1519 = vsel %vm1517, %v1516, %v1467
        %vm1520 = vcmask 785408
        %v1522 = vsel %vm1520, %v1519, %v1471
        %vm1523 = vcmask 916480
        %v1525 = vsel %vm1523, %v1522, %v1475
        %v1528 = vsel %vm1504, %v1426, %v1479
        %v1530 = vsel %vm1508, %v1528, %v1483
        %v1532 = vsel %vm1511, %v1530, %v1487
        %v1534 = vsel %vm1514, %v1532, %v1491
        %v1536 = vsel %vm1517, %v1534, %v1495
        %v1538 = vsel %vm1520, %v1536, %v1499
        %v1540 = vsel %vm1523, %v1538, %v1503
        %v1542 = vsel %vm523, %v1257, 0
        %vm1544 = vcmask 1043456
        %v1545 = vsel %vm1544, %v1525, 0
        %v1547 = vsel %vm1544, %v1540, 0
        %1549 = vmatprep.subr.bf16.mxu0 %v1547
        %1550 = vmatpush1.bf16.msra.mxu0 %v1545
        %1551 = vmatprep.subr.bf16.mxu0 0
        %1552 = vmatpush1.bf16.msra.mxu0 0
        %1553 = vmatprep.subr.bf16.mxu0 0
        %1554 = vmatpush1.bf16.msra.mxu0 0
        %1555 = vmatprep.subr.bf16.mxu0 0
        %1556 = vmatpush1.bf16.msra.mxu0 0
        %1557 = vmatprep.subr.bf16.mxu0 0
        %1558 = vmatpush1.bf16.msra.mxu0 0
        %1559 = vmatprep.subr.bf16.mxu0 0
        %1560 = vmatpush1.bf16.msra.mxu0 0
        %1561 = vmatprep.subr.bf16.mxu0 0
        %1562 = vmatpush1.bf16.msra.mxu0 0
        %1563 = vmatprep.subr.bf16.mxu0 0
        %1564 = vmatpush1.bf16.msra.mxu0 0
        %1565 = vmatprep.subr.bf16.mxu0 0
        %1566 = vmatpush1.bf16.msra.mxu0 0
        %1567 = vmatprep.subr.bf16.mxu0 0
        %1568 = vmatpush1.bf16.msra.mxu0 0
        %1569 = vmatprep.subr.bf16.mxu0 0
        %1570 = vmatpush1.bf16.msra.mxu0 0
        %1571 = vmatprep.subr.bf16.mxu0 0
        %1572 = vmatpush1.bf16.msra.mxu0 0
        %1573 = vmatprep.subr.bf16.mxu0 0
        %1574 = vmatpush1.bf16.msra.mxu0 0
        %1575 = vmatprep.subr.bf16.mxu0 0
        %1576 = vmatpush1.bf16.msra.mxu0 0
        %1577 = vmatprep.subr.bf16.mxu0 0
        %1578 = vmatpush1.bf16.msra.mxu0 0
        %1579 = vmatprep.subr.bf16.mxu0 0
        %1580 = vmatpush1.bf16.msra.mxu0 0
        %1581 = vmatprep.mubr.bf16.mxu0 0
        %1582 = vmatmul.mubr.bf16.gmra.mrb[0].mxu0 %v1542
        %v1583 = vpop.f32.mrb[0].mxu0
        %v1584 = vadd.f32 0.0, %v1583
        %v1585 = vpop.f32.mrb[0].mxu0
        %v1586 = vadd.f32 0.0, %v1585
        %v1587 = vpop.f32.mrb[0].mxu0
        %v1588 = vpop.f32.mrb[0].mxu0
        %1589 = vdwg.mxu0
        %v1590 = vadd.f32 %v1262, %v1584
        %v1591 = vadd.f32 %v1262, %v1586
        %1608 = vrot.lane.b32.xlu0 %v1233, 127
        %v1609 = vpop.permute.xlu0 %1608
        %1610 = vrot.lane.b32.xlu0 %v1234, 127
        %v1611 = vpop.permute.xlu0 %1610
        %1612 = vrot.lane.b32.xlu0 %v1236, 127
        %v1613 = vpop.permute.xlu0 %1612
        %1614 = vrot.lane.b32.xlu0 %v1237, 127
        %v1615 = vpop.permute.xlu0 %1614
        %1616 = vrot.lane.b32.xlu0 %v1239, 127
        %v1617 = vpop.permute.xlu0 %1616
        %1618 = vrot.lane.b32.xlu0 %v1240, 127
        %v1619 = vpop.permute.xlu0 %1618
        %1620 = vrot.lane.b32.xlu0 %v1242, 127
        %v1621 = vpop.permute.xlu0 %1620
        %1622 = vrot.lane.b32.xlu0 %v1243, 127
        %v1623 = vpop.permute.xlu0 %1622
        %1624 = vrot.lane.b32.xlu0 %v1245, 127
        %v1625 = vpop.permute.xlu0 %1624
        %1626 = vrot.lane.b32.xlu0 %v1246, 127
        %v1627 = vpop.permute.xlu0 %1626
        %1628 = vrot.lane.b32.xlu0 %v1248, 127
        %v1629 = vpop.permute.xlu0 %1628
        %1630 = vrot.lane.b32.xlu0 %v1249, 127
        %v1631 = vpop.permute.xlu0 %1630
        %1632 = vrot.lane.b32.xlu0 %v1251, 127
        %v1633 = vpop.permute.xlu0 %1632
        %1634 = vrot.lane.b32.xlu0 %v1252, 127
        %v1635 = vpop.permute.xlu0 %1634
        %1636 = vrot.lane.b32.xlu0 %v1254, 127
        %v1637 = vpop.permute.xlu0 %1636
        %1638 = vrot.lane.b32.xlu0 %v1255, 127
        %v1639 = vpop.permute.xlu0 %1638
        %v1656 = vcombine.low %v1609, %v1625
        %v1658 = vunpack.c.l.s4 1983009808
        %v1659 = vunpack.c.0.s8 %v1658
        %v1660 = vlaneseq
        %v1661 = vshrl.u32 %v1660, 7
        %v1662 = vsub.s32 %v1659, %v1661
        %v1663 = vrot.slane %v1656, %v1662
        %v1664 = vcombine.low %v1617, %v1633
        %v1666 = vunpack.c.l.s4 1983009808
        %v1667 = vunpack.c.0.s8 %v1666
        %v1668 = vlaneseq
        %v1669 = vshrl.u32 %v1668, 7
        %v1670 = vsub.s32 %v1667, %v1669
        %v1671 = vrot.slane %v1664, %v1670
        %v1672 = vcombine.low %v1663, %v1671
        %v1673 = vcombine.high %v1663, %v1671
        %v1675 = vunpack.c.l.s4 1934713408
        %v1676 = vunpack.c.0.s8 %v1675
        %v1677 = vlaneseq
        %v1678 = vshrl.u32 %v1677, 7
        %v1679 = vsub.s32 %v1676, %v1678
        %v1680 = vrot.slane %v1672, %v1679
        %v1682 = vunpack.c.l.s4 1934713408
        %v1683 = vunpack.c.0.s8 %v1682
        %v1684 = vlaneseq
        %v1685 = vshrl.u32 %v1684, 7
        %v1686 = vsub.s32 %v1683, %v1685
        %v1687 = vrot.slane %v1673, %v1686
        %v1688 = vcombine.high %v1680, 0
        %v1689 = vcombine.high %v1687, 0
        %v1690 = vcombine.low %v1613, %v1629
        %v1692 = vunpack.c.l.s4 1983009808
        %v1693 = vunpack.c.0.s8 %v1692
        %v1694 = vlaneseq
        %v1695 = vshrl.u32 %v1694, 7
        %v1696 = vsub.s32 %v1693, %v1695
        %v1697 = vrot.slane %v1690, %v1696
        %v1698 = vcombine.low %v1621, %v1637
        %v1700 = vunpack.c.l.s4 1983009808
        %v1701 = vunpack.c.0.s8 %v1700
        %v1702 = vlaneseq
        %v1703 = vshrl.u32 %v1702, 7
        %v1704 = vsub.s32 %v1701, %v1703
        %v1705 = vrot.slane %v1698, %v1704
        %v1706 = vcombine.low %v1697, %v1705
        %v1707 = vcombine.high %v1697, %v1705
        %v1709 = vunpack.c.l.s4 1934713408
        %v1710 = vunpack.c.0.s8 %v1709
        %v1711 = vlaneseq
        %v1712 = vshrl.u32 %v1711, 7
        %v1713 = vsub.s32 %v1710, %v1712
        %v1714 = vrot.slane %v1706, %v1713
        %v1716 = vunpack.c.l.s4 1934713408
        %v1717 = vunpack.c.0.s8 %v1716
        %v1718 = vlaneseq
        %v1719 = vshrl.u32 %v1718, 7
        %v1720 = vsub.s32 %v1717, %v1719
        %v1721 = vrot.slane %v1707, %v1720
        %v1722 = vcombine.high %v1714, 0
        %v1723 = vcombine.high %v1721, 0
        %v1724 = vcombine.low %v1611, %v1627
        %v1726 = vunpack.c.l.s4 1983009808
        %v1727 = vunpack.c.0.s8 %v1726
        %v1728 = vlaneseq
        %v1729 = vshrl.u32 %v1728, 7
        %v1730 = vsub.s32 %v1727, %v1729
        %v1731 = vrot.slane %v1724, %v1730
        %v1732 = vcombine.low %v1619, %v1635
        %v1734 = vunpack.c.l.s4 1983009808
        %v1735 = vunpack.c.0.s8 %v1734
        %v1736 = vlaneseq
        %v1737 = vshrl.u32 %v1736, 7
        %v1738 = vsub.s32 %v1735, %v1737
        %v1739 = vrot.slane %v1732, %v1738
        %v1740 = vcombine.low %v1731, %v1739
        %v1741 = vcombine.high %v1731, %v1739
        %v1743 = vunpack.c.l.s4 1934713408
        %v1744 = vunpack.c.0.s8 %v1743
        %v1745 = vlaneseq
        %v1746 = vshrl.u32 %v1745, 7
        %v1747 = vsub.s32 %v1744, %v1746
        %v1748 = vrot.slane %v1740, %v1747
        %v1750 = vunpack.c.l.s4 1934713408
        %v1751 = vunpack.c.0.s8 %v1750
        %v1752 = vlaneseq
        %v1753 = vshrl.u32 %v1752, 7
        %v1754 = vsub.s32 %v1751, %v1753
        %v1755 = vrot.slane %v1741, %v1754
        %v1756 = vcombine.high %v1748, 0
        %v1757 = vcombine.high %v1755, 0
        %v1758 = vcombine.low %v1615, %v1631
        %v1760 = vunpack.c.l.s4 1983009808
        %v1761 = vunpack.c.0.s8 %v1760
        %v1762 = vlaneseq
        %v1763 = vshrl.u32 %v1762, 7
        %v1764 = vsub.s32 %v1761, %v1763
        %v1765 = vrot.slane %v1758, %v1764
        %v1766 = vcombine.low %v1623, %v1639
        %v1768 = vunpack.c.l.s4 1983009808
        %v1769 = vunpack.c.0.s8 %v1768
        %v1770 = vlaneseq
        %v1771 = vshrl.u32 %v1770, 7
        %v1772 = vsub.s32 %v1769, %v1771
        %v1773 = vrot.slane %v1766, %v1772
        %v1774 = vcombine.low %v1765, %v1773
        %v1775 = vcombine.high %v1765, %v1773
        %v1777 = vunpack.c.l.s4 1934713408
        %v1778 = vunpack.c.0.s8 %v1777
        %v1779 = vlaneseq
        %v1780 = vshrl.u32 %v1779, 7
        %v1781 = vsub.s32 %v1778, %v1780
        %v1782 = vrot.slane %v1774, %v1781
        %v1784 = vunpack.c.l.s4 1934713408
        %v1785 = vunpack.c.0.s8 %v1784
        %v1786 = vlaneseq
        %v1787 = vshrl.u32 %v1786, 7
        %v1788 = vsub.s32 %v1785, %v1787
        %v1789 = vrot.slane %v1775, %v1788
        %v1790 = vcombine.high %v1782, 0
        %v1791 = vcombine.high %v1789, 0
        %v1794 = vpack.i.b16 %v1714, %v1680
        %v1795 = vshrl.u32 %v1680, 16
        %v1796 = vshrl.u32 %v1714, 16
        %v1797 = vpack.i.b16 %v1796, %v1795
        %v1800 = vpack.i.b16 %v1722, %v1688
        %v1801 = vshrl.u32 %v1688, 16
        %v1802 = vshrl.u32 %v1722, 16
        %v1803 = vpack.i.b16 %v1802, %v1801
        %v1806 = vpack.i.b16 %v1721, %v1687
        %v1807 = vshrl.u32 %v1687, 16
        %v1808 = vshrl.u32 %v1721, 16
        %v1809 = vpack.i.b16 %v1808, %v1807
        %v1812 = vpack.i.b16 %v1723, %v1689
        %v1813 = vshrl.u32 %v1689, 16
        %v1814 = vshrl.u32 %v1723, 16
        %v1815 = vpack.i.b16 %v1814, %v1813
        %v1818 = vpack.i.b16 %v1782, %v1748
        %v1819 = vshrl.u32 %v1748, 16
        %v1820 = vshrl.u32 %v1782, 16
        %v1821 = vpack.i.b16 %v1820, %v1819
        %v1824 = vpack.i.b16 %v1790, %v1756
        %v1825 = vshrl.u32 %v1756, 16
        %v1826 = vshrl.u32 %v1790, 16
        %v1827 = vpack.i.b16 %v1826, %v1825
        %v1830 = vpack.i.b16 %v1789, %v1755
        %v1831 = vshrl.u32 %v1755, 16
        %v1832 = vshrl.u32 %v1789, 16
        %v1833 = vpack.i.b16 %v1832, %v1831
        %v1836 = vpack.i.b16 %v1791, %v1757
        %v1837 = vshrl.u32 %v1757, 16
        %v1838 = vshrl.u32 %v1791, 16
        %v1839 = vpack.i.b16 %v1838, %v1837
        %v1840 = vunpack.c.l.b16 %v1797
        %v1841 = vpack.c.b16 %v1840, %v1840
        %1842 = vrot.lane.b32.xlu0 %v1841, 16
        %v1843 = vpop.permute.xlu0 %1842
        %v1844 = vunpack.c.l.b16 %v1800
        %v1845 = vpack.c.b16 %v1844, %v1844
        %1846 = vrot.lane.b32.xlu0 %v1845, 32
        %v1847 = vpop.permute.xlu0 %1846
        %v1848 = vunpack.c.l.b16 %v1803
        %v1849 = vpack.c.b16 %v1848, %v1848
        %1850 = vrot.lane.b32.xlu0 %v1849, 48
        %v1851 = vpop.permute.xlu0 %1850
        %v1852 = vunpack.c.l.b16 %v1806
        %v1853 = vpack.c.b16 %v1852, %v1852
        %1854 = vrot.lane.b32.xlu0 %v1853, 64
        %v1855 = vpop.permute.xlu0 %1854
        %v1856 = vunpack.c.l.b16 %v1809
        %v1857 = vpack.c.b16 %v1856, %v1856
        %1858 = vrot.lane.b32.xlu0 %v1857, 80
        %v1859 = vpop.permute.xlu0 %1858
        %v1860 = vunpack.c.l.b16 %v1812
        %v1861 = vpack.c.b16 %v1860, %v1860
        %1862 = vrot.lane.b32.xlu0 %v1861, 96
        %v1863 = vpop.permute.xlu0 %1862
        %v1864 = vunpack.c.l.b16 %v1815
        %v1865 = vpack.c.b16 %v1864, %v1864
        %1866 = vrot.lane.b32.xlu0 %v1865, 112
        %v1867 = vpop.permute.xlu0 %1866
        %v1868 = vunpack.c.l.b16 %v1821
        %v1869 = vpack.c.b16 %v1868, %v1868
        %1870 = vrot.lane.b32.xlu0 %v1869, 16
        %v1871 = vpop.permute.xlu0 %1870
        %v1872 = vunpack.c.l.b16 %v1824
        %v1873 = vpack.c.b16 %v1872, %v1872
        %1874 = vrot.lane.b32.xlu0 %v1873, 32
        %v1875 = vpop.permute.xlu0 %1874
        %v1876 = vunpack.c.l.b16 %v1827
        %v1877 = vpack.c.b16 %v1876, %v1876
        %1878 = vrot.lane.b32.xlu0 %v1877, 48
        %v1879 = vpop.permute.xlu0 %1878
        %v1880 = vunpack.c.l.b16 %v1830
        %v1881 = vpack.c.b16 %v1880, %v1880
        %1882 = vrot.lane.b32.xlu0 %v1881, 64
        %v1883 = vpop.permute.xlu0 %1882
        %v1884 = vunpack.c.l.b16 %v1833
        %v1885 = vpack.c.b16 %v1884, %v1884
        %1886 = vrot.lane.b32.xlu0 %v1885, 80
        %v1887 = vpop.permute.xlu0 %1886
        %v1888 = vunpack.c.l.b16 %v1836
        %v1889 = vpack.c.b16 %v1888, %v1888
        %1890 = vrot.lane.b32.xlu0 %v1889, 96
        %v1891 = vpop.permute.xlu0 %1890
        %v1892 = vunpack.c.l.b16 %v1839
        %v1893 = vpack.c.b16 %v1892, %v1892
        %1894 = vrot.lane.b32.xlu0 %v1893, 112
        %v1895 = vpop.permute.xlu0 %1894
        %v1898 = vsel %vm1504, %v1794, %v1843
        %v1900 = vsel %vm1508, %v1898, %v1847
        %v1902 = vsel %vm1511, %v1900, %v1851
        %v1904 = vsel %vm1514, %v1902, %v1855
        %v1906 = vsel %vm1517, %v1904, %v1859
        %v1908 = vsel %vm1520, %v1906, %v1863
        %v1910 = vsel %vm1523, %v1908, %v1867
        %v1913 = vsel %vm1504, %v1818, %v1871
        %v1915 = vsel %vm1508, %v1913, %v1875
        %v1917 = vsel %vm1511, %v1915, %v1879
        %v1919 = vsel %vm1514, %v1917, %v1883
        %v1921 = vsel %vm1517, %v1919, %v1887
        %v1923 = vsel %vm1520, %v1921, %v1891
        %v1925 = vsel %vm1523, %v1923, %v1895
        %v1928 = vunpack.c.l.s4 1983009808
        %v1929 = vunpack.c.0.s8 %v1928
        %v1930 = vlaneseq
        %v1931 = vshrl.u32 %v1930, 7
        %v1932 = vsub.s32 %v1929, %v1931
        %v1933 = vrot.slane %v1257, %v1932
        %1934 = vrot.lane.b32.xlu0 %v1933, 120
        %v1935 = vpop.permute.xlu0 %1934
        %v1937 = vsel %vm523, %v1935, 0
        %v1939 = vsel %vm1544, %v1910, 0
        %v1941 = vsel %vm1544, %v1925, 0
        %1943 = vmatprep.subr.bf16.mxu0 %v1941
        %1944 = vmatpush1.bf16.msra.mxu0 %v1939
        %1945 = vmatprep.subr.bf16.mxu0 0
        %1946 = vmatpush1.bf16.msra.mxu0 0
        %1947 = vmatprep.subr.bf16.mxu0 0
        %1948 = vmatpush1.bf16.msra.mxu0 0
        %1949 = vmatprep.subr.bf16.mxu0 0
        %1950 = vmatpush1.bf16.msra.mxu0 0
        %1951 = vmatprep.subr.bf16.mxu0 0
        %1952 = vmatpush1.bf16.msra.mxu0 0
        %1953 = vmatprep.subr.bf16.mxu0 0
        %1954 = vmatpush1.bf16.msra.mxu0 0
        %1955 = vmatprep.subr.bf16.mxu0 0
        %1956 = vmatpush1.bf16.msra.mxu0 0
        %1957 = vmatprep.subr.bf16.mxu0 0
        %1958 = vmatpush1.bf16.msra.mxu0 0
        %1959 = vmatprep.subr.bf16.mxu0 0
        %1960 = vmatpush1.bf16.msra.mxu0 0
        %1961 = vmatprep.subr.bf16.mxu0 0
        %1962 = vmatpush1.bf16.msra.mxu0 0
        %1963 = vmatprep.subr.bf16.mxu0 0
        %1964 = vmatpush1.bf16.msra.mxu0 0
        %1965 = vmatprep.subr.bf16.mxu0 0
        %1966 = vmatpush1.bf16.msra.mxu0 0
        %1967 = vmatprep.subr.bf16.mxu0 0
        %1968 = vmatpush1.bf16.msra.mxu0 0
        %1969 = vmatprep.subr.bf16.mxu0 0
        %1970 = vmatpush1.bf16.msra.mxu0 0
        %1971 = vmatprep.subr.bf16.mxu0 0
        %1972 = vmatpush1.bf16.msra.mxu0 0
        %1973 = vmatprep.subr.bf16.mxu0 0
        %1974 = vmatpush1.bf16.msra.mxu0 0
        %1975 = vmatprep.mubr.bf16.mxu0 0
        %1976 = vmatmul.mubr.bf16.gmra.mrb[0].mxu0 %v1937
        %v1977 = vpop.f32.mrb[0].mxu0
        %v1978 = vadd.f32 0.0, %v1977
        %v1979 = vpop.f32.mrb[0].mxu0
        %v1980 = vadd.f32 0.0, %v1979
        %v1981 = vpop.f32.mrb[0].mxu0
        %v1982 = vpop.f32.mrb[0].mxu0
        %1983 = vdwg.mxu0
        %v1984 = vadd.f32 %v1590, %v1978
        %v1985 = vadd.f32 %v1591, %v1980
        %1986 = vrot.lane.b32.xlu0 %v1233, 126
        %v1987 = vpop.permute.xlu0 %1986
        %1988 = vrot.lane.b32.xlu0 %v1234, 126
        %v1989 = vpop.permute.xlu0 %1988
        %1990 = vrot.lane.b32.xlu0 %v1236, 126
        %v1991 = vpop.permute.xlu0 %1990
        %1992 = vrot.lane.b32.xlu0 %v1237, 126
        %v1993 = vpop.permute.xlu0 %1992
        %1994 = vrot.lane.b32.xlu0 %v1239, 126
        %v1995 = vpop.permute.xlu0 %1994
        %1996 = vrot.lane.b32.xlu0 %v1240, 126
        %v1997 = vpop.permute.xlu0 %1996
        %1998 = vrot.lane.b32.xlu0 %v1242, 126
        %v1999 = vpop.permute.xlu0 %1998
        %2000 = vrot.lane.b32.xlu0 %v1243, 126
        %v2001 = vpop.permute.xlu0 %2000
        %2002 = vrot.lane.b32.xlu0 %v1245, 126
        %v2003 = vpop.permute.xlu0 %2002
        %2004 = vrot.lane.b32.xlu0 %v1246, 126
        %v2005 = vpop.permute.xlu0 %2004
        %2006 = vrot.lane.b32.xlu0 %v1248, 126
        %v2007 = vpop.permute.xlu0 %2006
        %2008 = vrot.lane.b32.xlu0 %v1249, 126
        %v2009 = vpop.permute.xlu0 %2008
        %2010 = vrot.lane.b32.xlu0 %v1251, 126
        %v2011 = vpop.permute.xlu0 %2010
        %2012 = vrot.lane.b32.xlu0 %v1252, 126
        %v2013 = vpop.permute.xlu0 %2012
        %2014 = vrot.lane.b32.xlu0 %v1254, 126
        %v2015 = vpop.permute.xlu0 %2014
        %2016 = vrot.lane.b32.xlu0 %v1255, 126
        %v2017 = vpop.permute.xlu0 %2016
        %v2034 = vcombine.low %v1987, %v2003
        %v2036 = vunpack.c.l.s4 1983009808
        %v2037 = vunpack.c.0.s8 %v2036
        %v2038 = vlaneseq
        %v2039 = vshrl.u32 %v2038, 7
        %v2040 = vsub.s32 %v2037, %v2039
        %v2041 = vrot.slane %v2034, %v2040
        %v2042 = vcombine.low %v1995, %v2011
        %v2044 = vunpack.c.l.s4 1983009808
        %v2045 = vunpack.c.0.s8 %v2044
        %v2046 = vlaneseq
        %v2047 = vshrl.u32 %v2046, 7
        %v2048 = vsub.s32 %v2045, %v2047
        %v2049 = vrot.slane %v2042, %v2048
        %v2050 = vcombine.low %v2041, %v2049
        %v2051 = vcombine.high %v2041, %v2049
        %v2053 = vunpack.c.l.s4 1934713408
        %v2054 = vunpack.c.0.s8 %v2053
        %v2055 = vlaneseq
        %v2056 = vshrl.u32 %v2055, 7
        %v2057 = vsub.s32 %v2054, %v2056
        %v2058 = vrot.slane %v2050, %v2057
        %v2060 = vunpack.c.l.s4 1934713408
        %v2061 = vunpack.c.0.s8 %v2060
        %v2062 = vlaneseq
        %v2063 = vshrl.u32 %v2062, 7
        %v2064 = vsub.s32 %v2061, %v2063
        %v2065 = vrot.slane %v2051, %v2064
        %v2066 = vcombine.high %v2058, 0
        %v2067 = vcombine.high %v2065, 0
        %v2068 = vcombine.low %v1991, %v2007
        %v2070 = vunpack.c.l.s4 1983009808
        %v2071 = vunpack.c.0.s8 %v2070
        %v2072 = vlaneseq
        %v2073 = vshrl.u32 %v2072, 7
        %v2074 = vsub.s32 %v2071, %v2073
        %v2075 = vrot.slane %v2068, %v2074
        %v2076 = vcombine.low %v1999, %v2015
        %v2078 = vunpack.c.l.s4 1983009808
        %v2079 = vunpack.c.0.s8 %v2078
        %v2080 = vlaneseq
        %v2081 = vshrl.u32 %v2080, 7
        %v2082 = vsub.s32 %v2079, %v2081
        %v2083 = vrot.slane %v2076, %v2082
        %v2084 = vcombine.low %v2075, %v2083
        %v2085 = vcombine.high %v2075, %v2083
        %v2087 = vunpack.c.l.s4 1934713408
        %v2088 = vunpack.c.0.s8 %v2087
        %v2089 = vlaneseq
        %v2090 = vshrl.u32 %v2089, 7
        %v2091 = vsub.s32 %v2088, %v2090
        %v2092 = vrot.slane %v2084, %v2091
        %v2094 = vunpack.c.l.s4 1934713408
        %v2095 = vunpack.c.0.s8 %v2094
        %v2096 = vlaneseq
        %v2097 = vshrl.u32 %v2096, 7
        %v2098 = vsub.s32 %v2095, %v2097
        %v2099 = vrot.slane %v2085, %v2098
        %v2100 = vcombine.high %v2092, 0
        %v2101 = vcombine.high %v2099, 0
        %v2102 = vcombine.low %v1989, %v2005
        %v2104 = vunpack.c.l.s4 1983009808
        %v2105 = vunpack.c.0.s8 %v2104
        %v2106 = vlaneseq
        %v2107 = vshrl.u32 %v2106, 7
        %v2108 = vsub.s32 %v2105, %v2107
        %v2109 = vrot.slane %v2102, %v2108
        %v2110 = vcombine.low %v1997, %v2013
        %v2112 = vunpack.c.l.s4 1983009808
        %v2113 = vunpack.c.0.s8 %v2112
        %v2114 = vlaneseq
        %v2115 = vshrl.u32 %v2114, 7
        %v2116 = vsub.s32 %v2113, %v2115
        %v2117 = vrot.slane %v2110, %v2116
        %v2118 = vcombine.low %v2109, %v2117
        %v2119 = vcombine.high %v2109, %v2117
        %v2121 = vunpack.c.l.s4 1934713408
        %v2122 = vunpack.c.0.s8 %v2121
        %v2123 = vlaneseq
        %v2124 = vshrl.u32 %v2123, 7
        %v2125 = vsub.s32 %v2122, %v2124
        %v2126 = vrot.slane %v2118, %v2125
        %v2128 = vunpack.c.l.s4 1934713408
        %v2129 = vunpack.c.0.s8 %v2128
        %v2130 = vlaneseq
        %v2131 = vshrl.u32 %v2130, 7
        %v2132 = vsub.s32 %v2129, %v2131
        %v2133 = vrot.slane %v2119, %v2132
        %v2134 = vcombine.high %v2126, 0
        %v2135 = vcombine.high %v2133, 0
        %v2136 = vcombine.low %v1993, %v2009
        %v2138 = vunpack.c.l.s4 1983009808
        %v2139 = vunpack.c.0.s8 %v2138
        %v2140 = vlaneseq
        %v2141 = vshrl.u32 %v2140, 7
        %v2142 = vsub.s32 %v2139, %v2141
        %v2143 = vrot.slane %v2136, %v2142
        %v2144 = vcombine.low %v2001, %v2017
        %v2146 = vunpack.c.l.s4 1983009808
        %v2147 = vunpack.c.0.s8 %v2146
        %v2148 = vlaneseq
        %v2149 = vshrl.u32 %v2148, 7
        %v2150 = vsub.s32 %v2147, %v2149
        %v2151 = vrot.slane %v2144, %v2150
        %v2152 = vcombine.low %v2143, %v2151
        %v2153 = vcombine.high %v2143, %v2151
        %v2155 = vunpack.c.l.s4 1934713408
        %v2156 = vunpack.c.0.s8 %v2155
        %v2157 = vlaneseq
        %v2158 = vshrl.u32 %v2157, 7
        %v2159 = vsub.s32 %v2156, %v2158
        %v2160 = vrot.slane %v2152, %v2159
        %v2162 = vunpack.c.l.s4 1934713408
        %v2163 = vunpack.c.0.s8 %v2162
        %v2164 = vlaneseq
        %v2165 = vshrl.u32 %v2164, 7
        %v2166 = vsub.s32 %v2163, %v2165
        %v2167 = vrot.slane %v2153, %v2166
        %v2168 = vcombine.high %v2160, 0
        %v2169 = vcombine.high %v2167, 0
        %v2172 = vpack.i.b16 %v2092, %v2058
        %v2173 = vshrl.u32 %v2058, 16
        %v2174 = vshrl.u32 %v2092, 16
        %v2175 = vpack.i.b16 %v2174, %v2173
        %v2178 = vpack.i.b16 %v2100, %v2066
        %v2179 = vshrl.u32 %v2066, 16
        %v2180 = vshrl.u32 %v2100, 16
        %v2181 = vpack.i.b16 %v2180, %v2179
        %v2184 = vpack.i.b16 %v2099, %v2065
        %v2185 = vshrl.u32 %v2065, 16
        %v2186 = vshrl.u32 %v2099, 16
        %v2187 = vpack.i.b16 %v2186, %v2185
        %v2190 = vpack.i.b16 %v2101, %v2067
        %v2191 = vshrl.u32 %v2067, 16
        %v2192 = vshrl.u32 %v2101, 16
        %v2193 = vpack.i.b16 %v2192, %v2191
        %v2196 = vpack.i.b16 %v2160, %v2126
        %v2197 = vshrl.u32 %v2126, 16
        %v2198 = vshrl.u32 %v2160, 16
        %v2199 = vpack.i.b16 %v2198, %v2197
        %v2202 = vpack.i.b16 %v2168, %v2134
        %v2203 = vshrl.u32 %v2134, 16
        %v2204 = vshrl.u32 %v2168, 16
        %v2205 = vpack.i.b16 %v2204, %v2203
        %v2208 = vpack.i.b16 %v2167, %v2133
        %v2209 = vshrl.u32 %v2133, 16
        %v2210 = vshrl.u32 %v2167, 16
        %v2211 = vpack.i.b16 %v2210, %v2209
        %v2214 = vpack.i.b16 %v2169, %v2135
        %v2215 = vshrl.u32 %v2135, 16
        %v2216 = vshrl.u32 %v2169, 16
        %v2217 = vpack.i.b16 %v2216, %v2215
        %v2218 = vunpack.c.l.b16 %v2175
        %v2219 = vpack.c.b16 %v2218, %v2218
        %2220 = vrot.lane.b32.xlu0 %v2219, 16
        %v2221 = vpop.permute.xlu0 %2220
        %v2222 = vunpack.c.l.b16 %v2178
        %v2223 = vpack.c.b16 %v2222, %v2222
        %2224 = vrot.lane.b32.xlu0 %v2223, 32
        %v2225 = vpop.permute.xlu0 %2224
        %v2226 = vunpack.c.l.b16 %v2181
        %v2227 = vpack.c.b16 %v2226, %v2226
        %2228 = vrot.lane.b32.xlu0 %v2227, 48
        %v2229 = vpop.permute.xlu0 %2228
        %v2230 = vunpack.c.l.b16 %v2184
        %v2231 = vpack.c.b16 %v2230, %v2230
        %2232 = vrot.lane.b32.xlu0 %v2231, 64
        %v2233 = vpop.permute.xlu0 %2232
        %v2234 = vunpack.c.l.b16 %v2187
        %v2235 = vpack.c.b16 %v2234, %v2234
        %2236 = vrot.lane.b32.xlu0 %v2235, 80
        %v2237 = vpop.permute.xlu0 %2236
        %v2238 = vunpack.c.l.b16 %v2190
        %v2239 = vpack.c.b16 %v2238, %v2238
        %2240 = vrot.lane.b32.xlu0 %v2239, 96
        %v2241 = vpop.permute.xlu0 %2240
        %v2242 = vunpack.c.l.b16 %v2193
        %v2243 = vpack.c.b16 %v2242, %v2242
        %2244 = vrot.lane.b32.xlu0 %v2243, 112
        %v2245 = vpop.permute.xlu0 %2244
        %v2246 = vunpack.c.l.b16 %v2199
        %v2247 = vpack.c.b16 %v2246, %v2246
        %2248 = vrot.lane.b32.xlu0 %v2247, 16
        %v2249 = vpop.permute.xlu0 %2248
        %v2250 = vunpack.c.l.b16 %v2202
        %v2251 = vpack.c.b16 %v2250, %v2250
        %2252 = vrot.lane.b32.xlu0 %v2251, 32
        %v2253 = vpop.permute.xlu0 %2252
        %v2254 = vunpack.c.l.b16 %v2205
        %v2255 = vpack.c.b16 %v2254, %v2254
        %2256 = vrot.lane.b32.xlu0 %v2255, 48
        %v2257 = vpop.permute.xlu0 %2256
        %v2258 = vunpack.c.l.b16 %v2208
        %v2259 = vpack.c.b16 %v2258, %v2258
        %2260 = vrot.lane.b32.xlu0 %v2259, 64
        %v2261 = vpop.permute.xlu0 %2260
        %v2262 = vunpack.c.l.b16 %v2211
        %v2263 = vpack.c.b16 %v2262, %v2262
        %2264 = vrot.lane.b32.xlu0 %v2263, 80
        %v2265 = vpop.permute.xlu0 %2264
        %v2266 = vunpack.c.l.b16 %v2214
        %v2267 = vpack.c.b16 %v2266, %v2266
        %2268 = vrot.lane.b32.xlu0 %v2267, 96
        %v2269 = vpop.permute.xlu0 %2268
        %v2270 = vunpack.c.l.b16 %v2217
        %v2271 = vpack.c.b16 %v2270, %v2270
        %2272 = vrot.lane.b32.xlu0 %v2271, 112
        %v2273 = vpop.permute.xlu0 %2272
        %v2276 = vsel %vm1504, %v2172, %v2221
        %v2278 = vsel %vm1508, %v2276, %v2225
        %v2280 = vsel %vm1511, %v2278, %v2229
        %v2282 = vsel %vm1514, %v2280, %v2233
        %v2284 = vsel %vm1517, %v2282, %v2237
        %v2286 = vsel %vm1520, %v2284, %v2241
        %v2288 = vsel %vm1523, %v2286, %v2245
        %v2291 = vsel %vm1504, %v2196, %v2249
        %v2293 = vsel %vm1508, %v2291, %v2253
        %v2295 = vsel %vm1511, %v2293, %v2257
        %v2297 = vsel %vm1514, %v2295, %v2261
        %v2299 = vsel %vm1517, %v2297, %v2265
        %v2301 = vsel %vm1520, %v2299, %v2269
        %v2303 = vsel %vm1523, %v2301, %v2273
        %2304 = vrot.lane.b32.xlu0 %v1933, 112
        %v2305 = vpop.permute.xlu0 %2304
        %v2307 = vsel %vm523, %v2305, 0
        %v2309 = vsel %vm1544, %v2288, 0
        %v2311 = vsel %vm1544, %v2303, 0
        %2313 = vmatprep.subr.bf16.mxu0 %v2311
        %2314 = vmatpush1.bf16.msra.mxu0 %v2309
        %2315 = vmatprep.subr.bf16.mxu0 0
        %2316 = vmatpush1.bf16.msra.mxu0 0
        %2317 = vmatprep.subr.bf16.mxu0 0
        %2318 = vmatpush1.bf16.msra.mxu0 0
        %2319 = vmatprep.subr.bf16.mxu0 0
        %2320 = vmatpush1.bf16.msra.mxu0 0
        %2321 = vmatprep.subr.bf16.mxu0 0
        %2322 = vmatpush1.bf16.msra.mxu0 0
        %2323 = vmatprep.subr.bf16.mxu0 0
        %2324 = vmatpush1.bf16.msra.mxu0 0
        %2325 = vmatprep.subr.bf16.mxu0 0
        %2326 = vmatpush1.bf16.msra.mxu0 0
        %2327 = vmatprep.subr.bf16.mxu0 0
        %2328 = vmatpush1.bf16.msra.mxu0 0
        %2329 = vmatprep.subr.bf16.mxu0 0
        %2330 = vmatpush1.bf16.msra.mxu0 0
        %2331 = vmatprep.subr.bf16.mxu0 0
        %2332 = vmatpush1.bf16.msra.mxu0 0
        %2333 = vmatprep.subr.bf16.mxu0 0
        %2334 = vmatpush1.bf16.msra.mxu0 0
        %2335 = vmatprep.subr.bf16.mxu0 0
        %2336 = vmatpush1.bf16.msra.mxu0 0
        %2337 = vmatprep.subr.bf16.mxu0 0
        %2338 = vmatpush1.bf16.msra.mxu0 0
        %2339 = vmatprep.subr.bf16.mxu0 0
        %2340 = vmatpush1.bf16.msra.mxu0 0
        %2341 = vmatprep.subr.bf16.mxu0 0
        %2342 = vmatpush1.bf16.msra.mxu0 0
        %2343 = vmatprep.subr.bf16.mxu0 0
        %2344 = vmatpush1.bf16.msra.mxu0 0
        %2345 = vmatprep.mubr.bf16.mxu0 0
        %2346 = vmatmul.mubr.bf16.gmra.mrb[0].mxu0 %v2307
        %v2347 = vpop.f32.mrb[0].mxu0
        %v2348 = vadd.f32 0.0, %v2347
        %v2349 = vpop.f32.mrb[0].mxu0
        %v2350 = vadd.f32 0.0, %v2349
        %v2351 = vpop.f32.mrb[0].mxu0
        %v2352 = vpop.f32.mrb[0].mxu0
        %2353 = vdwg.mxu0
        %v2354 = vadd.f32 %v1984, %v2348
        %v2355 = vadd.f32 %v1985, %v2350
        %vm2356 = vsmask.f32 3328
        %vm2357 = vsmask.f32 7440
        %vm2358 = vmor %vm2356, %vm2357
        %v2360 = vshrl.u32 %v1233, 16
        %v2362 = vrot.slane %v2360, 4
        %v2363 = vshll.u32 %v1233, 16
        %v2365 = vrot.slane %v2363, 5
        %v2366 = vor.u32 %v2362, %v2365
        %v2367 = vrot.slane %v2366, 4
        %v2369 = vshll.u32 %v1234, 16
        %v2371 = vrot.slane %v2369, 5
        %v2372 = vsel %vm2358, %v2367, %v2371
        %v2373 = vshrl.u32 %v1234, 16
        %v2375 = vrot.slane %v2373, 4
        %v2376 = vor.u32 %v2375, %v2371
        %v2377 = vrot.slane %v2376, 4
        %v2379 = vshll.u32 %v1235, 16
        %v2381 = vrot.slane %v2379, 5
        %v2382 = vsel %vm2358, %v2377, %v2381
        %v2384 = vshrl.u32 %v1236, 16
        %v2386 = vrot.slane %v2384, 4
        %v2387 = vshll.u32 %v1236, 16
        %v2389 = vrot.slane %v2387, 5
        %v2390 = vor.u32 %v2386, %v2389
        %v2391 = vrot.slane %v2390, 4
        %v2393 = vshll.u32 %v1237, 16
        %v2395 = vrot.slane %v2393, 5
        %v2396 = vsel %vm2358, %v2391, %v2395
        %v2397 = vshrl.u32 %v1237, 16
        %v2399 = vrot.slane %v2397, 4
        %v2400 = vor.u32 %v2399, %v2395
        %v2401 = vrot.slane %v2400, 4
        %v2403 = vshll.u32 %v1238, 16
        %v2405 = vrot.slane %v2403, 5
        %v2406 = vsel %vm2358, %v2401, %v2405
        %v2408 = vshrl.u32 %v1239, 16
        %v2410 = vrot.slane %v2408, 4
        %v2411 = vshll.u32 %v1239, 16
        %v2413 = vrot.slane %v2411, 5
        %v2414 = vor.u32 %v2410, %v2413
        %v2415 = vrot.slane %v2414, 4
        %v2417 = vshll.u32 %v1240, 16
        %v2419 = vrot.slane %v2417, 5
        %v2420 = vsel %vm2358, %v2415, %v2419
        %v2421 = vshrl.u32 %v1240, 16
        %v2423 = vrot.slane %v2421, 4
        %v2424 = vor.u32 %v2423, %v2419
        %v2425 = vrot.slane %v2424, 4
        %v2427 = vshll.u32 %v1241, 16
        %v2429 = vrot.slane %v2427, 5
        %v2430 = vsel %vm2358, %v2425, %v2429
        %v2432 = vshrl.u32 %v1242, 16
        %v2434 = vrot.slane %v2432, 4
        %v2435 = vshll.u32 %v1242, 16
        %v2437 = vrot.slane %v2435, 5
        %v2438 = vor.u32 %v2434, %v2437
        %v2439 = vrot.slane %v2438, 4
        %v2441 = vshll.u32 %v1243, 16
        %v2443 = vrot.slane %v2441, 5
        %v2444 = vsel %vm2358, %v2439, %v2443
        %v2445 = vshrl.u32 %v1243, 16
        %v2447 = vrot.slane %v2445, 4
        %v2448 = vor.u32 %v2447, %v2443
        %v2449 = vrot.slane %v2448, 4
        %v2451 = vshll.u32 %v1244, 16
        %v2453 = vrot.slane %v2451, 5
        %v2454 = vsel %vm2358, %v2449, %v2453
        %v2456 = vshrl.u32 %v1245, 16
        %v2458 = vrot.slane %v2456, 4
        %v2459 = vshll.u32 %v1245, 16
        %v2461 = vrot.slane %v2459, 5
        %v2462 = vor.u32 %v2458, %v2461
        %v2463 = vrot.slane %v2462, 4
        %v2465 = vshll.u32 %v1246, 16
        %v2467 = vrot.slane %v2465, 5
        %v2468 = vsel %vm2358, %v2463, %v2467
        %v2469 = vshrl.u32 %v1246, 16
        %v2471 = vrot.slane %v2469, 4
        %v2472 = vor.u32 %v2471, %v2467
        %v2473 = vrot.slane %v2472, 4
        %v2475 = vshll.u32 %v1247, 16
        %v2477 = vrot.slane %v2475, 5
        %v2478 = vsel %vm2358, %v2473, %v2477
        %v2480 = vshrl.u32 %v1248, 16
        %v2482 = vrot.slane %v2480, 4
        %v2483 = vshll.u32 %v1248, 16
        %v2485 = vrot.slane %v2483, 5
        %v2486 = vor.u32 %v2482, %v2485
        %v2487 = vrot.slane %v2486, 4
        %v2489 = vshll.u32 %v1249, 16
        %v2491 = vrot.slane %v2489, 5
        %v2492 = vsel %vm2358, %v2487, %v2491
        %v2493 = vshrl.u32 %v1249, 16
        %v2495 = vrot.slane %v2493, 4
        %v2496 = vor.u32 %v2495, %v2491
        %v2497 = vrot.slane %v2496, 4
        %v2499 = vshll.u32 %v1250, 16
        %v2501 = vrot.slane %v2499, 5
        %v2502 = vsel %vm2358, %v2497, %v2501
        %v2504 = vshrl.u32 %v1251, 16
        %v2506 = vrot.slane %v2504, 4
        %v2507 = vshll.u32 %v1251, 16
        %v2509 = vrot.slane %v2507, 5
        %v2510 = vor.u32 %v2506, %v2509
        %v2511 = vrot.slane %v2510, 4
        %v2513 = vshll.u32 %v1252, 16
        %v2515 = vrot.slane %v2513, 5
        %v2516 = vsel %vm2358, %v2511, %v2515
        %v2517 = vshrl.u32 %v1252, 16
        %v2519 = vrot.slane %v2517, 4
        %v2520 = vor.u32 %v2519, %v2515
        %v2521 = vrot.slane %v2520, 4
        %v2523 = vshll.u32 %v1253, 16
        %v2525 = vrot.slane %v2523, 5
        %v2526 = vsel %vm2358, %v2521, %v2525
        %v2528 = vshrl.u32 %v1254, 16
        %v2530 = vrot.slane %v2528, 4
        %v2531 = vshll.u32 %v1254, 16
        %v2533 = vrot.slane %v2531, 5
        %v2534 = vor.u32 %v2530, %v2533
        %v2535 = vrot.slane %v2534, 4
        %v2537 = vshll.u32 %v1255, 16
        %v2539 = vrot.slane %v2537, 5
        %v2540 = vsel %vm2358, %v2535, %v2539
        %v2541 = vshrl.u32 %v1255, 16
        %v2543 = vrot.slane %v2541, 4
        %v2544 = vor.u32 %v2543, %v2539
        %v2545 = vrot.slane %v2544, 4
        %v2547 = vshll.u32 %v1256, 16
        %v2549 = vrot.slane %v2547, 5
        %v2550 = vsel %vm2358, %v2545, %v2549
        %v2567 = vcombine.low %v2372, %v2468
        %v2569 = vunpack.c.l.s4 1983009808
        %v2570 = vunpack.c.0.s8 %v2569
        %v2571 = vlaneseq
        %v2572 = vshrl.u32 %v2571, 7
        %v2573 = vsub.s32 %v2570, %v2572
        %v2574 = vrot.slane %v2567, %v2573
        %v2575 = vcombine.low %v2420, %v2516
        %v2577 = vunpack.c.l.s4 1983009808
        %v2578 = vunpack.c.0.s8 %v2577
        %v2579 = vlaneseq
        %v2580 = vshrl.u32 %v2579, 7
        %v2581 = vsub.s32 %v2578, %v2580
        %v2582 = vrot.slane %v2575, %v2581
        %v2583 = vcombine.low %v2574, %v2582
        %v2584 = vcombine.high %v2574, %v2582
        %v2586 = vunpack.c.l.s4 1934713408
        %v2587 = vunpack.c.0.s8 %v2586
        %v2588 = vlaneseq
        %v2589 = vshrl.u32 %v2588, 7
        %v2590 = vsub.s32 %v2587, %v2589
        %v2591 = vrot.slane %v2583, %v2590
        %v2593 = vunpack.c.l.s4 1934713408
        %v2594 = vunpack.c.0.s8 %v2593
        %v2595 = vlaneseq
        %v2596 = vshrl.u32 %v2595, 7
        %v2597 = vsub.s32 %v2594, %v2596
        %v2598 = vrot.slane %v2584, %v2597
        %v2599 = vcombine.high %v2591, 0
        %v2600 = vcombine.high %v2598, 0
        %v2601 = vcombine.low %v2396, %v2492
        %v2603 = vunpack.c.l.s4 1983009808
        %v2604 = vunpack.c.0.s8 %v2603
        %v2605 = vlaneseq
        %v2606 = vshrl.u32 %v2605, 7
        %v2607 = vsub.s32 %v2604, %v2606
        %v2608 = vrot.slane %v2601, %v2607
        %v2609 = vcombine.low %v2444, %v2540
        %v2611 = vunpack.c.l.s4 1983009808
        %v2612 = vunpack.c.0.s8 %v2611
        %v2613 = vlaneseq
        %v2614 = vshrl.u32 %v2613, 7
        %v2615 = vsub.s32 %v2612, %v2614
        %v2616 = vrot.slane %v2609, %v2615
        %v2617 = vcombine.low %v2608, %v2616
        %v2618 = vcombine.high %v2608, %v2616
        %v2620 = vunpack.c.l.s4 1934713408
        %v2621 = vunpack.c.0.s8 %v2620
        %v2622 = vlaneseq
        %v2623 = vshrl.u32 %v2622, 7
        %v2624 = vsub.s32 %v2621, %v2623
        %v2625 = vrot.slane %v2617, %v2624
        %v2627 = vunpack.c.l.s4 1934713408
        %v2628 = vunpack.c.0.s8 %v2627
        %v2629 = vlaneseq
        %v2630 = vshrl.u32 %v2629, 7
        %v2631 = vsub.s32 %v2628, %v2630
        %v2632 = vrot.slane %v2618, %v2631
        %v2633 = vcombine.high %v2625, 0
        %v2634 = vcombine.high %v2632, 0
        %v2635 = vcombine.low %v2382, %v2478
        %v2637 = vunpack.c.l.s4 1983009808
        %v2638 = vunpack.c.0.s8 %v2637
        %v2639 = vlaneseq
        %v2640 = vshrl.u32 %v2639, 7
        %v2641 = vsub.s32 %v2638, %v2640
        %v2642 = vrot.slane %v2635, %v2641
        %v2643 = vcombine.low %v2430, %v2526
        %v2645 = vunpack.c.l.s4 1983009808
        %v2646 = vunpack.c.0.s8 %v2645
        %v2647 = vlaneseq
        %v2648 = vshrl.u32 %v2647, 7
        %v2649 = vsub.s32 %v2646, %v2648
        %v2650 = vrot.slane %v2643, %v2649
        %v2651 = vcombine.low %v2642, %v2650
        %v2652 = vcombine.high %v2642, %v2650
        %v2654 = vunpack.c.l.s4 1934713408
        %v2655 = vunpack.c.0.s8 %v2654
        %v2656 = vlaneseq
        %v2657 = vshrl.u32 %v2656, 7
        %v2658 = vsub.s32 %v2655, %v2657
        %v2659 = vrot.slane %v2651, %v2658
        %v2661 = vunpack.c.l.s4 1934713408
        %v2662 = vunpack.c.0.s8 %v2661
        %v2663 = vlaneseq
        %v2664 = vshrl.u32 %v2663, 7
        %v2665 = vsub.s32 %v2662, %v2664
        %v2666 = vrot.slane %v2652, %v2665
        %v2667 = vcombine.high %v2659, 0
        %v2668 = vcombine.high %v2666, 0
        %v2669 = vcombine.low %v2406, %v2502
        %v2671 = vunpack.c.l.s4 1983009808
        %v2672 = vunpack.c.0.s8 %v2671
        %v2673 = vlaneseq
        %v2674 = vshrl.u32 %v2673, 7
        %v2675 = vsub.s32 %v2672, %v2674
        %v2676 = vrot.slane %v2669, %v2675
        %v2677 = vcombine.low %v2454, %v2550
        %v2679 = vunpack.c.l.s4 1983009808
        %v2680 = vunpack.c.0.s8 %v2679
        %v2681 = vlaneseq
        %v2682 = vshrl.u32 %v2681, 7
        %v2683 = vsub.s32 %v2680, %v2682
        %v2684 = vrot.slane %v2677, %v2683
        %v2685 = vcombine.low %v2676, %v2684
        %v2686 = vcombine.high %v2676, %v2684
        %v2688 = vunpack.c.l.s4 1934713408
        %v2689 = vunpack.c.0.s8 %v2688
        %v2690 = vlaneseq
        %v2691 = vshrl.u32 %v2690, 7
        %v2692 = vsub.s32 %v2689, %v2691
        %v2693 = vrot.slane %v2685, %v2692
        %v2695 = vunpack.c.l.s4 1934713408
        %v2696 = vunpack.c.0.s8 %v2695
        %v2697 = vlaneseq
        %v2698 = vshrl.u32 %v2697, 7
        %v2699 = vsub.s32 %v2696, %v2698
        %v2700 = vrot.slane %v2686, %v2699
        %v2701 = vcombine.high %v2693, 0
        %v2702 = vcombine.high %v2700, 0
        %v2705 = vpack.i.b16 %v2625, %v2591
        %v2706 = vshrl.u32 %v2591, 16
        %v2707 = vshrl.u32 %v2625, 16
        %v2708 = vpack.i.b16 %v2707, %v2706
        %v2711 = vpack.i.b16 %v2633, %v2599
        %v2712 = vshrl.u32 %v2599, 16
        %v2713 = vshrl.u32 %v2633, 16
        %v2714 = vpack.i.b16 %v2713, %v2712
        %v2717 = vpack.i.b16 %v2632, %v2598
        %v2718 = vshrl.u32 %v2598, 16
        %v2719 = vshrl.u32 %v2632, 16
        %v2720 = vpack.i.b16 %v2719, %v2718
        %v2723 = vpack.i.b16 %v2634, %v2600
        %v2724 = vshrl.u32 %v2600, 16
        %v2725 = vshrl.u32 %v2634, 16
        %v2726 = vpack.i.b16 %v2725, %v2724
        %v2729 = vpack.i.b16 %v2693, %v2659
        %v2730 = vshrl.u32 %v2659, 16
        %v2731 = vshrl.u32 %v2693, 16
        %v2732 = vpack.i.b16 %v2731, %v2730
        %v2735 = vpack.i.b16 %v2701, %v2667
        %v2736 = vshrl.u32 %v2667, 16
        %v2737 = vshrl.u32 %v2701, 16
        %v2738 = vpack.i.b16 %v2737, %v2736
        %v2741 = vpack.i.b16 %v2700, %v2666
        %v2742 = vshrl.u32 %v2666, 16
        %v2743 = vshrl.u32 %v2700, 16
        %v2744 = vpack.i.b16 %v2743, %v2742
        %v2747 = vpack.i.b16 %v2702, %v2668
        %v2748 = vshrl.u32 %v2668, 16
        %v2749 = vshrl.u32 %v2702, 16
        %v2750 = vpack.i.b16 %v2749, %v2748
        %v2751 = vunpack.c.l.b16 %v2708
        %v2752 = vpack.c.b16 %v2751, %v2751
        %2753 = vrot.lane.b32.xlu0 %v2752, 16
        %v2754 = vpop.permute.xlu0 %2753
        %v2755 = vunpack.c.l.b16 %v2711
        %v2756 = vpack.c.b16 %v2755, %v2755
        %2757 = vrot.lane.b32.xlu0 %v2756, 32
        %v2758 = vpop.permute.xlu0 %2757
        %v2759 = vunpack.c.l.b16 %v2714
        %v2760 = vpack.c.b16 %v2759, %v2759
        %2761 = vrot.lane.b32.xlu0 %v2760, 48
        %v2762 = vpop.permute.xlu0 %2761
        %v2763 = vunpack.c.l.b16 %v2717
        %v2764 = vpack.c.b16 %v2763, %v2763
        %2765 = vrot.lane.b32.xlu0 %v2764, 64
        %v2766 = vpop.permute.xlu0 %2765
        %v2767 = vunpack.c.l.b16 %v2720
        %v2768 = vpack.c.b16 %v2767, %v2767
        %2769 = vrot.lane.b32.xlu0 %v2768, 80
        %v2770 = vpop.permute.xlu0 %2769
        %v2771 = vunpack.c.l.b16 %v2723
        %v2772 = vpack.c.b16 %v2771, %v2771
        %2773 = vrot.lane.b32.xlu0 %v2772, 96
        %v2774 = vpop.permute.xlu0 %2773
        %v2775 = vunpack.c.l.b16 %v2726
        %v2776 = vpack.c.b16 %v2775, %v2775
        %2777 = vrot.lane.b32.xlu0 %v2776, 112
        %v2778 = vpop.permute.xlu0 %2777
        %v2779 = vunpack.c.l.b16 %v2732
        %v2780 = vpack.c.b16 %v2779, %v2779
        %2781 = vrot.lane.b32.xlu0 %v2780, 16
        %v2782 = vpop.permute.xlu0 %2781
        %v2783 = vunpack.c.l.b16 %v2735
        %v2784 = vpack.c.b16 %v2783, %v2783
        %2785 = vrot.lane.b32.xlu0 %v2784, 32
        %v2786 = vpop.permute.xlu0 %2785
        %v2787 = vunpack.c.l.b16 %v2738
        %v2788 = vpack.c.b16 %v2787, %v2787
        %2789 = vrot.lane.b32.xlu0 %v2788, 48
        %v2790 = vpop.permute.xlu0 %2789
        %v2791 = vunpack.c.l.b16 %v2741
        %v2792 = vpack.c.b16 %v2791, %v2791
        %2793 = vrot.lane.b32.xlu0 %v2792, 64
        %v2794 = vpop.permute.xlu0 %2793
        %v2795 = vunpack.c.l.b16 %v2744
        %v2796 = vpack.c.b16 %v2795, %v2795
        %2797 = vrot.lane.b32.xlu0 %v2796, 80
        %v2798 = vpop.permute.xlu0 %2797
        %v2799 = vunpack.c.l.b16 %v2747
        %v2800 = vpack.c.b16 %v2799, %v2799
        %2801 = vrot.lane.b32.xlu0 %v2800, 96
        %v2802 = vpop.permute.xlu0 %2801
        %v2803 = vunpack.c.l.b16 %v2750
        %v2804 = vpack.c.b16 %v2803, %v2803
        %2805 = vrot.lane.b32.xlu0 %v2804, 112
        %v2806 = vpop.permute.xlu0 %2805
        %v2809 = vsel %vm1504, %v2705, %v2754
        %v2811 = vsel %vm1508, %v2809, %v2758
        %v2813 = vsel %vm1511, %v2811, %v2762
        %v2815 = vsel %vm1514, %v2813, %v2766
        %v2817 = vsel %vm1517, %v2815, %v2770
        %v2819 = vsel %vm1520, %v2817, %v2774
        %v2821 = vsel %vm1523, %v2819, %v2778
        %v2824 = vsel %vm1504, %v2729, %v2782
        %v2826 = vsel %vm1508, %v2824, %v2786
        %v2828 = vsel %vm1511, %v2826, %v2790
        %v2830 = vsel %vm1514, %v2828, %v2794
        %v2832 = vsel %vm1517, %v2830, %v2798
        %v2834 = vsel %vm1520, %v2832, %v2802
        %v2836 = vsel %vm1523, %v2834, %v2806
        %2837 = vrot.lane.b32.xlu0 %v1933, 104
        %v2838 = vpop.permute.xlu0 %2837
        %v2840 = vsel %vm523, %v2838, 0
        %v2842 = vsel %vm1544, %v2821, 0
        %v2844 = vsel %vm1544, %v2836, 0
        %2846 = vmatprep.subr.bf16.mxu0 %v2844
        %2847 = vmatpush1.bf16.msra.mxu0 %v2842
        %2848 = vmatprep.subr.bf16.mxu0 0
        %2849 = vmatpush1.bf16.msra.mxu0 0
        %2850 = vmatprep.subr.bf16.mxu0 0
        %2851 = vmatpush1.bf16.msra.mxu0 0
        %2852 = vmatprep.subr.bf16.mxu0 0
        %2853 = vmatpush1.bf16.msra.mxu0 0
        %2854 = vmatprep.subr.bf16.mxu0 0
        %2855 = vmatpush1.bf16.msra.mxu0 0
        %2856 = vmatprep.subr.bf16.mxu0 0
        %2857 = vmatpush1.bf16.msra.mxu0 0
        %2858 = vmatprep.subr.bf16.mxu0 0
        %2859 = vmatpush1.bf16.msra.mxu0 0
        %2860 = vmatprep.subr.bf16.mxu0 0
        %2861 = vmatpush1.bf16.msra.mxu0 0
        %2862 = vmatprep.subr.bf16.mxu0 0
        %2863 = vmatpush1.bf16.msra.mxu0 0
        %2864 = vmatprep.subr.bf16.mxu0 0
        %2865 = vmatpush1.bf16.msra.mxu0 0
        %2866 = vmatprep.subr.bf16.mxu0 0
        %2867 = vmatpush1.bf16.msra.mxu0 0
        %2868 = vmatprep.subr.bf16.mxu0 0
        %2869 = vmatpush1.bf16.msra.mxu0 0
        %2870 = vmatprep.subr.bf16.mxu0 0
        %2871 = vmatpush1.bf16.msra.mxu0 0
        %2872 = vmatprep.subr.bf16.mxu0 0
        %2873 = vmatpush1.bf16.msra.mxu0 0
        %2874 = vmatprep.subr.bf16.mxu0 0
        %2875 = vmatpush1.bf16.msra.mxu0 0
        %2876 = vmatprep.subr.bf16.mxu0 0
        %2877 = vmatpush1.bf16.msra.mxu0 0
        %2878 = vmatprep.mubr.bf16.mxu0 0
        %2879 = vmatmul.mubr.bf16.gmra.mrb[0].mxu0 %v2840
        %v2880 = vpop.f32.mrb[0].mxu0
        %v2881 = vadd.f32 0.0, %v2880
        %v2882 = vpop.f32.mrb[0].mxu0
        %v2883 = vadd.f32 0.0, %v2882
        %v2884 = vpop.f32.mrb[0].mxu0
        %v2885 = vpop.f32.mrb[0].mxu0
        %2886 = vdwg.mxu0
        %v2887 = vadd.f32 %v2354, %v2881
        %v2888 = vadd.f32 %v2355, %v2883
        %2889 = vrot.lane.b32.xlu0 %v2372, 127
        %v2890 = vpop.permute.xlu0 %2889
        %2891 = vrot.lane.b32.xlu0 %v2382, 127
        %v2892 = vpop.permute.xlu0 %2891
        %2893 = vrot.lane.b32.xlu0 %v2396, 127
        %v2894 = vpop.permute.xlu0 %2893
        %2895 = vrot.lane.b32.xlu0 %v2406, 127
        %v2896 = vpop.permute.xlu0 %2895
        %2897 = vrot.lane.b32.xlu0 %v2420, 127
        %v2898 = vpop.permute.xlu0 %2897
        %2899 = vrot.lane.b32.xlu0 %v2430, 127
        %v2900 = vpop.permute.xlu0 %2899
        %2901 = vrot.lane.b32.xlu0 %v2444, 127
        %v2902 = vpop.permute.xlu0 %2901
        %2903 = vrot.lane.b32.xlu0 %v2454, 127
        %v2904 = vpop.permute.xlu0 %2903
        %2905 = vrot.lane.b32.xlu0 %v2468, 127
        %v2906 = vpop.permute.xlu0 %2905
        %2907 = vrot.lane.b32.xlu0 %v2478, 127
        %v2908 = vpop.permute.xlu0 %2907
        %2909 = vrot.lane.b32.xlu0 %v2492, 127
        %v2910 = vpop.permute.xlu0 %2909
        %2911 = vrot.lane.b32.xlu0 %v2502, 127
        %v2912 = vpop.permute.xlu0 %2911
        %2913 = vrot.lane.b32.xlu0 %v2516, 127
        %v2914 = vpop.permute.xlu0 %2913
        %2915 = vrot.lane.b32.xlu0 %v2526, 127
        %v2916 = vpop.permute.xlu0 %2915
        %2917 = vrot.lane.b32.xlu0 %v2540, 127
        %v2918 = vpop.permute.xlu0 %2917
        %2919 = vrot.lane.b32.xlu0 %v2550, 127
        %v2920 = vpop.permute.xlu0 %2919
        %v2937 = vcombine.low %v2890, %v2906
        %v2939 = vunpack.c.l.s4 1983009808
        %v2940 = vunpack.c.0.s8 %v2939
        %v2941 = vlaneseq
        %v2942 = vshrl.u32 %v2941, 7
        %v2943 = vsub.s32 %v2940, %v2942
        %v2944 = vrot.slane %v2937, %v2943
        %v2945 = vcombine.low %v2898, %v2914
        %v2947 = vunpack.c.l.s4 1983009808
        %v2948 = vunpack.c.0.s8 %v2947
        %v2949 = vlaneseq
        %v2950 = vshrl.u32 %v2949, 7
        %v2951 = vsub.s32 %v2948, %v2950
        %v2952 = vrot.slane %v2945, %v2951
        %v2953 = vcombine.low %v2944, %v2952
        %v2954 = vcombine.high %v2944, %v2952
        %v2956 = vunpack.c.l.s4 1934713408
        %v2957 = vunpack.c.0.s8 %v2956
        %v2958 = vlaneseq
        %v2959 = vshrl.u32 %v2958, 7
        %v2960 = vsub.s32 %v2957, %v2959
        %v2961 = vrot.slane %v2953, %v2960
        %v2963 = vunpack.c.l.s4 1934713408
        %v2964 = vunpack.c.0.s8 %v2963
        %v2965 = vlaneseq
        %v2966 = vshrl.u32 %v2965, 7
        %v2967 = vsub.s32 %v2964, %v2966
        %v2968 = vrot.slane %v2954, %v2967
        %v2969 = vcombine.high %v2961, 0
        %v2970 = vcombine.high %v2968, 0
        %v2971 = vcombine.low %v2894, %v2910
        %v2973 = vunpack.c.l.s4 1983009808
        %v2974 = vunpack.c.0.s8 %v2973
        %v2975 = vlaneseq
        %v2976 = vshrl.u32 %v2975, 7
        %v2977 = vsub.s32 %v2974, %v2976
        %v2978 = vrot.slane %v2971, %v2977
        %v2979 = vcombine.low %v2902, %v2918
        %v2981 = vunpack.c.l.s4 1983009808
        %v2982 = vunpack.c.0.s8 %v2981
        %v2983 = vlaneseq
        %v2984 = vshrl.u32 %v2983, 7
        %v2985 = vsub.s32 %v2982, %v2984
        %v2986 = vrot.slane %v2979, %v2985
        %v2987 = vcombine.low %v2978, %v2986
        %v2988 = vcombine.high %v2978, %v2986
        %v2990 = vunpack.c.l.s4 1934713408
        %v2991 = vunpack.c.0.s8 %v2990
        %v2992 = vlaneseq
        %v2993 = vshrl.u32 %v2992, 7
        %v2994 = vsub.s32 %v2991, %v2993
        %v2995 = vrot.slane %v2987, %v2994
        %v2997 = vunpack.c.l.s4 1934713408
        %v2998 = vunpack.c.0.s8 %v2997
        %v2999 = vlaneseq
        %v3000 = vshrl.u32 %v2999, 7
        %v3001 = vsub.s32 %v2998, %v3000
        %v3002 = vrot.slane %v2988, %v3001
        %v3003 = vcombine.high %v2995, 0
        %v3004 = vcombine.high %v3002, 0
        %v3005 = vcombine.low %v2892, %v2908
        %v3007 = vunpack.c.l.s4 1983009808
        %v3008 = vunpack.c.0.s8 %v3007
        %v3009 = vlaneseq
        %v3010 = vshrl.u32 %v3009, 7
        %v3011 = vsub.s32 %v3008, %v3010
        %v3012 = vrot.slane %v3005, %v3011
        %v3013 = vcombine.low %v2900, %v2916
        %v3015 = vunpack.c.l.s4 1983009808
        %v3016 = vunpack.c.0.s8 %v3015
        %v3017 = vlaneseq
        %v3018 = vshrl.u32 %v3017, 7
        %v3019 = vsub.s32 %v3016, %v3018
        %v3020 = vrot.slane %v3013, %v3019
        %v3021 = vcombine.low %v3012, %v3020
        %v3022 = vcombine.high %v3012, %v3020
        %v3024 = vunpack.c.l.s4 1934713408
        %v3025 = vunpack.c.0.s8 %v3024
        %v3026 = vlaneseq
        %v3027 = vshrl.u32 %v3026, 7
        %v3028 = vsub.s32 %v3025, %v3027
        %v3029 = vrot.slane %v3021, %v3028
        %v3031 = vunpack.c.l.s4 1934713408
        %v3032 = vunpack.c.0.s8 %v3031
        %v3033 = vlaneseq
        %v3034 = vshrl.u32 %v3033, 7
        %v3035 = vsub.s32 %v3032, %v3034
        %v3036 = vrot.slane %v3022, %v3035
        %v3037 = vcombine.high %v3029, 0
        %v3038 = vcombine.high %v3036, 0
        %v3039 = vcombine.low %v2896, %v2912
        %v3041 = vunpack.c.l.s4 1983009808
        %v3042 = vunpack.c.0.s8 %v3041
        %v3043 = vlaneseq
        %v3044 = vshrl.u32 %v3043, 7
        %v3045 = vsub.s32 %v3042, %v3044
        %v3046 = vrot.slane %v3039, %v3045
        %v3047 = vcombine.low %v2904, %v2920
        %v3049 = vunpack.c.l.s4 1983009808
        %v3050 = vunpack.c.0.s8 %v3049
        %v3051 = vlaneseq
        %v3052 = vshrl.u32 %v3051, 7
        %v3053 = vsub.s32 %v3050, %v3052
        %v3054 = vrot.slane %v3047, %v3053
        %v3055 = vcombine.low %v3046, %v3054
        %v3056 = vcombine.high %v3046, %v3054
        %v3058 = vunpack.c.l.s4 1934713408
        %v3059 = vunpack.c.0.s8 %v3058
        %v3060 = vlaneseq
        %v3061 = vshrl.u32 %v3060, 7
        %v3062 = vsub.s32 %v3059, %v3061
        %v3063 = vrot.slane %v3055, %v3062
        %v3065 = vunpack.c.l.s4 1934713408
        %v3066 = vunpack.c.0.s8 %v3065
        %v3067 = vlaneseq
        %v3068 = vshrl.u32 %v3067, 7
        %v3069 = vsub.s32 %v3066, %v3068
        %v3070 = vrot.slane %v3056, %v3069
        %v3071 = vcombine.high %v3063, 0
        %v3072 = vcombine.high %v3070, 0
        %v3075 = vpack.i.b16 %v2995, %v2961
        %v3076 = vshrl.u32 %v2961, 16
        %v3077 = vshrl.u32 %v2995, 16
        %v3078 = vpack.i.b16 %v3077, %v3076
        %v3081 = vpack.i.b16 %v3003, %v2969
        %v3082 = vshrl.u32 %v2969, 16
        %v3083 = vshrl.u32 %v3003, 16
        %v3084 = vpack.i.b16 %v3083, %v3082
        %v3087 = vpack.i.b16 %v3002, %v2968
        %v3088 = vshrl.u32 %v2968, 16
        %v3089 = vshrl.u32 %v3002, 16
        %v3090 = vpack.i.b16 %v3089, %v3088
        %v3093 = vpack.i.b16 %v3004, %v2970
        %v3094 = vshrl.u32 %v2970, 16
        %v3095 = vshrl.u32 %v3004, 16
        %v3096 = vpack.i.b16 %v3095, %v3094
        %v3099 = vpack.i.b16 %v3063, %v3029
        %v3100 = vshrl.u32 %v3029, 16
        %v3101 = vshrl.u32 %v3063, 16
        %v3102 = vpack.i.b16 %v3101, %v3100
        %v3105 = vpack.i.b16 %v3071, %v3037
        %v3106 = vshrl.u32 %v3037, 16
        %v3107 = vshrl.u32 %v3071, 16
        %v3108 = vpack.i.b16 %v3107, %v3106
        %v3111 = vpack.i.b16 %v3070, %v3036
        %v3112 = vshrl.u32 %v3036, 16
        %v3113 = vshrl.u32 %v3070, 16
        %v3114 = vpack.i.b16 %v3113, %v3112
        %v3117 = vpack.i.b16 %v3072, %v3038
        %v3118 = vshrl.u32 %v3038, 16
        %v3119 = vshrl.u32 %v3072, 16
        %v3120 = vpack.i.b16 %v3119, %v3118
        %v3121 = vunpack.c.l.b16 %v3078
        %v3122 = vpack.c.b16 %v3121, %v3121
        %3123 = vrot.lane.b32.xlu0 %v3122, 16
        %v3124 = vpop.permute.xlu0 %3123
        %v3125 = vunpack.c.l.b16 %v3081
        %v3126 = vpack.c.b16 %v3125, %v3125
        %3127 = vrot.lane.b32.xlu0 %v3126, 32
        %v3128 = vpop.permute.xlu0 %3127
        %v3129 = vunpack.c.l.b16 %v3084
        %v3130 = vpack.c.b16 %v3129, %v3129
        %3131 = vrot.lane.b32.xlu0 %v3130, 48
        %v3132 = vpop.permute.xlu0 %3131
        %v3133 = vunpack.c.l.b16 %v3087
        %v3134 = vpack.c.b16 %v3133, %v3133
        %3135 = vrot.lane.b32.xlu0 %v3134, 64
        %v3136 = vpop.permute.xlu0 %3135
        %v3137 = vunpack.c.l.b16 %v3090
        %v3138 = vpack.c.b16 %v3137, %v3137
        %3139 = vrot.lane.b32.xlu0 %v3138, 80
        %v3140 = vpop.permute.xlu0 %3139
        %v3141 = vunpack.c.l.b16 %v3093
        %v3142 = vpack.c.b16 %v3141, %v3141
        %3143 = vrot.lane.b32.xlu0 %v3142, 96
        %v3144 = vpop.permute.xlu0 %3143
        %v3145 = vunpack.c.l.b16 %v3096
        %v3146 = vpack.c.b16 %v3145, %v3145
        %3147 = vrot.lane.b32.xlu0 %v3146, 112
        %v3148 = vpop.permute.xlu0 %3147
        %v3149 = vunpack.c.l.b16 %v3102
        %v3150 = vpack.c.b16 %v3149, %v3149
        %3151 = vrot.lane.b32.xlu0 %v3150, 16
        %v3152 = vpop.permute.xlu0 %3151
        %v3153 = vunpack.c.l.b16 %v3105
        %v3154 = vpack.c.b16 %v3153, %v3153
        %3155 = vrot.lane.b32.xlu0 %v3154, 32
        %v3156 = vpop.permute.xlu0 %3155
        %v3157 = vunpack.c.l.b16 %v3108
        %v3158 = vpack.c.b16 %v3157, %v3157
        %3159 = vrot.lane.b32.xlu0 %v3158, 48
        %v3160 = vpop.permute.xlu0 %3159
        %v3161 = vunpack.c.l.b16 %v3111
        %v3162 = vpack.c.b16 %v3161, %v3161
        %3163 = vrot.lane.b32.xlu0 %v3162, 64
        %v3164 = vpop.permute.xlu0 %3163
        %v3165 = vunpack.c.l.b16 %v3114
        %v3166 = vpack.c.b16 %v3165, %v3165
        %3167 = vrot.lane.b32.xlu0 %v3166, 80
        %v3168 = vpop.permute.xlu0 %3167
        %v3169 = vunpack.c.l.b16 %v3117
        %v3170 = vpack.c.b16 %v3169, %v3169
        %3171 = vrot.lane.b32.xlu0 %v3170, 96
        %v3172 = vpop.permute.xlu0 %3171
        %v3173 = vunpack.c.l.b16 %v3120
        %v3174 = vpack.c.b16 %v3173, %v3173
        %3175 = vrot.lane.b32.xlu0 %v3174, 112
        %v3176 = vpop.permute.xlu0 %3175
        %v3179 = vsel %vm1504, %v3075, %v3124
        %v3181 = vsel %vm1508, %v3179, %v3128
        %v3183 = vsel %vm1511, %v3181, %v3132
        %v3185 = vsel %vm1514, %v3183, %v3136
        %v3187 = vsel %vm1517, %v3185, %v3140
        %v3189 = vsel %vm1520, %v3187, %v3144
        %v3191 = vsel %vm1523, %v3189, %v3148
        %v3194 = vsel %vm1504, %v3099, %v3152
        %v3196 = vsel %vm1508, %v3194, %v3156
        %v3198 = vsel %vm1511, %v3196, %v3160
        %v3200 = vsel %vm1514, %v3198, %v3164
        %v3202 = vsel %vm1517, %v3200, %v3168
        %v3204 = vsel %vm1520, %v3202, %v3172
        %v3206 = vsel %vm1523, %v3204, %v3176
        %3207 = vrot.lane.b32.xlu0 %v1933, 96
        %v3208 = vpop.permute.xlu0 %3207
        %v3210 = vsel %vm523, %v3208, 0
        %v3212 = vsel %vm1544, %v3191, 0
        %v3214 = vsel %vm1544, %v3206, 0
        %3216 = vmatprep.subr.bf16.mxu0 %v3214
        %3217 = vmatpush1.bf16.msra.mxu0 %v3212
        %3218 = vmatprep.subr.bf16.mxu0 0
        %3219 = vmatpush1.bf16.msra.mxu0 0
        %3220 = vmatprep.subr.bf16.mxu0 0
        %3221 = vmatpush1.bf16.msra.mxu0 0
        %3222 = vmatprep.subr.bf16.mxu0 0
        %3223 = vmatpush1.bf16.msra.mxu0 0
        %3224 = vmatprep.subr.bf16.mxu0 0
        %3225 = vmatpush1.bf16.msra.mxu0 0
        %3226 = vmatprep.subr.bf16.mxu0 0
        %3227 = vmatpush1.bf16.msra.mxu0 0
        %3228 = vmatprep.subr.bf16.mxu0 0
        %3229 = vmatpush1.bf16.msra.mxu0 0
        %3230 = vmatprep.subr.bf16.mxu0 0
        %3231 = vmatpush1.bf16.msra.mxu0 0
        %3232 = vmatprep.subr.bf16.mxu0 0
        %3233 = vmatpush1.bf16.msra.mxu0 0
        %3234 = vmatprep.subr.bf16.mxu0 0
        %3235 = vmatpush1.bf16.msra.mxu0 0
        %3236 = vmatprep.subr.bf16.mxu0 0
        %3237 = vmatpush1.bf16.msra.mxu0 0
        %3238 = vmatprep.subr.bf16.mxu0 0
        %3239 = vmatpush1.bf16.msra.mxu0 0
        %3240 = vmatprep.subr.bf16.mxu0 0
        %3241 = vmatpush1.bf16.msra.mxu0 0
        %3242 = vmatprep.subr.bf16.mxu0 0
        %3243 = vmatpush1.bf16.msra.mxu0 0
        %3244 = vmatprep.subr.bf16.mxu0 0
        %3245 = vmatpush1.bf16.msra.mxu0 0
        %3246 = vmatprep.subr.bf16.mxu0 0
        %3247 = vmatpush1.bf16.msra.mxu0 0
        %3248 = vmatprep.mubr.bf16.mxu0 0
        %3249 = vmatmul.mubr.bf16.gmra.mrb[0].mxu0 %v3210
        %v3250 = vpop.f32.mrb[0].mxu0
        %v3251 = vadd.f32 0.0, %v3250
        %v3252 = vpop.f32.mrb[0].mxu0
        %v3253 = vadd.f32 0.0, %v3252
        %v3254 = vpop.f32.mrb[0].mxu0
        %v3255 = vpop.f32.mrb[0].mxu0
        %3256 = vdwg.mxu0
        %v3257 = vadd.f32 %v2887, %v3251
        %v3258 = vadd.f32 %v2888, %v3253
        %3259 = vrot.lane.b32.xlu0 %v2372, 126
        %v3260 = vpop.permute.xlu0 %3259
        %3261 = vrot.lane.b32.xlu0 %v2382, 126
        %v3262 = vpop.permute.xlu0 %3261
        %3263 = vrot.lane.b32.xlu0 %v2396, 126
        %v3264 = vpop.permute.xlu0 %3263
        %3265 = vrot.lane.b32.xlu0 %v2406, 126
        %v3266 = vpop.permute.xlu0 %3265
        %3267 = vrot.lane.b32.xlu0 %v2420, 126
        %v3268 = vpop.permute.xlu0 %3267
        %3269 = vrot.lane.b32.xlu0 %v2430, 126
        %v3270 = vpop.permute.xlu0 %3269
        %3271 = vrot.lane.b32.xlu0 %v2444, 126
        %v3272 = vpop.permute.xlu0 %3271
        %3273 = vrot.lane.b32.xlu0 %v2454, 126
        %v3274 = vpop.permute.xlu0 %3273
        %3275 = vrot.lane.b32.xlu0 %v2468, 126
        %v3276 = vpop.permute.xlu0 %3275
        %3277 = vrot.lane.b32.xlu0 %v2478, 126
        %v3278 = vpop.permute.xlu0 %3277
        %3279 = vrot.lane.b32.xlu0 %v2492, 126
        %v3280 = vpop.permute.xlu0 %3279
        %3281 = vrot.lane.b32.xlu0 %v2502, 126
        %v3282 = vpop.permute.xlu0 %3281
        %3283 = vrot.lane.b32.xlu0 %v2516, 126
        %v3284 = vpop.permute.xlu0 %3283
        %3285 = vrot.lane.b32.xlu0 %v2526, 126
        %v3286 = vpop.permute.xlu0 %3285
        %3287 = vrot.lane.b32.xlu0 %v2540, 126
        %v3288 = vpop.permute.xlu0 %3287
        %3289 = vrot.lane.b32.xlu0 %v2550, 126
        %v3290 = vpop.permute.xlu0 %3289
        %v3307 = vcombine.low %v3260, %v3276
        %v3309 = vunpack.c.l.s4 1983009808
        %v3310 = vunpack.c.0.s8 %v3309
        %v3311 = vlaneseq
        %v3312 = vshrl.u32 %v3311, 7
        %v3313 = vsub.s32 %v3310, %v3312
        %v3314 = vrot.slane %v3307, %v3313
        %v3315 = vcombine.low %v3268, %v3284
        %v3317 = vunpack.c.l.s4 1983009808
        %v3318 = vunpack.c.0.s8 %v3317
        %v3319 = vlaneseq
        %v3320 = vshrl.u32 %v3319, 7
        %v3321 = vsub.s32 %v3318, %v3320
        %v3322 = vrot.slane %v3315, %v3321
        %v3323 = vcombine.low %v3314, %v3322
        %v3324 = vcombine.high %v3314, %v3322
        %v3326 = vunpack.c.l.s4 1934713408
        %v3327 = vunpack.c.0.s8 %v3326
        %v3328 = vlaneseq
        %v3329 = vshrl.u32 %v3328, 7
        %v3330 = vsub.s32 %v3327, %v3329
        %v3331 = vrot.slane %v3323, %v3330
        %v3333 = vunpack.c.l.s4 1934713408
        %v3334 = vunpack.c.0.s8 %v3333
        %v3335 = vlaneseq
        %v3336 = vshrl.u32 %v3335, 7
        %v3337 = vsub.s32 %v3334, %v3336
        %v3338 = vrot.slane %v3324, %v3337
        %v3339 = vcombine.high %v3331, 0
        %v3340 = vcombine.high %v3338, 0
        %v3341 = vcombine.low %v3264, %v3280
        %v3343 = vunpack.c.l.s4 1983009808
        %v3344 = vunpack.c.0.s8 %v3343
        %v3345 = vlaneseq
        %v3346 = vshrl.u32 %v3345, 7
        %v3347 = vsub.s32 %v3344, %v3346
        %v3348 = vrot.slane %v3341, %v3347
        %v3349 = vcombine.low %v3272, %v3288
        %v3351 = vunpack.c.l.s4 1983009808
        %v3352 = vunpack.c.0.s8 %v3351
        %v3353 = vlaneseq
        %v3354 = vshrl.u32 %v3353, 7
        %v3355 = vsub.s32 %v3352, %v3354
        %v3356 = vrot.slane %v3349, %v3355
        %v3357 = vcombine.low %v3348, %v3356
        %v3358 = vcombine.high %v3348, %v3356
        %v3360 = vunpack.c.l.s4 1934713408
        %v3361 = vunpack.c.0.s8 %v3360
        %v3362 = vlaneseq
        %v3363 = vshrl.u32 %v3362, 7
        %v3364 = vsub.s32 %v3361, %v3363
        %v3365 = vrot.slane %v3357, %v3364
        %v3367 = vunpack.c.l.s4 1934713408
        %v3368 = vunpack.c.0.s8 %v3367
        %v3369 = vlaneseq
        %v3370 = vshrl.u32 %v3369, 7
        %v3371 = vsub.s32 %v3368, %v3370
        %v3372 = vrot.slane %v3358, %v3371
        %v3373 = vcombine.high %v3365, 0
        %v3374 = vcombine.high %v3372, 0
        %v3375 = vcombine.low %v3262, %v3278
        %v3377 = vunpack.c.l.s4 1983009808
        %v3378 = vunpack.c.0.s8 %v3377
        %v3379 = vlaneseq
        %v3380 = vshrl.u32 %v3379, 7
        %v3381 = vsub.s32 %v3378, %v3380
        %v3382 = vrot.slane %v3375, %v3381
        %v3383 = vcombine.low %v3270, %v3286
        %v3385 = vunpack.c.l.s4 1983009808
        %v3386 = vunpack.c.0.s8 %v3385
        %v3387 = vlaneseq
        %v3388 = vshrl.u32 %v3387, 7
        %v3389 = vsub.s32 %v3386, %v3388
        %v3390 = vrot.slane %v3383, %v3389
        %v3391 = vcombine.low %v3382, %v3390
        %v3392 = vcombine.high %v3382, %v3390
        %v3394 = vunpack.c.l.s4 1934713408
        %v3395 = vunpack.c.0.s8 %v3394
        %v3396 = vlaneseq
        %v3397 = vshrl.u32 %v3396, 7
        %v3398 = vsub.s32 %v3395, %v3397
        %v3399 = vrot.slane %v3391, %v3398
        %v3401 = vunpack.c.l.s4 1934713408
        %v3402 = vunpack.c.0.s8 %v3401
        %v3403 = vlaneseq
        %v3404 = vshrl.u32 %v3403, 7
        %v3405 = vsub.s32 %v3402, %v3404
        %v3406 = vrot.slane %v3392, %v3405
        %v3407 = vcombine.high %v3399, 0
        %v3408 = vcombine.high %v3406, 0
        %v3409 = vcombine.low %v3266, %v3282
        %v3411 = vunpack.c.l.s4 1983009808
        %v3412 = vunpack.c.0.s8 %v3411
        %v3413 = vlaneseq
        %v3414 = vshrl.u32 %v3413, 7
        %v3415 = vsub.s32 %v3412, %v3414
        %v3416 = vrot.slane %v3409, %v3415
        %v3417 = vcombine.low %v3274, %v3290
        %v3419 = vunpack.c.l.s4 1983009808
        %v3420 = vunpack.c.0.s8 %v3419
        %v3421 = vlaneseq
        %v3422 = vshrl.u32 %v3421, 7
        %v3423 = vsub.s32 %v3420, %v3422
        %v3424 = vrot.slane %v3417, %v3423
        %v3425 = vcombine.low %v3416, %v3424
        %v3426 = vcombine.high %v3416, %v3424
        %v3428 = vunpack.c.l.s4 1934713408
        %v3429 = vunpack.c.0.s8 %v3428
        %v3430 = vlaneseq
        %v3431 = vshrl.u32 %v3430, 7
        %v3432 = vsub.s32 %v3429, %v3431
        %v3433 = vrot.slane %v3425, %v3432
        %v3435 = vunpack.c.l.s4 1934713408
        %v3436 = vunpack.c.0.s8 %v3435
        %v3437 = vlaneseq
        %v3438 = vshrl.u32 %v3437, 7
        %v3439 = vsub.s32 %v3436, %v3438
        %v3440 = vrot.slane %v3426, %v3439
        %v3441 = vcombine.high %v3433, 0
        %v3442 = vcombine.high %v3440, 0
        %v3445 = vpack.i.b16 %v3365, %v3331
        %v3446 = vshrl.u32 %v3331, 16
        %v3447 = vshrl.u32 %v3365, 16
        %v3448 = vpack.i.b16 %v3447, %v3446
        %v3451 = vpack.i.b16 %v3373, %v3339
        %v3452 = vshrl.u32 %v3339, 16
        %v3453 = vshrl.u32 %v3373, 16
        %v3454 = vpack.i.b16 %v3453, %v3452
        %v3457 = vpack.i.b16 %v3372, %v3338
        %v3458 = vshrl.u32 %v3338, 16
        %v3459 = vshrl.u32 %v3372, 16
        %v3460 = vpack.i.b16 %v3459, %v3458
        %v3463 = vpack.i.b16 %v3374, %v3340
        %v3464 = vshrl.u32 %v3340, 16
        %v3465 = vshrl.u32 %v3374, 16
        %v3466 = vpack.i.b16 %v3465, %v3464
        %v3469 = vpack.i.b16 %v3433, %v3399
        %v3470 = vshrl.u32 %v3399, 16
        %v3471 = vshrl.u32 %v3433, 16
        %v3472 = vpack.i.b16 %v3471, %v3470
        %v3475 = vpack.i.b16 %v3441, %v3407
        %v3476 = vshrl.u32 %v3407, 16
        %v3477 = vshrl.u32 %v3441, 16
        %v3478 = vpack.i.b16 %v3477, %v3476
        %v3481 = vpack.i.b16 %v3440, %v3406
        %v3482 = vshrl.u32 %v3406, 16
        %v3483 = vshrl.u32 %v3440, 16
        %v3484 = vpack.i.b16 %v3483, %v3482
        %v3487 = vpack.i.b16 %v3442, %v3408
        %v3488 = vshrl.u32 %v3408, 16
        %v3489 = vshrl.u32 %v3442, 16
        %v3490 = vpack.i.b16 %v3489, %v3488
        %v3491 = vunpack.c.l.b16 %v3448
        %v3492 = vpack.c.b16 %v3491, %v3491
        %3493 = vrot.lane.b32.xlu0 %v3492, 16
        %v3494 = vpop.permute.xlu0 %3493
        %v3495 = vunpack.c.l.b16 %v3451
        %v3496 = vpack.c.b16 %v3495, %v3495
        %3497 = vrot.lane.b32.xlu0 %v3496, 32
        %v3498 = vpop.permute.xlu0 %3497
        %v3499 = vunpack.c.l.b16 %v3454
        %v3500 = vpack.c.b16 %v3499, %v3499
        %3501 = vrot.lane.b32.xlu0 %v3500, 48
        %v3502 = vpop.permute.xlu0 %3501
        %v3503 = vunpack.c.l.b16 %v3457
        %v3504 = vpack.c.b16 %v3503, %v3503
        %3505 = vrot.lane.b32.xlu0 %v3504, 64
        %v3506 = vpop.permute.xlu0 %3505
        %v3507 = vunpack.c.l.b16 %v3460
        %v3508 = vpack.c.b16 %v3507, %v3507
        %3509 = vrot.lane.b32.xlu0 %v3508, 80
        %v3510 = vpop.permute.xlu0 %3509
        %v3511 = vunpack.c.l.b16 %v3463
        %v3512 = vpack.c.b16 %v3511, %v3511
        %3513 = vrot.lane.b32.xlu0 %v3512, 96
        %v3514 = vpop.permute.xlu0 %3513
        %v3515 = vunpack.c.l.b16 %v3466
        %v3516 = vpack.c.b16 %v3515, %v3515
        %3517 = vrot.lane.b32.xlu0 %v3516, 112
        %v3518 = vpop.permute.xlu0 %3517
        %v3519 = vunpack.c.l.b16 %v3472
        %v3520 = vpack.c.b16 %v3519, %v3519
        %3521 = vrot.lane.b32.xlu0 %v3520, 16
        %v3522 = vpop.permute.xlu0 %3521
        %v3523 = vunpack.c.l.b16 %v3475
        %v3524 = vpack.c.b16 %v3523, %v3523
        %3525 = vrot.lane.b32.xlu0 %v3524, 32
        %v3526 = vpop.permute.xlu0 %3525
        %v3527 = vunpack.c.l.b16 %v3478
        %v3528 = vpack.c.b16 %v3527, %v3527
        %3529 = vrot.lane.b32.xlu0 %v3528, 48
        %v3530 = vpop.permute.xlu0 %3529
        %v3531 = vunpack.c.l.b16 %v3481
        %v3532 = vpack.c.b16 %v3531, %v3531
        %3533 = vrot.lane.b32.xlu0 %v3532, 64
        %v3534 = vpop.permute.xlu0 %3533
        %v3535 = vunpack.c.l.b16 %v3484
        %v3536 = vpack.c.b16 %v3535, %v3535
        %3537 = vrot.lane.b32.xlu0 %v3536, 80
        %v3538 = vpop.permute.xlu0 %3537
        %v3539 = vunpack.c.l.b16 %v3487
        %v3540 = vpack.c.b16 %v3539, %v3539
        %3541 = vrot.lane.b32.xlu0 %v3540, 96
        %v3542 = vpop.permute.xlu0 %3541
        %v3543 = vunpack.c.l.b16 %v3490
        %v3544 = vpack.c.b16 %v3543, %v3543
        %3545 = vrot.lane.b32.xlu0 %v3544, 112
        %v3546 = vpop.permute.xlu0 %3545
        %v3549 = vsel %vm1504, %v3445, %v3494
        %v3551 = vsel %vm1508, %v3549, %v3498
        %v3553 = vsel %vm1511, %v3551, %v3502
        %v3555 = vsel %vm1514, %v3553, %v3506
        %v3557 = vsel %vm1517, %v3555, %v3510
        %v3559 = vsel %vm1520, %v3557, %v3514
        %v3561 = vsel %vm1523, %v3559, %v3518
        %v3564 = vsel %vm1504, %v3469, %v3522
        %v3566 = vsel %vm1508, %v3564, %v3526
        %v3568 = vsel %vm1511, %v3566, %v3530
        %v3570 = vsel %vm1514, %v3568, %v3534
        %v3572 = vsel %vm1517, %v3570, %v3538
        %v3574 = vsel %vm1520, %v3572, %v3542
        %v3576 = vsel %vm1523, %v3574, %v3546
        %3577 = vrot.lane.b32.xlu0 %v1933, 88
        %v3578 = vpop.permute.xlu0 %3577
        %v3580 = vsel %vm523, %v3578, 0
        %v3582 = vsel %vm1544, %v3561, 0
        %v3584 = vsel %vm1544, %v3576, 0
        %3586 = vmatprep.subr.bf16.mxu0 %v3584
        %3587 = vmatpush1.bf16.msra.mxu0 %v3582
        %3588 = vmatprep.subr.bf16.mxu0 0
        %3589 = vmatpush1.bf16.msra.mxu0 0
        %3590 = vmatprep.subr.bf16.mxu0 0
        %3591 = vmatpush1.bf16.msra.mxu0 0
        %3592 = vmatprep.subr.bf16.mxu0 0
        %3593 = vmatpush1.bf16.msra.mxu0 0
        %3594 = vmatprep.subr.bf16.mxu0 0
        %3595 = vmatpush1.bf16.msra.mxu0 0
        %3596 = vmatprep.subr.bf16.mxu0 0
        %3597 = vmatpush1.bf16.msra.mxu0 0
        %3598 = vmatprep.subr.bf16.mxu0 0
        %3599 = vmatpush1.bf16.msra.mxu0 0
        %3600 = vmatprep.subr.bf16.mxu0 0
        %3601 = vmatpush1.bf16.msra.mxu0 0
        %3602 = vmatprep.subr.bf16.mxu0 0
        %3603 = vmatpush1.bf16.msra.mxu0 0
        %3604 = vmatprep.subr.bf16.mxu0 0
        %3605 = vmatpush1.bf16.msra.mxu0 0
        %3606 = vmatprep.subr.bf16.mxu0 0
        %3607 = vmatpush1.bf16.msra.mxu0 0
        %3608 = vmatprep.subr.bf16.mxu0 0
        %3609 = vmatpush1.bf16.msra.mxu0 0
        %3610 = vmatprep.subr.bf16.mxu0 0
        %3611 = vmatpush1.bf16.msra.mxu0 0
        %3612 = vmatprep.subr.bf16.mxu0 0
        %3613 = vmatpush1.bf16.msra.mxu0 0
        %3614 = vmatprep.subr.bf16.mxu0 0
        %3615 = vmatpush1.bf16.msra.mxu0 0
        %3616 = vmatprep.subr.bf16.mxu0 0
        %3617 = vmatpush1.bf16.msra.mxu0 0
        %3618 = vmatprep.mubr.bf16.mxu0 0
        %3619 = vmatmul.mubr.bf16.gmra.mrb[0].mxu0 %v3580
        %v3620 = vpop.f32.mrb[0].mxu0
        %v3621 = vadd.f32 0.0, %v3620
        %v3622 = vpop.f32.mrb[0].mxu0
        %v3623 = vadd.f32 0.0, %v3622
        %v3624 = vpop.f32.mrb[0].mxu0
        %v3625 = vpop.f32.mrb[0].mxu0
        %3626 = vdwg.mxu0
        %v3627 = vadd.f32 %v3257, %v3621
        %v3628 = vadd.f32 %v3258, %v3623
        %vm3637 = vcmask 1042432
        %vm3638 = vcmask 1046532
        %vm3639 = vmor %vm3637, %vm3638
        %v3640 = vrot.slane %v1233, 5
        %v3641 = vrot.slane %v3640, 4
        %v3642 = vrot.slane %v1234, 5
        %v3643 = vsel %vm3639, %v3641, %v3642
        %v3644 = vrot.slane %v3642, 4
        %v3645 = vrot.slane %v1235, 5
        %v3646 = vsel %vm3639, %v3644, %v3645
        %v3647 = vrot.slane %v1236, 5
        %v3648 = vrot.slane %v3647, 4
        %v3649 = vrot.slane %v1237, 5
        %v3650 = vsel %vm3639, %v3648, %v3649
        %v3651 = vrot.slane %v3649, 4
        %v3652 = vrot.slane %v1238, 5
        %v3653 = vsel %vm3639, %v3651, %v3652
        %v3654 = vrot.slane %v1239, 5
        %v3655 = vrot.slane %v3654, 4
        %v3656 = vrot.slane %v1240, 5
        %v3657 = vsel %vm3639, %v3655, %v3656
        %v3658 = vrot.slane %v3656, 4
        %v3659 = vrot.slane %v1241, 5
        %v3660 = vsel %vm3639, %v3658, %v3659
        %v3661 = vrot.slane %v1242, 5
        %v3662 = vrot.slane %v3661, 4
        %v3663 = vrot.slane %v1243, 5
        %v3664 = vsel %vm3639, %v3662, %v3663
        %v3665 = vrot.slane %v3663, 4
        %v3666 = vrot.slane %v1244, 5
        %v3667 = vsel %vm3639, %v3665, %v3666
        %v3668 = vrot.slane %v1245, 5
        %v3669 = vrot.slane %v3668, 4
        %v3670 = vrot.slane %v1246, 5
        %v3671 = vsel %vm3639, %v3669, %v3670
        %v3672 = vrot.slane %v3670, 4
        %v3673 = vrot.slane %v1247, 5
        %v3674 = vsel %vm3639, %v3672, %v3673
        %v3675 = vrot.slane %v1248, 5
        %v3676 = vrot.slane %v3675, 4
        %v3677 = vrot.slane %v1249, 5
        %v3678 = vsel %vm3639, %v3676, %v3677
        %v3679 = vrot.slane %v3677, 4
        %v3680 = vrot.slane %v1250, 5
        %v3681 = vsel %vm3639, %v3679, %v3680
        %v3682 = vrot.slane %v1251, 5
        %v3683 = vrot.slane %v3682, 4
        %v3684 = vrot.slane %v1252, 5
        %v3685 = vsel %vm3639, %v3683, %v3684
        %v3686 = vrot.slane %v3684, 4
        %v3687 = vrot.slane %v1253, 5
        %v3688 = vsel %vm3639, %v3686, %v3687
        %v3689 = vrot.slane %v1254, 5
        %v3690 = vrot.slane %v3689, 4
        %v3691 = vrot.slane %v1255, 5
        %v3692 = vsel %vm3639, %v3690, %v3691
        %v3693 = vrot.slane %v3691, 4
        %v3694 = vrot.slane %v1256, 5
        %v3695 = vsel %vm3639, %v3693, %v3694
        %v3712 = vcombine.low %v3643, %v3671
        %v3714 = vunpack.c.l.s4 1983009808
        %v3715 = vunpack.c.0.s8 %v3714
        %v3716 = vlaneseq
        %v3717 = vshrl.u32 %v3716, 7
        %v3718 = vsub.s32 %v3715, %v3717
        %v3719 = vrot.slane %v3712, %v3718
        %v3720 = vcombine.low %v3657, %v3685
        %v3722 = vunpack.c.l.s4 1983009808
        %v3723 = vunpack.c.0.s8 %v3722
        %v3724 = vlaneseq
        %v3725 = vshrl.u32 %v3724, 7
        %v3726 = vsub.s32 %v3723, %v3725
        %v3727 = vrot.slane %v3720, %v3726
        %v3728 = vcombine.low %v3719, %v3727
        %v3729 = vcombine.high %v3719, %v3727
        %v3731 = vunpack.c.l.s4 1934713408
        %v3732 = vunpack.c.0.s8 %v3731
        %v3733 = vlaneseq
        %v3734 = vshrl.u32 %v3733, 7
        %v3735 = vsub.s32 %v3732, %v3734
        %v3736 = vrot.slane %v3728, %v3735
        %v3738 = vunpack.c.l.s4 1934713408
        %v3739 = vunpack.c.0.s8 %v3738
        %v3740 = vlaneseq
        %v3741 = vshrl.u32 %v3740, 7
        %v3742 = vsub.s32 %v3739, %v3741
        %v3743 = vrot.slane %v3729, %v3742
        %v3744 = vcombine.high %v3736, 0
        %v3745 = vcombine.high %v3743, 0
        %v3746 = vcombine.low %v3650, %v3678
        %v3748 = vunpack.c.l.s4 1983009808
        %v3749 = vunpack.c.0.s8 %v3748
        %v3750 = vlaneseq
        %v3751 = vshrl.u32 %v3750, 7
        %v3752 = vsub.s32 %v3749, %v3751
        %v3753 = vrot.slane %v3746, %v3752
        %v3754 = vcombine.low %v3664, %v3692
        %v3756 = vunpack.c.l.s4 1983009808
        %v3757 = vunpack.c.0.s8 %v3756
        %v3758 = vlaneseq
        %v3759 = vshrl.u32 %v3758, 7
        %v3760 = vsub.s32 %v3757, %v3759
        %v3761 = vrot.slane %v3754, %v3760
        %v3762 = vcombine.low %v3753, %v3761
        %v3763 = vcombine.high %v3753, %v3761
        %v3765 = vunpack.c.l.s4 1934713408
        %v3766 = vunpack.c.0.s8 %v3765
        %v3767 = vlaneseq
        %v3768 = vshrl.u32 %v3767, 7
        %v3769 = vsub.s32 %v3766, %v3768
        %v3770 = vrot.slane %v3762, %v3769
        %v3772 = vunpack.c.l.s4 1934713408
        %v3773 = vunpack.c.0.s8 %v3772
        %v3774 = vlaneseq
        %v3775 = vshrl.u32 %v3774, 7
        %v3776 = vsub.s32 %v3773, %v3775
        %v3777 = vrot.slane %v3763, %v3776
        %v3778 = vcombine.high %v3770, 0
        %v3779 = vcombine.high %v3777, 0
        %v3780 = vcombine.low %v3646, %v3674
        %v3782 = vunpack.c.l.s4 1983009808
        %v3783 = vunpack.c.0.s8 %v3782
        %v3784 = vlaneseq
        %v3785 = vshrl.u32 %v3784, 7
        %v3786 = vsub.s32 %v3783, %v3785
        %v3787 = vrot.slane %v3780, %v3786
        %v3788 = vcombine.low %v3660, %v3688
        %v3790 = vunpack.c.l.s4 1983009808
        %v3791 = vunpack.c.0.s8 %v3790
        %v3792 = vlaneseq
        %v3793 = vshrl.u32 %v3792, 7
        %v3794 = vsub.s32 %v3791, %v3793
        %v3795 = vrot.slane %v3788, %v3794
        %v3796 = vcombine.low %v3787, %v3795
        %v3797 = vcombine.high %v3787, %v3795
        %v3799 = vunpack.c.l.s4 1934713408
        %v3800 = vunpack.c.0.s8 %v3799
        %v3801 = vlaneseq
        %v3802 = vshrl.u32 %v3801, 7
        %v3803 = vsub.s32 %v3800, %v3802
        %v3804 = vrot.slane %v3796, %v3803
        %v3806 = vunpack.c.l.s4 1934713408
        %v3807 = vunpack.c.0.s8 %v3806
        %v3808 = vlaneseq
        %v3809 = vshrl.u32 %v3808, 7
        %v3810 = vsub.s32 %v3807, %v3809
        %v3811 = vrot.slane %v3797, %v3810
        %v3812 = vcombine.high %v3804, 0
        %v3813 = vcombine.high %v3811, 0
        %v3814 = vcombine.low %v3653, %v3681
        %v3816 = vunpack.c.l.s4 1983009808
        %v3817 = vunpack.c.0.s8 %v3816
        %v3818 = vlaneseq
        %v3819 = vshrl.u32 %v3818, 7
        %v3820 = vsub.s32 %v3817, %v3819
        %v3821 = vrot.slane %v3814, %v3820
        %v3822 = vcombine.low %v3667, %v3695
        %v3824 = vunpack.c.l.s4 1983009808
        %v3825 = vunpack.c.0.s8 %v3824
        %v3826 = vlaneseq
        %v3827 = vshrl.u32 %v3826, 7
        %v3828 = vsub.s32 %v3825, %v3827
        %v3829 = vrot.slane %v3822, %v3828
        %v3830 = vcombine.low %v3821, %v3829
        %v3831 = vcombine.high %v3821, %v3829
        %v3833 = vunpack.c.l.s4 1934713408
        %v3834 = vunpack.c.0.s8 %v3833
        %v3835 = vlaneseq
        %v3836 = vshrl.u32 %v3835, 7
        %v3837 = vsub.s32 %v3834, %v3836
        %v3838 = vrot.slane %v3830, %v3837
        %v3840 = vunpack.c.l.s4 1934713408
        %v3841 = vunpack.c.0.s8 %v3840
        %v3842 = vlaneseq
        %v3843 = vshrl.u32 %v3842, 7
        %v3844 = vsub.s32 %v3841, %v3843
        %v3845 = vrot.slane %v3831, %v3844
        %v3846 = vcombine.high %v3838, 0
        %v3847 = vcombine.high %v3845, 0
        %v3850 = vpack.i.b16 %v3770, %v3736
        %v3851 = vshrl.u32 %v3736, 16
        %v3852 = vshrl.u32 %v3770, 16
        %v3853 = vpack.i.b16 %v3852, %v3851
        %v3856 = vpack.i.b16 %v3778, %v3744
        %v3857 = vshrl.u32 %v3744, 16
        %v3858 = vshrl.u32 %v3778, 16
        %v3859 = vpack.i.b16 %v3858, %v3857
        %v3862 = vpack.i.b16 %v3777, %v3743
        %v3863 = vshrl.u32 %v3743, 16
        %v3864 = vshrl.u32 %v3777, 16
        %v3865 = vpack.i.b16 %v3864, %v3863
        %v3868 = vpack.i.b16 %v3779, %v3745
        %v3869 = vshrl.u32 %v3745, 16
        %v3870 = vshrl.u32 %v3779, 16
        %v3871 = vpack.i.b16 %v3870, %v3869
        %v3874 = vpack.i.b16 %v3838, %v3804
        %v3875 = vshrl.u32 %v3804, 16
        %v3876 = vshrl.u32 %v3838, 16
        %v3877 = vpack.i.b16 %v3876, %v3875
        %v3880 = vpack.i.b16 %v3846, %v3812
        %v3881 = vshrl.u32 %v3812, 16
        %v3882 = vshrl.u32 %v3846, 16
        %v3883 = vpack.i.b16 %v3882, %v3881
        %v3886 = vpack.i.b16 %v3845, %v3811
        %v3887 = vshrl.u32 %v3811, 16
        %v3888 = vshrl.u32 %v3845, 16
        %v3889 = vpack.i.b16 %v3888, %v3887
        %v3892 = vpack.i.b16 %v3847, %v3813
        %v3893 = vshrl.u32 %v3813, 16
        %v3894 = vshrl.u32 %v3847, 16
        %v3895 = vpack.i.b16 %v3894, %v3893
        %v3896 = vunpack.c.l.b16 %v3853
        %v3897 = vpack.c.b16 %v3896, %v3896
        %3898 = vrot.lane.b32.xlu0 %v3897, 16
        %v3899 = vpop.permute.xlu0 %3898
        %v3900 = vunpack.c.l.b16 %v3856
        %v3901 = vpack.c.b16 %v3900, %v3900
        %3902 = vrot.lane.b32.xlu0 %v3901, 32
        %v3903 = vpop.permute.xlu0 %3902
        %v3904 = vunpack.c.l.b16 %v3859
        %v3905 = vpack.c.b16 %v3904, %v3904
        %3906 = vrot.lane.b32.xlu0 %v3905, 48
        %v3907 = vpop.permute.xlu0 %3906
        %v3908 = vunpack.c.l.b16 %v3862
        %v3909 = vpack.c.b16 %v3908, %v3908
        %3910 = vrot.lane.b32.xlu0 %v3909, 64
        %v3911 = vpop.permute.xlu0 %3910
        %v3912 = vunpack.c.l.b16 %v3865
        %v3913 = vpack.c.b16 %v3912, %v3912
        %3914 = vrot.lane.b32.xlu0 %v3913, 80
        %v3915 = vpop.permute.xlu0 %3914
        %v3916 = vunpack.c.l.b16 %v3868
        %v3917 = vpack.c.b16 %v3916, %v3916
        %3918 = vrot.lane.b32.xlu0 %v3917, 96
        %v3919 = vpop.permute.xlu0 %3918
        %v3920 = vunpack.c.l.b16 %v3871
        %v3921 = vpack.c.b16 %v3920, %v3920
        %3922 = vrot.lane.b32.xlu0 %v3921, 112
        %v3923 = vpop.permute.xlu0 %3922
        %v3924 = vunpack.c.l.b16 %v3877
        %v3925 = vpack.c.b16 %v3924, %v3924
        %3926 = vrot.lane.b32.xlu0 %v3925, 16
        %v3927 = vpop.permute.xlu0 %3926
        %v3928 = vunpack.c.l.b16 %v3880
        %v3929 = vpack.c.b16 %v3928, %v3928
        %3930 = vrot.lane.b32.xlu0 %v3929, 32
        %v3931 = vpop.permute.xlu0 %3930
        %v3932 = vunpack.c.l.b16 %v3883
        %v3933 = vpack.c.b16 %v3932, %v3932
        %3934 = vrot.lane.b32.xlu0 %v3933, 48
        %v3935 = vpop.permute.xlu0 %3934
        %v3936 = vunpack.c.l.b16 %v3886
        %v3937 = vpack.c.b16 %v3936, %v3936
        %3938 = vrot.lane.b32.xlu0 %v3937, 64
        %v3939 = vpop.permute.xlu0 %3938
        %v3940 = vunpack.c.l.b16 %v3889
        %v3941 = vpack.c.b16 %v3940, %v3940
        %3942 = vrot.lane.b32.xlu0 %v3941, 80
        %v3943 = vpop.permute.xlu0 %3942
        %v3944 = vunpack.c.l.b16 %v3892
        %v3945 = vpack.c.b16 %v3944, %v3944
        %3946 = vrot.lane.b32.xlu0 %v3945, 96
        %v3947 = vpop.permute.xlu0 %3946
        %v3948 = vunpack.c.l.b16 %v3895
        %v3949 = vpack.c.b16 %v3948, %v3948
        %3950 = vrot.lane.b32.xlu0 %v3949, 112
        %v3951 = vpop.permute.xlu0 %3950
        %v3954 = vsel %vm1504, %v3850, %v3899
        %v3956 = vsel %vm1508, %v3954, %v3903
        %v3958 = vsel %vm1511, %v3956, %v3907
        %v3960 = vsel %vm1514, %v3958, %v3911
        %v3962 = vsel %vm1517, %v3960, %v3915
        %v3964 = vsel %vm1520, %v3962, %v3919
        %v3966 = vsel %vm1523, %v3964, %v3923
        %v3969 = vsel %vm1504, %v3874, %v3927
        %v3971 = vsel %vm1508, %v3969, %v3931
        %v3973 = vsel %vm1511, %v3971, %v3935
        %v3975 = vsel %vm1514, %v3973, %v3939
        %v3977 = vsel %vm1517, %v3975, %v3943
        %v3979 = vsel %vm1520, %v3977, %v3947
        %v3981 = vsel %vm1523, %v3979, %v3951
        %3982 = vrot.lane.b32.xlu0 %v1933, 80
        %v3983 = vpop.permute.xlu0 %3982
        %v3985 = vsel %vm523, %v3983, 0
        %v3987 = vsel %vm1544, %v3966, 0
        %v3989 = vsel %vm1544, %v3981, 0
        %3991 = vmatprep.subr.bf16.mxu0 %v3989
        %3992 = vmatpush1.bf16.msra.mxu0 %v3987
        %3993 = vmatprep.subr.bf16.mxu0 0
        %3994 = vmatpush1.bf16.msra.mxu0 0
        %3995 = vmatprep.subr.bf16.mxu0 0
        %3996 = vmatpush1.bf16.msra.mxu0 0
        %3997 = vmatprep.subr.bf16.mxu0 0
        %3998 = vmatpush1.bf16.msra.mxu0 0
        %3999 = vmatprep.subr.bf16.mxu0 0
        %4000 = vmatpush1.bf16.msra.mxu0 0
        %4001 = vmatprep.subr.bf16.mxu0 0
        %4002 = vmatpush1.bf16.msra.mxu0 0
        %4003 = vmatprep.subr.bf16.mxu0 0
        %4004 = vmatpush1.bf16.msra.mxu0 0
        %4005 = vmatprep.subr.bf16.mxu0 0
        %4006 = vmatpush1.bf16.msra.mxu0 0
        %4007 = vmatprep.subr.bf16.mxu0 0
        %4008 = vmatpush1.bf16.msra.mxu0 0
        %4009 = vmatprep.subr.bf16.mxu0 0
        %4010 = vmatpush1.bf16.msra.mxu0 0
        %4011 = vmatprep.subr.bf16.mxu0 0
        %4012 = vmatpush1.bf16.msra.mxu0 0
        %4013 = vmatprep.subr.bf16.mxu0 0
        %4014 = vmatpush1.bf16.msra.mxu0 0
        %4015 = vmatprep.subr.bf16.mxu0 0
        %4016 = vmatpush1.bf16.msra.mxu0 0
        %4017 = vmatprep.subr.bf16.mxu0 0
        %4018 = vmatpush1.bf16.msra.mxu0 0
        %4019 = vmatprep.subr.bf16.mxu0 0
        %4020 = vmatpush1.bf16.msra.mxu0 0
        %4021 = vmatprep.subr.bf16.mxu0 0
        %4022 = vmatpush1.bf16.msra.mxu0 0
        %4023 = vmatprep.mubr.bf16.mxu0 0
        %4024 = vmatmul.mubr.bf16.gmra.mrb[0].mxu0 %v3985
        %v4025 = vpop.f32.mrb[0].mxu0
        %v4026 = vadd.f32 0.0, %v4025
        %v4027 = vpop.f32.mrb[0].mxu0
        %v4028 = vadd.f32 0.0, %v4027
        %v4029 = vpop.f32.mrb[0].mxu0
        %v4030 = vpop.f32.mrb[0].mxu0
        %4031 = vdwg.mxu0
        %v4032 = vadd.f32 %v3627, %v4026
        %v4033 = vadd.f32 %v3628, %v4028
        %4034 = vrot.lane.b32.xlu0 %v3643, 127
        %v4035 = vpop.permute.xlu0 %4034
        %4036 = vrot.lane.b32.xlu0 %v3646, 127
        %v4037 = vpop.permute.xlu0 %4036
        %4038 = vrot.lane.b32.xlu0 %v3650, 127
        %v4039 = vpop.permute.xlu0 %4038
        %4040 = vrot.lane.b32.xlu0 %v3653, 127
        %v4041 = vpop.permute.xlu0 %4040
        %4042 = vrot.lane.b32.xlu0 %v3657, 127
        %v4043 = vpop.permute.xlu0 %4042
        %4044 = vrot.lane.b32.xlu0 %v3660, 127
        %v4045 = vpop.permute.xlu0 %4044
        %4046 = vrot.lane.b32.xlu0 %v3664, 127
        %v4047 = vpop.permute.xlu0 %4046
        %4048 = vrot.lane.b32.xlu0 %v3667, 127
        %v4049 = vpop.permute.xlu0 %4048
        %4050 = vrot.lane.b32.xlu0 %v3671, 127
        %v4051 = vpop.permute.xlu0 %4050
        %4052 = vrot.lane.b32.xlu0 %v3674, 127
        %v4053 = vpop.permute.xlu0 %4052
        %4054 = vrot.lane.b32.xlu0 %v3678, 127
        %v4055 = vpop.permute.xlu0 %4054
        %4056 = vrot.lane.b32.xlu0 %v3681, 127
        %v4057 = vpop.permute.xlu0 %4056
        %4058 = vrot.lane.b32.xlu0 %v3685, 127
        %v4059 = vpop.permute.xlu0 %4058
        %4060 = vrot.lane.b32.xlu0 %v3688, 127
        %v4061 = vpop.permute.xlu0 %4060
        %4062 = vrot.lane.b32.xlu0 %v3692, 127
        %v4063 = vpop.permute.xlu0 %4062
        %4064 = vrot.lane.b32.xlu0 %v3695, 127
        %v4065 = vpop.permute.xlu0 %4064
        %v4082 = vcombine.low %v4035, %v4051
        %v4084 = vunpack.c.l.s4 1983009808
        %v4085 = vunpack.c.0.s8 %v4084
        %v4086 = vlaneseq
        %v4087 = vshrl.u32 %v4086, 7
        %v4088 = vsub.s32 %v4085, %v4087
        %v4089 = vrot.slane %v4082, %v4088
        %v4090 = vcombine.low %v4043, %v4059
        %v4092 = vunpack.c.l.s4 1983009808
        %v4093 = vunpack.c.0.s8 %v4092
        %v4094 = vlaneseq
        %v4095 = vshrl.u32 %v4094, 7
        %v4096 = vsub.s32 %v4093, %v4095
        %v4097 = vrot.slane %v4090, %v4096
        %v4098 = vcombine.low %v4089, %v4097
        %v4099 = vcombine.high %v4089, %v4097
        %v4101 = vunpack.c.l.s4 1934713408
        %v4102 = vunpack.c.0.s8 %v4101
        %v4103 = vlaneseq
        %v4104 = vshrl.u32 %v4103, 7
        %v4105 = vsub.s32 %v4102, %v4104
        %v4106 = vrot.slane %v4098, %v4105
        %v4108 = vunpack.c.l.s4 1934713408
        %v4109 = vunpack.c.0.s8 %v4108
        %v4110 = vlaneseq
        %v4111 = vshrl.u32 %v4110, 7
        %v4112 = vsub.s32 %v4109, %v4111
        %v4113 = vrot.slane %v4099, %v4112
        %v4114 = vcombine.high %v4106, 0
        %v4115 = vcombine.high %v4113, 0
        %v4116 = vcombine.low %v4039, %v4055
        %v4118 = vunpack.c.l.s4 1983009808
        %v4119 = vunpack.c.0.s8 %v4118
        %v4120 = vlaneseq
        %v4121 = vshrl.u32 %v4120, 7
        %v4122 = vsub.s32 %v4119, %v4121
        %v4123 = vrot.slane %v4116, %v4122
        %v4124 = vcombine.low %v4047, %v4063
        %v4126 = vunpack.c.l.s4 1983009808
        %v4127 = vunpack.c.0.s8 %v4126
        %v4128 = vlaneseq
        %v4129 = vshrl.u32 %v4128, 7
        %v4130 = vsub.s32 %v4127, %v4129
        %v4131 = vrot.slane %v4124, %v4130
        %v4132 = vcombine.low %v4123, %v4131
        %v4133 = vcombine.high %v4123, %v4131
        %v4135 = vunpack.c.l.s4 1934713408
        %v4136 = vunpack.c.0.s8 %v4135
        %v4137 = vlaneseq
        %v4138 = vshrl.u32 %v4137, 7
        %v4139 = vsub.s32 %v4136, %v4138
        %v4140 = vrot.slane %v4132, %v4139
        %v4142 = vunpack.c.l.s4 1934713408
        %v4143 = vunpack.c.0.s8 %v4142
        %v4144 = vlaneseq
        %v4145 = vshrl.u32 %v4144, 7
        %v4146 = vsub.s32 %v4143, %v4145
        %v4147 = vrot.slane %v4133, %v4146
        %v4148 = vcombine.high %v4140, 0
        %v4149 = vcombine.high %v4147, 0
        %v4150 = vcombine.low %v4037, %v4053
        %v4152 = vunpack.c.l.s4 1983009808
        %v4153 = vunpack.c.0.s8 %v4152
        %v4154 = vlaneseq
        %v4155 = vshrl.u32 %v4154, 7
        %v4156 = vsub.s32 %v4153, %v4155
        %v4157 = vrot.slane %v4150, %v4156
        %v4158 = vcombine.low %v4045, %v4061
        %v4160 = vunpack.c.l.s4 1983009808
        %v4161 = vunpack.c.0.s8 %v4160
        %v4162 = vlaneseq
        %v4163 = vshrl.u32 %v4162, 7
        %v4164 = vsub.s32 %v4161, %v4163
        %v4165 = vrot.slane %v4158, %v4164
        %v4166 = vcombine.low %v4157, %v4165
        %v4167 = vcombine.high %v4157, %v4165
        %v4169 = vunpack.c.l.s4 1934713408
        %v4170 = vunpack.c.0.s8 %v4169
        %v4171 = vlaneseq
        %v4172 = vshrl.u32 %v4171, 7
        %v4173 = vsub.s32 %v4170, %v4172
        %v4174 = vrot.slane %v4166, %v4173
        %v4176 = vunpack.c.l.s4 1934713408
        %v4177 = vunpack.c.0.s8 %v4176
        %v4178 = vlaneseq
        %v4179 = vshrl.u32 %v4178, 7
        %v4180 = vsub.s32 %v4177, %v4179
        %v4181 = vrot.slane %v4167, %v4180
        %v4182 = vcombine.high %v4174, 0
        %v4183 = vcombine.high %v4181, 0
        %v4184 = vcombine.low %v4041, %v4057
        %v4186 = vunpack.c.l.s4 1983009808
        %v4187 = vunpack.c.0.s8 %v4186
        %v4188 = vlaneseq
        %v4189 = vshrl.u32 %v4188, 7
        %v4190 = vsub.s32 %v4187, %v4189
        %v4191 = vrot.slane %v4184, %v4190
        %v4192 = vcombine.low %v4049, %v4065
        %v4194 = vunpack.c.l.s4 1983009808
        %v4195 = vunpack.c.0.s8 %v4194
        %v4196 = vlaneseq
        %v4197 = vshrl.u32 %v4196, 7
        %v4198 = vsub.s32 %v4195, %v4197
        %v4199 = vrot.slane %v4192, %v4198
        %v4200 = vcombine.low %v4191, %v4199
        %v4201 = vcombine.high %v4191, %v4199
        %v4203 = vunpack.c.l.s4 1934713408
        %v4204 = vunpack.c.0.s8 %v4203
        %v4205 = vlaneseq
        %v4206 = vshrl.u32 %v4205, 7
        %v4207 = vsub.s32 %v4204, %v4206
        %v4208 = vrot.slane %v4200, %v4207
        %v4210 = vunpack.c.l.s4 1934713408
        %v4211 = vunpack.c.0.s8 %v4210
        %v4212 = vlaneseq
        %v4213 = vshrl.u32 %v4212, 7
        %v4214 = vsub.s32 %v4211, %v4213
        %v4215 = vrot.slane %v4201, %v4214
        %v4216 = vcombine.high %v4208, 0
        %v4217 = vcombine.high %v4215, 0
        %v4220 = vpack.i.b16 %v4140, %v4106
        %v4221 = vshrl.u32 %v4106, 16
        %v4222 = vshrl.u32 %v4140, 16
        %v4223 = vpack.i.b16 %v4222, %v4221
        %v4226 = vpack.i.b16 %v4148, %v4114
        %v4227 = vshrl.u32 %v4114, 16
        %v4228 = vshrl.u32 %v4148, 16
        %v4229 = vpack.i.b16 %v4228, %v4227
        %v4232 = vpack.i.b16 %v4147, %v4113
        %v4233 = vshrl.u32 %v4113, 16
        %v4234 = vshrl.u32 %v4147, 16
        %v4235 = vpack.i.b16 %v4234, %v4233
        %v4238 = vpack.i.b16 %v4149, %v4115
        %v4239 = vshrl.u32 %v4115, 16
        %v4240 = vshrl.u32 %v4149, 16
        %v4241 = vpack.i.b16 %v4240, %v4239
        %v4244 = vpack.i.b16 %v4208, %v4174
        %v4245 = vshrl.u32 %v4174, 16
        %v4246 = vshrl.u32 %v4208, 16
        %v4247 = vpack.i.b16 %v4246, %v4245
        %v4250 = vpack.i.b16 %v4216, %v4182
        %v4251 = vshrl.u32 %v4182, 16
        %v4252 = vshrl.u32 %v4216, 16
        %v4253 = vpack.i.b16 %v4252, %v4251
        %v4256 = vpack.i.b16 %v4215, %v4181
        %v4257 = vshrl.u32 %v4181, 16
        %v4258 = vshrl.u32 %v4215, 16
        %v4259 = vpack.i.b16 %v4258, %v4257
        %v4262 = vpack.i.b16 %v4217, %v4183
        %v4263 = vshrl.u32 %v4183, 16
        %v4264 = vshrl.u32 %v4217, 16
        %v4265 = vpack.i.b16 %v4264, %v4263
        %v4266 = vunpack.c.l.b16 %v4223
        %v4267 = vpack.c.b16 %v4266, %v4266
        %4268 = vrot.lane.b32.xlu0 %v4267, 16
        %v4269 = vpop.permute.xlu0 %4268
        %v4270 = vunpack.c.l.b16 %v4226
        %v4271 = vpack.c.b16 %v4270, %v4270
        %4272 = vrot.lane.b32.xlu0 %v4271, 32
        %v4273 = vpop.permute.xlu0 %4272
        %v4274 = vunpack.c.l.b16 %v4229
        %v4275 = vpack.c.b16 %v4274, %v4274
        %4276 = vrot.lane.b32.xlu0 %v4275, 48
        %v4277 = vpop.permute.xlu0 %4276
        %v4278 = vunpack.c.l.b16 %v4232
        %v4279 = vpack.c.b16 %v4278, %v4278
        %4280 = vrot.lane.b32.xlu0 %v4279, 64
        %v4281 = vpop.permute.xlu0 %4280
        %v4282 = vunpack.c.l.b16 %v4235
        %v4283 = vpack.c.b16 %v4282, %v4282
        %4284 = vrot.lane.b32.xlu0 %v4283, 80
        %v4285 = vpop.permute.xlu0 %4284
        %v4286 = vunpack.c.l.b16 %v4238
        %v4287 = vpack.c.b16 %v4286, %v4286
        %4288 = vrot.lane.b32.xlu0 %v4287, 96
        %v4289 = vpop.permute.xlu0 %4288
        %v4290 = vunpack.c.l.b16 %v4241
        %v4291 = vpack.c.b16 %v4290, %v4290
        %4292 = vrot.lane.b32.xlu0 %v4291, 112
        %v4293 = vpop.permute.xlu0 %4292
        %v4294 = vunpack.c.l.b16 %v4247
        %v4295 = vpack.c.b16 %v4294, %v4294
        %4296 = vrot.lane.b32.xlu0 %v4295, 16
        %v4297 = vpop.permute.xlu0 %4296
        %v4298 = vunpack.c.l.b16 %v4250
        %v4299 = vpack.c.b16 %v4298, %v4298
        %4300 = vrot.lane.b32.xlu0 %v4299, 32
        %v4301 = vpop.permute.xlu0 %4300
        %v4302 = vunpack.c.l.b16 %v4253
        %v4303 = vpack.c.b16 %v4302, %v4302
        %4304 = vrot.lane.b32.xlu0 %v4303, 48
        %v4305 = vpop.permute.xlu0 %4304
        %v4306 = vunpack.c.l.b16 %v4256
        %v4307 = vpack.c.b16 %v4306, %v4306
        %4308 = vrot.lane.b32.xlu0 %v4307, 64
        %v4309 = vpop.permute.xlu0 %4308
        %v4310 = vunpack.c.l.b16 %v4259
        %v4311 = vpack.c.b16 %v4310, %v4310
        %4312 = vrot.lane.b32.xlu0 %v4311, 80
        %v4313 = vpop.permute.xlu0 %4312
        %v4314 = vunpack.c.l.b16 %v4262
        %v4315 = vpack.c.b16 %v4314, %v4314
        %4316 = vrot.lane.b32.xlu0 %v4315, 96
        %v4317 = vpop.permute.xlu0 %4316
        %v4318 = vunpack.c.l.b16 %v4265
        %v4319 = vpack.c.b16 %v4318, %v4318
        %4320 = vrot.lane.b32.xlu0 %v4319, 112
        %v4321 = vpop.permute.xlu0 %4320
        %v4324 = vsel %vm1504, %v4220, %v4269
        %v4326 = vsel %vm1508, %v4324, %v4273
        %v4328 = vsel %vm1511, %v4326, %v4277
        %v4330 = vsel %vm1514, %v4328, %v4281
        %v4332 = vsel %vm1517, %v4330, %v4285
        %v4334 = vsel %vm1520, %v4332, %v4289
        %v4336 = vsel %vm1523, %v4334, %v4293
        %v4339 = vsel %vm1504, %v4244, %v4297
        %v4341 = vsel %vm1508, %v4339, %v4301
        %v4343 = vsel %vm1511, %v4341, %v4305
        %v4345 = vsel %vm1514, %v4343, %v4309
        %v4347 = vsel %vm1517, %v4345, %v4313
        %v4349 = vsel %vm1520, %v4347, %v4317
        %v4351 = vsel %vm1523, %v4349, %v4321
        %4352 = vrot.lane.b32.xlu0 %v1933, 72
        %v4353 = vpop.permute.xlu0 %4352
        %v4355 = vsel %vm523, %v4353, 0
        %v4357 = vsel %vm1544, %v4336, 0
        %v4359 = vsel %vm1544, %v4351, 0
        %4361 = vmatprep.subr.bf16.mxu0 %v4359
        %4362 = vmatpush1.bf16.msra.mxu0 %v4357
        %4363 = vmatprep.subr.bf16.mxu0 0
        %4364 = vmatpush1.bf16.msra.mxu0 0
        %4365 = vmatprep.subr.bf16.mxu0 0
        %4366 = vmatpush1.bf16.msra.mxu0 0
        %4367 = vmatprep.subr.bf16.mxu0 0
        %4368 = vmatpush1.bf16.msra.mxu0 0
        %4369 = vmatprep.subr.bf16.mxu0 0
        %4370 = vmatpush1.bf16.msra.mxu0 0
        %4371 = vmatprep.subr.bf16.mxu0 0
        %4372 = vmatpush1.bf16.msra.mxu0 0
        %4373 = vmatprep.subr.bf16.mxu0 0
        %4374 = vmatpush1.bf16.msra.mxu0 0
        %4375 = vmatprep.subr.bf16.mxu0 0
        %4376 = vmatpush1.bf16.msra.mxu0 0
        %4377 = vmatprep.subr.bf16.mxu0 0
        %4378 = vmatpush1.bf16.msra.mxu0 0
        %4379 = vmatprep.subr.bf16.mxu0 0
        %4380 = vmatpush1.bf16.msra.mxu0 0
        %4381 = vmatprep.subr.bf16.mxu0 0
        %4382 = vmatpush1.bf16.msra.mxu0 0
        %4383 = vmatprep.subr.bf16.mxu0 0
        %4384 = vmatpush1.bf16.msra.mxu0 0
        %4385 = vmatprep.subr.bf16.mxu0 0
        %4386 = vmatpush1.bf16.msra.mxu0 0
        %4387 = vmatprep.subr.bf16.mxu0 0
        %4388 = vmatpush1.bf16.msra.mxu0 0
        %4389 = vmatprep.subr.bf16.mxu0 0
        %4390 = vmatpush1.bf16.msra.mxu0 0
        %4391 = vmatprep.subr.bf16.mxu0 0
        %4392 = vmatpush1.bf16.msra.mxu0 0
        %4393 = vmatprep.mubr.bf16.mxu0 0
        %4394 = vmatmul.mubr.bf16.gmra.mrb[0].mxu0 %v4355
        %v4395 = vpop.f32.mrb[0].mxu0
        %v4396 = vadd.f32 0.0, %v4395
        %v4397 = vpop.f32.mrb[0].mxu0
        %v4398 = vadd.f32 0.0, %v4397
        %v4399 = vpop.f32.mrb[0].mxu0
        %v4400 = vpop.f32.mrb[0].mxu0
        %4401 = vdwg.mxu0
        %v4402 = vadd.f32 %v4032, %v4396
        %v4403 = vadd.f32 %v4033, %v4398
        %4404 = vrot.lane.b32.xlu0 %v3643, 126
        %v4405 = vpop.permute.xlu0 %4404
        %4406 = vrot.lane.b32.xlu0 %v3646, 126
        %v4407 = vpop.permute.xlu0 %4406
        %4408 = vrot.lane.b32.xlu0 %v3650, 126
        %v4409 = vpop.permute.xlu0 %4408
        %4410 = vrot.lane.b32.xlu0 %v3653, 126
        %v4411 = vpop.permute.xlu0 %4410
        %4412 = vrot.lane.b32.xlu0 %v3657, 126
        %v4413 = vpop.permute.xlu0 %4412
        %4414 = vrot.lane.b32.xlu0 %v3660, 126
        %v4415 = vpop.permute.xlu0 %4414
        %4416 = vrot.lane.b32.xlu0 %v3664, 126
        %v4417 = vpop.permute.xlu0 %4416
        %4418 = vrot.lane.b32.xlu0 %v3667, 126
        %v4419 = vpop.permute.xlu0 %4418
        %4420 = vrot.lane.b32.xlu0 %v3671, 126
        %v4421 = vpop.permute.xlu0 %4420
        %4422 = vrot.lane.b32.xlu0 %v3674, 126
        %v4423 = vpop.permute.xlu0 %4422
        %4424 = vrot.lane.b32.xlu0 %v3678, 126
        %v4425 = vpop.permute.xlu0 %4424
        %4426 = vrot.lane.b32.xlu0 %v3681, 126
        %v4427 = vpop.permute.xlu0 %4426
        %4428 = vrot.lane.b32.xlu0 %v3685, 126
        %v4429 = vpop.permute.xlu0 %4428
        %4430 = vrot.lane.b32.xlu0 %v3688, 126
        %v4431 = vpop.permute.xlu0 %4430
        %4432 = vrot.lane.b32.xlu0 %v3692, 126
        %v4433 = vpop.permute.xlu0 %4432
        %4434 = vrot.lane.b32.xlu0 %v3695, 126
        %v4435 = vpop.permute.xlu0 %4434
        %v4452 = vcombine.low %v4405, %v4421
        %v4454 = vunpack.c.l.s4 1983009808
        %v4455 = vunpack.c.0.s8 %v4454
        %v4456 = vlaneseq
        %v4457 = vshrl.u32 %v4456, 7
        %v4458 = vsub.s32 %v4455, %v4457
        %v4459 = vrot.slane %v4452, %v4458
        %v4460 = vcombine.low %v4413, %v4429
        %v4462 = vunpack.c.l.s4 1983009808
        %v4463 = vunpack.c.0.s8 %v4462
        %v4464 = vlaneseq
        %v4465 = vshrl.u32 %v4464, 7
        %v4466 = vsub.s32 %v4463, %v4465
        %v4467 = vrot.slane %v4460, %v4466
        %v4468 = vcombine.low %v4459, %v4467
        %v4469 = vcombine.high %v4459, %v4467
        %v4471 = vunpack.c.l.s4 1934713408
        %v4472 = vunpack.c.0.s8 %v4471
        %v4473 = vlaneseq
        %v4474 = vshrl.u32 %v4473, 7
        %v4475 = vsub.s32 %v4472, %v4474
        %v4476 = vrot.slane %v4468, %v4475
        %v4478 = vunpack.c.l.s4 1934713408
        %v4479 = vunpack.c.0.s8 %v4478
        %v4480 = vlaneseq
        %v4481 = vshrl.u32 %v4480, 7
        %v4482 = vsub.s32 %v4479, %v4481
        %v4483 = vrot.slane %v4469, %v4482
        %v4484 = vcombine.high %v4476, 0
        %v4485 = vcombine.high %v4483, 0
        %v4486 = vcombine.low %v4409, %v4425
        %v4488 = vunpack.c.l.s4 1983009808
        %v4489 = vunpack.c.0.s8 %v4488
        %v4490 = vlaneseq
        %v4491 = vshrl.u32 %v4490, 7
        %v4492 = vsub.s32 %v4489, %v4491
        %v4493 = vrot.slane %v4486, %v4492
        %v4494 = vcombine.low %v4417, %v4433
        %v4496 = vunpack.c.l.s4 1983009808
        %v4497 = vunpack.c.0.s8 %v4496
        %v4498 = vlaneseq
        %v4499 = vshrl.u32 %v4498, 7
        %v4500 = vsub.s32 %v4497, %v4499
        %v4501 = vrot.slane %v4494, %v4500
        %v4502 = vcombine.low %v4493, %v4501
        %v4503 = vcombine.high %v4493, %v4501
        %v4505 = vunpack.c.l.s4 1934713408
        %v4506 = vunpack.c.0.s8 %v4505
        %v4507 = vlaneseq
        %v4508 = vshrl.u32 %v4507, 7
        %v4509 = vsub.s32 %v4506, %v4508
        %v4510 = vrot.slane %v4502, %v4509
        %v4512 = vunpack.c.l.s4 1934713408
        %v4513 = vunpack.c.0.s8 %v4512
        %v4514 = vlaneseq
        %v4515 = vshrl.u32 %v4514, 7
        %v4516 = vsub.s32 %v4513, %v4515
        %v4517 = vrot.slane %v4503, %v4516
        %v4518 = vcombine.high %v4510, 0
        %v4519 = vcombine.high %v4517, 0
        %v4520 = vcombine.low %v4407, %v4423
        %v4522 = vunpack.c.l.s4 1983009808
        %v4523 = vunpack.c.0.s8 %v4522
        %v4524 = vlaneseq
        %v4525 = vshrl.u32 %v4524, 7
        %v4526 = vsub.s32 %v4523, %v4525
        %v4527 = vrot.slane %v4520, %v4526
        %v4528 = vcombine.low %v4415, %v4431
        %v4530 = vunpack.c.l.s4 1983009808
        %v4531 = vunpack.c.0.s8 %v4530
        %v4532 = vlaneseq
        %v4533 = vshrl.u32 %v4532, 7
        %v4534 = vsub.s32 %v4531, %v4533
        %v4535 = vrot.slane %v4528, %v4534
        %v4536 = vcombine.low %v4527, %v4535
        %v4537 = vcombine.high %v4527, %v4535
        %v4539 = vunpack.c.l.s4 1934713408
        %v4540 = vunpack.c.0.s8 %v4539
        %v4541 = vlaneseq
        %v4542 = vshrl.u32 %v4541, 7
        %v4543 = vsub.s32 %v4540, %v4542
        %v4544 = vrot.slane %v4536, %v4543
        %v4546 = vunpack.c.l.s4 1934713408
        %v4547 = vunpack.c.0.s8 %v4546
        %v4548 = vlaneseq
        %v4549 = vshrl.u32 %v4548, 7
        %v4550 = vsub.s32 %v4547, %v4549
        %v4551 = vrot.slane %v4537, %v4550
        %v4552 = vcombine.high %v4544, 0
        %v4553 = vcombine.high %v4551, 0
        %v4554 = vcombine.low %v4411, %v4427
        %v4556 = vunpack.c.l.s4 1983009808
        %v4557 = vunpack.c.0.s8 %v4556
        %v4558 = vlaneseq
        %v4559 = vshrl.u32 %v4558, 7
        %v4560 = vsub.s32 %v4557, %v4559
        %v4561 = vrot.slane %v4554, %v4560
        %v4562 = vcombine.low %v4419, %v4435
        %v4564 = vunpack.c.l.s4 1983009808
        %v4565 = vunpack.c.0.s8 %v4564
        %v4566 = vlaneseq
        %v4567 = vshrl.u32 %v4566, 7
        %v4568 = vsub.s32 %v4565, %v4567
        %v4569 = vrot.slane %v4562, %v4568
        %v4570 = vcombine.low %v4561, %v4569
        %v4571 = vcombine.high %v4561, %v4569
        %v4573 = vunpack.c.l.s4 1934713408
        %v4574 = vunpack.c.0.s8 %v4573
        %v4575 = vlaneseq
        %v4576 = vshrl.u32 %v4575, 7
        %v4577 = vsub.s32 %v4574, %v4576
        %v4578 = vrot.slane %v4570, %v4577
        %v4580 = vunpack.c.l.s4 1934713408
        %v4581 = vunpack.c.0.s8 %v4580
        %v4582 = vlaneseq
        %v4583 = vshrl.u32 %v4582, 7
        %v4584 = vsub.s32 %v4581, %v4583
        %v4585 = vrot.slane %v4571, %v4584
        %v4586 = vcombine.high %v4578, 0
        %v4587 = vcombine.high %v4585, 0
        %v4590 = vpack.i.b16 %v4510, %v4476
        %v4591 = vshrl.u32 %v4476, 16
        %v4592 = vshrl.u32 %v4510, 16
        %v4593 = vpack.i.b16 %v4592, %v4591
        %v4596 = vpack.i.b16 %v4518, %v4484
        %v4597 = vshrl.u32 %v4484, 16
        %v4598 = vshrl.u32 %v4518, 16
        %v4599 = vpack.i.b16 %v4598, %v4597
        %v4602 = vpack.i.b16 %v4517, %v4483
        %v4603 = vshrl.u32 %v4483, 16
        %v4604 = vshrl.u32 %v4517, 16
        %v4605 = vpack.i.b16 %v4604, %v4603
        %v4608 = vpack.i.b16 %v4519, %v4485
        %v4609 = vshrl.u32 %v4485, 16
        %v4610 = vshrl.u32 %v4519, 16
        %v4611 = vpack.i.b16 %v4610, %v4609
        %v4614 = vpack.i.b16 %v4578, %v4544
        %v4615 = vshrl.u32 %v4544, 16
        %v4616 = vshrl.u32 %v4578, 16
        %v4617 = vpack.i.b16 %v4616, %v4615
        %v4620 = vpack.i.b16 %v4586, %v4552
        %v4621 = vshrl.u32 %v4552, 16
        %v4622 = vshrl.u32 %v4586, 16
        %v4623 = vpack.i.b16 %v4622, %v4621
        %v4626 = vpack.i.b16 %v4585, %v4551
        %v4627 = vshrl.u32 %v4551, 16
        %v4628 = vshrl.u32 %v4585, 16
        %v4629 = vpack.i.b16 %v4628, %v4627
        %v4632 = vpack.i.b16 %v4587, %v4553
        %v4633 = vshrl.u32 %v4553, 16
        %v4634 = vshrl.u32 %v4587, 16
        %v4635 = vpack.i.b16 %v4634, %v4633
        %v4636 = vunpack.c.l.b16 %v4593
        %v4637 = vpack.c.b16 %v4636, %v4636
        %4638 = vrot.lane.b32.xlu0 %v4637, 16
        %v4639 = vpop.permute.xlu0 %4638
        %v4640 = vunpack.c.l.b16 %v4596
        %v4641 = vpack.c.b16 %v4640, %v4640
        %4642 = vrot.lane.b32.xlu0 %v4641, 32
        %v4643 = vpop.permute.xlu0 %4642
        %v4644 = vunpack.c.l.b16 %v4599
        %v4645 = vpack.c.b16 %v4644, %v4644
        %4646 = vrot.lane.b32.xlu0 %v4645, 48
        %v4647 = vpop.permute.xlu0 %4646
        %v4648 = vunpack.c.l.b16 %v4602
        %v4649 = vpack.c.b16 %v4648, %v4648
        %4650 = vrot.lane.b32.xlu0 %v4649, 64
        %v4651 = vpop.permute.xlu0 %4650
        %v4652 = vunpack.c.l.b16 %v4605
        %v4653 = vpack.c.b16 %v4652, %v4652
        %4654 = vrot.lane.b32.xlu0 %v4653, 80
        %v4655 = vpop.permute.xlu0 %4654
        %v4656 = vunpack.c.l.b16 %v4608
        %v4657 = vpack.c.b16 %v4656, %v4656
        %4658 = vrot.lane.b32.xlu0 %v4657, 96
        %v4659 = vpop.permute.xlu0 %4658
        %v4660 = vunpack.c.l.b16 %v4611
        %v4661 = vpack.c.b16 %v4660, %v4660
        %4662 = vrot.lane.b32.xlu0 %v4661, 112
        %v4663 = vpop.permute.xlu0 %4662
        %v4664 = vunpack.c.l.b16 %v4617
        %v4665 = vpack.c.b16 %v4664, %v4664
        %4666 = vrot.lane.b32.xlu0 %v4665, 16
        %v4667 = vpop.permute.xlu0 %4666
        %v4668 = vunpack.c.l.b16 %v4620
        %v4669 = vpack.c.b16 %v4668, %v4668
        %4670 = vrot.lane.b32.xlu0 %v4669, 32
        %v4671 = vpop.permute.xlu0 %4670
        %v4672 = vunpack.c.l.b16 %v4623
        %v4673 = vpack.c.b16 %v4672, %v4672
        %4674 = vrot.lane.b32.xlu0 %v4673, 48
        %v4675 = vpop.permute.xlu0 %4674
        %v4676 = vunpack.c.l.b16 %v4626
        %v4677 = vpack.c.b16 %v4676, %v4676
        %4678 = vrot.lane.b32.xlu0 %v4677, 64
        %v4679 = vpop.permute.xlu0 %4678
        %v4680 = vunpack.c.l.b16 %v4629
        %v4681 = vpack.c.b16 %v4680, %v4680
        %4682 = vrot.lane.b32.xlu0 %v4681, 80
        %v4683 = vpop.permute.xlu0 %4682
        %v4684 = vunpack.c.l.b16 %v4632
        %v4685 = vpack.c.b16 %v4684, %v4684
        %4686 = vrot.lane.b32.xlu0 %v4685, 96
        %v4687 = vpop.permute.xlu0 %4686
        %v4688 = vunpack.c.l.b16 %v4635
        %v4689 = vpack.c.b16 %v4688, %v4688
        %4690 = vrot.lane.b32.xlu0 %v4689, 112
        %v4691 = vpop.permute.xlu0 %4690
        %v4694 = vsel %vm1504, %v4590, %v4639
        %v4696 = vsel %vm1508, %v4694, %v4643
        %v4698 = vsel %vm1511, %v4696, %v4647
        %v4700 = vsel %vm1514, %v4698, %v4651
        %v4702 = vsel %vm1517, %v4700, %v4655
        %v4704 = vsel %vm1520, %v4702, %v4659
        %v4706 = vsel %vm1523, %v4704, %v4663
        %v4709 = vsel %vm1504, %v4614, %v4667
        %v4711 = vsel %vm1508, %v4709, %v4671
        %v4713 = vsel %vm1511, %v4711, %v4675
        %v4715 = vsel %vm1514, %v4713, %v4679
        %v4717 = vsel %vm1517, %v4715, %v4683
        %v4719 = vsel %vm1520, %v4717, %v4687
        %v4721 = vsel %vm1523, %v4719, %v4691
        %4722 = vrot.lane.b32.xlu0 %v1933, 64
        %v4723 = vpop.permute.xlu0 %4722
        %v4725 = vsel %vm523, %v4723, 0
        %v4727 = vsel %vm1544, %v4706, 0
        %v4729 = vsel %vm1544, %v4721, 0
        %4731 = vmatprep.subr.bf16.mxu0 %v4729
        %4732 = vmatpush1.bf16.msra.mxu0 %v4727
        %4733 = vmatprep.subr.bf16.mxu0 0
        %4734 = vmatpush1.bf16.msra.mxu0 0
        %4735 = vmatprep.subr.bf16.mxu0 0
        %4736 = vmatpush1.bf16.msra.mxu0 0
        %4737 = vmatprep.subr.bf16.mxu0 0
        %4738 = vmatpush1.bf16.msra.mxu0 0
        %4739 = vmatprep.subr.bf16.mxu0 0
        %4740 = vmatpush1.bf16.msra.mxu0 0
        %4741 = vmatprep.subr.bf16.mxu0 0
        %4742 = vmatpush1.bf16.msra.mxu0 0
        %4743 = vmatprep.subr.bf16.mxu0 0
        %4744 = vmatpush1.bf16.msra.mxu0 0
        %4745 = vmatprep.subr.bf16.mxu0 0
        %4746 = vmatpush1.bf16.msra.mxu0 0
        %4747 = vmatprep.subr.bf16.mxu0 0
        %4748 = vmatpush1.bf16.msra.mxu0 0
        %4749 = vmatprep.subr.bf16.mxu0 0
        %4750 = vmatpush1.bf16.msra.mxu0 0
        %4751 = vmatprep.subr.bf16.mxu0 0
        %4752 = vmatpush1.bf16.msra.mxu0 0
        %4753 = vmatprep.subr.bf16.mxu0 0
        %4754 = vmatpush1.bf16.msra.mxu0 0
        %4755 = vmatprep.subr.bf16.mxu0 0
        %4756 = vmatpush1.bf16.msra.mxu0 0
        %4757 = vmatprep.subr.bf16.mxu0 0
        %4758 = vmatpush1.bf16.msra.mxu0 0
        %4759 = vmatprep.subr.bf16.mxu0 0
        %4760 = vmatpush1.bf16.msra.mxu0 0
        %4761 = vmatprep.subr.bf16.mxu0 0
        %4762 = vmatpush1.bf16.msra.mxu0 0
        %4763 = vmatprep.mubr.bf16.mxu0 0
        %4764 = vmatmul.mubr.bf16.gmra.mrb[0].mxu0 %v4725
        %v4765 = vpop.f32.mrb[0].mxu0
        %v4766 = vadd.f32 0.0, %v4765
        %v4767 = vpop.f32.mrb[0].mxu0
        %v4768 = vadd.f32 0.0, %v4767
        %v4769 = vpop.f32.mrb[0].mxu0
        %v4770 = vpop.f32.mrb[0].mxu0
        %4771 = vdwg.mxu0
        %v4772 = vadd.f32 %v4402, %v4766
        %v4773 = vadd.f32 %v4403, %v4768
        %v4774 = vmax.f32 %v4772, 0.0
        %v4775 = vmax.f32 %v4773, 0.0
        %4777 = vrot.lane.b32.xlu0 %v4774, 112
        %v4778 = vpop.permute.xlu0 %4777
        %4780 = vrot.lane.b32.xlu0 %v4774, 96
        %v4781 = vpop.permute.xlu0 %4780
        %4783 = vrot.lane.b32.xlu0 %v4774, 80
        %v4784 = vpop.permute.xlu0 %4783
        %4786 = vrot.lane.b32.xlu0 %v4774, 64
        %v4787 = vpop.permute.xlu0 %4786
        %4789 = vrot.lane.b32.xlu0 %v4774, 48
        %v4790 = vpop.permute.xlu0 %4789
        %4792 = vrot.lane.b32.xlu0 %v4774, 32
        %v4793 = vpop.permute.xlu0 %4792
        %4795 = vrot.lane.b32.xlu0 %v4774, 16
        %v4796 = vpop.permute.xlu0 %4795
        %4799 = vrot.lane.b32.xlu0 %v4775, 112
        %v4800 = vpop.permute.xlu0 %4799
        %4802 = vrot.lane.b32.xlu0 %v4775, 96
        %v4803 = vpop.permute.xlu0 %4802
        %4805 = vrot.lane.b32.xlu0 %v4775, 80
        %v4806 = vpop.permute.xlu0 %4805
        %4808 = vrot.lane.b32.xlu0 %v4775, 64
        %v4809 = vpop.permute.xlu0 %4808
        %4811 = vrot.lane.b32.xlu0 %v4775, 48
        %v4812 = vpop.permute.xlu0 %4811
        %4814 = vrot.lane.b32.xlu0 %v4775, 32
        %v4815 = vpop.permute.xlu0 %4814
        %4817 = vrot.lane.b32.xlu0 %v4775, 16
        %v4818 = vpop.permute.xlu0 %4817
        %v4820 = vcombine.low %v4774, %v4781
        %v4822 = vunpack.c.l.s4 1983009808
        %v4823 = vunpack.c.0.s8 %v4822
        %v4824 = vlaneseq
        %v4825 = vshrl.u32 %v4824, 7
        %v4826 = vsub.s32 %v4823, %v4825
        %v4827 = vrot.slane %v4820, %v4826
        %v4828 = vcombine.low %v4778, %v4784
        %v4830 = vunpack.c.l.s4 1983009808
        %v4831 = vunpack.c.0.s8 %v4830
        %v4832 = vlaneseq
        %v4833 = vshrl.u32 %v4832, 7
        %v4834 = vsub.s32 %v4831, %v4833
        %v4835 = vrot.slane %v4828, %v4834
        %v4836 = vcombine.low %v4787, %v4793
        %v4838 = vunpack.c.l.s4 1983009808
        %v4839 = vunpack.c.0.s8 %v4838
        %v4840 = vlaneseq
        %v4841 = vshrl.u32 %v4840, 7
        %v4842 = vsub.s32 %v4839, %v4841
        %v4843 = vrot.slane %v4836, %v4842
        %v4844 = vcombine.low %v4790, %v4796
        %v4846 = vunpack.c.l.s4 1983009808
        %v4847 = vunpack.c.0.s8 %v4846
        %v4848 = vlaneseq
        %v4849 = vshrl.u32 %v4848, 7
        %v4850 = vsub.s32 %v4847, %v4849
        %v4851 = vrot.slane %v4844, %v4850
        %v4852 = vcombine.low %v4827, %v4835
        %v4853 = vcombine.high %v4827, %v4835
        %v4855 = vunpack.c.l.s4 1934713408
        %v4856 = vunpack.c.0.s8 %v4855
        %v4857 = vlaneseq
        %v4858 = vshrl.u32 %v4857, 7
        %v4859 = vsub.s32 %v4856, %v4858
        %v4860 = vrot.slane %v4852, %v4859
        %v4862 = vunpack.c.l.s4 1934713408
        %v4863 = vunpack.c.0.s8 %v4862
        %v4864 = vlaneseq
        %v4865 = vshrl.u32 %v4864, 7
        %v4866 = vsub.s32 %v4863, %v4865
        %v4867 = vrot.slane %v4853, %v4866
        %v4868 = vcombine.low %v4843, %v4851
        %v4869 = vcombine.high %v4843, %v4851
        %v4871 = vunpack.c.l.s4 1934713408
        %v4872 = vunpack.c.0.s8 %v4871
        %v4873 = vlaneseq
        %v4874 = vshrl.u32 %v4873, 7
        %v4875 = vsub.s32 %v4872, %v4874
        %v4876 = vrot.slane %v4868, %v4875
        %v4878 = vunpack.c.l.s4 1934713408
        %v4879 = vunpack.c.0.s8 %v4878
        %v4880 = vlaneseq
        %v4881 = vshrl.u32 %v4880, 7
        %v4882 = vsub.s32 %v4879, %v4881
        %v4883 = vrot.slane %v4869, %v4882
        %v4884 = vcombine.low %v4860, %v4876
        %v4885 = vcombine.high %v4860, %v4876
        %v4886 = vcombine.low %v4867, %v4883
        %v4887 = vcombine.high %v4867, %v4883
        %v4888 = vcombine.low %v4775, %v4803
        %v4890 = vunpack.c.l.s4 1983009808
        %v4891 = vunpack.c.0.s8 %v4890
        %v4892 = vlaneseq
        %v4893 = vshrl.u32 %v4892, 7
        %v4894 = vsub.s32 %v4891, %v4893
        %v4895 = vrot.slane %v4888, %v4894
        %v4896 = vcombine.low %v4800, %v4806
        %v4898 = vunpack.c.l.s4 1983009808
        %v4899 = vunpack.c.0.s8 %v4898
        %v4900 = vlaneseq
        %v4901 = vshrl.u32 %v4900, 7
        %v4902 = vsub.s32 %v4899, %v4901
        %v4903 = vrot.slane %v4896, %v4902
        %v4904 = vcombine.low %v4809, %v4815
        %v4906 = vunpack.c.l.s4 1983009808
        %v4907 = vunpack.c.0.s8 %v4906
        %v4908 = vlaneseq
        %v4909 = vshrl.u32 %v4908, 7
        %v4910 = vsub.s32 %v4907, %v4909
        %v4911 = vrot.slane %v4904, %v4910
        %v4912 = vcombine.low %v4812, %v4818
        %v4914 = vunpack.c.l.s4 1983009808
        %v4915 = vunpack.c.0.s8 %v4914
        %v4916 = vlaneseq
        %v4917 = vshrl.u32 %v4916, 7
        %v4918 = vsub.s32 %v4915, %v4917
        %v4919 = vrot.slane %v4912, %v4918
        %v4920 = vcombine.low %v4895, %v4903
        %v4921 = vcombine.high %v4895, %v4903
        %v4923 = vunpack.c.l.s4 1934713408
        %v4924 = vunpack.c.0.s8 %v4923
        %v4925 = vlaneseq
        %v4926 = vshrl.u32 %v4925, 7
        %v4927 = vsub.s32 %v4924, %v4926
        %v4928 = vrot.slane %v4920, %v4927
        %v4930 = vunpack.c.l.s4 1934713408
        %v4931 = vunpack.c.0.s8 %v4930
        %v4932 = vlaneseq
        %v4933 = vshrl.u32 %v4932, 7
        %v4934 = vsub.s32 %v4931, %v4933
        %v4935 = vrot.slane %v4921, %v4934
        %v4936 = vcombine.low %v4911, %v4919
        %v4937 = vcombine.high %v4911, %v4919
        %v4939 = vunpack.c.l.s4 1934713408
        %v4940 = vunpack.c.0.s8 %v4939
        %v4941 = vlaneseq
        %v4942 = vshrl.u32 %v4941, 7
        %v4943 = vsub.s32 %v4940, %v4942
        %v4944 = vrot.slane %v4936, %v4943
        %v4946 = vunpack.c.l.s4 1934713408
        %v4947 = vunpack.c.0.s8 %v4946
        %v4948 = vlaneseq
        %v4949 = vshrl.u32 %v4948, 7
        %v4950 = vsub.s32 %v4947, %v4949
        %v4951 = vrot.slane %v4937, %v4950
        %v4952 = vcombine.low %v4928, %v4944
        %v4953 = vcombine.high %v4928, %v4944
        %v4954 = vcombine.low %v4935, %v4951
        %v4955 = vcombine.high %v4935, %v4951
        %v4956 = vpack.c.bf16 %v4952, %v4884
        %v4957 = vpack.c.bf16 %v4953, %v4885
        %v4958 = vpack.c.bf16 %v4954, %v4886
        %v4959 = vpack.c.bf16 %v4955, %v4887
        %v4964 = vunpack.c.l.b16 %v4956
        %v4965 = vunpack.c.h.b16 %v4956
        %v4966 = vunpack.c.l.b16 %v4957
        %v4967 = vunpack.c.h.b16 %v4957
        %v4968 = vunpack.c.l.b16 %v4958
        %v4969 = vunpack.c.h.b16 %v4958
        %v4970 = vunpack.c.l.b16 %v4959
        %v4971 = vunpack.c.h.b16 %v4959
        %v4972 = vpack.c.b16 %v4964, %v4964
        %v4973 = vpack.c.b16 %v4965, %v4965
        %v4974 = vpack.c.b16 %v4966, %v4966
        %v4975 = vpack.c.b16 %v4967, %v4967
        %v4976 = vpack.c.b16 %v4968, %v4968
        %v4977 = vpack.c.b16 %v4969, %v4969
        %v4978 = vpack.c.b16 %v4970, %v4970
        %v4979 = vpack.c.b16 %v4971, %v4971
        %v4981 = vshrl.u32 %v4972, 16
        %v4983 = vrot.slane %v4981, 7
        %v4984 = vshll.u32 %v4972, 16
        %v4986 = vor.u32 %v4983, %v4984
        %v4987 = vrot.slane %v4983, 4
        %v4989 = vshrl.u32 %v4973, 16
        %v4991 = vrot.slane %v4989, 7
        %v4992 = vshll.u32 %v4973, 16
        %v4994 = vor.u32 %v4991, %v4992
        %v4995 = vsel %vm938, %v4987, %v4994
        %v4996 = vrot.slane %v4991, 4
        %v4998 = vshrl.u32 %v4974, 16
        %v5000 = vrot.slane %v4998, 7
        %v5001 = vshll.u32 %v4974, 16
        %v5003 = vor.u32 %v5000, %v5001
        %v5004 = vrot.slane %v5000, 4
        %v5006 = vshrl.u32 %v4975, 16
        %v5008 = vrot.slane %v5006, 7
        %v5009 = vshll.u32 %v4975, 16
        %v5011 = vor.u32 %v5008, %v5009
        %v5012 = vsel %vm938, %v5004, %v5011
        %v5013 = vrot.slane %v5008, 4
        %v5015 = vshrl.u32 %v4976, 16
        %v5017 = vrot.slane %v5015, 7
        %v5018 = vshll.u32 %v4976, 16
        %v5020 = vor.u32 %v5017, %v5018
        %v5021 = vrot.slane %v5017, 4
        %v5023 = vshrl.u32 %v4977, 16
        %v5025 = vrot.slane %v5023, 7
        %v5026 = vshll.u32 %v4977, 16
        %v5028 = vor.u32 %v5025, %v5026
        %v5029 = vsel %vm938, %v5021, %v5028
        %v5030 = vrot.slane %v5025, 4
        %v5032 = vshrl.u32 %v4978, 16
        %v5034 = vrot.slane %v5032, 7
        %v5035 = vshll.u32 %v4978, 16
        %v5037 = vor.u32 %v5034, %v5035
        %v5038 = vrot.slane %v5034, 4
        %v5040 = vshrl.u32 %v4979, 16
        %v5042 = vrot.slane %v5040, 7
        %v5043 = vshll.u32 %v4979, 16
        %v5045 = vor.u32 %v5042, %v5043
        %v5046 = vsel %vm938, %v5038, %v5045
        %v5047 = vrot.slane %v5042, 4
        %5048 = vrot.lane.b32.xlu0 %v4986, 1
        %v5049 = vpop.permute.xlu0 %5048
        %5050 = vrot.lane.b32.xlu0 %v4995, 1
        %v5051 = vpop.permute.xlu0 %5050
        %5052 = vrot.lane.b32.xlu0 %v4996, 1
        %v5053 = vpop.permute.xlu0 %5052
        %5054 = vrot.lane.b32.xlu0 %v5003, 1
        %v5055 = vpop.permute.xlu0 %5054
        %5056 = vrot.lane.b32.xlu0 %v5012, 1
        %v5057 = vpop.permute.xlu0 %5056
        %5058 = vrot.lane.b32.xlu0 %v5013, 1
        %v5059 = vpop.permute.xlu0 %5058
        %5060 = vrot.lane.b32.xlu0 %v5020, 1
        %v5061 = vpop.permute.xlu0 %5060
        %5062 = vrot.lane.b32.xlu0 %v5029, 1
        %v5063 = vpop.permute.xlu0 %5062
        %5064 = vrot.lane.b32.xlu0 %v5030, 1
        %v5065 = vpop.permute.xlu0 %5064
        %5066 = vrot.lane.b32.xlu0 %v5037, 1
        %v5067 = vpop.permute.xlu0 %5066
        %5068 = vrot.lane.b32.xlu0 %v5046, 1
        %v5069 = vpop.permute.xlu0 %5068
        %5070 = vrot.lane.b32.xlu0 %v5047, 1
        %v5071 = vpop.permute.xlu0 %5070
        %v5084 = vld [vmem:[#allocation3] sm:$0xf]
        %v5085 = vsel %vm1044, %v5049, %v5084
        %5086 = vst [vmem:[#allocation3] sm:$0xf] %v5085
        %5087 = vst.msk [vmem:[#allocation3 + $0x4] sm:$0xf] %vm1048, %v5051
        %v5088 = vld [vmem:[#allocation3 + $0x8] sm:$0x1]
        %v5089 = vsel %vm1051, %v5053, %v5088
        %5090 = vst [vmem:[#allocation3 + $0x8] sm:$0x1] %v5089
        %v5091 = vld [vmem:[#allocation3 + $0xc] sm:$0xf]
        %v5092 = vsel %vm1044, %v5055, %v5091
        %5093 = vst [vmem:[#allocation3 + $0xc] sm:$0xf] %v5092
        %5094 = vst.msk [vmem:[#allocation3 + $0x10] sm:$0xf] %vm1048, %v5057
        %v5095 = vld [vmem:[#allocation3 + $0x14] sm:$0x1]
        %v5096 = vsel %vm1051, %v5059, %v5095
        %5097 = vst [vmem:[#allocation3 + $0x14] sm:$0x1] %v5096
        %v5098 = vld [vmem:[#allocation3 + $0x18] sm:$0xf]
        %v5099 = vsel %vm1044, %v5061, %v5098
        %5100 = vst [vmem:[#allocation3 + $0x18] sm:$0xf] %v5099
        %5101 = vst.msk [vmem:[#allocation3 + $0x1c] sm:$0xf] %vm1048, %v5063
        %v5102 = vld [vmem:[#allocation3 + $0x20] sm:$0x1]
        %v5103 = vsel %vm1051, %v5065, %v5102
        %5104 = vst [vmem:[#allocation3 + $0x20] sm:$0x1] %v5103
        %v5105 = vld [vmem:[#allocation3 + $0x24] sm:$0xf]
        %v5106 = vsel %vm1044, %v5067, %v5105
        %5107 = vst [vmem:[#allocation3 + $0x24] sm:$0xf] %v5106
        %5108 = vst.msk [vmem:[#allocation3 + $0x28] sm:$0xf] %vm1048, %v5069
        %v5109 = vld [vmem:[#allocation3 + $0x2c] sm:$0x1]
        %v5110 = vsel %vm1051, %v5071, %v5109
        %5111 = vst [vmem:[#allocation3 + $0x2c] sm:$0x1] %v5110
        %v5112 = vld [vmem:[#allocation3] sm:$0xf]
        %v5113 = vld [vmem:[#allocation3 + $0x4] sm:$0xf]
        %v5114 = vld [vmem:[#allocation3 + $0x8] sm:$0x1]
        %v5115 = vld [vmem:[#allocation3 + $0xc] sm:$0xf]
        %v5116 = vld [vmem:[#allocation3 + $0x10] sm:$0xf]
        %v5117 = vld [vmem:[#allocation3 + $0x14] sm:$0x1]
        %v5118 = vld [vmem:[#allocation3 + $0x18] sm:$0xf]
        %v5119 = vld [vmem:[#allocation3 + $0x1c] sm:$0xf]
        %v5120 = vld [vmem:[#allocation3 + $0x20] sm:$0x1]
        %v5121 = vld [vmem:[#allocation3 + $0x24] sm:$0xf]
        %v5122 = vld [vmem:[#allocation3 + $0x28] sm:$0xf]
        %v5123 = vld [vmem:[#allocation3 + $0x2c] sm:$0x1]
        %v5124 = vld [vmem:[%s6] sm:$0x3]
        %v5125 = vld [vmem:[%s7] sm:$0xf]
        %5127 = vset.pattern.permute.xlu0 0
        %5128 = vperm.xlu0 %5127, %v5125
        %v5129 = vpop.permute.xlu0 %5128
        %v5133 = vpack.i.b16 %v5115, %v5112
        %v5134 = vshrl.u32 %v5112, 16
        %v5135 = vshrl.u32 %v5115, 16
        %v5136 = vpack.i.b16 %v5135, %v5134
        %v5139 = vpack.i.b16 %v5121, %v5118
        %v5140 = vshrl.u32 %v5118, 16
        %v5141 = vshrl.u32 %v5121, 16
        %v5142 = vpack.i.b16 %v5141, %v5140
        %v5145 = vpack.i.b16 %v5116, %v5113
        %v5146 = vshrl.u32 %v5113, 16
        %v5147 = vshrl.u32 %v5116, 16
        %v5148 = vpack.i.b16 %v5147, %v5146
        %v5151 = vpack.i.b16 %v5122, %v5119
        %v5152 = vshrl.u32 %v5119, 16
        %v5153 = vshrl.u32 %v5122, 16
        %v5154 = vpack.i.b16 %v5153, %v5152
        %v5157 = vunpack.c.l.s4 1983009808
        %v5158 = vunpack.c.0.s8 %v5157
        %v5159 = vlaneseq
        %v5160 = vshrl.u32 %v5159, 7
        %v5161 = vsub.s32 %v5158, %v5160
        %v5162 = vrot.slane %v5133, %v5161
        %v5165 = vunpack.c.l.s4 1983009808
        %v5166 = vunpack.c.0.s8 %v5165
        %v5167 = vlaneseq
        %v5168 = vshrl.u32 %v5167, 7
        %v5169 = vsub.s32 %v5166, %v5168
        %v5170 = vrot.slane %v5139, %v5169
        %v5171 = vcombine.low %v5162, %v5170
        %v5172 = vcombine.high %v5162, %v5170
        %v5174 = vunpack.c.l.s4 1934713408
        %v5175 = vunpack.c.0.s8 %v5174
        %v5176 = vlaneseq
        %v5177 = vshrl.u32 %v5176, 7
        %v5178 = vsub.s32 %v5175, %v5177
        %v5179 = vrot.slane %v5171, %v5178
        %v5181 = vunpack.c.l.s4 1934713408
        %v5182 = vunpack.c.0.s8 %v5181
        %v5183 = vlaneseq
        %v5184 = vshrl.u32 %v5183, 7
        %v5185 = vsub.s32 %v5182, %v5184
        %v5186 = vrot.slane %v5172, %v5185
        %v5187 = vcombine.high %v5179, 0
        %v5188 = vcombine.high %v5186, 0
        %v5191 = vunpack.c.l.s4 1983009808
        %v5192 = vunpack.c.0.s8 %v5191
        %v5193 = vlaneseq
        %v5194 = vshrl.u32 %v5193, 7
        %v5195 = vsub.s32 %v5192, %v5194
        %v5196 = vrot.slane %v5136, %v5195
        %v5199 = vunpack.c.l.s4 1983009808
        %v5200 = vunpack.c.0.s8 %v5199
        %v5201 = vlaneseq
        %v5202 = vshrl.u32 %v5201, 7
        %v5203 = vsub.s32 %v5200, %v5202
        %v5204 = vrot.slane %v5142, %v5203
        %v5205 = vcombine.low %v5196, %v5204
        %v5206 = vcombine.high %v5196, %v5204
        %v5208 = vunpack.c.l.s4 1934713408
        %v5209 = vunpack.c.0.s8 %v5208
        %v5210 = vlaneseq
        %v5211 = vshrl.u32 %v5210, 7
        %v5212 = vsub.s32 %v5209, %v5211
        %v5213 = vrot.slane %v5205, %v5212
        %v5215 = vunpack.c.l.s4 1934713408
        %v5216 = vunpack.c.0.s8 %v5215
        %v5217 = vlaneseq
        %v5218 = vshrl.u32 %v5217, 7
        %v5219 = vsub.s32 %v5216, %v5218
        %v5220 = vrot.slane %v5206, %v5219
        %v5221 = vcombine.high %v5213, 0
        %v5222 = vcombine.high %v5220, 0
        %v5225 = vunpack.c.l.s4 1983009808
        %v5226 = vunpack.c.0.s8 %v5225
        %v5227 = vlaneseq
        %v5228 = vshrl.u32 %v5227, 7
        %v5229 = vsub.s32 %v5226, %v5228
        %v5230 = vrot.slane %v5145, %v5229
        %v5233 = vunpack.c.l.s4 1983009808
        %v5234 = vunpack.c.0.s8 %v5233
        %v5235 = vlaneseq
        %v5236 = vshrl.u32 %v5235, 7
        %v5237 = vsub.s32 %v5234, %v5236
        %v5238 = vrot.slane %v5151, %v5237
        %v5239 = vcombine.low %v5230, %v5238
        %v5240 = vcombine.high %v5230, %v5238
        %v5242 = vunpack.c.l.s4 1934713408
        %v5243 = vunpack.c.0.s8 %v5242
        %v5244 = vlaneseq
        %v5245 = vshrl.u32 %v5244, 7
        %v5246 = vsub.s32 %v5243, %v5245
        %v5247 = vrot.slane %v5239, %v5246
        %v5249 = vunpack.c.l.s4 1934713408
        %v5250 = vunpack.c.0.s8 %v5249
        %v5251 = vlaneseq
        %v5252 = vshrl.u32 %v5251, 7
        %v5253 = vsub.s32 %v5250, %v5252
        %v5254 = vrot.slane %v5240, %v5253
        %v5255 = vcombine.high %v5247, 0
        %v5256 = vcombine.high %v5254, 0
        %v5259 = vunpack.c.l.s4 1983009808
        %v5260 = vunpack.c.0.s8 %v5259
        %v5261 = vlaneseq
        %v5262 = vshrl.u32 %v5261, 7
        %v5263 = vsub.s32 %v5260, %v5262
        %v5264 = vrot.slane %v5148, %v5263
        %v5267 = vunpack.c.l.s4 1983009808
        %v5268 = vunpack.c.0.s8 %v5267
        %v5269 = vlaneseq
        %v5270 = vshrl.u32 %v5269, 7
        %v5271 = vsub.s32 %v5268, %v5270
        %v5272 = vrot.slane %v5154, %v5271
        %v5273 = vcombine.low %v5264, %v5272
        %v5274 = vcombine.high %v5264, %v5272
        %v5276 = vunpack.c.l.s4 1934713408
        %v5277 = vunpack.c.0.s8 %v5276
        %v5278 = vlaneseq
        %v5279 = vshrl.u32 %v5278, 7
        %v5280 = vsub.s32 %v5277, %v5279
        %v5281 = vrot.slane %v5273, %v5280
        %v5283 = vunpack.c.l.s4 1934713408
        %v5284 = vunpack.c.0.s8 %v5283
        %v5285 = vlaneseq
        %v5286 = vshrl.u32 %v5285, 7
        %v5287 = vsub.s32 %v5284, %v5286
        %v5288 = vrot.slane %v5274, %v5287
        %v5289 = vcombine.high %v5281, 0
        %v5290 = vcombine.high %v5288, 0
        %v5292 = vunpack.c.l.b16 %v5213
        %v5293 = vpack.c.b16 %v5292, %v5292
        %5294 = vrot.lane.b32.xlu0 %v5293, 16
        %v5295 = vpop.permute.xlu0 %5294
        %v5297 = vunpack.c.l.b16 %v5187
        %v5298 = vpack.c.b16 %v5297, %v5297
        %5299 = vrot.lane.b32.xlu0 %v5298, 32
        %v5300 = vpop.permute.xlu0 %5299
        %v5302 = vunpack.c.l.b16 %v5221
        %v5303 = vpack.c.b16 %v5302, %v5302
        %5304 = vrot.lane.b32.xlu0 %v5303, 48
        %v5305 = vpop.permute.xlu0 %5304
        %v5307 = vunpack.c.l.b16 %v5186
        %v5308 = vpack.c.b16 %v5307, %v5307
        %5309 = vrot.lane.b32.xlu0 %v5308, 64
        %v5310 = vpop.permute.xlu0 %5309
        %v5312 = vunpack.c.l.b16 %v5220
        %v5313 = vpack.c.b16 %v5312, %v5312
        %5314 = vrot.lane.b32.xlu0 %v5313, 80
        %v5315 = vpop.permute.xlu0 %5314
        %v5317 = vunpack.c.l.b16 %v5188
        %v5318 = vpack.c.b16 %v5317, %v5317
        %5319 = vrot.lane.b32.xlu0 %v5318, 96
        %v5320 = vpop.permute.xlu0 %5319
        %v5322 = vunpack.c.l.b16 %v5222
        %v5323 = vpack.c.b16 %v5322, %v5322
        %5324 = vrot.lane.b32.xlu0 %v5323, 112
        %v5325 = vpop.permute.xlu0 %5324
        %v5327 = vunpack.c.l.b16 %v5281
        %v5328 = vpack.c.b16 %v5327, %v5327
        %5329 = vrot.lane.b32.xlu0 %v5328, 16
        %v5330 = vpop.permute.xlu0 %5329
        %v5332 = vunpack.c.l.b16 %v5255
        %v5333 = vpack.c.b16 %v5332, %v5332
        %5334 = vrot.lane.b32.xlu0 %v5333, 32
        %v5335 = vpop.permute.xlu0 %5334
        %v5337 = vunpack.c.l.b16 %v5289
        %v5338 = vpack.c.b16 %v5337, %v5337
        %5339 = vrot.lane.b32.xlu0 %v5338, 48
        %v5340 = vpop.permute.xlu0 %5339
        %v5342 = vunpack.c.l.b16 %v5254
        %v5343 = vpack.c.b16 %v5342, %v5342
        %5344 = vrot.lane.b32.xlu0 %v5343, 64
        %v5345 = vpop.permute.xlu0 %5344
        %v5347 = vunpack.c.l.b16 %v5288
        %v5348 = vpack.c.b16 %v5347, %v5347
        %5349 = vrot.lane.b32.xlu0 %v5348, 80
        %v5350 = vpop.permute.xlu0 %5349
        %v5352 = vunpack.c.l.b16 %v5256
        %v5353 = vpack.c.b16 %v5352, %v5352
        %5354 = vrot.lane.b32.xlu0 %v5353, 96
        %v5355 = vpop.permute.xlu0 %5354
        %v5357 = vunpack.c.l.b16 %v5290
        %v5358 = vpack.c.b16 %v5357, %v5357
        %5359 = vrot.lane.b32.xlu0 %v5358, 112
        %v5360 = vpop.permute.xlu0 %5359
        %v5363 = vsel %vm1504, %v5179, %v5295
        %v5365 = vsel %vm1508, %v5363, %v5300
        %v5367 = vsel %vm1511, %v5365, %v5305
        %v5369 = vsel %vm1514, %v5367, %v5310
        %v5371 = vsel %vm1517, %v5369, %v5315
        %v5373 = vsel %vm1520, %v5371, %v5320
        %v5375 = vsel %vm1523, %v5373, %v5325
        %v5378 = vsel %vm1504, %v5247, %v5330
        %v5380 = vsel %vm1508, %v5378, %v5335
        %v5382 = vsel %vm1511, %v5380, %v5340
        %v5384 = vsel %vm1514, %v5382, %v5345
        %v5386 = vsel %vm1517, %v5384, %v5350
        %v5388 = vsel %vm1520, %v5386, %v5355
        %v5390 = vsel %vm1523, %v5388, %v5360
        %vm5391 = vcmask 31744
        %v5393 = vsel %vm5391, %v5124, 0
        %vm5395 = vcmask 1041408
        %v5396 = vsel %vm5395, %v5375, 0
        %v5398 = vsel %vm5395, %v5390, 0
        %5400 = vmatprep.subr.bf16.mxu0 %v5398
        %5401 = vmatpush1.bf16.msra.mxu0 %v5396
        %5402 = vmatprep.subr.bf16.mxu0 0
        %5403 = vmatpush1.bf16.msra.mxu0 0
        %5404 = vmatprep.subr.bf16.mxu0 0
        %5405 = vmatpush1.bf16.msra.mxu0 0
        %5406 = vmatprep.subr.bf16.mxu0 0
        %5407 = vmatpush1.bf16.msra.mxu0 0
        %5408 = vmatprep.subr.bf16.mxu0 0
        %5409 = vmatpush1.bf16.msra.mxu0 0
        %5410 = vmatprep.subr.bf16.mxu0 0
        %5411 = vmatpush1.bf16.msra.mxu0 0
        %5412 = vmatprep.subr.bf16.mxu0 0
        %5413 = vmatpush1.bf16.msra.mxu0 0
        %5414 = vmatprep.subr.bf16.mxu0 0
        %5415 = vmatpush1.bf16.msra.mxu0 0
        %5416 = vmatprep.subr.bf16.mxu0 0
        %5417 = vmatpush1.bf16.msra.mxu0 0
        %5418 = vmatprep.subr.bf16.mxu0 0
        %5419 = vmatpush1.bf16.msra.mxu0 0
        %5420 = vmatprep.subr.bf16.mxu0 0
        %5421 = vmatpush1.bf16.msra.mxu0 0
        %5422 = vmatprep.subr.bf16.mxu0 0
        %5423 = vmatpush1.bf16.msra.mxu0 0
        %5424 = vmatprep.subr.bf16.mxu0 0
        %5425 = vmatpush1.bf16.msra.mxu0 0
        %5426 = vmatprep.subr.bf16.mxu0 0
        %5427 = vmatpush1.bf16.msra.mxu0 0
        %5428 = vmatprep.subr.bf16.mxu0 0
        %5429 = vmatpush1.bf16.msra.mxu0 0
        %5430 = vmatprep.subr.bf16.mxu0 0
        %5431 = vmatpush1.bf16.msra.mxu0 0
        %5432 = vmatprep.mubr.bf16.mxu0 0
        %5433 = vmatmul.mubr.bf16.gmra.mrb[0].mxu0 %v5393
        %v5434 = vpop.f32.mrb[0].mxu0
        %v5435 = vadd.f32 0.0, %v5434
        %v5436 = vpop.f32.mrb[0].mxu0
        %v5437 = vadd.f32 0.0, %v5436
        %v5438 = vpop.f32.mrb[0].mxu0
        %v5439 = vpop.f32.mrb[0].mxu0
        %5440 = vdwg.mxu0
        %v5441 = vadd.f32 %v5129, %v5435
        %v5442 = vadd.f32 %v5129, %v5437
        %5451 = vrot.lane.b32.xlu0 %v5112, 127
        %v5452 = vpop.permute.xlu0 %5451
        %5453 = vrot.lane.b32.xlu0 %v5113, 127
        %v5454 = vpop.permute.xlu0 %5453
        %5455 = vrot.lane.b32.xlu0 %v5115, 127
        %v5456 = vpop.permute.xlu0 %5455
        %5457 = vrot.lane.b32.xlu0 %v5116, 127
        %v5458 = vpop.permute.xlu0 %5457
        %5459 = vrot.lane.b32.xlu0 %v5118, 127
        %v5460 = vpop.permute.xlu0 %5459
        %5461 = vrot.lane.b32.xlu0 %v5119, 127
        %v5462 = vpop.permute.xlu0 %5461
        %5463 = vrot.lane.b32.xlu0 %v5121, 127
        %v5464 = vpop.permute.xlu0 %5463
        %5465 = vrot.lane.b32.xlu0 %v5122, 127
        %v5466 = vpop.permute.xlu0 %5465
        %v5469 = vpack.i.b16 %v5456, %v5452
        %v5470 = vshrl.u32 %v5452, 16
        %v5471 = vshrl.u32 %v5456, 16
        %v5472 = vpack.i.b16 %v5471, %v5470
        %v5475 = vpack.i.b16 %v5464, %v5460
        %v5476 = vshrl.u32 %v5460, 16
        %v5477 = vshrl.u32 %v5464, 16
        %v5478 = vpack.i.b16 %v5477, %v5476
        %v5481 = vpack.i.b16 %v5458, %v5454
        %v5482 = vshrl.u32 %v5454, 16
        %v5483 = vshrl.u32 %v5458, 16
        %v5484 = vpack.i.b16 %v5483, %v5482
        %v5487 = vpack.i.b16 %v5466, %v5462
        %v5488 = vshrl.u32 %v5462, 16
        %v5489 = vshrl.u32 %v5466, 16
        %v5490 = vpack.i.b16 %v5489, %v5488
        %v5493 = vunpack.c.l.s4 1983009808
        %v5494 = vunpack.c.0.s8 %v5493
        %v5495 = vlaneseq
        %v5496 = vshrl.u32 %v5495, 7
        %v5497 = vsub.s32 %v5494, %v5496
        %v5498 = vrot.slane %v5469, %v5497
        %v5501 = vunpack.c.l.s4 1983009808
        %v5502 = vunpack.c.0.s8 %v5501
        %v5503 = vlaneseq
        %v5504 = vshrl.u32 %v5503, 7
        %v5505 = vsub.s32 %v5502, %v5504
        %v5506 = vrot.slane %v5475, %v5505
        %v5507 = vcombine.low %v5498, %v5506
        %v5508 = vcombine.high %v5498, %v5506
        %v5510 = vunpack.c.l.s4 1934713408
        %v5511 = vunpack.c.0.s8 %v5510
        %v5512 = vlaneseq
        %v5513 = vshrl.u32 %v5512, 7
        %v5514 = vsub.s32 %v5511, %v5513
        %v5515 = vrot.slane %v5507, %v5514
        %v5517 = vunpack.c.l.s4 1934713408
        %v5518 = vunpack.c.0.s8 %v5517
        %v5519 = vlaneseq
        %v5520 = vshrl.u32 %v5519, 7
        %v5521 = vsub.s32 %v5518, %v5520
        %v5522 = vrot.slane %v5508, %v5521
        %v5523 = vcombine.high %v5515, 0
        %v5524 = vcombine.high %v5522, 0
        %v5527 = vunpack.c.l.s4 1983009808
        %v5528 = vunpack.c.0.s8 %v5527
        %v5529 = vlaneseq
        %v5530 = vshrl.u32 %v5529, 7
        %v5531 = vsub.s32 %v5528, %v5530
        %v5532 = vrot.slane %v5472, %v5531
        %v5535 = vunpack.c.l.s4 1983009808
        %v5536 = vunpack.c.0.s8 %v5535
        %v5537 = vlaneseq
        %v5538 = vshrl.u32 %v5537, 7
        %v5539 = vsub.s32 %v5536, %v5538
        %v5540 = vrot.slane %v5478, %v5539
        %v5541 = vcombine.low %v5532, %v5540
        %v5542 = vcombine.high %v5532, %v5540
        %v5544 = vunpack.c.l.s4 1934713408
        %v5545 = vunpack.c.0.s8 %v5544
        %v5546 = vlaneseq
        %v5547 = vshrl.u32 %v5546, 7
        %v5548 = vsub.s32 %v5545, %v5547
        %v5549 = vrot.slane %v5541, %v5548
        %v5551 = vunpack.c.l.s4 1934713408
        %v5552 = vunpack.c.0.s8 %v5551
        %v5553 = vlaneseq
        %v5554 = vshrl.u32 %v5553, 7
        %v5555 = vsub.s32 %v5552, %v5554
        %v5556 = vrot.slane %v5542, %v5555
        %v5557 = vcombine.high %v5549, 0
        %v5558 = vcombine.high %v5556, 0
        %v5561 = vunpack.c.l.s4 1983009808
        %v5562 = vunpack.c.0.s8 %v5561
        %v5563 = vlaneseq
        %v5564 = vshrl.u32 %v5563, 7
        %v5565 = vsub.s32 %v5562, %v5564
        %v5566 = vrot.slane %v5481, %v5565
        %v5569 = vunpack.c.l.s4 1983009808
        %v5570 = vunpack.c.0.s8 %v5569
        %v5571 = vlaneseq
        %v5572 = vshrl.u32 %v5571, 7
        %v5573 = vsub.s32 %v5570, %v5572
        %v5574 = vrot.slane %v5487, %v5573
        %v5575 = vcombine.low %v5566, %v5574
        %v5576 = vcombine.high %v5566, %v5574
        %v5578 = vunpack.c.l.s4 1934713408
        %v5579 = vunpack.c.0.s8 %v5578
        %v5580 = vlaneseq
        %v5581 = vshrl.u32 %v5580, 7
        %v5582 = vsub.s32 %v5579, %v5581
        %v5583 = vrot.slane %v5575, %v5582
        %v5585 = vunpack.c.l.s4 1934713408
        %v5586 = vunpack.c.0.s8 %v5585
        %v5587 = vlaneseq
        %v5588 = vshrl.u32 %v5587, 7
        %v5589 = vsub.s32 %v5586, %v5588
        %v5590 = vrot.slane %v5576, %v5589
        %v5591 = vcombine.high %v5583, 0
        %v5592 = vcombine.high %v5590, 0
        %v5595 = vunpack.c.l.s4 1983009808
        %v5596 = vunpack.c.0.s8 %v5595
        %v5597 = vlaneseq
        %v5598 = vshrl.u32 %v5597, 7
        %v5599 = vsub.s32 %v5596, %v5598
        %v5600 = vrot.slane %v5484, %v5599
        %v5603 = vunpack.c.l.s4 1983009808
        %v5604 = vunpack.c.0.s8 %v5603
        %v5605 = vlaneseq
        %v5606 = vshrl.u32 %v5605, 7
        %v5607 = vsub.s32 %v5604, %v5606
        %v5608 = vrot.slane %v5490, %v5607
        %v5609 = vcombine.low %v5600, %v5608
        %v5610 = vcombine.high %v5600, %v5608
        %v5612 = vunpack.c.l.s4 1934713408
        %v5613 = vunpack.c.0.s8 %v5612
        %v5614 = vlaneseq
        %v5615 = vshrl.u32 %v5614, 7
        %v5616 = vsub.s32 %v5613, %v5615
        %v5617 = vrot.slane %v5609, %v5616
        %v5619 = vunpack.c.l.s4 1934713408
        %v5620 = vunpack.c.0.s8 %v5619
        %v5621 = vlaneseq
        %v5622 = vshrl.u32 %v5621, 7
        %v5623 = vsub.s32 %v5620, %v5622
        %v5624 = vrot.slane %v5610, %v5623
        %v5625 = vcombine.high %v5617, 0
        %v5626 = vcombine.high %v5624, 0
        %v5628 = vunpack.c.l.b16 %v5549
        %v5629 = vpack.c.b16 %v5628, %v5628
        %5630 = vrot.lane.b32.xlu0 %v5629, 16
        %v5631 = vpop.permute.xlu0 %5630
        %v5633 = vunpack.c.l.b16 %v5523
        %v5634 = vpack.c.b16 %v5633, %v5633
        %5635 = vrot.lane.b32.xlu0 %v5634, 32
        %v5636 = vpop.permute.xlu0 %5635
        %v5638 = vunpack.c.l.b16 %v5557
        %v5639 = vpack.c.b16 %v5638, %v5638
        %5640 = vrot.lane.b32.xlu0 %v5639, 48
        %v5641 = vpop.permute.xlu0 %5640
        %v5643 = vunpack.c.l.b16 %v5522
        %v5644 = vpack.c.b16 %v5643, %v5643
        %5645 = vrot.lane.b32.xlu0 %v5644, 64
        %v5646 = vpop.permute.xlu0 %5645
        %v5648 = vunpack.c.l.b16 %v5556
        %v5649 = vpack.c.b16 %v5648, %v5648
        %5650 = vrot.lane.b32.xlu0 %v5649, 80
        %v5651 = vpop.permute.xlu0 %5650
        %v5653 = vunpack.c.l.b16 %v5524
        %v5654 = vpack.c.b16 %v5653, %v5653
        %5655 = vrot.lane.b32.xlu0 %v5654, 96
        %v5656 = vpop.permute.xlu0 %5655
        %v5658 = vunpack.c.l.b16 %v5558
        %v5659 = vpack.c.b16 %v5658, %v5658
        %5660 = vrot.lane.b32.xlu0 %v5659, 112
        %v5661 = vpop.permute.xlu0 %5660
        %v5663 = vunpack.c.l.b16 %v5617
        %v5664 = vpack.c.b16 %v5663, %v5663
        %5665 = vrot.lane.b32.xlu0 %v5664, 16
        %v5666 = vpop.permute.xlu0 %5665
        %v5668 = vunpack.c.l.b16 %v5591
        %v5669 = vpack.c.b16 %v5668, %v5668
        %5670 = vrot.lane.b32.xlu0 %v5669, 32
        %v5671 = vpop.permute.xlu0 %5670
        %v5673 = vunpack.c.l.b16 %v5625
        %v5674 = vpack.c.b16 %v5673, %v5673
        %5675 = vrot.lane.b32.xlu0 %v5674, 48
        %v5676 = vpop.permute.xlu0 %5675
        %v5678 = vunpack.c.l.b16 %v5590
        %v5679 = vpack.c.b16 %v5678, %v5678
        %5680 = vrot.lane.b32.xlu0 %v5679, 64
        %v5681 = vpop.permute.xlu0 %5680
        %v5683 = vunpack.c.l.b16 %v5624
        %v5684 = vpack.c.b16 %v5683, %v5683
        %5685 = vrot.lane.b32.xlu0 %v5684, 80
        %v5686 = vpop.permute.xlu0 %5685
        %v5688 = vunpack.c.l.b16 %v5592
        %v5689 = vpack.c.b16 %v5688, %v5688
        %5690 = vrot.lane.b32.xlu0 %v5689, 96
        %v5691 = vpop.permute.xlu0 %5690
        %v5693 = vunpack.c.l.b16 %v5626
        %v5694 = vpack.c.b16 %v5693, %v5693
        %5695 = vrot.lane.b32.xlu0 %v5694, 112
        %v5696 = vpop.permute.xlu0 %5695
        %v5699 = vsel %vm1504, %v5515, %v5631
        %v5701 = vsel %vm1508, %v5699, %v5636
        %v5703 = vsel %vm1511, %v5701, %v5641
        %v5705 = vsel %vm1514, %v5703, %v5646
        %v5707 = vsel %vm1517, %v5705, %v5651
        %v5709 = vsel %vm1520, %v5707, %v5656
        %v5711 = vsel %vm1523, %v5709, %v5661
        %v5714 = vsel %vm1504, %v5583, %v5666
        %v5716 = vsel %vm1508, %v5714, %v5671
        %v5718 = vsel %vm1511, %v5716, %v5676
        %v5720 = vsel %vm1514, %v5718, %v5681
        %v5722 = vsel %vm1517, %v5720, %v5686
        %v5724 = vsel %vm1520, %v5722, %v5691
        %v5726 = vsel %vm1523, %v5724, %v5696
        %v5729 = vunpack.c.l.s4 1983009808
        %v5730 = vunpack.c.0.s8 %v5729
        %v5731 = vlaneseq
        %v5732 = vshrl.u32 %v5731, 7
        %v5733 = vsub.s32 %v5730, %v5732
        %v5734 = vrot.slane %v5124, %v5733
        %5735 = vrot.lane.b32.xlu0 %v5734, 124
        %v5736 = vpop.permute.xlu0 %5735
        %v5738 = vsel %vm5391, %v5736, 0
        %v5740 = vsel %vm5395, %v5711, 0
        %v5742 = vsel %vm5395, %v5726, 0
        %5744 = vmatprep.subr.bf16.mxu0 %v5742
        %5745 = vmatpush1.bf16.msra.mxu0 %v5740
        %5746 = vmatprep.subr.bf16.mxu0 0
        %5747 = vmatpush1.bf16.msra.mxu0 0
        %5748 = vmatprep.subr.bf16.mxu0 0
        %5749 = vmatpush1.bf16.msra.mxu0 0
        %5750 = vmatprep.subr.bf16.mxu0 0
        %5751 = vmatpush1.bf16.msra.mxu0 0
        %5752 = vmatprep.subr.bf16.mxu0 0
        %5753 = vmatpush1.bf16.msra.mxu0 0
        %5754 = vmatprep.subr.bf16.mxu0 0
        %5755 = vmatpush1.bf16.msra.mxu0 0
        %5756 = vmatprep.subr.bf16.mxu0 0
        %5757 = vmatpush1.bf16.msra.mxu0 0
        %5758 = vmatprep.subr.bf16.mxu0 0
        %5759 = vmatpush1.bf16.msra.mxu0 0
        %5760 = vmatprep.subr.bf16.mxu0 0
        %5761 = vmatpush1.bf16.msra.mxu0 0
        %5762 = vmatprep.subr.bf16.mxu0 0
        %5763 = vmatpush1.bf16.msra.mxu0 0
        %5764 = vmatprep.subr.bf16.mxu0 0
        %5765 = vmatpush1.bf16.msra.mxu0 0
        %5766 = vmatprep.subr.bf16.mxu0 0
        %5767 = vmatpush1.bf16.msra.mxu0 0
        %5768 = vmatprep.subr.bf16.mxu0 0
        %5769 = vmatpush1.bf16.msra.mxu0 0
        %5770 = vmatprep.subr.bf16.mxu0 0
        %5771 = vmatpush1.bf16.msra.mxu0 0
        %5772 = vmatprep.subr.bf16.mxu0 0
        %5773 = vmatpush1.bf16.msra.mxu0 0
        %5774 = vmatprep.subr.bf16.mxu0 0
        %5775 = vmatpush1.bf16.msra.mxu0 0
        %5776 = vmatprep.mubr.bf16.mxu0 0
        %5777 = vmatmul.mubr.bf16.gmra.mrb[0].mxu0 %v5738
        %v5778 = vpop.f32.mrb[0].mxu0
        %v5779 = vadd.f32 0.0, %v5778
        %v5780 = vpop.f32.mrb[0].mxu0
        %v5781 = vadd.f32 0.0, %v5780
        %v5782 = vpop.f32.mrb[0].mxu0
        %v5783 = vpop.f32.mrb[0].mxu0
        %5784 = vdwg.mxu0
        %v5785 = vadd.f32 %v5441, %v5779
        %v5786 = vadd.f32 %v5442, %v5781
        %5787 = vrot.lane.b32.xlu0 %v5112, 126
        %v5788 = vpop.permute.xlu0 %5787
        %5789 = vrot.lane.b32.xlu0 %v5113, 126
        %v5790 = vpop.permute.xlu0 %5789
        %5791 = vrot.lane.b32.xlu0 %v5115, 126
        %v5792 = vpop.permute.xlu0 %5791
        %5793 = vrot.lane.b32.xlu0 %v5116, 126
        %v5794 = vpop.permute.xlu0 %5793
        %5795 = vrot.lane.b32.xlu0 %v5118, 126
        %v5796 = vpop.permute.xlu0 %5795
        %5797 = vrot.lane.b32.xlu0 %v5119, 126
        %v5798 = vpop.permute.xlu0 %5797
        %5799 = vrot.lane.b32.xlu0 %v5121, 126
        %v5800 = vpop.permute.xlu0 %5799
        %5801 = vrot.lane.b32.xlu0 %v5122, 126
        %v5802 = vpop.permute.xlu0 %5801
        %v5805 = vpack.i.b16 %v5792, %v5788
        %v5806 = vshrl.u32 %v5788, 16
        %v5807 = vshrl.u32 %v5792, 16
        %v5808 = vpack.i.b16 %v5807, %v5806
        %v5811 = vpack.i.b16 %v5800, %v5796
        %v5812 = vshrl.u32 %v5796, 16
        %v5813 = vshrl.u32 %v5800, 16
        %v5814 = vpack.i.b16 %v5813, %v5812
        %v5817 = vpack.i.b16 %v5794, %v5790
        %v5818 = vshrl.u32 %v5790, 16
        %v5819 = vshrl.u32 %v5794, 16
        %v5820 = vpack.i.b16 %v5819, %v5818
        %v5823 = vpack.i.b16 %v5802, %v5798
        %v5824 = vshrl.u32 %v5798, 16
        %v5825 = vshrl.u32 %v5802, 16
        %v5826 = vpack.i.b16 %v5825, %v5824
        %v5829 = vunpack.c.l.s4 1983009808
        %v5830 = vunpack.c.0.s8 %v5829
        %v5831 = vlaneseq
        %v5832 = vshrl.u32 %v5831, 7
        %v5833 = vsub.s32 %v5830, %v5832
        %v5834 = vrot.slane %v5805, %v5833
        %v5837 = vunpack.c.l.s4 1983009808
        %v5838 = vunpack.c.0.s8 %v5837
        %v5839 = vlaneseq
        %v5840 = vshrl.u32 %v5839, 7
        %v5841 = vsub.s32 %v5838, %v5840
        %v5842 = vrot.slane %v5811, %v5841
        %v5843 = vcombine.low %v5834, %v5842
        %v5844 = vcombine.high %v5834, %v5842
        %v5846 = vunpack.c.l.s4 1934713408
        %v5847 = vunpack.c.0.s8 %v5846
        %v5848 = vlaneseq
        %v5849 = vshrl.u32 %v5848, 7
        %v5850 = vsub.s32 %v5847, %v5849
        %v5851 = vrot.slane %v5843, %v5850
        %v5853 = vunpack.c.l.s4 1934713408
        %v5854 = vunpack.c.0.s8 %v5853
        %v5855 = vlaneseq
        %v5856 = vshrl.u32 %v5855, 7
        %v5857 = vsub.s32 %v5854, %v5856
        %v5858 = vrot.slane %v5844, %v5857
        %v5859 = vcombine.high %v5851, 0
        %v5860 = vcombine.high %v5858, 0
        %v5863 = vunpack.c.l.s4 1983009808
        %v5864 = vunpack.c.0.s8 %v5863
        %v5865 = vlaneseq
        %v5866 = vshrl.u32 %v5865, 7
        %v5867 = vsub.s32 %v5864, %v5866
        %v5868 = vrot.slane %v5808, %v5867
        %v5871 = vunpack.c.l.s4 1983009808
        %v5872 = vunpack.c.0.s8 %v5871
        %v5873 = vlaneseq
        %v5874 = vshrl.u32 %v5873, 7
        %v5875 = vsub.s32 %v5872, %v5874
        %v5876 = vrot.slane %v5814, %v5875
        %v5877 = vcombine.low %v5868, %v5876
        %v5878 = vcombine.high %v5868, %v5876
        %v5880 = vunpack.c.l.s4 1934713408
        %v5881 = vunpack.c.0.s8 %v5880
        %v5882 = vlaneseq
        %v5883 = vshrl.u32 %v5882, 7
        %v5884 = vsub.s32 %v5881, %v5883
        %v5885 = vrot.slane %v5877, %v5884
        %v5887 = vunpack.c.l.s4 1934713408
        %v5888 = vunpack.c.0.s8 %v5887
        %v5889 = vlaneseq
        %v5890 = vshrl.u32 %v5889, 7
        %v5891 = vsub.s32 %v5888, %v5890
        %v5892 = vrot.slane %v5878, %v5891
        %v5893 = vcombine.high %v5885, 0
        %v5894 = vcombine.high %v5892, 0
        %v5897 = vunpack.c.l.s4 1983009808
        %v5898 = vunpack.c.0.s8 %v5897
        %v5899 = vlaneseq
        %v5900 = vshrl.u32 %v5899, 7
        %v5901 = vsub.s32 %v5898, %v5900
        %v5902 = vrot.slane %v5817, %v5901
        %v5905 = vunpack.c.l.s4 1983009808
        %v5906 = vunpack.c.0.s8 %v5905
        %v5907 = vlaneseq
        %v5908 = vshrl.u32 %v5907, 7
        %v5909 = vsub.s32 %v5906, %v5908
        %v5910 = vrot.slane %v5823, %v5909
        %v5911 = vcombine.low %v5902, %v5910
        %v5912 = vcombine.high %v5902, %v5910
        %v5914 = vunpack.c.l.s4 1934713408
        %v5915 = vunpack.c.0.s8 %v5914
        %v5916 = vlaneseq
        %v5917 = vshrl.u32 %v5916, 7
        %v5918 = vsub.s32 %v5915, %v5917
        %v5919 = vrot.slane %v5911, %v5918
        %v5921 = vunpack.c.l.s4 1934713408
        %v5922 = vunpack.c.0.s8 %v5921
        %v5923 = vlaneseq
        %v5924 = vshrl.u32 %v5923, 7
        %v5925 = vsub.s32 %v5922, %v5924
        %v5926 = vrot.slane %v5912, %v5925
        %v5927 = vcombine.high %v5919, 0
        %v5928 = vcombine.high %v5926, 0
        %v5931 = vunpack.c.l.s4 1983009808
        %v5932 = vunpack.c.0.s8 %v5931
        %v5933 = vlaneseq
        %v5934 = vshrl.u32 %v5933, 7
        %v5935 = vsub.s32 %v5932, %v5934
        %v5936 = vrot.slane %v5820, %v5935
        %v5939 = vunpack.c.l.s4 1983009808
        %v5940 = vunpack.c.0.s8 %v5939
        %v5941 = vlaneseq
        %v5942 = vshrl.u32 %v5941, 7
        %v5943 = vsub.s32 %v5940, %v5942
        %v5944 = vrot.slane %v5826, %v5943
        %v5945 = vcombine.low %v5936, %v5944
        %v5946 = vcombine.high %v5936, %v5944
        %v5948 = vunpack.c.l.s4 1934713408
        %v5949 = vunpack.c.0.s8 %v5948
        %v5950 = vlaneseq
        %v5951 = vshrl.u32 %v5950, 7
        %v5952 = vsub.s32 %v5949, %v5951
        %v5953 = vrot.slane %v5945, %v5952
        %v5955 = vunpack.c.l.s4 1934713408
        %v5956 = vunpack.c.0.s8 %v5955
        %v5957 = vlaneseq
        %v5958 = vshrl.u32 %v5957, 7
        %v5959 = vsub.s32 %v5956, %v5958
        %v5960 = vrot.slane %v5946, %v5959
        %v5961 = vcombine.high %v5953, 0
        %v5962 = vcombine.high %v5960, 0
        %v5964 = vunpack.c.l.b16 %v5885
        %v5965 = vpack.c.b16 %v5964, %v5964
        %5966 = vrot.lane.b32.xlu0 %v5965, 16
        %v5967 = vpop.permute.xlu0 %5966
        %v5969 = vunpack.c.l.b16 %v5859
        %v5970 = vpack.c.b16 %v5969, %v5969
        %5971 = vrot.lane.b32.xlu0 %v5970, 32
        %v5972 = vpop.permute.xlu0 %5971
        %v5974 = vunpack.c.l.b16 %v5893
        %v5975 = vpack.c.b16 %v5974, %v5974
        %5976 = vrot.lane.b32.xlu0 %v5975, 48
        %v5977 = vpop.permute.xlu0 %5976
        %v5979 = vunpack.c.l.b16 %v5858
        %v5980 = vpack.c.b16 %v5979, %v5979
        %5981 = vrot.lane.b32.xlu0 %v5980, 64
        %v5982 = vpop.permute.xlu0 %5981
        %v5984 = vunpack.c.l.b16 %v5892
        %v5985 = vpack.c.b16 %v5984, %v5984
        %5986 = vrot.lane.b32.xlu0 %v5985, 80
        %v5987 = vpop.permute.xlu0 %5986
        %v5989 = vunpack.c.l.b16 %v5860
        %v5990 = vpack.c.b16 %v5989, %v5989
        %5991 = vrot.lane.b32.xlu0 %v5990, 96
        %v5992 = vpop.permute.xlu0 %5991
        %v5994 = vunpack.c.l.b16 %v5894
        %v5995 = vpack.c.b16 %v5994, %v5994
        %5996 = vrot.lane.b32.xlu0 %v5995, 112
        %v5997 = vpop.permute.xlu0 %5996
        %v5999 = vunpack.c.l.b16 %v5953
        %v6000 = vpack.c.b16 %v5999, %v5999
        %6001 = vrot.lane.b32.xlu0 %v6000, 16
        %v6002 = vpop.permute.xlu0 %6001
        %v6004 = vunpack.c.l.b16 %v5927
        %v6005 = vpack.c.b16 %v6004, %v6004
        %6006 = vrot.lane.b32.xlu0 %v6005, 32
        %v6007 = vpop.permute.xlu0 %6006
        %v6009 = vunpack.c.l.b16 %v5961
        %v6010 = vpack.c.b16 %v6009, %v6009
        %6011 = vrot.lane.b32.xlu0 %v6010, 48
        %v6012 = vpop.permute.xlu0 %6011
        %v6014 = vunpack.c.l.b16 %v5926
        %v6015 = vpack.c.b16 %v6014, %v6014
        %6016 = vrot.lane.b32.xlu0 %v6015, 64
        %v6017 = vpop.permute.xlu0 %6016
        %v6019 = vunpack.c.l.b16 %v5960
        %v6020 = vpack.c.b16 %v6019, %v6019
        %6021 = vrot.lane.b32.xlu0 %v6020, 80
        %v6022 = vpop.permute.xlu0 %6021
        %v6024 = vunpack.c.l.b16 %v5928
        %v6025 = vpack.c.b16 %v6024, %v6024
        %6026 = vrot.lane.b32.xlu0 %v6025, 96
        %v6027 = vpop.permute.xlu0 %6026
        %v6029 = vunpack.c.l.b16 %v5962
        %v6030 = vpack.c.b16 %v6029, %v6029
        %6031 = vrot.lane.b32.xlu0 %v6030, 112
        %v6032 = vpop.permute.xlu0 %6031
        %v6035 = vsel %vm1504, %v5851, %v5967
        %v6037 = vsel %vm1508, %v6035, %v5972
        %v6039 = vsel %vm1511, %v6037, %v5977
        %v6041 = vsel %vm1514, %v6039, %v5982
        %v6043 = vsel %vm1517, %v6041, %v5987
        %v6045 = vsel %vm1520, %v6043, %v5992
        %v6047 = vsel %vm1523, %v6045, %v5997
        %v6050 = vsel %vm1504, %v5919, %v6002
        %v6052 = vsel %vm1508, %v6050, %v6007
        %v6054 = vsel %vm1511, %v6052, %v6012
        %v6056 = vsel %vm1514, %v6054, %v6017
        %v6058 = vsel %vm1517, %v6056, %v6022
        %v6060 = vsel %vm1520, %v6058, %v6027
        %v6062 = vsel %vm1523, %v6060, %v6032
        %6063 = vrot.lane.b32.xlu0 %v5734, 120
        %v6064 = vpop.permute.xlu0 %6063
        %v6066 = vsel %vm5391, %v6064, 0
        %v6068 = vsel %vm5395, %v6047, 0
        %v6070 = vsel %vm5395, %v6062, 0
        %6072 = vmatprep.subr.bf16.mxu0 %v6070
        %6073 = vmatpush1.bf16.msra.mxu0 %v6068
        %6074 = vmatprep.subr.bf16.mxu0 0
        %6075 = vmatpush1.bf16.msra.mxu0 0
        %6076 = vmatprep.subr.bf16.mxu0 0
        %6077 = vmatpush1.bf16.msra.mxu0 0
        %6078 = vmatprep.subr.bf16.mxu0 0
        %6079 = vmatpush1.bf16.msra.mxu0 0
        %6080 = vmatprep.subr.bf16.mxu0 0
        %6081 = vmatpush1.bf16.msra.mxu0 0
        %6082 = vmatprep.subr.bf16.mxu0 0
        %6083 = vmatpush1.bf16.msra.mxu0 0
        %6084 = vmatprep.subr.bf16.mxu0 0
        %6085 = vmatpush1.bf16.msra.mxu0 0
        %6086 = vmatprep.subr.bf16.mxu0 0
        %6087 = vmatpush1.bf16.msra.mxu0 0
        %6088 = vmatprep.subr.bf16.mxu0 0
        %6089 = vmatpush1.bf16.msra.mxu0 0
        %6090 = vmatprep.subr.bf16.mxu0 0
        %6091 = vmatpush1.bf16.msra.mxu0 0
        %6092 = vmatprep.subr.bf16.mxu0 0
        %6093 = vmatpush1.bf16.msra.mxu0 0
        %6094 = vmatprep.subr.bf16.mxu0 0
        %6095 = vmatpush1.bf16.msra.mxu0 0
        %6096 = vmatprep.subr.bf16.mxu0 0
        %6097 = vmatpush1.bf16.msra.mxu0 0
        %6098 = vmatprep.subr.bf16.mxu0 0
        %6099 = vmatpush1.bf16.msra.mxu0 0
        %6100 = vmatprep.subr.bf16.mxu0 0
        %6101 = vmatpush1.bf16.msra.mxu0 0
        %6102 = vmatprep.subr.bf16.mxu0 0
        %6103 = vmatpush1.bf16.msra.mxu0 0
        %6104 = vmatprep.mubr.bf16.mxu0 0
        %6105 = vmatmul.mubr.bf16.gmra.mrb[0].mxu0 %v6066
        %v6106 = vpop.f32.mrb[0].mxu0
        %v6107 = vadd.f32 0.0, %v6106
        %v6108 = vpop.f32.mrb[0].mxu0
        %v6109 = vadd.f32 0.0, %v6108
        %v6110 = vpop.f32.mrb[0].mxu0
        %v6111 = vpop.f32.mrb[0].mxu0
        %6112 = vdwg.mxu0
        %v6113 = vadd.f32 %v5785, %v6107
        %v6114 = vadd.f32 %v5786, %v6109
        %v6116 = vrot.slane %v5134, 4
        %v6117 = vshll.u32 %v5112, 16
        %v6119 = vrot.slane %v6117, 5
        %v6120 = vor.u32 %v6116, %v6119
        %v6121 = vrot.slane %v6120, 4
        %v6122 = vshll.u32 %v5113, 16
        %v6124 = vrot.slane %v6122, 5
        %v6125 = vsel %vm2358, %v6121, %v6124
        %v6127 = vrot.slane %v5146, 4
        %v6128 = vor.u32 %v6127, %v6124
        %v6129 = vrot.slane %v6128, 4
        %v6131 = vshll.u32 %v5114, 16
        %v6133 = vrot.slane %v6131, 5
        %v6134 = vsel %vm2358, %v6129, %v6133
        %v6136 = vrot.slane %v5135, 4
        %v6137 = vshll.u32 %v5115, 16
        %v6139 = vrot.slane %v6137, 5
        %v6140 = vor.u32 %v6136, %v6139
        %v6141 = vrot.slane %v6140, 4
        %v6142 = vshll.u32 %v5116, 16
        %v6144 = vrot.slane %v6142, 5
        %v6145 = vsel %vm2358, %v6141, %v6144
        %v6147 = vrot.slane %v5147, 4
        %v6148 = vor.u32 %v6147, %v6144
        %v6149 = vrot.slane %v6148, 4
        %v6151 = vshll.u32 %v5117, 16
        %v6153 = vrot.slane %v6151, 5
        %v6154 = vsel %vm2358, %v6149, %v6153
        %v6156 = vrot.slane %v5140, 4
        %v6157 = vshll.u32 %v5118, 16
        %v6159 = vrot.slane %v6157, 5
        %v6160 = vor.u32 %v6156, %v6159
        %v6161 = vrot.slane %v6160, 4
        %v6162 = vshll.u32 %v5119, 16
        %v6164 = vrot.slane %v6162, 5
        %v6165 = vsel %vm2358, %v6161, %v6164
        %v6167 = vrot.slane %v5152, 4
        %v6168 = vor.u32 %v6167, %v6164
        %v6169 = vrot.slane %v6168, 4
        %v6171 = vshll.u32 %v5120, 16
        %v6173 = vrot.slane %v6171, 5
        %v6174 = vsel %vm2358, %v6169, %v6173
        %v6176 = vrot.slane %v5141, 4
        %v6177 = vshll.u32 %v5121, 16
        %v6179 = vrot.slane %v6177, 5
        %v6180 = vor.u32 %v6176, %v6179
        %v6181 = vrot.slane %v6180, 4
        %v6182 = vshll.u32 %v5122, 16
        %v6184 = vrot.slane %v6182, 5
        %v6185 = vsel %vm2358, %v6181, %v6184
        %v6187 = vrot.slane %v5153, 4
        %v6188 = vor.u32 %v6187, %v6184
        %v6189 = vrot.slane %v6188, 4
        %v6191 = vshll.u32 %v5123, 16
        %v6193 = vrot.slane %v6191, 5
        %v6194 = vsel %vm2358, %v6189, %v6193
        %v6197 = vpack.i.b16 %v6145, %v6125
        %v6198 = vshrl.u32 %v6125, 16
        %v6199 = vshrl.u32 %v6145, 16
        %v6200 = vpack.i.b16 %v6199, %v6198
        %v6203 = vpack.i.b16 %v6185, %v6165
        %v6204 = vshrl.u32 %v6165, 16
        %v6205 = vshrl.u32 %v6185, 16
        %v6206 = vpack.i.b16 %v6205, %v6204
        %v6209 = vpack.i.b16 %v6154, %v6134
        %v6210 = vshrl.u32 %v6134, 16
        %v6211 = vshrl.u32 %v6154, 16
        %v6212 = vpack.i.b16 %v6211, %v6210
        %v6215 = vpack.i.b16 %v6194, %v6174
        %v6216 = vshrl.u32 %v6174, 16
        %v6217 = vshrl.u32 %v6194, 16
        %v6218 = vpack.i.b16 %v6217, %v6216
        %v6221 = vunpack.c.l.s4 1983009808
        %v6222 = vunpack.c.0.s8 %v6221
        %v6223 = vlaneseq
        %v6224 = vshrl.u32 %v6223, 7
        %v6225 = vsub.s32 %v6222, %v6224
        %v6226 = vrot.slane %v6197, %v6225
        %v6229 = vunpack.c.l.s4 1983009808
        %v6230 = vunpack.c.0.s8 %v6229
        %v6231 = vlaneseq
        %v6232 = vshrl.u32 %v6231, 7
        %v6233 = vsub.s32 %v6230, %v6232
        %v6234 = vrot.slane %v6203, %v6233
        %v6235 = vcombine.low %v6226, %v6234
        %v6236 = vcombine.high %v6226, %v6234
        %v6238 = vunpack.c.l.s4 1934713408
        %v6239 = vunpack.c.0.s8 %v6238
        %v6240 = vlaneseq
        %v6241 = vshrl.u32 %v6240, 7
        %v6242 = vsub.s32 %v6239, %v6241
        %v6243 = vrot.slane %v6235, %v6242
        %v6245 = vunpack.c.l.s4 1934713408
        %v6246 = vunpack.c.0.s8 %v6245
        %v6247 = vlaneseq
        %v6248 = vshrl.u32 %v6247, 7
        %v6249 = vsub.s32 %v6246, %v6248
        %v6250 = vrot.slane %v6236, %v6249
        %v6251 = vcombine.high %v6243, 0
        %v6252 = vcombine.high %v6250, 0
        %v6255 = vunpack.c.l.s4 1983009808
        %v6256 = vunpack.c.0.s8 %v6255
        %v6257 = vlaneseq
        %v6258 = vshrl.u32 %v6257, 7
        %v6259 = vsub.s32 %v6256, %v6258
        %v6260 = vrot.slane %v6200, %v6259
        %v6263 = vunpack.c.l.s4 1983009808
        %v6264 = vunpack.c.0.s8 %v6263
        %v6265 = vlaneseq
        %v6266 = vshrl.u32 %v6265, 7
        %v6267 = vsub.s32 %v6264, %v6266
        %v6268 = vrot.slane %v6206, %v6267
        %v6269 = vcombine.low %v6260, %v6268
        %v6270 = vcombine.high %v6260, %v6268
        %v6272 = vunpack.c.l.s4 1934713408
        %v6273 = vunpack.c.0.s8 %v6272
        %v6274 = vlaneseq
        %v6275 = vshrl.u32 %v6274, 7
        %v6276 = vsub.s32 %v6273, %v6275
        %v6277 = vrot.slane %v6269, %v6276
        %v6279 = vunpack.c.l.s4 1934713408
        %v6280 = vunpack.c.0.s8 %v6279
        %v6281 = vlaneseq
        %v6282 = vshrl.u32 %v6281, 7
        %v6283 = vsub.s32 %v6280, %v6282
        %v6284 = vrot.slane %v6270, %v6283
        %v6285 = vcombine.high %v6277, 0
        %v6286 = vcombine.high %v6284, 0
        %v6289 = vunpack.c.l.s4 1983009808
        %v6290 = vunpack.c.0.s8 %v6289
        %v6291 = vlaneseq
        %v6292 = vshrl.u32 %v6291, 7
        %v6293 = vsub.s32 %v6290, %v6292
        %v6294 = vrot.slane %v6209, %v6293
        %v6297 = vunpack.c.l.s4 1983009808
        %v6298 = vunpack.c.0.s8 %v6297
        %v6299 = vlaneseq
        %v6300 = vshrl.u32 %v6299, 7
        %v6301 = vsub.s32 %v6298, %v6300
        %v6302 = vrot.slane %v6215, %v6301
        %v6303 = vcombine.low %v6294, %v6302
        %v6304 = vcombine.high %v6294, %v6302
        %v6306 = vunpack.c.l.s4 1934713408
        %v6307 = vunpack.c.0.s8 %v6306
        %v6308 = vlaneseq
        %v6309 = vshrl.u32 %v6308, 7
        %v6310 = vsub.s32 %v6307, %v6309
        %v6311 = vrot.slane %v6303, %v6310
        %v6313 = vunpack.c.l.s4 1934713408
        %v6314 = vunpack.c.0.s8 %v6313
        %v6315 = vlaneseq
        %v6316 = vshrl.u32 %v6315, 7
        %v6317 = vsub.s32 %v6314, %v6316
        %v6318 = vrot.slane %v6304, %v6317
        %v6319 = vcombine.high %v6311, 0
        %v6320 = vcombine.high %v6318, 0
        %v6323 = vunpack.c.l.s4 1983009808
        %v6324 = vunpack.c.0.s8 %v6323
        %v6325 = vlaneseq
        %v6326 = vshrl.u32 %v6325, 7
        %v6327 = vsub.s32 %v6324, %v6326
        %v6328 = vrot.slane %v6212, %v6327
        %v6331 = vunpack.c.l.s4 1983009808
        %v6332 = vunpack.c.0.s8 %v6331
        %v6333 = vlaneseq
        %v6334 = vshrl.u32 %v6333, 7
        %v6335 = vsub.s32 %v6332, %v6334
        %v6336 = vrot.slane %v6218, %v6335
        %v6337 = vcombine.low %v6328, %v6336
        %v6338 = vcombine.high %v6328, %v6336
        %v6340 = vunpack.c.l.s4 1934713408
        %v6341 = vunpack.c.0.s8 %v6340
        %v6342 = vlaneseq
        %v6343 = vshrl.u32 %v6342, 7
        %v6344 = vsub.s32 %v6341, %v6343
        %v6345 = vrot.slane %v6337, %v6344
        %v6347 = vunpack.c.l.s4 1934713408
        %v6348 = vunpack.c.0.s8 %v6347
        %v6349 = vlaneseq
        %v6350 = vshrl.u32 %v6349, 7
        %v6351 = vsub.s32 %v6348, %v6350
        %v6352 = vrot.slane %v6338, %v6351
        %v6353 = vcombine.high %v6345, 0
        %v6354 = vcombine.high %v6352, 0
        %v6356 = vunpack.c.l.b16 %v6277
        %v6357 = vpack.c.b16 %v6356, %v6356
        %6358 = vrot.lane.b32.xlu0 %v6357, 16
        %v6359 = vpop.permute.xlu0 %6358
        %v6361 = vunpack.c.l.b16 %v6251
        %v6362 = vpack.c.b16 %v6361, %v6361
        %6363 = vrot.lane.b32.xlu0 %v6362, 32
        %v6364 = vpop.permute.xlu0 %6363
        %v6366 = vunpack.c.l.b16 %v6285
        %v6367 = vpack.c.b16 %v6366, %v6366
        %6368 = vrot.lane.b32.xlu0 %v6367, 48
        %v6369 = vpop.permute.xlu0 %6368
        %v6371 = vunpack.c.l.b16 %v6250
        %v6372 = vpack.c.b16 %v6371, %v6371
        %6373 = vrot.lane.b32.xlu0 %v6372, 64
        %v6374 = vpop.permute.xlu0 %6373
        %v6376 = vunpack.c.l.b16 %v6284
        %v6377 = vpack.c.b16 %v6376, %v6376
        %6378 = vrot.lane.b32.xlu0 %v6377, 80
        %v6379 = vpop.permute.xlu0 %6378
        %v6381 = vunpack.c.l.b16 %v6252
        %v6382 = vpack.c.b16 %v6381, %v6381
        %6383 = vrot.lane.b32.xlu0 %v6382, 96
        %v6384 = vpop.permute.xlu0 %6383
        %v6386 = vunpack.c.l.b16 %v6286
        %v6387 = vpack.c.b16 %v6386, %v6386
        %6388 = vrot.lane.b32.xlu0 %v6387, 112
        %v6389 = vpop.permute.xlu0 %6388
        %v6391 = vunpack.c.l.b16 %v6345
        %v6392 = vpack.c.b16 %v6391, %v6391
        %6393 = vrot.lane.b32.xlu0 %v6392, 16
        %v6394 = vpop.permute.xlu0 %6393
        %v6396 = vunpack.c.l.b16 %v6319
        %v6397 = vpack.c.b16 %v6396, %v6396
        %6398 = vrot.lane.b32.xlu0 %v6397, 32
        %v6399 = vpop.permute.xlu0 %6398
        %v6401 = vunpack.c.l.b16 %v6353
        %v6402 = vpack.c.b16 %v6401, %v6401
        %6403 = vrot.lane.b32.xlu0 %v6402, 48
        %v6404 = vpop.permute.xlu0 %6403
        %v6406 = vunpack.c.l.b16 %v6318
        %v6407 = vpack.c.b16 %v6406, %v6406
        %6408 = vrot.lane.b32.xlu0 %v6407, 64
        %v6409 = vpop.permute.xlu0 %6408
        %v6411 = vunpack.c.l.b16 %v6352
        %v6412 = vpack.c.b16 %v6411, %v6411
        %6413 = vrot.lane.b32.xlu0 %v6412, 80
        %v6414 = vpop.permute.xlu0 %6413
        %v6416 = vunpack.c.l.b16 %v6320
        %v6417 = vpack.c.b16 %v6416, %v6416
        %6418 = vrot.lane.b32.xlu0 %v6417, 96
        %v6419 = vpop.permute.xlu0 %6418
        %v6421 = vunpack.c.l.b16 %v6354
        %v6422 = vpack.c.b16 %v6421, %v6421
        %6423 = vrot.lane.b32.xlu0 %v6422, 112
        %v6424 = vpop.permute.xlu0 %6423
        %v6427 = vsel %vm1504, %v6243, %v6359
        %v6429 = vsel %vm1508, %v6427, %v6364
        %v6431 = vsel %vm1511, %v6429, %v6369
        %v6433 = vsel %vm1514, %v6431, %v6374
        %v6435 = vsel %vm1517, %v6433, %v6379
        %v6437 = vsel %vm1520, %v6435, %v6384
        %v6439 = vsel %vm1523, %v6437, %v6389
        %v6442 = vsel %vm1504, %v6311, %v6394
        %v6444 = vsel %vm1508, %v6442, %v6399
        %v6446 = vsel %vm1511, %v6444, %v6404
        %v6448 = vsel %vm1514, %v6446, %v6409
        %v6450 = vsel %vm1517, %v6448, %v6414
        %v6452 = vsel %vm1520, %v6450, %v6419
        %v6454 = vsel %vm1523, %v6452, %v6424
        %6455 = vrot.lane.b32.xlu0 %v5734, 116
        %v6456 = vpop.permute.xlu0 %6455
        %v6458 = vsel %vm5391, %v6456, 0
        %v6460 = vsel %vm5395, %v6439, 0
        %v6462 = vsel %vm5395, %v6454, 0
        %6464 = vmatprep.subr.bf16.mxu0 %v6462
        %6465 = vmatpush1.bf16.msra.mxu0 %v6460
        %6466 = vmatprep.subr.bf16.mxu0 0
        %6467 = vmatpush1.bf16.msra.mxu0 0
        %6468 = vmatprep.subr.bf16.mxu0 0
        %6469 = vmatpush1.bf16.msra.mxu0 0
        %6470 = vmatprep.subr.bf16.mxu0 0
        %6471 = vmatpush1.bf16.msra.mxu0 0
        %6472 = vmatprep.subr.bf16.mxu0 0
        %6473 = vmatpush1.bf16.msra.mxu0 0
        %6474 = vmatprep.subr.bf16.mxu0 0
        %6475 = vmatpush1.bf16.msra.mxu0 0
        %6476 = vmatprep.subr.bf16.mxu0 0
        %6477 = vmatpush1.bf16.msra.mxu0 0
        %6478 = vmatprep.subr.bf16.mxu0 0
        %6479 = vmatpush1.bf16.msra.mxu0 0
        %6480 = vmatprep.subr.bf16.mxu0 0
        %6481 = vmatpush1.bf16.msra.mxu0 0
        %6482 = vmatprep.subr.bf16.mxu0 0
        %6483 = vmatpush1.bf16.msra.mxu0 0
        %6484 = vmatprep.subr.bf16.mxu0 0
        %6485 = vmatpush1.bf16.msra.mxu0 0
        %6486 = vmatprep.subr.bf16.mxu0 0
        %6487 = vmatpush1.bf16.msra.mxu0 0
        %6488 = vmatprep.subr.bf16.mxu0 0
        %6489 = vmatpush1.bf16.msra.mxu0 0
        %6490 = vmatprep.subr.bf16.mxu0 0
        %6491 = vmatpush1.bf16.msra.mxu0 0
        %6492 = vmatprep.subr.bf16.mxu0 0
        %6493 = vmatpush1.bf16.msra.mxu0 0
        %6494 = vmatprep.subr.bf16.mxu0 0
        %6495 = vmatpush1.bf16.msra.mxu0 0
        %6496 = vmatprep.mubr.bf16.mxu0 0
        %6497 = vmatmul.mubr.bf16.gmra.mrb[0].mxu0 %v6458
        %v6498 = vpop.f32.mrb[0].mxu0
        %v6499 = vadd.f32 0.0, %v6498
        %v6500 = vpop.f32.mrb[0].mxu0
        %v6501 = vadd.f32 0.0, %v6500
        %v6502 = vpop.f32.mrb[0].mxu0
        %v6503 = vpop.f32.mrb[0].mxu0
        %6504 = vdwg.mxu0
        %v6505 = vadd.f32 %v6113, %v6499
        %v6506 = vadd.f32 %v6114, %v6501
        %6507 = vrot.lane.b32.xlu0 %v6125, 127
        %v6508 = vpop.permute.xlu0 %6507
        %6509 = vrot.lane.b32.xlu0 %v6134, 127
        %v6510 = vpop.permute.xlu0 %6509
        %6511 = vrot.lane.b32.xlu0 %v6145, 127
        %v6512 = vpop.permute.xlu0 %6511
        %6513 = vrot.lane.b32.xlu0 %v6154, 127
        %v6514 = vpop.permute.xlu0 %6513
        %6515 = vrot.lane.b32.xlu0 %v6165, 127
        %v6516 = vpop.permute.xlu0 %6515
        %6517 = vrot.lane.b32.xlu0 %v6174, 127
        %v6518 = vpop.permute.xlu0 %6517
        %6519 = vrot.lane.b32.xlu0 %v6185, 127
        %v6520 = vpop.permute.xlu0 %6519
        %6521 = vrot.lane.b32.xlu0 %v6194, 127
        %v6522 = vpop.permute.xlu0 %6521
        %v6525 = vpack.i.b16 %v6512, %v6508
        %v6526 = vshrl.u32 %v6508, 16
        %v6527 = vshrl.u32 %v6512, 16
        %v6528 = vpack.i.b16 %v6527, %v6526
        %v6531 = vpack.i.b16 %v6520, %v6516
        %v6532 = vshrl.u32 %v6516, 16
        %v6533 = vshrl.u32 %v6520, 16
        %v6534 = vpack.i.b16 %v6533, %v6532
        %v6537 = vpack.i.b16 %v6514, %v6510
        %v6538 = vshrl.u32 %v6510, 16
        %v6539 = vshrl.u32 %v6514, 16
        %v6540 = vpack.i.b16 %v6539, %v6538
        %v6543 = vpack.i.b16 %v6522, %v6518
        %v6544 = vshrl.u32 %v6518, 16
        %v6545 = vshrl.u32 %v6522, 16
        %v6546 = vpack.i.b16 %v6545, %v6544
        %v6549 = vunpack.c.l.s4 1983009808
        %v6550 = vunpack.c.0.s8 %v6549
        %v6551 = vlaneseq
        %v6552 = vshrl.u32 %v6551, 7
        %v6553 = vsub.s32 %v6550, %v6552
        %v6554 = vrot.slane %v6525, %v6553
        %v6557 = vunpack.c.l.s4 1983009808
        %v6558 = vunpack.c.0.s8 %v6557
        %v6559 = vlaneseq
        %v6560 = vshrl.u32 %v6559, 7
        %v6561 = vsub.s32 %v6558, %v6560
        %v6562 = vrot.slane %v6531, %v6561
        %v6563 = vcombine.low %v6554, %v6562
        %v6564 = vcombine.high %v6554, %v6562
        %v6566 = vunpack.c.l.s4 1934713408
        %v6567 = vunpack.c.0.s8 %v6566
        %v6568 = vlaneseq
        %v6569 = vshrl.u32 %v6568, 7
        %v6570 = vsub.s32 %v6567, %v6569
        %v6571 = vrot.slane %v6563, %v6570
        %v6573 = vunpack.c.l.s4 1934713408
        %v6574 = vunpack.c.0.s8 %v6573
        %v6575 = vlaneseq
        %v6576 = vshrl.u32 %v6575, 7
        %v6577 = vsub.s32 %v6574, %v6576
        %v6578 = vrot.slane %v6564, %v6577
        %v6579 = vcombine.high %v6571, 0
        %v6580 = vcombine.high %v6578, 0
        %v6583 = vunpack.c.l.s4 1983009808
        %v6584 = vunpack.c.0.s8 %v6583
        %v6585 = vlaneseq
        %v6586 = vshrl.u32 %v6585, 7
        %v6587 = vsub.s32 %v6584, %v6586
        %v6588 = vrot.slane %v6528, %v6587
        %v6591 = vunpack.c.l.s4 1983009808
        %v6592 = vunpack.c.0.s8 %v6591
        %v6593 = vlaneseq
        %v6594 = vshrl.u32 %v6593, 7
        %v6595 = vsub.s32 %v6592, %v6594
        %v6596 = vrot.slane %v6534, %v6595
        %v6597 = vcombine.low %v6588, %v6596
        %v6598 = vcombine.high %v6588, %v6596
        %v6600 = vunpack.c.l.s4 1934713408
        %v6601 = vunpack.c.0.s8 %v6600
        %v6602 = vlaneseq
        %v6603 = vshrl.u32 %v6602, 7
        %v6604 = vsub.s32 %v6601, %v6603
        %v6605 = vrot.slane %v6597, %v6604
        %v6607 = vunpack.c.l.s4 1934713408
        %v6608 = vunpack.c.0.s8 %v6607
        %v6609 = vlaneseq
        %v6610 = vshrl.u32 %v6609, 7
        %v6611 = vsub.s32 %v6608, %v6610
        %v6612 = vrot.slane %v6598, %v6611
        %v6613 = vcombine.high %v6605, 0
        %v6614 = vcombine.high %v6612, 0
        %v6617 = vunpack.c.l.s4 1983009808
        %v6618 = vunpack.c.0.s8 %v6617
        %v6619 = vlaneseq
        %v6620 = vshrl.u32 %v6619, 7
        %v6621 = vsub.s32 %v6618, %v6620
        %v6622 = vrot.slane %v6537, %v6621
        %v6625 = vunpack.c.l.s4 1983009808
        %v6626 = vunpack.c.0.s8 %v6625
        %v6627 = vlaneseq
        %v6628 = vshrl.u32 %v6627, 7
        %v6629 = vsub.s32 %v6626, %v6628
        %v6630 = vrot.slane %v6543, %v6629
        %v6631 = vcombine.low %v6622, %v6630
        %v6632 = vcombine.high %v6622, %v6630
        %v6634 = vunpack.c.l.s4 1934713408
        %v6635 = vunpack.c.0.s8 %v6634
        %v6636 = vlaneseq
        %v6637 = vshrl.u32 %v6636, 7
        %v6638 = vsub.s32 %v6635, %v6637
        %v6639 = vrot.slane %v6631, %v6638
        %v6641 = vunpack.c.l.s4 1934713408
        %v6642 = vunpack.c.0.s8 %v6641
        %v6643 = vlaneseq
        %v6644 = vshrl.u32 %v6643, 7
        %v6645 = vsub.s32 %v6642, %v6644
        %v6646 = vrot.slane %v6632, %v6645
        %v6647 = vcombine.high %v6639, 0
        %v6648 = vcombine.high %v6646, 0
        %v6651 = vunpack.c.l.s4 1983009808
        %v6652 = vunpack.c.0.s8 %v6651
        %v6653 = vlaneseq
        %v6654 = vshrl.u32 %v6653, 7
        %v6655 = vsub.s32 %v6652, %v6654
        %v6656 = vrot.slane %v6540, %v6655
        %v6659 = vunpack.c.l.s4 1983009808
        %v6660 = vunpack.c.0.s8 %v6659
        %v6661 = vlaneseq
        %v6662 = vshrl.u32 %v6661, 7
        %v6663 = vsub.s32 %v6660, %v6662
        %v6664 = vrot.slane %v6546, %v6663
        %v6665 = vcombine.low %v6656, %v6664
        %v6666 = vcombine.high %v6656, %v6664
        %v6668 = vunpack.c.l.s4 1934713408
        %v6669 = vunpack.c.0.s8 %v6668
        %v6670 = vlaneseq
        %v6671 = vshrl.u32 %v6670, 7
        %v6672 = vsub.s32 %v6669, %v6671
        %v6673 = vrot.slane %v6665, %v6672
        %v6675 = vunpack.c.l.s4 1934713408
        %v6676 = vunpack.c.0.s8 %v6675
        %v6677 = vlaneseq
        %v6678 = vshrl.u32 %v6677, 7
        %v6679 = vsub.s32 %v6676, %v6678
        %v6680 = vrot.slane %v6666, %v6679
        %v6681 = vcombine.high %v6673, 0
        %v6682 = vcombine.high %v6680, 0
        %v6684 = vunpack.c.l.b16 %v6605
        %v6685 = vpack.c.b16 %v6684, %v6684
        %6686 = vrot.lane.b32.xlu0 %v6685, 16
        %v6687 = vpop.permute.xlu0 %6686
        %v6689 = vunpack.c.l.b16 %v6579
        %v6690 = vpack.c.b16 %v6689, %v6689
        %6691 = vrot.lane.b32.xlu0 %v6690, 32
        %v6692 = vpop.permute.xlu0 %6691
        %v6694 = vunpack.c.l.b16 %v6613
        %v6695 = vpack.c.b16 %v6694, %v6694
        %6696 = vrot.lane.b32.xlu0 %v6695, 48
        %v6697 = vpop.permute.xlu0 %6696
        %v6699 = vunpack.c.l.b16 %v6578
        %v6700 = vpack.c.b16 %v6699, %v6699
        %6701 = vrot.lane.b32.xlu0 %v6700, 64
        %v6702 = vpop.permute.xlu0 %6701
        %v6704 = vunpack.c.l.b16 %v6612
        %v6705 = vpack.c.b16 %v6704, %v6704
        %6706 = vrot.lane.b32.xlu0 %v6705, 80
        %v6707 = vpop.permute.xlu0 %6706
        %v6709 = vunpack.c.l.b16 %v6580
        %v6710 = vpack.c.b16 %v6709, %v6709
        %6711 = vrot.lane.b32.xlu0 %v6710, 96
        %v6712 = vpop.permute.xlu0 %6711
        %v6714 = vunpack.c.l.b16 %v6614
        %v6715 = vpack.c.b16 %v6714, %v6714
        %6716 = vrot.lane.b32.xlu0 %v6715, 112
        %v6717 = vpop.permute.xlu0 %6716
        %v6719 = vunpack.c.l.b16 %v6673
        %v6720 = vpack.c.b16 %v6719, %v6719
        %6721 = vrot.lane.b32.xlu0 %v6720, 16
        %v6722 = vpop.permute.xlu0 %6721
        %v6724 = vunpack.c.l.b16 %v6647
        %v6725 = vpack.c.b16 %v6724, %v6724
        %6726 = vrot.lane.b32.xlu0 %v6725, 32
        %v6727 = vpop.permute.xlu0 %6726
        %v6729 = vunpack.c.l.b16 %v6681
        %v6730 = vpack.c.b16 %v6729, %v6729
        %6731 = vrot.lane.b32.xlu0 %v6730, 48
        %v6732 = vpop.permute.xlu0 %6731
        %v6734 = vunpack.c.l.b16 %v6646
        %v6735 = vpack.c.b16 %v6734, %v6734
        %6736 = vrot.lane.b32.xlu0 %v6735, 64
        %v6737 = vpop.permute.xlu0 %6736
        %v6739 = vunpack.c.l.b16 %v6680
        %v6740 = vpack.c.b16 %v6739, %v6739
        %6741 = vrot.lane.b32.xlu0 %v6740, 80
        %v6742 = vpop.permute.xlu0 %6741
        %v6744 = vunpack.c.l.b16 %v6648
        %v6745 = vpack.c.b16 %v6744, %v6744
        %6746 = vrot.lane.b32.xlu0 %v6745, 96
        %v6747 = vpop.permute.xlu0 %6746
        %v6749 = vunpack.c.l.b16 %v6682
        %v6750 = vpack.c.b16 %v6749, %v6749
        %6751 = vrot.lane.b32.xlu0 %v6750, 112
        %v6752 = vpop.permute.xlu0 %6751
        %v6755 = vsel %vm1504, %v6571, %v6687
        %v6757 = vsel %vm1508, %v6755, %v6692
        %v6759 = vsel %vm1511, %v6757, %v6697
        %v6761 = vsel %vm1514, %v6759, %v6702
        %v6763 = vsel %vm1517, %v6761, %v6707
        %v6765 = vsel %vm1520, %v6763, %v6712
        %v6767 = vsel %vm1523, %v6765, %v6717
        %v6770 = vsel %vm1504, %v6639, %v6722
        %v6772 = vsel %vm1508, %v6770, %v6727
        %v6774 = vsel %vm1511, %v6772, %v6732
        %v6776 = vsel %vm1514, %v6774, %v6737
        %v6778 = vsel %vm1517, %v6776, %v6742
        %v6780 = vsel %vm1520, %v6778, %v6747
        %v6782 = vsel %vm1523, %v6780, %v6752
        %6783 = vrot.lane.b32.xlu0 %v5734, 112
        %v6784 = vpop.permute.xlu0 %6783
        %v6786 = vsel %vm5391, %v6784, 0
        %v6788 = vsel %vm5395, %v6767, 0
        %v6790 = vsel %vm5395, %v6782, 0
        %6792 = vmatprep.subr.bf16.mxu0 %v6790
        %6793 = vmatpush1.bf16.msra.mxu0 %v6788
        %6794 = vmatprep.subr.bf16.mxu0 0
        %6795 = vmatpush1.bf16.msra.mxu0 0
        %6796 = vmatprep.subr.bf16.mxu0 0
        %6797 = vmatpush1.bf16.msra.mxu0 0
        %6798 = vmatprep.subr.bf16.mxu0 0
        %6799 = vmatpush1.bf16.msra.mxu0 0
        %6800 = vmatprep.subr.bf16.mxu0 0
        %6801 = vmatpush1.bf16.msra.mxu0 0
        %6802 = vmatprep.subr.bf16.mxu0 0
        %6803 = vmatpush1.bf16.msra.mxu0 0
        %6804 = vmatprep.subr.bf16.mxu0 0
        %6805 = vmatpush1.bf16.msra.mxu0 0
        %6806 = vmatprep.subr.bf16.mxu0 0
        %6807 = vmatpush1.bf16.msra.mxu0 0
        %6808 = vmatprep.subr.bf16.mxu0 0
        %6809 = vmatpush1.bf16.msra.mxu0 0
        %6810 = vmatprep.subr.bf16.mxu0 0
        %6811 = vmatpush1.bf16.msra.mxu0 0
        %6812 = vmatprep.subr.bf16.mxu0 0
        %6813 = vmatpush1.bf16.msra.mxu0 0
        %6814 = vmatprep.subr.bf16.mxu0 0
        %6815 = vmatpush1.bf16.msra.mxu0 0
        %6816 = vmatprep.subr.bf16.mxu0 0
        %6817 = vmatpush1.bf16.msra.mxu0 0
        %6818 = vmatprep.subr.bf16.mxu0 0
        %6819 = vmatpush1.bf16.msra.mxu0 0
        %6820 = vmatprep.subr.bf16.mxu0 0
        %6821 = vmatpush1.bf16.msra.mxu0 0
        %6822 = vmatprep.subr.bf16.mxu0 0
        %6823 = vmatpush1.bf16.msra.mxu0 0
        %6824 = vmatprep.mubr.bf16.mxu0 0
        %6825 = vmatmul.mubr.bf16.gmra.mrb[0].mxu0 %v6786
        %v6826 = vpop.f32.mrb[0].mxu0
        %v6827 = vadd.f32 0.0, %v6826
        %v6828 = vpop.f32.mrb[0].mxu0
        %v6829 = vadd.f32 0.0, %v6828
        %v6830 = vpop.f32.mrb[0].mxu0
        %v6831 = vpop.f32.mrb[0].mxu0
        %6832 = vdwg.mxu0
        %v6833 = vadd.f32 %v6505, %v6827
        %v6834 = vadd.f32 %v6506, %v6829
        %6835 = vrot.lane.b32.xlu0 %v6125, 126
        %v6836 = vpop.permute.xlu0 %6835
        %6837 = vrot.lane.b32.xlu0 %v6134, 126
        %v6838 = vpop.permute.xlu0 %6837
        %6839 = vrot.lane.b32.xlu0 %v6145, 126
        %v6840 = vpop.permute.xlu0 %6839
        %6841 = vrot.lane.b32.xlu0 %v6154, 126
        %v6842 = vpop.permute.xlu0 %6841
        %6843 = vrot.lane.b32.xlu0 %v6165, 126
        %v6844 = vpop.permute.xlu0 %6843
        %6845 = vrot.lane.b32.xlu0 %v6174, 126
        %v6846 = vpop.permute.xlu0 %6845
        %6847 = vrot.lane.b32.xlu0 %v6185, 126
        %v6848 = vpop.permute.xlu0 %6847
        %6849 = vrot.lane.b32.xlu0 %v6194, 126
        %v6850 = vpop.permute.xlu0 %6849
        %v6853 = vpack.i.b16 %v6840, %v6836
        %v6854 = vshrl.u32 %v6836, 16
        %v6855 = vshrl.u32 %v6840, 16
        %v6856 = vpack.i.b16 %v6855, %v6854
        %v6859 = vpack.i.b16 %v6848, %v6844
        %v6860 = vshrl.u32 %v6844, 16
        %v6861 = vshrl.u32 %v6848, 16
        %v6862 = vpack.i.b16 %v6861, %v6860
        %v6865 = vpack.i.b16 %v6842, %v6838
        %v6866 = vshrl.u32 %v6838, 16
        %v6867 = vshrl.u32 %v6842, 16
        %v6868 = vpack.i.b16 %v6867, %v6866
        %v6871 = vpack.i.b16 %v6850, %v6846
        %v6872 = vshrl.u32 %v6846, 16
        %v6873 = vshrl.u32 %v6850, 16
        %v6874 = vpack.i.b16 %v6873, %v6872
        %v6877 = vunpack.c.l.s4 1983009808
        %v6878 = vunpack.c.0.s8 %v6877
        %v6879 = vlaneseq
        %v6880 = vshrl.u32 %v6879, 7
        %v6881 = vsub.s32 %v6878, %v6880
        %v6882 = vrot.slane %v6853, %v6881
        %v6885 = vunpack.c.l.s4 1983009808
        %v6886 = vunpack.c.0.s8 %v6885
        %v6887 = vlaneseq
        %v6888 = vshrl.u32 %v6887, 7
        %v6889 = vsub.s32 %v6886, %v6888
        %v6890 = vrot.slane %v6859, %v6889
        %v6891 = vcombine.low %v6882, %v6890
        %v6892 = vcombine.high %v6882, %v6890
        %v6894 = vunpack.c.l.s4 1934713408
        %v6895 = vunpack.c.0.s8 %v6894
        %v6896 = vlaneseq
        %v6897 = vshrl.u32 %v6896, 7
        %v6898 = vsub.s32 %v6895, %v6897
        %v6899 = vrot.slane %v6891, %v6898
        %v6901 = vunpack.c.l.s4 1934713408
        %v6902 = vunpack.c.0.s8 %v6901
        %v6903 = vlaneseq
        %v6904 = vshrl.u32 %v6903, 7
        %v6905 = vsub.s32 %v6902, %v6904
        %v6906 = vrot.slane %v6892, %v6905
        %v6907 = vcombine.high %v6899, 0
        %v6908 = vcombine.high %v6906, 0
        %v6911 = vunpack.c.l.s4 1983009808
        %v6912 = vunpack.c.0.s8 %v6911
        %v6913 = vlaneseq
        %v6914 = vshrl.u32 %v6913, 7
        %v6915 = vsub.s32 %v6912, %v6914
        %v6916 = vrot.slane %v6856, %v6915
        %v6919 = vunpack.c.l.s4 1983009808
        %v6920 = vunpack.c.0.s8 %v6919
        %v6921 = vlaneseq
        %v6922 = vshrl.u32 %v6921, 7
        %v6923 = vsub.s32 %v6920, %v6922
        %v6924 = vrot.slane %v6862, %v6923
        %v6925 = vcombine.low %v6916, %v6924
        %v6926 = vcombine.high %v6916, %v6924
        %v6928 = vunpack.c.l.s4 1934713408
        %v6929 = vunpack.c.0.s8 %v6928
        %v6930 = vlaneseq
        %v6931 = vshrl.u32 %v6930, 7
        %v6932 = vsub.s32 %v6929, %v6931
        %v6933 = vrot.slane %v6925, %v6932
        %v6935 = vunpack.c.l.s4 1934713408
        %v6936 = vunpack.c.0.s8 %v6935
        %v6937 = vlaneseq
        %v6938 = vshrl.u32 %v6937, 7
        %v6939 = vsub.s32 %v6936, %v6938
        %v6940 = vrot.slane %v6926, %v6939
        %v6941 = vcombine.high %v6933, 0
        %v6942 = vcombine.high %v6940, 0
        %v6945 = vunpack.c.l.s4 1983009808
        %v6946 = vunpack.c.0.s8 %v6945
        %v6947 = vlaneseq
        %v6948 = vshrl.u32 %v6947, 7
        %v6949 = vsub.s32 %v6946, %v6948
        %v6950 = vrot.slane %v6865, %v6949
        %v6953 = vunpack.c.l.s4 1983009808
        %v6954 = vunpack.c.0.s8 %v6953
        %v6955 = vlaneseq
        %v6956 = vshrl.u32 %v6955, 7
        %v6957 = vsub.s32 %v6954, %v6956
        %v6958 = vrot.slane %v6871, %v6957
        %v6959 = vcombine.low %v6950, %v6958
        %v6960 = vcombine.high %v6950, %v6958
        %v6962 = vunpack.c.l.s4 1934713408
        %v6963 = vunpack.c.0.s8 %v6962
        %v6964 = vlaneseq
        %v6965 = vshrl.u32 %v6964, 7
        %v6966 = vsub.s32 %v6963, %v6965
        %v6967 = vrot.slane %v6959, %v6966
        %v6969 = vunpack.c.l.s4 1934713408
        %v6970 = vunpack.c.0.s8 %v6969
        %v6971 = vlaneseq
        %v6972 = vshrl.u32 %v6971, 7
        %v6973 = vsub.s32 %v6970, %v6972
        %v6974 = vrot.slane %v6960, %v6973
        %v6975 = vcombine.high %v6967, 0
        %v6976 = vcombine.high %v6974, 0
        %v6979 = vunpack.c.l.s4 1983009808
        %v6980 = vunpack.c.0.s8 %v6979
        %v6981 = vlaneseq
        %v6982 = vshrl.u32 %v6981, 7
        %v6983 = vsub.s32 %v6980, %v6982
        %v6984 = vrot.slane %v6868, %v6983
        %v6987 = vunpack.c.l.s4 1983009808
        %v6988 = vunpack.c.0.s8 %v6987
        %v6989 = vlaneseq
        %v6990 = vshrl.u32 %v6989, 7
        %v6991 = vsub.s32 %v6988, %v6990
        %v6992 = vrot.slane %v6874, %v6991
        %v6993 = vcombine.low %v6984, %v6992
        %v6994 = vcombine.high %v6984, %v6992
        %v6996 = vunpack.c.l.s4 1934713408
        %v6997 = vunpack.c.0.s8 %v6996
        %v6998 = vlaneseq
        %v6999 = vshrl.u32 %v6998, 7
        %v7000 = vsub.s32 %v6997, %v6999
        %v7001 = vrot.slane %v6993, %v7000
        %v7003 = vunpack.c.l.s4 1934713408
        %v7004 = vunpack.c.0.s8 %v7003
        %v7005 = vlaneseq
        %v7006 = vshrl.u32 %v7005, 7
        %v7007 = vsub.s32 %v7004, %v7006
        %v7008 = vrot.slane %v6994, %v7007
        %v7009 = vcombine.high %v7001, 0
        %v7010 = vcombine.high %v7008, 0
        %v7012 = vunpack.c.l.b16 %v6933
        %v7013 = vpack.c.b16 %v7012, %v7012
        %7014 = vrot.lane.b32.xlu0 %v7013, 16
        %v7015 = vpop.permute.xlu0 %7014
        %v7017 = vunpack.c.l.b16 %v6907
        %v7018 = vpack.c.b16 %v7017, %v7017
        %7019 = vrot.lane.b32.xlu0 %v7018, 32
        %v7020 = vpop.permute.xlu0 %7019
        %v7022 = vunpack.c.l.b16 %v6941
        %v7023 = vpack.c.b16 %v7022, %v7022
        %7024 = vrot.lane.b32.xlu0 %v7023, 48
        %v7025 = vpop.permute.xlu0 %7024
        %v7027 = vunpack.c.l.b16 %v6906
        %v7028 = vpack.c.b16 %v7027, %v7027
        %7029 = vrot.lane.b32.xlu0 %v7028, 64
        %v7030 = vpop.permute.xlu0 %7029
        %v7032 = vunpack.c.l.b16 %v6940
        %v7033 = vpack.c.b16 %v7032, %v7032
        %7034 = vrot.lane.b32.xlu0 %v7033, 80
        %v7035 = vpop.permute.xlu0 %7034
        %v7037 = vunpack.c.l.b16 %v6908
        %v7038 = vpack.c.b16 %v7037, %v7037
        %7039 = vrot.lane.b32.xlu0 %v7038, 96
        %v7040 = vpop.permute.xlu0 %7039
        %v7042 = vunpack.c.l.b16 %v6942
        %v7043 = vpack.c.b16 %v7042, %v7042
        %7044 = vrot.lane.b32.xlu0 %v7043, 112
        %v7045 = vpop.permute.xlu0 %7044
        %v7047 = vunpack.c.l.b16 %v7001
        %v7048 = vpack.c.b16 %v7047, %v7047
        %7049 = vrot.lane.b32.xlu0 %v7048, 16
        %v7050 = vpop.permute.xlu0 %7049
        %v7052 = vunpack.c.l.b16 %v6975
        %v7053 = vpack.c.b16 %v7052, %v7052
        %7054 = vrot.lane.b32.xlu0 %v7053, 32
        %v7055 = vpop.permute.xlu0 %7054
        %v7057 = vunpack.c.l.b16 %v7009
        %v7058 = vpack.c.b16 %v7057, %v7057
        %7059 = vrot.lane.b32.xlu0 %v7058, 48
        %v7060 = vpop.permute.xlu0 %7059
        %v7062 = vunpack.c.l.b16 %v6974
        %v7063 = vpack.c.b16 %v7062, %v7062
        %7064 = vrot.lane.b32.xlu0 %v7063, 64
        %v7065 = vpop.permute.xlu0 %7064
        %v7067 = vunpack.c.l.b16 %v7008
        %v7068 = vpack.c.b16 %v7067, %v7067
        %7069 = vrot.lane.b32.xlu0 %v7068, 80
        %v7070 = vpop.permute.xlu0 %7069
        %v7072 = vunpack.c.l.b16 %v6976
        %v7073 = vpack.c.b16 %v7072, %v7072
        %7074 = vrot.lane.b32.xlu0 %v7073, 96
        %v7075 = vpop.permute.xlu0 %7074
        %v7077 = vunpack.c.l.b16 %v7010
        %v7078 = vpack.c.b16 %v7077, %v7077
        %7079 = vrot.lane.b32.xlu0 %v7078, 112
        %v7080 = vpop.permute.xlu0 %7079
        %v7083 = vsel %vm1504, %v6899, %v7015
        %v7085 = vsel %vm1508, %v7083, %v7020
        %v7087 = vsel %vm1511, %v7085, %v7025
        %v7089 = vsel %vm1514, %v7087, %v7030
        %v7091 = vsel %vm1517, %v7089, %v7035
        %v7093 = vsel %vm1520, %v7091, %v7040
        %v7095 = vsel %vm1523, %v7093, %v7045
        %v7098 = vsel %vm1504, %v6967, %v7050
        %v7100 = vsel %vm1508, %v7098, %v7055
        %v7102 = vsel %vm1511, %v7100, %v7060
        %v7104 = vsel %vm1514, %v7102, %v7065
        %v7106 = vsel %vm1517, %v7104, %v7070
        %v7108 = vsel %vm1520, %v7106, %v7075
        %v7110 = vsel %vm1523, %v7108, %v7080
        %7111 = vrot.lane.b32.xlu0 %v5734, 108
        %v7112 = vpop.permute.xlu0 %7111
        %v7114 = vsel %vm5391, %v7112, 0
        %v7116 = vsel %vm5395, %v7095, 0
        %v7118 = vsel %vm5395, %v7110, 0
        %7120 = vmatprep.subr.bf16.mxu0 %v7118
        %7121 = vmatpush1.bf16.msra.mxu0 %v7116
        %7122 = vmatprep.subr.bf16.mxu0 0
        %7123 = vmatpush1.bf16.msra.mxu0 0
        %7124 = vmatprep.subr.bf16.mxu0 0
        %7125 = vmatpush1.bf16.msra.mxu0 0
        %7126 = vmatprep.subr.bf16.mxu0 0
        %7127 = vmatpush1.bf16.msra.mxu0 0
        %7128 = vmatprep.subr.bf16.mxu0 0
        %7129 = vmatpush1.bf16.msra.mxu0 0
        %7130 = vmatprep.subr.bf16.mxu0 0
        %7131 = vmatpush1.bf16.msra.mxu0 0
        %7132 = vmatprep.subr.bf16.mxu0 0
        %7133 = vmatpush1.bf16.msra.mxu0 0
        %7134 = vmatprep.subr.bf16.mxu0 0
        %7135 = vmatpush1.bf16.msra.mxu0 0
        %7136 = vmatprep.subr.bf16.mxu0 0
        %7137 = vmatpush1.bf16.msra.mxu0 0
        %7138 = vmatprep.subr.bf16.mxu0 0
        %7139 = vmatpush1.bf16.msra.mxu0 0
        %7140 = vmatprep.subr.bf16.mxu0 0
        %7141 = vmatpush1.bf16.msra.mxu0 0
        %7142 = vmatprep.subr.bf16.mxu0 0
        %7143 = vmatpush1.bf16.msra.mxu0 0
        %7144 = vmatprep.subr.bf16.mxu0 0
        %7145 = vmatpush1.bf16.msra.mxu0 0
        %7146 = vmatprep.subr.bf16.mxu0 0
        %7147 = vmatpush1.bf16.msra.mxu0 0
        %7148 = vmatprep.subr.bf16.mxu0 0
        %7149 = vmatpush1.bf16.msra.mxu0 0
        %7150 = vmatprep.subr.bf16.mxu0 0
        %7151 = vmatpush1.bf16.msra.mxu0 0
        %7152 = vmatprep.mubr.bf16.mxu0 0
        %7153 = vmatmul.mubr.bf16.gmra.mrb[0].mxu0 %v7114
        %v7154 = vpop.f32.mrb[0].mxu0
        %v7155 = vadd.f32 0.0, %v7154
        %v7156 = vpop.f32.mrb[0].mxu0
        %v7157 = vadd.f32 0.0, %v7156
        %v7158 = vpop.f32.mrb[0].mxu0
        %v7159 = vpop.f32.mrb[0].mxu0
        %7160 = vdwg.mxu0
        %v7161 = vadd.f32 %v6833, %v7155
        %v7162 = vadd.f32 %v6834, %v7157
        %v7167 = vrot.slane %v5112, 5
        %v7168 = vrot.slane %v7167, 4
        %v7169 = vrot.slane %v5113, 5
        %v7170 = vsel %vm3639, %v7168, %v7169
        %v7171 = vrot.slane %v7169, 4
        %v7172 = vrot.slane %v5114, 5
        %v7173 = vsel %vm3639, %v7171, %v7172
        %v7174 = vrot.slane %v5115, 5
        %v7175 = vrot.slane %v7174, 4
        %v7176 = vrot.slane %v5116, 5
        %v7177 = vsel %vm3639, %v7175, %v7176
        %v7178 = vrot.slane %v7176, 4
        %v7179 = vrot.slane %v5117, 5
        %v7180 = vsel %vm3639, %v7178, %v7179
        %v7181 = vrot.slane %v5118, 5
        %v7182 = vrot.slane %v7181, 4
        %v7183 = vrot.slane %v5119, 5
        %v7184 = vsel %vm3639, %v7182, %v7183
        %v7185 = vrot.slane %v7183, 4
        %v7186 = vrot.slane %v5120, 5
        %v7187 = vsel %vm3639, %v7185, %v7186
        %v7188 = vrot.slane %v5121, 5
        %v7189 = vrot.slane %v7188, 4
        %v7190 = vrot.slane %v5122, 5
        %v7191 = vsel %vm3639, %v7189, %v7190
        %v7192 = vrot.slane %v7190, 4
        %v7193 = vrot.slane %v5123, 5
        %v7194 = vsel %vm3639, %v7192, %v7193
        %v7197 = vpack.i.b16 %v7177, %v7170
        %v7198 = vshrl.u32 %v7170, 16
        %v7199 = vshrl.u32 %v7177, 16
        %v7200 = vpack.i.b16 %v7199, %v7198
        %v7203 = vpack.i.b16 %v7191, %v7184
        %v7204 = vshrl.u32 %v7184, 16
        %v7205 = vshrl.u32 %v7191, 16
        %v7206 = vpack.i.b16 %v7205, %v7204
        %v7209 = vpack.i.b16 %v7180, %v7173
        %v7210 = vshrl.u32 %v7173, 16
        %v7211 = vshrl.u32 %v7180, 16
        %v7212 = vpack.i.b16 %v7211, %v7210
        %v7215 = vpack.i.b16 %v7194, %v7187
        %v7216 = vshrl.u32 %v7187, 16
        %v7217 = vshrl.u32 %v7194, 16
        %v7218 = vpack.i.b16 %v7217, %v7216
        %v7221 = vunpack.c.l.s4 1983009808
        %v7222 = vunpack.c.0.s8 %v7221
        %v7223 = vlaneseq
        %v7224 = vshrl.u32 %v7223, 7
        %v7225 = vsub.s32 %v7222, %v7224
        %v7226 = vrot.slane %v7197, %v7225
        %v7229 = vunpack.c.l.s4 1983009808
        %v7230 = vunpack.c.0.s8 %v7229
        %v7231 = vlaneseq
        %v7232 = vshrl.u32 %v7231, 7
        %v7233 = vsub.s32 %v7230, %v7232
        %v7234 = vrot.slane %v7203, %v7233
        %v7235 = vcombine.low %v7226, %v7234
        %v7236 = vcombine.high %v7226, %v7234
        %v7238 = vunpack.c.l.s4 1934713408
        %v7239 = vunpack.c.0.s8 %v7238
        %v7240 = vlaneseq
        %v7241 = vshrl.u32 %v7240, 7
        %v7242 = vsub.s32 %v7239, %v7241
        %v7243 = vrot.slane %v7235, %v7242
        %v7245 = vunpack.c.l.s4 1934713408
        %v7246 = vunpack.c.0.s8 %v7245
        %v7247 = vlaneseq
        %v7248 = vshrl.u32 %v7247, 7
        %v7249 = vsub.s32 %v7246, %v7248
        %v7250 = vrot.slane %v7236, %v7249
        %v7251 = vcombine.high %v7243, 0
        %v7252 = vcombine.high %v7250, 0
        %v7255 = vunpack.c.l.s4 1983009808
        %v7256 = vunpack.c.0.s8 %v7255
        %v7257 = vlaneseq
        %v7258 = vshrl.u32 %v7257, 7
        %v7259 = vsub.s32 %v7256, %v7258
        %v7260 = vrot.slane %v7200, %v7259
        %v7263 = vunpack.c.l.s4 1983009808
        %v7264 = vunpack.c.0.s8 %v7263
        %v7265 = vlaneseq
        %v7266 = vshrl.u32 %v7265, 7
        %v7267 = vsub.s32 %v7264, %v7266
        %v7268 = vrot.slane %v7206, %v7267
        %v7269 = vcombine.low %v7260, %v7268
        %v7270 = vcombine.high %v7260, %v7268
        %v7272 = vunpack.c.l.s4 1934713408
        %v7273 = vunpack.c.0.s8 %v7272
        %v7274 = vlaneseq
        %v7275 = vshrl.u32 %v7274, 7
        %v7276 = vsub.s32 %v7273, %v7275
        %v7277 = vrot.slane %v7269, %v7276
        %v7279 = vunpack.c.l.s4 1934713408
        %v7280 = vunpack.c.0.s8 %v7279
        %v7281 = vlaneseq
        %v7282 = vshrl.u32 %v7281, 7
        %v7283 = vsub.s32 %v7280, %v7282
        %v7284 = vrot.slane %v7270, %v7283
        %v7285 = vcombine.high %v7277, 0
        %v7286 = vcombine.high %v7284, 0
        %v7289 = vunpack.c.l.s4 1983009808
        %v7290 = vunpack.c.0.s8 %v7289
        %v7291 = vlaneseq
        %v7292 = vshrl.u32 %v7291, 7
        %v7293 = vsub.s32 %v7290, %v7292
        %v7294 = vrot.slane %v7209, %v7293
        %v7297 = vunpack.c.l.s4 1983009808
        %v7298 = vunpack.c.0.s8 %v7297
        %v7299 = vlaneseq
        %v7300 = vshrl.u32 %v7299, 7
        %v7301 = vsub.s32 %v7298, %v7300
        %v7302 = vrot.slane %v7215, %v7301
        %v7303 = vcombine.low %v7294, %v7302
        %v7304 = vcombine.high %v7294, %v7302
        %v7306 = vunpack.c.l.s4 1934713408
        %v7307 = vunpack.c.0.s8 %v7306
        %v7308 = vlaneseq
        %v7309 = vshrl.u32 %v7308, 7
        %v7310 = vsub.s32 %v7307, %v7309
        %v7311 = vrot.slane %v7303, %v7310
        %v7313 = vunpack.c.l.s4 1934713408
        %v7314 = vunpack.c.0.s8 %v7313
        %v7315 = vlaneseq
        %v7316 = vshrl.u32 %v7315, 7
        %v7317 = vsub.s32 %v7314, %v7316
        %v7318 = vrot.slane %v7304, %v7317
        %v7319 = vcombine.high %v7311, 0
        %v7320 = vcombine.high %v7318, 0
        %v7323 = vunpack.c.l.s4 1983009808
        %v7324 = vunpack.c.0.s8 %v7323
        %v7325 = vlaneseq
        %v7326 = vshrl.u32 %v7325, 7
        %v7327 = vsub.s32 %v7324, %v7326
        %v7328 = vrot.slane %v7212, %v7327
        %v7331 = vunpack.c.l.s4 1983009808
        %v7332 = vunpack.c.0.s8 %v7331
        %v7333 = vlaneseq
        %v7334 = vshrl.u32 %v7333, 7
        %v7335 = vsub.s32 %v7332, %v7334
        %v7336 = vrot.slane %v7218, %v7335
        %v7337 = vcombine.low %v7328, %v7336
        %v7338 = vcombine.high %v7328, %v7336
        %v7340 = vunpack.c.l.s4 1934713408
        %v7341 = vunpack.c.0.s8 %v7340
        %v7342 = vlaneseq
        %v7343 = vshrl.u32 %v7342, 7
        %v7344 = vsub.s32 %v7341, %v7343
        %v7345 = vrot.slane %v7337, %v7344
        %v7347 = vunpack.c.l.s4 1934713408
        %v7348 = vunpack.c.0.s8 %v7347
        %v7349 = vlaneseq
        %v7350 = vshrl.u32 %v7349, 7
        %v7351 = vsub.s32 %v7348, %v7350
        %v7352 = vrot.slane %v7338, %v7351
        %v7353 = vcombine.high %v7345, 0
        %v7354 = vcombine.high %v7352, 0
        %v7356 = vunpack.c.l.b16 %v7277
        %v7357 = vpack.c.b16 %v7356, %v7356
        %7358 = vrot.lane.b32.xlu0 %v7357, 16
        %v7359 = vpop.permute.xlu0 %7358
        %v7361 = vunpack.c.l.b16 %v7251
        %v7362 = vpack.c.b16 %v7361, %v7361
        %7363 = vrot.lane.b32.xlu0 %v7362, 32
        %v7364 = vpop.permute.xlu0 %7363
        %v7366 = vunpack.c.l.b16 %v7285
        %v7367 = vpack.c.b16 %v7366, %v7366
        %7368 = vrot.lane.b32.xlu0 %v7367, 48
        %v7369 = vpop.permute.xlu0 %7368
        %v7371 = vunpack.c.l.b16 %v7250
        %v7372 = vpack.c.b16 %v7371, %v7371
        %7373 = vrot.lane.b32.xlu0 %v7372, 64
        %v7374 = vpop.permute.xlu0 %7373
        %v7376 = vunpack.c.l.b16 %v7284
        %v7377 = vpack.c.b16 %v7376, %v7376
        %7378 = vrot.lane.b32.xlu0 %v7377, 80
        %v7379 = vpop.permute.xlu0 %7378
        %v7381 = vunpack.c.l.b16 %v7252
        %v7382 = vpack.c.b16 %v7381, %v7381
        %7383 = vrot.lane.b32.xlu0 %v7382, 96
        %v7384 = vpop.permute.xlu0 %7383
        %v7386 = vunpack.c.l.b16 %v7286
        %v7387 = vpack.c.b16 %v7386, %v7386
        %7388 = vrot.lane.b32.xlu0 %v7387, 112
        %v7389 = vpop.permute.xlu0 %7388
        %v7391 = vunpack.c.l.b16 %v7345
        %v7392 = vpack.c.b16 %v7391, %v7391
        %7393 = vrot.lane.b32.xlu0 %v7392, 16
        %v7394 = vpop.permute.xlu0 %7393
        %v7396 = vunpack.c.l.b16 %v7319
        %v7397 = vpack.c.b16 %v7396, %v7396
        %7398 = vrot.lane.b32.xlu0 %v7397, 32
        %v7399 = vpop.permute.xlu0 %7398
        %v7401 = vunpack.c.l.b16 %v7353
        %v7402 = vpack.c.b16 %v7401, %v7401
        %7403 = vrot.lane.b32.xlu0 %v7402, 48
        %v7404 = vpop.permute.xlu0 %7403
        %v7406 = vunpack.c.l.b16 %v7318
        %v7407 = vpack.c.b16 %v7406, %v7406
        %7408 = vrot.lane.b32.xlu0 %v7407, 64
        %v7409 = vpop.permute.xlu0 %7408
        %v7411 = vunpack.c.l.b16 %v7352
        %v7412 = vpack.c.b16 %v7411, %v7411
        %7413 = vrot.lane.b32.xlu0 %v7412, 80
        %v7414 = vpop.permute.xlu0 %7413
        %v7416 = vunpack.c.l.b16 %v7320
        %v7417 = vpack.c.b16 %v7416, %v7416
        %7418 = vrot.lane.b32.xlu0 %v7417, 96
        %v7419 = vpop.permute.xlu0 %7418
        %v7421 = vunpack.c.l.b16 %v7354
        %v7422 = vpack.c.b16 %v7421, %v7421
        %7423 = vrot.lane.b32.xlu0 %v7422, 112
        %v7424 = vpop.permute.xlu0 %7423
        %v7427 = vsel %vm1504, %v7243, %v7359
        %v7429 = vsel %vm1508, %v7427, %v7364
        %v7431 = vsel %vm1511, %v7429, %v7369
        %v7433 = vsel %vm1514, %v7431, %v7374
        %v7435 = vsel %vm1517, %v7433, %v7379
        %v7437 = vsel %vm1520, %v7435, %v7384
        %v7439 = vsel %vm1523, %v7437, %v7389
        %v7442 = vsel %vm1504, %v7311, %v7394
        %v7444 = vsel %vm1508, %v7442, %v7399
        %v7446 = vsel %vm1511, %v7444, %v7404
        %v7448 = vsel %vm1514, %v7446, %v7409
        %v7450 = vsel %vm1517, %v7448, %v7414
        %v7452 = vsel %vm1520, %v7450, %v7419
        %v7454 = vsel %vm1523, %v7452, %v7424
        %7455 = vrot.lane.b32.xlu0 %v5734, 104
        %v7456 = vpop.permute.xlu0 %7455
        %v7458 = vsel %vm5391, %v7456, 0
        %v7460 = vsel %vm5395, %v7439, 0
        %v7462 = vsel %vm5395, %v7454, 0
        %7464 = vmatprep.subr.bf16.mxu0 %v7462
        %7465 = vmatpush1.bf16.msra.mxu0 %v7460
        %7466 = vmatprep.subr.bf16.mxu0 0
        %7467 = vmatpush1.bf16.msra.mxu0 0
        %7468 = vmatprep.subr.bf16.mxu0 0
        %7469 = vmatpush1.bf16.msra.mxu0 0
        %7470 = vmatprep.subr.bf16.mxu0 0
        %7471 = vmatpush1.bf16.msra.mxu0 0
        %7472 = vmatprep.subr.bf16.mxu0 0
        %7473 = vmatpush1.bf16.msra.mxu0 0
        %7474 = vmatprep.subr.bf16.mxu0 0
        %7475 = vmatpush1.bf16.msra.mxu0 0
        %7476 = vmatprep.subr.bf16.mxu0 0
        %7477 = vmatpush1.bf16.msra.mxu0 0
        %7478 = vmatprep.subr.bf16.mxu0 0
        %7479 = vmatpush1.bf16.msra.mxu0 0
        %7480 = vmatprep.subr.bf16.mxu0 0
        %7481 = vmatpush1.bf16.msra.mxu0 0
        %7482 = vmatprep.subr.bf16.mxu0 0
        %7483 = vmatpush1.bf16.msra.mxu0 0
        %7484 = vmatprep.subr.bf16.mxu0 0
        %7485 = vmatpush1.bf16.msra.mxu0 0
        %7486 = vmatprep.subr.bf16.mxu0 0
        %7487 = vmatpush1.bf16.msra.mxu0 0
        %7488 = vmatprep.subr.bf16.mxu0 0
        %7489 = vmatpush1.bf16.msra.mxu0 0
        %7490 = vmatprep.subr.bf16.mxu0 0
        %7491 = vmatpush1.bf16.msra.mxu0 0
        %7492 = vmatprep.subr.bf16.mxu0 0
        %7493 = vmatpush1.bf16.msra.mxu0 0
        %7494 = vmatprep.subr.bf16.mxu0 0
        %7495 = vmatpush1.bf16.msra.mxu0 0
        %7496 = vmatprep.mubr.bf16.mxu0 0
        %7497 = vmatmul.mubr.bf16.gmra.mrb[0].mxu0 %v7458
        %v7498 = vpop.f32.mrb[0].mxu0
        %v7499 = vadd.f32 0.0, %v7498
        %v7500 = vpop.f32.mrb[0].mxu0
        %v7501 = vadd.f32 0.0, %v7500
        %v7502 = vpop.f32.mrb[0].mxu0
        %v7503 = vpop.f32.mrb[0].mxu0
        %7504 = vdwg.mxu0
        %v7505 = vadd.f32 %v7161, %v7499
        %v7506 = vadd.f32 %v7162, %v7501
        %7507 = vrot.lane.b32.xlu0 %v7170, 127
        %v7508 = vpop.permute.xlu0 %7507
        %7509 = vrot.lane.b32.xlu0 %v7173, 127
        %v7510 = vpop.permute.xlu0 %7509
        %7511 = vrot.lane.b32.xlu0 %v7177, 127
        %v7512 = vpop.permute.xlu0 %7511
        %7513 = vrot.lane.b32.xlu0 %v7180, 127
        %v7514 = vpop.permute.xlu0 %7513
        %7515 = vrot.lane.b32.xlu0 %v7184, 127
        %v7516 = vpop.permute.xlu0 %7515
        %7517 = vrot.lane.b32.xlu0 %v7187, 127
        %v7518 = vpop.permute.xlu0 %7517
        %7519 = vrot.lane.b32.xlu0 %v7191, 127
        %v7520 = vpop.permute.xlu0 %7519
        %7521 = vrot.lane.b32.xlu0 %v7194, 127
        %v7522 = vpop.permute.xlu0 %7521
        %v7525 = vpack.i.b16 %v7512, %v7508
        %v7526 = vshrl.u32 %v7508, 16
        %v7527 = vshrl.u32 %v7512, 16
        %v7528 = vpack.i.b16 %v7527, %v7526
        %v7531 = vpack.i.b16 %v7520, %v7516
        %v7532 = vshrl.u32 %v7516, 16
        %v7533 = vshrl.u32 %v7520, 16
        %v7534 = vpack.i.b16 %v7533, %v7532
        %v7537 = vpack.i.b16 %v7514, %v7510
        %v7538 = vshrl.u32 %v7510, 16
        %v7539 = vshrl.u32 %v7514, 16
        %v7540 = vpack.i.b16 %v7539, %v7538
        %v7543 = vpack.i.b16 %v7522, %v7518
        %v7544 = vshrl.u32 %v7518, 16
        %v7545 = vshrl.u32 %v7522, 16
        %v7546 = vpack.i.b16 %v7545, %v7544
        %v7549 = vunpack.c.l.s4 1983009808
        %v7550 = vunpack.c.0.s8 %v7549
        %v7551 = vlaneseq
        %v7552 = vshrl.u32 %v7551, 7
        %v7553 = vsub.s32 %v7550, %v7552
        %v7554 = vrot.slane %v7525, %v7553
        %v7557 = vunpack.c.l.s4 1983009808
        %v7558 = vunpack.c.0.s8 %v7557
        %v7559 = vlaneseq
        %v7560 = vshrl.u32 %v7559, 7
        %v7561 = vsub.s32 %v7558, %v7560
        %v7562 = vrot.slane %v7531, %v7561
        %v7563 = vcombine.low %v7554, %v7562
        %v7564 = vcombine.high %v7554, %v7562
        %v7566 = vunpack.c.l.s4 1934713408
        %v7567 = vunpack.c.0.s8 %v7566
        %v7568 = vlaneseq
        %v7569 = vshrl.u32 %v7568, 7
        %v7570 = vsub.s32 %v7567, %v7569
        %v7571 = vrot.slane %v7563, %v7570
        %v7573 = vunpack.c.l.s4 1934713408
        %v7574 = vunpack.c.0.s8 %v7573
        %v7575 = vlaneseq
        %v7576 = vshrl.u32 %v7575, 7
        %v7577 = vsub.s32 %v7574, %v7576
        %v7578 = vrot.slane %v7564, %v7577
        %v7579 = vcombine.high %v7571, 0
        %v7580 = vcombine.high %v7578, 0
        %v7583 = vunpack.c.l.s4 1983009808
        %v7584 = vunpack.c.0.s8 %v7583
        %v7585 = vlaneseq
        %v7586 = vshrl.u32 %v7585, 7
        %v7587 = vsub.s32 %v7584, %v7586
        %v7588 = vrot.slane %v7528, %v7587
        %v7591 = vunpack.c.l.s4 1983009808
        %v7592 = vunpack.c.0.s8 %v7591
        %v7593 = vlaneseq
        %v7594 = vshrl.u32 %v7593, 7
        %v7595 = vsub.s32 %v7592, %v7594
        %v7596 = vrot.slane %v7534, %v7595
        %v7597 = vcombine.low %v7588, %v7596
        %v7598 = vcombine.high %v7588, %v7596
        %v7600 = vunpack.c.l.s4 1934713408
        %v7601 = vunpack.c.0.s8 %v7600
        %v7602 = vlaneseq
        %v7603 = vshrl.u32 %v7602, 7
        %v7604 = vsub.s32 %v7601, %v7603
        %v7605 = vrot.slane %v7597, %v7604
        %v7607 = vunpack.c.l.s4 1934713408
        %v7608 = vunpack.c.0.s8 %v7607
        %v7609 = vlaneseq
        %v7610 = vshrl.u32 %v7609, 7
        %v7611 = vsub.s32 %v7608, %v7610
        %v7612 = vrot.slane %v7598, %v7611
        %v7613 = vcombine.high %v7605, 0
        %v7614 = vcombine.high %v7612, 0
        %v7617 = vunpack.c.l.s4 1983009808
        %v7618 = vunpack.c.0.s8 %v7617
        %v7619 = vlaneseq
        %v7620 = vshrl.u32 %v7619, 7
        %v7621 = vsub.s32 %v7618, %v7620
        %v7622 = vrot.slane %v7537, %v7621
        %v7625 = vunpack.c.l.s4 1983009808
        %v7626 = vunpack.c.0.s8 %v7625
        %v7627 = vlaneseq
        %v7628 = vshrl.u32 %v7627, 7
        %v7629 = vsub.s32 %v7626, %v7628
        %v7630 = vrot.slane %v7543, %v7629
        %v7631 = vcombine.low %v7622, %v7630
        %v7632 = vcombine.high %v7622, %v7630
        %v7634 = vunpack.c.l.s4 1934713408
        %v7635 = vunpack.c.0.s8 %v7634
        %v7636 = vlaneseq
        %v7637 = vshrl.u32 %v7636, 7
        %v7638 = vsub.s32 %v7635, %v7637
        %v7639 = vrot.slane %v7631, %v7638
        %v7641 = vunpack.c.l.s4 1934713408
        %v7642 = vunpack.c.0.s8 %v7641
        %v7643 = vlaneseq
        %v7644 = vshrl.u32 %v7643, 7
        %v7645 = vsub.s32 %v7642, %v7644
        %v7646 = vrot.slane %v7632, %v7645
        %v7647 = vcombine.high %v7639, 0
        %v7648 = vcombine.high %v7646, 0
        %v7651 = vunpack.c.l.s4 1983009808
        %v7652 = vunpack.c.0.s8 %v7651
        %v7653 = vlaneseq
        %v7654 = vshrl.u32 %v7653, 7
        %v7655 = vsub.s32 %v7652, %v7654
        %v7656 = vrot.slane %v7540, %v7655
        %v7659 = vunpack.c.l.s4 1983009808
        %v7660 = vunpack.c.0.s8 %v7659
        %v7661 = vlaneseq
        %v7662 = vshrl.u32 %v7661, 7
        %v7663 = vsub.s32 %v7660, %v7662
        %v7664 = vrot.slane %v7546, %v7663
        %v7665 = vcombine.low %v7656, %v7664
        %v7666 = vcombine.high %v7656, %v7664
        %v7668 = vunpack.c.l.s4 1934713408
        %v7669 = vunpack.c.0.s8 %v7668
        %v7670 = vlaneseq
        %v7671 = vshrl.u32 %v7670, 7
        %v7672 = vsub.s32 %v7669, %v7671
        %v7673 = vrot.slane %v7665, %v7672
        %v7675 = vunpack.c.l.s4 1934713408
        %v7676 = vunpack.c.0.s8 %v7675
        %v7677 = vlaneseq
        %v7678 = vshrl.u32 %v7677, 7
        %v7679 = vsub.s32 %v7676, %v7678
        %v7680 = vrot.slane %v7666, %v7679
        %v7681 = vcombine.high %v7673, 0
        %v7682 = vcombine.high %v7680, 0
        %v7684 = vunpack.c.l.b16 %v7605
        %v7685 = vpack.c.b16 %v7684, %v7684
        %7686 = vrot.lane.b32.xlu0 %v7685, 16
        %v7687 = vpop.permute.xlu0 %7686
        %v7689 = vunpack.c.l.b16 %v7579
        %v7690 = vpack.c.b16 %v7689, %v7689
        %7691 = vrot.lane.b32.xlu0 %v7690, 32
        %v7692 = vpop.permute.xlu0 %7691
        %v7694 = vunpack.c.l.b16 %v7613
        %v7695 = vpack.c.b16 %v7694, %v7694
        %7696 = vrot.lane.b32.xlu0 %v7695, 48
        %v7697 = vpop.permute.xlu0 %7696
        %v7699 = vunpack.c.l.b16 %v7578
        %v7700 = vpack.c.b16 %v7699, %v7699
        %7701 = vrot.lane.b32.xlu0 %v7700, 64
        %v7702 = vpop.permute.xlu0 %7701
        %v7704 = vunpack.c.l.b16 %v7612
        %v7705 = vpack.c.b16 %v7704, %v7704
        %7706 = vrot.lane.b32.xlu0 %v7705, 80
        %v7707 = vpop.permute.xlu0 %7706
        %v7709 = vunpack.c.l.b16 %v7580
        %v7710 = vpack.c.b16 %v7709, %v7709
        %7711 = vrot.lane.b32.xlu0 %v7710, 96
        %v7712 = vpop.permute.xlu0 %7711
        %v7714 = vunpack.c.l.b16 %v7614
        %v7715 = vpack.c.b16 %v7714, %v7714
        %7716 = vrot.lane.b32.xlu0 %v7715, 112
        %v7717 = vpop.permute.xlu0 %7716
        %v7719 = vunpack.c.l.b16 %v7673
        %v7720 = vpack.c.b16 %v7719, %v7719
        %7721 = vrot.lane.b32.xlu0 %v7720, 16
        %v7722 = vpop.permute.xlu0 %7721
        %v7724 = vunpack.c.l.b16 %v7647
        %v7725 = vpack.c.b16 %v7724, %v7724
        %7726 = vrot.lane.b32.xlu0 %v7725, 32
        %v7727 = vpop.permute.xlu0 %7726
        %v7729 = vunpack.c.l.b16 %v7681
        %v7730 = vpack.c.b16 %v7729, %v7729
        %7731 = vrot.lane.b32.xlu0 %v7730, 48
        %v7732 = vpop.permute.xlu0 %7731
        %v7734 = vunpack.c.l.b16 %v7646
        %v7735 = vpack.c.b16 %v7734, %v7734
        %7736 = vrot.lane.b32.xlu0 %v7735, 64
        %v7737 = vpop.permute.xlu0 %7736
        %v7739 = vunpack.c.l.b16 %v7680
        %v7740 = vpack.c.b16 %v7739, %v7739
        %7741 = vrot.lane.b32.xlu0 %v7740, 80
        %v7742 = vpop.permute.xlu0 %7741
        %v7744 = vunpack.c.l.b16 %v7648
        %v7745 = vpack.c.b16 %v7744, %v7744
        %7746 = vrot.lane.b32.xlu0 %v7745, 96
        %v7747 = vpop.permute.xlu0 %7746
        %v7749 = vunpack.c.l.b16 %v7682
        %v7750 = vpack.c.b16 %v7749, %v7749
        %7751 = vrot.lane.b32.xlu0 %v7750, 112
        %v7752 = vpop.permute.xlu0 %7751
        %v7755 = vsel %vm1504, %v7571, %v7687
        %v7757 = vsel %vm1508, %v7755, %v7692
        %v7759 = vsel %vm1511, %v7757, %v7697
        %v7761 = vsel %vm1514, %v7759, %v7702
        %v7763 = vsel %vm1517, %v7761, %v7707
        %v7765 = vsel %vm1520, %v7763, %v7712
        %v7767 = vsel %vm1523, %v7765, %v7717
        %v7770 = vsel %vm1504, %v7639, %v7722
        %v7772 = vsel %vm1508, %v7770, %v7727
        %v7774 = vsel %vm1511, %v7772, %v7732
        %v7776 = vsel %vm1514, %v7774, %v7737
        %v7778 = vsel %vm1517, %v7776, %v7742
        %v7780 = vsel %vm1520, %v7778, %v7747
        %v7782 = vsel %vm1523, %v7780, %v7752
        %7783 = vrot.lane.b32.xlu0 %v5734, 100
        %v7784 = vpop.permute.xlu0 %7783
        %v7786 = vsel %vm5391, %v7784, 0
        %v7788 = vsel %vm5395, %v7767, 0
        %v7790 = vsel %vm5395, %v7782, 0
        %7792 = vmatprep.subr.bf16.mxu0 %v7790
        %7793 = vmatpush1.bf16.msra.mxu0 %v7788
        %7794 = vmatprep.subr.bf16.mxu0 0
        %7795 = vmatpush1.bf16.msra.mxu0 0
        %7796 = vmatprep.subr.bf16.mxu0 0
        %7797 = vmatpush1.bf16.msra.mxu0 0
        %7798 = vmatprep.subr.bf16.mxu0 0
        %7799 = vmatpush1.bf16.msra.mxu0 0
        %7800 = vmatprep.subr.bf16.mxu0 0
        %7801 = vmatpush1.bf16.msra.mxu0 0
        %7802 = vmatprep.subr.bf16.mxu0 0
        %7803 = vmatpush1.bf16.msra.mxu0 0
        %7804 = vmatprep.subr.bf16.mxu0 0
        %7805 = vmatpush1.bf16.msra.mxu0 0
        %7806 = vmatprep.subr.bf16.mxu0 0
        %7807 = vmatpush1.bf16.msra.mxu0 0
        %7808 = vmatprep.subr.bf16.mxu0 0
        %7809 = vmatpush1.bf16.msra.mxu0 0
        %7810 = vmatprep.subr.bf16.mxu0 0
        %7811 = vmatpush1.bf16.msra.mxu0 0
        %7812 = vmatprep.subr.bf16.mxu0 0
        %7813 = vmatpush1.bf16.msra.mxu0 0
        %7814 = vmatprep.subr.bf16.mxu0 0
        %7815 = vmatpush1.bf16.msra.mxu0 0
        %7816 = vmatprep.subr.bf16.mxu0 0
        %7817 = vmatpush1.bf16.msra.mxu0 0
        %7818 = vmatprep.subr.bf16.mxu0 0
        %7819 = vmatpush1.bf16.msra.mxu0 0
        %7820 = vmatprep.subr.bf16.mxu0 0
        %7821 = vmatpush1.bf16.msra.mxu0 0
        %7822 = vmatprep.subr.bf16.mxu0 0
        %7823 = vmatpush1.bf16.msra.mxu0 0
        %7824 = vmatprep.mubr.bf16.mxu0 0
        %7825 = vmatmul.mubr.bf16.gmra.mrb[0].mxu0 %v7786
        %v7826 = vpop.f32.mrb[0].mxu0
        %v7827 = vadd.f32 0.0, %v7826
        %v7828 = vpop.f32.mrb[0].mxu0
        %v7829 = vadd.f32 0.0, %v7828
        %v7830 = vpop.f32.mrb[0].mxu0
        %v7831 = vpop.f32.mrb[0].mxu0
        %7832 = vdwg.mxu0
        %v7833 = vadd.f32 %v7505, %v7827
        %v7834 = vadd.f32 %v7506, %v7829
        %7835 = vrot.lane.b32.xlu0 %v7170, 126
        %v7836 = vpop.permute.xlu0 %7835
        %7837 = vrot.lane.b32.xlu0 %v7173, 126
        %v7838 = vpop.permute.xlu0 %7837
        %7839 = vrot.lane.b32.xlu0 %v7177, 126
        %v7840 = vpop.permute.xlu0 %7839
        %7841 = vrot.lane.b32.xlu0 %v7180, 126
        %v7842 = vpop.permute.xlu0 %7841
        %7843 = vrot.lane.b32.xlu0 %v7184, 126
        %v7844 = vpop.permute.xlu0 %7843
        %7845 = vrot.lane.b32.xlu0 %v7187, 126
        %v7846 = vpop.permute.xlu0 %7845
        %7847 = vrot.lane.b32.xlu0 %v7191, 126
        %v7848 = vpop.permute.xlu0 %7847
        %7849 = vrot.lane.b32.xlu0 %v7194, 126
        %v7850 = vpop.permute.xlu0 %7849
        %v7853 = vpack.i.b16 %v7840, %v7836
        %v7854 = vshrl.u32 %v7836, 16
        %v7855 = vshrl.u32 %v7840, 16
        %v7856 = vpack.i.b16 %v7855, %v7854
        %v7859 = vpack.i.b16 %v7848, %v7844
        %v7860 = vshrl.u32 %v7844, 16
        %v7861 = vshrl.u32 %v7848, 16
        %v7862 = vpack.i.b16 %v7861, %v7860
        %v7865 = vpack.i.b16 %v7842, %v7838
        %v7866 = vshrl.u32 %v7838, 16
        %v7867 = vshrl.u32 %v7842, 16
        %v7868 = vpack.i.b16 %v7867, %v7866
        %v7871 = vpack.i.b16 %v7850, %v7846
        %v7872 = vshrl.u32 %v7846, 16
        %v7873 = vshrl.u32 %v7850, 16
        %v7874 = vpack.i.b16 %v7873, %v7872
        %v7877 = vunpack.c.l.s4 1983009808
        %v7878 = vunpack.c.0.s8 %v7877
        %v7879 = vlaneseq
        %v7880 = vshrl.u32 %v7879, 7
        %v7881 = vsub.s32 %v7878, %v7880
        %v7882 = vrot.slane %v7853, %v7881
        %v7885 = vunpack.c.l.s4 1983009808
        %v7886 = vunpack.c.0.s8 %v7885
        %v7887 = vlaneseq
        %v7888 = vshrl.u32 %v7887, 7
        %v7889 = vsub.s32 %v7886, %v7888
        %v7890 = vrot.slane %v7859, %v7889
        %v7891 = vcombine.low %v7882, %v7890
        %v7892 = vcombine.high %v7882, %v7890
        %v7894 = vunpack.c.l.s4 1934713408
        %v7895 = vunpack.c.0.s8 %v7894
        %v7896 = vlaneseq
        %v7897 = vshrl.u32 %v7896, 7
        %v7898 = vsub.s32 %v7895, %v7897
        %v7899 = vrot.slane %v7891, %v7898
        %v7901 = vunpack.c.l.s4 1934713408
        %v7902 = vunpack.c.0.s8 %v7901
        %v7903 = vlaneseq
        %v7904 = vshrl.u32 %v7903, 7
        %v7905 = vsub.s32 %v7902, %v7904
        %v7906 = vrot.slane %v7892, %v7905
        %v7907 = vcombine.high %v7899, 0
        %v7908 = vcombine.high %v7906, 0
        %v7911 = vunpack.c.l.s4 1983009808
        %v7912 = vunpack.c.0.s8 %v7911
        %v7913 = vlaneseq
        %v7914 = vshrl.u32 %v7913, 7
        %v7915 = vsub.s32 %v7912, %v7914
        %v7916 = vrot.slane %v7856, %v7915
        %v7919 = vunpack.c.l.s4 1983009808
        %v7920 = vunpack.c.0.s8 %v7919
        %v7921 = vlaneseq
        %v7922 = vshrl.u32 %v7921, 7
        %v7923 = vsub.s32 %v7920, %v7922
        %v7924 = vrot.slane %v7862, %v7923
        %v7925 = vcombine.low %v7916, %v7924
        %v7926 = vcombine.high %v7916, %v7924
        %v7928 = vunpack.c.l.s4 1934713408
        %v7929 = vunpack.c.0.s8 %v7928
        %v7930 = vlaneseq
        %v7931 = vshrl.u32 %v7930, 7
        %v7932 = vsub.s32 %v7929, %v7931
        %v7933 = vrot.slane %v7925, %v7932
        %v7935 = vunpack.c.l.s4 1934713408
        %v7936 = vunpack.c.0.s8 %v7935
        %v7937 = vlaneseq
        %v7938 = vshrl.u32 %v7937, 7
        %v7939 = vsub.s32 %v7936, %v7938
        %v7940 = vrot.slane %v7926, %v7939
        %v7941 = vcombine.high %v7933, 0
        %v7942 = vcombine.high %v7940, 0
        %v7945 = vunpack.c.l.s4 1983009808
        %v7946 = vunpack.c.0.s8 %v7945
        %v7947 = vlaneseq
        %v7948 = vshrl.u32 %v7947, 7
        %v7949 = vsub.s32 %v7946, %v7948
        %v7950 = vrot.slane %v7865, %v7949
        %v7953 = vunpack.c.l.s4 1983009808
        %v7954 = vunpack.c.0.s8 %v7953
        %v7955 = vlaneseq
        %v7956 = vshrl.u32 %v7955, 7
        %v7957 = vsub.s32 %v7954, %v7956
        %v7958 = vrot.slane %v7871, %v7957
        %v7959 = vcombine.low %v7950, %v7958
        %v7960 = vcombine.high %v7950, %v7958
        %v7962 = vunpack.c.l.s4 1934713408
        %v7963 = vunpack.c.0.s8 %v7962
        %v7964 = vlaneseq
        %v7965 = vshrl.u32 %v7964, 7
        %v7966 = vsub.s32 %v7963, %v7965
        %v7967 = vrot.slane %v7959, %v7966
        %v7969 = vunpack.c.l.s4 1934713408
        %v7970 = vunpack.c.0.s8 %v7969
        %v7971 = vlaneseq
        %v7972 = vshrl.u32 %v7971, 7
        %v7973 = vsub.s32 %v7970, %v7972
        %v7974 = vrot.slane %v7960, %v7973
        %v7975 = vcombine.high %v7967, 0
        %v7976 = vcombine.high %v7974, 0
        %v7979 = vunpack.c.l.s4 1983009808
        %v7980 = vunpack.c.0.s8 %v7979
        %v7981 = vlaneseq
        %v7982 = vshrl.u32 %v7981, 7
        %v7983 = vsub.s32 %v7980, %v7982
        %v7984 = vrot.slane %v7868, %v7983
        %v7987 = vunpack.c.l.s4 1983009808
        %v7988 = vunpack.c.0.s8 %v7987
        %v7989 = vlaneseq
        %v7990 = vshrl.u32 %v7989, 7
        %v7991 = vsub.s32 %v7988, %v7990
        %v7992 = vrot.slane %v7874, %v7991
        %v7993 = vcombine.low %v7984, %v7992
        %v7994 = vcombine.high %v7984, %v7992
        %v7996 = vunpack.c.l.s4 1934713408
        %v7997 = vunpack.c.0.s8 %v7996
        %v7998 = vlaneseq
        %v7999 = vshrl.u32 %v7998, 7
        %v8000 = vsub.s32 %v7997, %v7999
        %v8001 = vrot.slane %v7993, %v8000
        %v8003 = vunpack.c.l.s4 1934713408
        %v8004 = vunpack.c.0.s8 %v8003
        %v8005 = vlaneseq
        %v8006 = vshrl.u32 %v8005, 7
        %v8007 = vsub.s32 %v8004, %v8006
        %v8008 = vrot.slane %v7994, %v8007
        %v8009 = vcombine.high %v8001, 0
        %v8010 = vcombine.high %v8008, 0
        %v8012 = vunpack.c.l.b16 %v7933
        %v8013 = vpack.c.b16 %v8012, %v8012
        %8014 = vrot.lane.b32.xlu0 %v8013, 16
        %v8015 = vpop.permute.xlu0 %8014
        %v8017 = vunpack.c.l.b16 %v7907
        %v8018 = vpack.c.b16 %v8017, %v8017
        %8019 = vrot.lane.b32.xlu0 %v8018, 32
        %v8020 = vpop.permute.xlu0 %8019
        %v8022 = vunpack.c.l.b16 %v7941
        %v8023 = vpack.c.b16 %v8022, %v8022
        %8024 = vrot.lane.b32.xlu0 %v8023, 48
        %v8025 = vpop.permute.xlu0 %8024
        %v8027 = vunpack.c.l.b16 %v7906
        %v8028 = vpack.c.b16 %v8027, %v8027
        %8029 = vrot.lane.b32.xlu0 %v8028, 64
        %v8030 = vpop.permute.xlu0 %8029
        %v8032 = vunpack.c.l.b16 %v7940
        %v8033 = vpack.c.b16 %v8032, %v8032
        %8034 = vrot.lane.b32.xlu0 %v8033, 80
        %v8035 = vpop.permute.xlu0 %8034
        %v8037 = vunpack.c.l.b16 %v7908
        %v8038 = vpack.c.b16 %v8037, %v8037
        %8039 = vrot.lane.b32.xlu0 %v8038, 96
        %v8040 = vpop.permute.xlu0 %8039
        %v8042 = vunpack.c.l.b16 %v7942
        %v8043 = vpack.c.b16 %v8042, %v8042
        %8044 = vrot.lane.b32.xlu0 %v8043, 112
        %v8045 = vpop.permute.xlu0 %8044
        %v8047 = vunpack.c.l.b16 %v8001
        %v8048 = vpack.c.b16 %v8047, %v8047
        %8049 = vrot.lane.b32.xlu0 %v8048, 16
        %v8050 = vpop.permute.xlu0 %8049
        %v8052 = vunpack.c.l.b16 %v7975
        %v8053 = vpack.c.b16 %v8052, %v8052
        %8054 = vrot.lane.b32.xlu0 %v8053, 32
        %v8055 = vpop.permute.xlu0 %8054
        %v8057 = vunpack.c.l.b16 %v8009
        %v8058 = vpack.c.b16 %v8057, %v8057
        %8059 = vrot.lane.b32.xlu0 %v8058, 48
        %v8060 = vpop.permute.xlu0 %8059
        %v8062 = vunpack.c.l.b16 %v7974
        %v8063 = vpack.c.b16 %v8062, %v8062
        %8064 = vrot.lane.b32.xlu0 %v8063, 64
        %v8065 = vpop.permute.xlu0 %8064
        %v8067 = vunpack.c.l.b16 %v8008
        %v8068 = vpack.c.b16 %v8067, %v8067
        %8069 = vrot.lane.b32.xlu0 %v8068, 80
        %v8070 = vpop.permute.xlu0 %8069
        %v8072 = vunpack.c.l.b16 %v7976
        %v8073 = vpack.c.b16 %v8072, %v8072
        %8074 = vrot.lane.b32.xlu0 %v8073, 96
        %v8075 = vpop.permute.xlu0 %8074
        %v8077 = vunpack.c.l.b16 %v8010
        %v8078 = vpack.c.b16 %v8077, %v8077
        %8079 = vrot.lane.b32.xlu0 %v8078, 112
        %v8080 = vpop.permute.xlu0 %8079
        %v8083 = vsel %vm1504, %v7899, %v8015
        %v8085 = vsel %vm1508, %v8083, %v8020
        %v8087 = vsel %vm1511, %v8085, %v8025
        %v8089 = vsel %vm1514, %v8087, %v8030
        %v8091 = vsel %vm1517, %v8089, %v8035
        %v8093 = vsel %vm1520, %v8091, %v8040
        %v8095 = vsel %vm1523, %v8093, %v8045
        %v8098 = vsel %vm1504, %v7967, %v8050
        %v8100 = vsel %vm1508, %v8098, %v8055
        %v8102 = vsel %vm1511, %v8100, %v8060
        %v8104 = vsel %vm1514, %v8102, %v8065
        %v8106 = vsel %vm1517, %v8104, %v8070
        %v8108 = vsel %vm1520, %v8106, %v8075
        %v8110 = vsel %vm1523, %v8108, %v8080
        %8111 = vrot.lane.b32.xlu0 %v5734, 96
        %v8112 = vpop.permute.xlu0 %8111
        %v8114 = vsel %vm5391, %v8112, 0
        %v8116 = vsel %vm5395, %v8095, 0
        %v8118 = vsel %vm5395, %v8110, 0
        %8120 = vmatprep.subr.bf16.mxu0 %v8118
        %8121 = vmatpush1.bf16.msra.mxu0 %v8116
        %8122 = vmatprep.subr.bf16.mxu0 0
        %8123 = vmatpush1.bf16.msra.mxu0 0
        %8124 = vmatprep.subr.bf16.mxu0 0
        %8125 = vmatpush1.bf16.msra.mxu0 0
        %8126 = vmatprep.subr.bf16.mxu0 0
        %8127 = vmatpush1.bf16.msra.mxu0 0
        %8128 = vmatprep.subr.bf16.mxu0 0
        %8129 = vmatpush1.bf16.msra.mxu0 0
        %8130 = vmatprep.subr.bf16.mxu0 0
        %8131 = vmatpush1.bf16.msra.mxu0 0
        %8132 = vmatprep.subr.bf16.mxu0 0
        %8133 = vmatpush1.bf16.msra.mxu0 0
        %8134 = vmatprep.subr.bf16.mxu0 0
        %8135 = vmatpush1.bf16.msra.mxu0 0
        %8136 = vmatprep.subr.bf16.mxu0 0
        %8137 = vmatpush1.bf16.msra.mxu0 0
        %8138 = vmatprep.subr.bf16.mxu0 0
        %8139 = vmatpush1.bf16.msra.mxu0 0
        %8140 = vmatprep.subr.bf16.mxu0 0
        %8141 = vmatpush1.bf16.msra.mxu0 0
        %8142 = vmatprep.subr.bf16.mxu0 0
        %8143 = vmatpush1.bf16.msra.mxu0 0
        %8144 = vmatprep.subr.bf16.mxu0 0
        %8145 = vmatpush1.bf16.msra.mxu0 0
        %8146 = vmatprep.subr.bf16.mxu0 0
        %8147 = vmatpush1.bf16.msra.mxu0 0
        %8148 = vmatprep.subr.bf16.mxu0 0
        %8149 = vmatpush1.bf16.msra.mxu0 0
        %8150 = vmatprep.subr.bf16.mxu0 0
        %8151 = vmatpush1.bf16.msra.mxu0 0
        %8152 = vmatprep.mubr.bf16.mxu0 0
        %8153 = vmatmul.mubr.bf16.gmra.mrb[0].mxu0 %v8114
        %v8154 = vpop.f32.mrb[0].mxu0
        %v8155 = vadd.f32 0.0, %v8154
        %v8156 = vpop.f32.mrb[0].mxu0
        %v8157 = vadd.f32 0.0, %v8156
        %v8158 = vpop.f32.mrb[0].mxu0
        %v8159 = vpop.f32.mrb[0].mxu0
        %8160 = vdwg.mxu0
        %v8161 = vadd.f32 %v7833, %v8155
        %v8162 = vadd.f32 %v7834, %v8157
        %v8163 = vmax.f32 %v8161, 0.0
        %v8164 = vmax.f32 %v8162, 0.0
        %v8165 = vpack.c.bf16 %v8163, %v8163
        %v8166 = vpack.c.bf16 %v8164, %v8164
        %v8169 = vcombine.low %v8165, %v8166
        %v8171 = vunpack.c.l.s4 1983009808
        %v8172 = vunpack.c.0.s8 %v8171
        %v8173 = vlaneseq
        %v8174 = vshrl.u32 %v8173, 7
        %v8175 = vsub.s32 %v8172, %v8174
        %v8176 = vrot.slane %v8169, %v8175
        %8178 = vst [vmem:[%s363] sm:$0xf] %v8176
        %s8179 = sand.u32 %s214, 1
        %s8180 = scalar_lea.sflag [#allocation6], %s8179
        %s8181 = sand.u32 %s214, 1
        %s8182 = smul.addr %s8181, 4
        %s8183 = scalar_lea.vmem [#allocation9], %s8182
        // Predicated region
        $region61: #{tpu_custom_call.1} parent=51 // pred_check
          %p8184 = pneg %p224
        $region62: #{tpu_custom_call.1} parent=51 // pred_check_branch
          %8186 = sbr.rel (%p8184) target = $region64
        $region63: #{tpu_custom_call.1} parent=51 // pred_region
          %s8188 = ssub.s32 64, 64
          %8189 = vsyncadd %s8180, %s8188
          %s8190 = smul.addr %s28, 2
          %s8191 = smul.addr %s8190, 32
          %s8192 = scalar_lea.hbm %s8, %s8191
          %s8194 = sshll.u32 %s8183, 4
          %s8195 = int_to_ptr.vmem [resolvable:$true] %s8194
          %8197 = dma.vmem_to_hbm [thread:$0]  %s8195, 64, %s8192, %s8180
        $region64: #{tpu_custom_call.1} parent=51 // pred_fallthru
          _
      $region52: #{tpu_custom_call.1} parent=5 // pred_fallthru
        _
      %p8198 = scmp.le.s32.totalorder 2, %s23
      // Predicated region
      $region65: #{tpu_custom_call.1} parent=5 // pred_check
        %p8199 = pneg %p8198
      $region66: #{tpu_custom_call.1} parent=5 // pred_check_branch
        %8201 = sbr.rel (%p8199) target = $region68
      $region67: #{tpu_custom_call.1} parent=5 // pred_region
        %s8202 = ssub.s32 %s23, 2
        // Predicated region
        $region69: #{tpu_custom_call.1} parent=67 // pred_check
          %p8203 = pneg %p230
        $region70: #{tpu_custom_call.1} parent=67 // pred_check_branch
          %8205 = sbr.rel (%p8203) target = $region72
        $region71: #{tpu_custom_call.1} parent=67 // pred_region
          %s8206 = sand.u32 %s215, 1
          %s8207 = scalar_lea.sflag [#allocation6], %s8206
          %s8208 = sand.u32 %s215, 1
          %s8209 = smul.addr %s8208, 4
          %s8210 = scalar_lea.vmem [#allocation9], %s8209
          %8211 = dma.done %s8207, 64
        $region72: #{tpu_custom_call.1} parent=67 // pred_fallthru
          _
      $region68: #{tpu_custom_call.1} parent=5 // pred_fallthru
        _
    $region6: #{tpu_custom_call.1} parent=1 // loop_footer
      %s27 = sadd.s32 1, %s23
    $region7: #{tpu_custom_call.1} parent=1 // loop_footer_branch
      %22 = sbr.rel target = $region3
    $region8: #{tpu_custom_call.1} parent=1 // loop_exit
      _
    %8212 = vsyncpa [#allocation5], 1
    %s8213 = scalar_lea.sflag [#allocation5], 1
    %8214 = vsyncpa %s8213, 1
    %8215 = vsyncpa [#allocation8], 1
    %s8216 = scalar_lea.sflag [#allocation8], 1
    %8217 = vsyncpa %s8216, 1
    %8218 = vsyncpa [#allocation6], 1
    %s8219 = scalar_lea.sflag [#allocation6], 1
    %8220 = vsyncpa %s8219, 1

</llo_original>
